<compile_context>
chip_gen: v7x
topology: tpu7x:2x2x1
jax: 0.10.0
libtpu: 0.0.40
codegen_flags: <defaults>
</compile_context>

<pallas_src>
import functools
import math

import jax
import jax.numpy as jnp
import numpy as np
from jax.experimental import pallas as pl
from jax.experimental.pallas import tpu as pltpu


# --------------------------------------------------------------------------- Pallas kernel
def _conv_in_lrelu_kernel(x_ref, w_ref, b_ref, o_ref, *, apply_in, apply_act):
    """Fused 3x3 conv (as im2col matmul) + bias + InstanceNorm2d + LeakyReLU(0.1)."""
    x = x_ref[0]                                                    # (HW, 9*Cin)
    y = jnp.dot(x, w_ref[...], preferred_element_type=jnp.float32)  # MXU
    y = y + b_ref[...]                                              # (1, Cout) broadcast
    if apply_in:                                                    # InstanceNorm2d, eps=1e-5
        mu = jnp.mean(y, axis=0, keepdims=True)
        var = jnp.mean(jnp.square(y - mu), axis=0, keepdims=True)
        y = (y - mu) * jax.lax.rsqrt(var + 1e-5)
    if apply_act:                                                   # LeakyReLU(0.1)
        y = jnp.where(y >= 0, y, 0.1 * y)
    o_ref[0] = y


# --------------------------------------------------------------------------- conv wrapper
def pallas_conv3x3(x_nhwc, w_hwio, b, *, apply_in, apply_act):
    """3x3 conv (stride 1, pad 1) + optional InstanceNorm + optional LeakyReLU, fused."""
    B, H, W, Cin = x_nhwc.shape
    Cout = w_hwio.shape[-1]
    HW = H * W
    K = 9 * Cin

    xp = jnp.pad(x_nhwc, ((0, 0), (1, 1), (1, 1), (0, 0)))
    # im2col ordered (dy, dx, cin) to match w_hwio.reshape(9*Cin, Cout)
    patches = jnp.concatenate(
        [xp[:, dy:dy + H, dx:dx + W, :] for dy in range(3) for dx in range(3)], axis=-1
    ).reshape(B, HW, K)
    w2d = w_hwio.reshape(K, Cout)
    b2d = b.reshape(1, Cout)

    kern = functools.partial(_conv_in_lrelu_kernel,
                             apply_in=apply_in, apply_act=apply_act)
    out = pl.pallas_call(
        kern,
        grid=(B,),
        in_specs=[pl.BlockSpec((1, HW, K), lambda i: (i, 0, 0)),
                  pl.BlockSpec((K, Cout), lambda i: (0, 0)),
                  pl.BlockSpec((1, Cout), lambda i: (0, 0))],
        out_specs=pl.BlockSpec((1, HW, Cout), lambda i: (i, 0, 0)),
        out_shape=jax.ShapeDtypeStruct((B, HW, Cout), jnp.float32),
        compiler_params=pltpu.CompilerParams(dimension_semantics=("parallel",)),
    )(patches, w2d, b2d)
    return out.reshape(B, H, W, Cout)


# --------------------------------------------------------------------------- XLA glue ops
def _maxpool2x(x):                                  # MaxPool2d(kernel=2, stride=2)
    B, H, W, C = x.shape
    return jnp.max(x.reshape(B, H // 2, 2, W // 2, 2, C), axis=(2, 4))


def _upsample2x_bilinear(x):                        # F.interpolate(scale=2, 'bilinear', align_corners=False)
    B, H, W, C = x.shape

    def plan(n):
        src = np.maximum((np.arange(2 * n) + 0.5) / 2.0 - 0.5, 0.0)
        i0 = np.floor(src).astype(np.int32)
        frac = (src - i0).astype(np.float32)
        i1 = np.minimum(i0 + 1, n - 1)
        return i0, i1, frac

    i0, i1, f = plan(H)
    f = jnp.asarray(f)[None, :, None, None]
    x = x[:, i0, :, :] * (1.0 - f) + x[:, i1, :, :] * f
    j0, j1, g = plan(W)
    g = jnp.asarray(g)[None, None, :, None]
    x = x[:, :, j0, :] * (1.0 - g) + x[:, :, j1, :] * g
    return x


def _apply_final_act(x, final_act):
    if final_act == "sigmoid":
        return jax.nn.sigmoid(x)
    if final_act == "relu":
        return jnp.maximum(x, 0.0)
    if final_act == "tanh":
        return jnp.tanh(x)
    return x


# --------------------------------------------------------------------------- parameters
def init_params(key, in_ch, out_ch, num_lvs, base_ch):
    keys = iter(jax.random.split(key, 64))

    def conv(cin, cout):
        k1, k2 = jax.random.split(next(keys))
        bound = 1.0 / math.sqrt(cin * 9)
        w = jax.random.uniform(k1, (3, 3, cin, cout), jnp.float32, -bound, bound)  # HWIO
        b = jax.random.uniform(k2, (cout,), jnp.float32, -bound, bound)
        return {"w": w, "b": b}

    p = {"in_conv": conv(in_ch, base_ch), "down": [], "up_sample": [], "up_conv": []}
    for lv in range(num_lvs):
        ch = base_ch * 2 ** lv
        p["down"].append({"c1": conv(ch, ch * 2), "c2": conv(ch * 2, ch * 2)})
        p["up_sample"].append(conv(ch * 4, ch * 2))
        p["up_conv"].append({"c1": conv(ch * 4, ch * 2), "c2": conv(ch * 2, ch * 2)})
    bch = base_ch * 2 ** num_lvs
    p["bottleneck"] = {"c1": conv(bch, bch * 2), "c2": conv(bch * 2, bch * 2)}
    p["out1"] = conv(base_ch * 2, base_ch)
    p["out2"] = conv(base_ch, out_ch)
    return p


# --------------------------------------------------------------------------- forward (Pallas)
def _conv_block(x, p):
    x = pallas_conv3x3(x, p["c1"]["w"], p["c1"]["b"], apply_in=True, apply_act=True)
    x = pallas_conv3x3(x, p["c2"]["w"], p["c2"]["b"], apply_in=True, apply_act=True)
    return x


def unet_forward(params, x_nchw, num_lvs, final_act="noact"):
    # TODO(synk): conditional path (condition is not None / conditional_ch > 0) is not
    # exercised here; it is a wrapper-side spatial broadcast + channel concat before each
    # down_conv and would reuse the same fused conv kernel.
    x = jnp.transpose(x_nchw, (0, 2, 3, 1)).astype(jnp.float32)          # NCHW -> NHWC

    x = pallas_conv3x3(x, params["in_conv"]["w"], params["in_conv"]["b"],
                       apply_in=False, apply_act=False)

    encoded = []
    for lv in range(num_lvs):
        y = _conv_block(x, params["down"][lv])
        encoded.append(y)
        x = _maxpool2x(y)

    x = _conv_block(x, params["bottleneck"])

    for lv in reversed(range(num_lvs)):
        up = _upsample2x_bilinear(x)
        up = pallas_conv3x3(up, params["up_sample"][lv]["w"], params["up_sample"][lv]["b"],
                            apply_in=True, apply_act=True)
        x = jnp.concatenate([encoded[lv], up], axis=-1)                  # cat([enc, up], ch)
        x = _conv_block(x, params["up_conv"][lv])

    x = pallas_conv3x3(x, params["out1"]["w"], params["out1"]["b"],
                       apply_in=False, apply_act=True)                   # conv + LeakyReLU
    x = pallas_conv3x3(x, params["out2"]["w"], params["out2"]["b"],
                       apply_in=False, apply_act=False)                  # final conv
    x = _apply_final_act(x, final_act)
    return jnp.transpose(x, (0, 3, 1, 2))                                # NHWC -> NCHW


# --------------------------------------------------------------------------- reference (pure JAX)
def _ref_conv(x, w, b):
    y = jax.lax.conv_general_dilated(
        x, w, window_strides=(1, 1), padding=((1, 1), (1, 1)),
        dimension_numbers=("NHWC", "HWIO", "NHWC"),
        precision=jax.lax.Precision.HIGHEST)
    return y + b.reshape(1, 1, 1, -1)


def _ref_instnorm(x):
    mu = jnp.mean(x, axis=(1, 2), keepdims=True)
    var = jnp.mean(jnp.square(x - mu), axis=(1, 2), keepdims=True)
    return (x - mu) * jax.lax.rsqrt(var + 1e-5)


def _ref_lrelu(x):
    return jnp.where(x >= 0, x, 0.1 * x)


def _ref_block(x, p):
    x = _ref_lrelu(_ref_instnorm(_ref_conv(x, p["c1"]["w"], p["c1"]["b"])))
    x = _ref_lrelu(_ref_instnorm(_ref_conv(x, p["c2"]["w"], p["c2"]["b"])))
    return x


def _ref_pool(x):
    return jax.lax.reduce_window(x, -jnp.inf, jax.lax.max,
                                 (1, 2, 2, 1), (1, 2, 2, 1), "VALID")


def _up_mat(n):
    m = np.zeros((2 * n, n), np.float32)
    for i in range(2 * n):
        src = max((i + 0.5) / 2.0 - 0.5, 0.0)
        i0 = int(np.floor(src))
        frac = src - i0
        i1 = min(i0 + 1, n - 1)
        m[i, i0] += 1.0 - frac
        m[i, i1] += frac
    return jnp.asarray(m)


def _ref_up2x(x):
    B, H, W, C = x.shape
    x = jnp.einsum("hH,bHwc->bhwc", _up_mat(H), x, precision=jax.lax.Precision.HIGHEST)
    x = jnp.einsum("wW,bhWc->bhwc", _up_mat(W), x, precision=jax.lax.Precision.HIGHEST)
    return x


def unet_reference(params, x_nchw, num_lvs, final_act="noact"):
    x = jnp.transpose(x_nchw, (0, 2, 3, 1)).astype(jnp.float32)
    x = _ref_conv(x, params["in_conv"]["w"], params["in_conv"]["b"])
    encoded = []
    for lv in range(num_lvs):
        y = _ref_block(x, params["down"][lv])
        encoded.append(y)
        x = _ref_pool(y)
    x = _ref_block(x, params["bottleneck"])
    for lv in reversed(range(num_lvs)):
        up = _ref_up2x(x)
        up = _ref_lrelu(_ref_instnorm(
            _ref_conv(up, params["up_sample"][lv]["w"], params["up_sample"][lv]["b"])))
        x = jnp.concatenate([encoded[lv], up], axis=-1)
        x = _ref_block(x, params["up_conv"][lv])
    x = _ref_lrelu(_ref_conv(x, params["out1"]["w"], params["out1"]["b"]))
    x = _ref_conv(x, params["out2"]["w"], params["out2"]["b"])
    x = _apply_final_act(x, final_act)
    return jnp.transpose(x, (0, 3, 1, 2))


# --------------------------------------------------------------------------- main
if __name__ == "__main__":
    B, IN_CH, OUT_CH, H, W = 2, 4, 3, 16, 16
    NUM_LVS, BASE_CH = 2, 16

    root = jax.random.PRNGKey(0)
    kp, kx = jax.random.split(root)
    params = init_params(kp, IN_CH, OUT_CH, NUM_LVS, BASE_CH)
    x = jax.random.normal(kx, (B, IN_CH, H, W), jnp.float32)

    fwd = jax.jit(functools.partial(unet_forward, num_lvs=NUM_LVS, final_act="noact"))
    out = fwd(params, x)
    jax.block_until_ready(out)

    ref = jax.jit(functools.partial(unet_reference, num_lvs=NUM_LVS, final_act="noact"))(params, x)
    jax.block_until_ready(ref)

    np.testing.assert_allclose(np.asarray(out), np.asarray(ref), rtol=1e-3, atol=1e-3)
    assert out.shape == (B, OUT_CH, H, W)
    print("KERNEL_OK")
</pallas_src>

<mosaic_0001>
module attributes {stable_mosaic.version = 11 : i64} {
  func.func @_conv_in_lrelu_kernel(%arg0: i32, %arg1: memref<1x256x36xf32, #tpu.memory_space<vmem>>, %arg2: memref<36x16xf32, #tpu.memory_space<vmem>>, %arg3: memref<1x16xf32, #tpu.memory_space<vmem>>, %arg4: memref<1x256x16xf32, #tpu.memory_space<vmem>>) attributes {dimension_semantics = [#tpu.dimension_semantics<parallel>], iteration_bounds = array<i64: 2>, scalar_prefetch = 0 : i64, scratch_operands = 0 : i64, tpu.core_type = #tpu.core_type<tc>, window_params = [{transform_indices = @transform_0, window_bounds = array<i64: 1, 256, 36>}, {pipeline_mode = #tpu.pipeline_mode<synchronous>, transform_indices = @transform_1, window_bounds = array<i64: 36, 16>}, {pipeline_mode = #tpu.pipeline_mode<synchronous>, transform_indices = @transform_2, window_bounds = array<i64: 1, 16>}, {transform_indices = @transform_3, window_bounds = array<i64: 1, 256, 16>}]} {
    %c0 = arith.constant 0 : index
    %c0_0 = arith.constant 0 : index
    %c0_1 = arith.constant 0 : index
    %0 = vector.load %arg1[%c0, %c0_0, %c0_1] : memref<1x256x36xf32, #tpu.memory_space<vmem>>, vector<1x256x36xf32>
    %1 = vector.shape_cast %0 : vector<1x256x36xf32> to vector<256x36xf32>
    %c0_2 = arith.constant 0 : index
    %c0_3 = arith.constant 0 : index
    %2 = vector.load %arg2[%c0_2, %c0_3] : memref<36x16xf32, #tpu.memory_space<vmem>>, vector<36x16xf32>
    %cst = arith.constant dense<0.000000e+00> : vector<256x16xf32>
    %3 = tpu.matmul %1, %2, %cst {dimension_numbers = #tpu.dot_dimension_numbers<[1], [0], [0], [1], [0, 0, 1, 1], [], []>} : vector<256x36xf32>, vector<36x16xf32>, vector<256x16xf32> -> vector<256x16xf32>
    %c0_4 = arith.constant 0 : index
    %c0_5 = arith.constant 0 : index
    %4 = vector.load %arg3[%c0_4, %c0_5] : memref<1x16xf32, #tpu.memory_space<vmem>>, vector<1x16xf32>
    %5 = vector.broadcast %4 : vector<1x16xf32> to vector<256x16xf32>
    %6 = arith.addf %3, %5 : vector<256x16xf32>
    %c0_6 = arith.constant 0 : index
    %c0_7 = arith.constant 0 : index
    %c0_8 = arith.constant 0 : index
    %7 = vector.load %arg4[%c0_6, %c0_7, %c0_8] : memref<1x256x16xf32, #tpu.memory_space<vmem>>, vector<1x256x16xf32>
    %8 = vector.shape_cast %7 : vector<1x256x16xf32> to vector<256x16xf32>
    %9 = vector.shape_cast %6 : vector<256x16xf32> to vector<1x256x16xf32>
    tpu.vector_store %arg4[%c0_6, %c0_7, %c0_8], %9 {strides = array<i32>} : memref<1x256x16xf32, #tpu.memory_space<vmem>>, vector<1x256x16xf32>,
    return
  }
  func.func @transform_0(%arg0: i32) -> (i32, i32, i32) {
    %c0_i32 = arith.constant 0 : i32
    %c0_i32_0 = arith.constant 0 : i32
    %c0_i32_1 = arith.constant 0 : i32
    return %arg0, %c0_i32, %c0_i32_0 : i32, i32, i32
  }
  func.func @transform_1(%arg0: i32) -> (i32, i32) {
    %c0_i32 = arith.constant 0 : i32
    %c0_i32_0 = arith.constant 0 : i32
    %c0_i32_1 = arith.constant 0 : i32
    return %c0_i32, %c0_i32_0 : i32, i32
  }
  func.func @transform_2(%arg0: i32) -> (i32, i32) {
    %c0_i32 = arith.constant 0 : i32
    %c0_i32_0 = arith.constant 0 : i32
    %c0_i32_1 = arith.constant 0 : i32
    return %c0_i32, %c0_i32_0 : i32, i32
  }
  func.func @transform_3(%arg0: i32) -> (i32, i32, i32) {
    %c0_i32 = arith.constant 0 : i32
    %c0_i32_0 = arith.constant 0 : i32
    %c0_i32_1 = arith.constant 0 : i32
    return %arg0, %c0_i32, %c0_i32_0 : i32, i32, i32
  }
}

module attributes {stable_mosaic.version = 11 : i64} {
  func.func @_conv_in_lrelu_kernel(%arg0: i32, %arg1: memref<1x256x144xf32, #tpu.memory_space<vmem>>, %arg2: memref<144x32xf32, #tpu.memory_space<vmem>>, %arg3: memref<1x32xf32, #tpu.memory_space<vmem>>, %arg4: memref<1x256x32xf32, #tpu.memory_space<vmem>>) attributes {dimension_semantics = [#tpu.dimension_semantics<parallel>], iteration_bounds = array<i64: 2>, scalar_prefetch = 0 : i64, scratch_operands = 0 : i64, tpu.core_type = #tpu.core_type<tc>, window_params = [{transform_indices = @transform_0, window_bounds = array<i64: 1, 256, 144>}, {pipeline_mode = #tpu.pipeline_mode<synchronous>, transform_indices = @transform_1, window_bounds = array<i64: 144, 32>}, {pipeline_mode = #tpu.pipeline_mode<synchronous>, transform_indices = @transform_2, window_bounds = array<i64: 1, 32>}, {transform_indices = @transform_3, window_bounds = array<i64: 1, 256, 32>}]} {
    %c0 = arith.constant 0 : index
    %c0_0 = arith.constant 0 : index
    %c0_1 = arith.constant 0 : index
    %0 = vector.load %arg1[%c0, %c0_0, %c0_1] : memref<1x256x144xf32, #tpu.memory_space<vmem>>, vector<1x256x144xf32>
    %1 = vector.shape_cast %0 : vector<1x256x144xf32> to vector<256x144xf32>
    %c0_2 = arith.constant 0 : index
    %c0_3 = arith.constant 0 : index
    %2 = vector.load %arg2[%c0_2, %c0_3] : memref<144x32xf32, #tpu.memory_space<vmem>>, vector<144x32xf32>
    %cst = arith.constant dense<0.000000e+00> : vector<256x32xf32>
    %3 = tpu.matmul %1, %2, %cst {dimension_numbers = #tpu.dot_dimension_numbers<[1], [0], [0], [1], [0, 0, 1, 1], [], []>} : vector<256x144xf32>, vector<144x32xf32>, vector<256x32xf32> -> vector<256x32xf32>
    %c0_4 = arith.constant 0 : index
    %c0_5 = arith.constant 0 : index
    %4 = vector.load %arg3[%c0_4, %c0_5] : memref<1x32xf32, #tpu.memory_space<vmem>>, vector<1x32xf32>
    %5 = vector.broadcast %4 : vector<1x32xf32> to vector<256x32xf32>
    %6 = arith.addf %3, %5 : vector<256x32xf32>
    %cst_6 = arith.constant dense<0.000000e+00> : vector<32xf32>
    %7 = vector.multi_reduction <add>, %6, %cst_6 [0] : vector<256x32xf32> to vector<32xf32>
    %8 = vector.shape_cast %7 : vector<32xf32> to vector<1x32xf32>
    %cst_7 = arith.constant 2.560000e+02 : f32
    %9 = vector.broadcast %cst_7 : f32 to vector<1x32xf32>
    %10 = arith.divf %8, %9 : vector<1x32xf32>
    %11 = vector.broadcast %10 : vector<1x32xf32> to vector<256x32xf32>
    %12 = arith.subf %6, %11 : vector<256x32xf32>
    %13 = arith.mulf %12, %12 : vector<256x32xf32>
    %cst_8 = arith.constant dense<0.000000e+00> : vector<32xf32>
    %14 = vector.multi_reduction <add>, %13, %cst_8 [0] : vector<256x32xf32> to vector<32xf32>
    %15 = vector.shape_cast %14 : vector<32xf32> to vector<1x32xf32>
    %cst_9 = arith.constant 2.560000e+02 : f32
    %16 = vector.broadcast %cst_9 : f32 to vector<1x32xf32>
    %17 = arith.divf %15, %16 : vector<1x32xf32>
    %18 = vector.broadcast %10 : vector<1x32xf32> to vector<256x32xf32>
    %19 = arith.subf %6, %18 : vector<256x32xf32>
    %cst_10 = arith.constant 9.99999974E-6 : f32
    %20 = vector.broadcast %cst_10 : f32 to vector<1x32xf32>
    %21 = arith.addf %17, %20 : vector<1x32xf32>
    %22 = math.rsqrt %21 : vector<1x32xf32>
    %23 = vector.broadcast %22 : vector<1x32xf32> to vector<256x32xf32>
    %24 = arith.mulf %19, %23 : vector<256x32xf32>
    %cst_11 = arith.constant 0.000000e+00 : f32
    %25 = vector.broadcast %cst_11 : f32 to vector<256x32xf32>
    %26 = arith.cmpf oge, %24, %25 : vector<256x32xf32>
    %cst_12 = arith.constant 1.000000e-01 : f32
    %27 = vector.broadcast %cst_12 : f32 to vector<256x32xf32>
    %28 = arith.mulf %27, %24 : vector<256x32xf32>
    %29 = arith.select %26, %24, %28 : vector<256x32xi1>, vector<256x32xf32>
    %c0_13 = arith.constant 0 : index
    %c0_14 = arith.constant 0 : index
    %c0_15 = arith.constant 0 : index
    %30 = vector.load %arg4[%c0_13, %c0_14, %c0_15] : memref<1x256x32xf32, #tpu.memory_space<vmem>>, vector<1x256x32xf32>
    %31 = vector.shape_cast %30 : vector<1x256x32xf32> to vector<256x32xf32>
    %32 = vector.shape_cast %29 : vector<256x32xf32> to vector<1x256x32xf32>
    tpu.vector_store %arg4[%c0_13, %c0_14, %c0_15], %32 {strides = array<i32>} : memref<1x256x32xf32, #tpu.memory_space<vmem>>, vector<1x256x32xf32>,
    return
  }
  func.func @transform_0(%arg0: i32) -> (i32, i32, i32) {
    %c0_i32 = arith.constant 0 : i32
    %c0_i32_0 = arith.constant 0 : i32
    %c0_i32_1 = arith.constant 0 : i32
    return %arg0, %c0_i32, %c0_i32_0 : i32, i32, i32
  }
  func.func @transform_1(%arg0: i32) -> (i32, i32) {
    %c0_i32 = arith.constant 0 : i32
    %c0_i32_0 = arith.constant 0 : i32
    %c0_i32_1 = arith.constant 0 : i32
    return %c0_i32, %c0_i32_0 : i32, i32
  }
  func.func @transform_2(%arg0: i32) -> (i32, i32) {
    %c0_i32 = arith.constant 0 : i32
    %c0_i32_0 = arith.constant 0 : i32
    %c0_i32_1 = arith.constant 0 : i32
    return %c0_i32, %c0_i32_0 : i32, i32
  }
  func.func @transform_3(%arg0: i32) -> (i32, i32, i32) {
    %c0_i32 = arith.constant 0 : i32
    %c0_i32_0 = arith.constant 0 : i32
    %c0_i32_1 = arith.constant 0 : i32
    return %arg0, %c0_i32, %c0_i32_0 : i32, i32, i32
  }
}

module attributes {stable_mosaic.version = 11 : i64} {
  func.func @_conv_in_lrelu_kernel(%arg0: i32, %arg1: memref<1x256x288xf32, #tpu.memory_space<vmem>>, %arg2: memref<288x32xf32, #tpu.memory_space<vmem>>, %arg3: memref<1x32xf32, #tpu.memory_space<vmem>>, %arg4: memref<1x256x32xf32, #tpu.memory_space<vmem>>) attributes {dimension_semantics = [#tpu.dimension_semantics<parallel>], iteration_bounds = array<i64: 2>, scalar_prefetch = 0 : i64, scratch_operands = 0 : i64, tpu.core_type = #tpu.core_type<tc>, window_params = [{transform_indices = @transform_0, window_bounds = array<i64: 1, 256, 288>}, {pipeline_mode = #tpu.pipeline_mode<synchronous>, transform_indices = @transform_1, window_bounds = array<i64: 288, 32>}, {pipeline_mode = #tpu.pipeline_mode<synchronous>, transform_indices = @transform_2, window_bounds = array<i64: 1, 32>}, {transform_indices = @transform_3, window_bounds = array<i64: 1, 256, 32>}]} {
    %c0 = arith.constant 0 : index
    %c0_0 = arith.constant 0 : index
    %c0_1 = arith.constant 0 : index
    %0 = vector.load %arg1[%c0, %c0_0, %c0_1] : memref<1x256x288xf32, #tpu.memory_space<vmem>>, vector<1x256x288xf32>
    %1 = vector.shape_cast %0 : vector<1x256x288xf32> to vector<256x288xf32>
    %c0_2 = arith.constant 0 : index
    %c0_3 = arith.constant 0 : index
    %2 = vector.load %arg2[%c0_2, %c0_3] : memref<288x32xf32, #tpu.memory_space<vmem>>, vector<288x32xf32>
    %cst = arith.constant dense<0.000000e+00> : vector<256x32xf32>
    %3 = tpu.matmul %1, %2, %cst {dimension_numbers = #tpu.dot_dimension_numbers<[1], [0], [0], [1], [0, 0, 1, 1], [], []>} : vector<256x288xf32>, vector<288x32xf32>, vector<256x32xf32> -> vector<256x32xf32>
    %c0_4 = arith.constant 0 : index
    %c0_5 = arith.constant 0 : index
    %4 = vector.load %arg3[%c0_4, %c0_5] : memref<1x32xf32, #tpu.memory_space<vmem>>, vector<1x32xf32>
    %5 = vector.broadcast %4 : vector<1x32xf32> to vector<256x32xf32>
    %6 = arith.addf %3, %5 : vector<256x32xf32>
    %cst_6 = arith.constant dense<0.000000e+00> : vector<32xf32>
    %7 = vector.multi_reduction <add>, %6, %cst_6 [0] : vector<256x32xf32> to vector<32xf32>
    %8 = vector.shape_cast %7 : vector<32xf32> to vector<1x32xf32>
    %cst_7 = arith.constant 2.560000e+02 : f32
    %9 = vector.broadcast %cst_7 : f32 to vector<1x32xf32>
    %10 = arith.divf %8, %9 : vector<1x32xf32>
    %11 = vector.broadcast %10 : vector<1x32xf32> to vector<256x32xf32>
    %12 = arith.subf %6, %11 : vector<256x32xf32>
    %13 = arith.mulf %12, %12 : vector<256x32xf32>
    %cst_8 = arith.constant dense<0.000000e+00> : vector<32xf32>
    %14 = vector.multi_reduction <add>, %13, %cst_8 [0] : vector<256x32xf32> to vector<32xf32>
    %15 = vector.shape_cast %14 : vector<32xf32> to vector<1x32xf32>
    %cst_9 = arith.constant 2.560000e+02 : f32
    %16 = vector.broadcast %cst_9 : f32 to vector<1x32xf32>
    %17 = arith.divf %15, %16 : vector<1x32xf32>
    %18 = vector.broadcast %10 : vector<1x32xf32> to vector<256x32xf32>
    %19 = arith.subf %6, %18 : vector<256x32xf32>
    %cst_10 = arith.constant 9.99999974E-6 : f32
    %20 = vector.broadcast %cst_10 : f32 to vector<1x32xf32>
    %21 = arith.addf %17, %20 : vector<1x32xf32>
    %22 = math.rsqrt %21 : vector<1x32xf32>
    %23 = vector.broadcast %22 : vector<1x32xf32> to vector<256x32xf32>
    %24 = arith.mulf %19, %23 : vector<256x32xf32>
    %cst_11 = arith.constant 0.000000e+00 : f32
    %25 = vector.broadcast %cst_11 : f32 to vector<256x32xf32>
    %26 = arith.cmpf oge, %24, %25 : vector<256x32xf32>
    %cst_12 = arith.constant 1.000000e-01 : f32
    %27 = vector.broadcast %cst_12 : f32 to vector<256x32xf32>
    %28 = arith.mulf %27, %24 : vector<256x32xf32>
    %29 = arith.select %26, %24, %28 : vector<256x32xi1>, vector<256x32xf32>
    %c0_13 = arith.constant 0 : index
    %c0_14 = arith.constant 0 : index
    %c0_15 = arith.constant 0 : index
    %30 = vector.load %arg4[%c0_13, %c0_14, %c0_15] : memref<1x256x32xf32, #tpu.memory_space<vmem>>, vector<1x256x32xf32>
    %31 = vector.shape_cast %30 : vector<1x256x32xf32> to vector<256x32xf32>
    %32 = vector.shape_cast %29 : vector<256x32xf32> to vector<1x256x32xf32>
    tpu.vector_store %arg4[%c0_13, %c0_14, %c0_15], %32 {strides = array<i32>} : memref<1x256x32xf32, #tpu.memory_space<vmem>>, vector<1x256x32xf32>,
    return
  }
  func.func @transform_0(%arg0: i32) -> (i32, i32, i32) {
    %c0_i32 = arith.constant 0 : i32
    %c0_i32_0 = arith.constant 0 : i32
    %c0_i32_1 = arith.constant 0 : i32
    return %arg0, %c0_i32, %c0_i32_0 : i32, i32, i32
  }
  func.func @transform_1(%arg0: i32) -> (i32, i32) {
    %c0_i32 = arith.constant 0 : i32
    %c0_i32_0 = arith.constant 0 : i32
    %c0_i32_1 = arith.constant 0 : i32
    return %c0_i32, %c0_i32_0 : i32, i32
  }
  func.func @transform_2(%arg0: i32) -> (i32, i32) {
    %c0_i32 = arith.constant 0 : i32
    %c0_i32_0 = arith.constant 0 : i32
    %c0_i32_1 = arith.constant 0 : i32
    return %c0_i32, %c0_i32_0 : i32, i32
  }
  func.func @transform_3(%arg0: i32) -> (i32, i32, i32) {
    %c0_i32 = arith.constant 0 : i32
    %c0_i32_0 = arith.constant 0 : i32
    %c0_i32_1 = arith.constant 0 : i32
    return %arg0, %c0_i32, %c0_i32_0 : i32, i32, i32
  }
}

module attributes {stable_mosaic.version = 11 : i64} {
  func.func @_conv_in_lrelu_kernel(%arg0: i32, %arg1: memref<1x64x288xf32, #tpu.memory_space<vmem>>, %arg2: memref<288x64xf32, #tpu.memory_space<vmem>>, %arg3: memref<1x64xf32, #tpu.memory_space<vmem>>, %arg4: memref<1x64x64xf32, #tpu.memory_space<vmem>>) attributes {dimension_semantics = [#tpu.dimension_semantics<parallel>], iteration_bounds = array<i64: 2>, scalar_prefetch = 0 : i64, scratch_operands = 0 : i64, tpu.core_type = #tpu.core_type<tc>, window_params = [{transform_indices = @transform_0, window_bounds = array<i64: 1, 64, 288>}, {pipeline_mode = #tpu.pipeline_mode<synchronous>, transform_indices = @transform_1, window_bounds = array<i64: 288, 64>}, {pipeline_mode = #tpu.pipeline_mode<synchronous>, transform_indices = @transform_2, window_bounds = array<i64: 1, 64>}, {transform_indices = @transform_3, window_bounds = array<i64: 1, 64, 64>}]} {
    %c0 = arith.constant 0 : index
    %c0_0 = arith.constant 0 : index
    %c0_1 = arith.constant 0 : index
    %0 = vector.load %arg1[%c0, %c0_0, %c0_1] : memref<1x64x288xf32, #tpu.memory_space<vmem>>, vector<1x64x288xf32>
    %1 = vector.shape_cast %0 : vector<1x64x288xf32> to vector<64x288xf32>
    %c0_2 = arith.constant 0 : index
    %c0_3 = arith.constant 0 : index
    %2 = vector.load %arg2[%c0_2, %c0_3] : memref<288x64xf32, #tpu.memory_space<vmem>>, vector<288x64xf32>
    %cst = arith.constant dense<0.000000e+00> : vector<64x64xf32>
    %3 = tpu.matmul %1, %2, %cst {dimension_numbers = #tpu.dot_dimension_numbers<[1], [0], [0], [1], [0, 0, 1, 1], [], []>} : vector<64x288xf32>, vector<288x64xf32>, vector<64x64xf32> -> vector<64x64xf32>
    %c0_4 = arith.constant 0 : index
    %c0_5 = arith.constant 0 : index
    %4 = vector.load %arg3[%c0_4, %c0_5] : memref<1x64xf32, #tpu.memory_space<vmem>>, vector<1x64xf32>
    %5 = vector.broadcast %4 : vector<1x64xf32> to vector<64x64xf32>
    %6 = arith.addf %3, %5 : vector<64x64xf32>
    %cst_6 = arith.constant dense<0.000000e+00> : vector<64xf32>
    %7 = vector.multi_reduction <add>, %6, %cst_6 [0] : vector<64x64xf32> to vector<64xf32>
    %8 = vector.shape_cast %7 : vector<64xf32> to vector<1x64xf32>
    %cst_7 = arith.constant 6.400000e+01 : f32
    %9 = vector.broadcast %cst_7 : f32 to vector<1x64xf32>
    %10 = arith.divf %8, %9 : vector<1x64xf32>
    %11 = vector.broadcast %10 : vector<1x64xf32> to vector<64x64xf32>
    %12 = arith.subf %6, %11 : vector<64x64xf32>
    %13 = arith.mulf %12, %12 : vector<64x64xf32>
    %cst_8 = arith.constant dense<0.000000e+00> : vector<64xf32>
    %14 = vector.multi_reduction <add>, %13, %cst_8 [0] : vector<64x64xf32> to vector<64xf32>
    %15 = vector.shape_cast %14 : vector<64xf32> to vector<1x64xf32>
    %cst_9 = arith.constant 6.400000e+01 : f32
    %16 = vector.broadcast %cst_9 : f32 to vector<1x64xf32>
    %17 = arith.divf %15, %16 : vector<1x64xf32>
    %18 = vector.broadcast %10 : vector<1x64xf32> to vector<64x64xf32>
    %19 = arith.subf %6, %18 : vector<64x64xf32>
    %cst_10 = arith.constant 9.99999974E-6 : f32
    %20 = vector.broadcast %cst_10 : f32 to vector<1x64xf32>
    %21 = arith.addf %17, %20 : vector<1x64xf32>
    %22 = math.rsqrt %21 : vector<1x64xf32>
    %23 = vector.broadcast %22 : vector<1x64xf32> to vector<64x64xf32>
    %24 = arith.mulf %19, %23 : vector<64x64xf32>
    %cst_11 = arith.constant 0.000000e+00 : f32
    %25 = vector.broadcast %cst_11 : f32 to vector<64x64xf32>
    %26 = arith.cmpf oge, %24, %25 : vector<64x64xf32>
    %cst_12 = arith.constant 1.000000e-01 : f32
    %27 = vector.broadcast %cst_12 : f32 to vector<64x64xf32>
    %28 = arith.mulf %27, %24 : vector<64x64xf32>
    %29 = arith.select %26, %24, %28 : vector<64x64xi1>, vector<64x64xf32>
    %c0_13 = arith.constant 0 : index
    %c0_14 = arith.constant 0 : index
    %c0_15 = arith.constant 0 : index
    %30 = vector.load %arg4[%c0_13, %c0_14, %c0_15] : memref<1x64x64xf32, #tpu.memory_space<vmem>>, vector<1x64x64xf32>
    %31 = vector.shape_cast %30 : vector<1x64x64xf32> to vector<64x64xf32>
    %32 = vector.shape_cast %29 : vector<64x64xf32> to vector<1x64x64xf32>
    tpu.vector_store %arg4[%c0_13, %c0_14, %c0_15], %32 {strides = array<i32>} : memref<1x64x64xf32, #tpu.memory_space<vmem>>, vector<1x64x64xf32>,
    return
  }
  func.func @transform_0(%arg0: i32) -> (i32, i32, i32) {
    %c0_i32 = arith.constant 0 : i32
    %c0_i32_0 = arith.constant 0 : i32
    %c0_i32_1 = arith.constant 0 : i32
    return %arg0, %c0_i32, %c0_i32_0 : i32, i32, i32
  }
  func.func @transform_1(%arg0: i32) -> (i32, i32) {
    %c0_i32 = arith.constant 0 : i32
    %c0_i32_0 = arith.constant 0 : i32
    %c0_i32_1 = arith.constant 0 : i32
    return %c0_i32, %c0_i32_0 : i32, i32
  }
  func.func @transform_2(%arg0: i32) -> (i32, i32) {
    %c0_i32 = arith.constant 0 : i32
    %c0_i32_0 = arith.constant 0 : i32
    %c0_i32_1 = arith.constant 0 : i32
    return %c0_i32, %c0_i32_0 : i32, i32
  }
  func.func @transform_3(%arg0: i32) -> (i32, i32, i32) {
    %c0_i32 = arith.constant 0 : i32
    %c0_i32_0 = arith.constant 0 : i32
    %c0_i32_1 = arith.constant 0 : i32
    return %arg0, %c0_i32, %c0_i32_0 : i32, i32, i32
  }
}

module attributes {stable_mosaic.version = 11 : i64} {
  func.func @_conv_in_lrelu_kernel(%arg0: i32, %arg1: memref<1x64x576xf32, #tpu.memory_space<vmem>>, %arg2: memref<576x64xf32, #tpu.memory_space<vmem>>, %arg3: memref<1x64xf32, #tpu.memory_space<vmem>>, %arg4: memref<1x64x64xf32, #tpu.memory_space<vmem>>) attributes {dimension_semantics = [#tpu.dimension_semantics<parallel>], iteration_bounds = array<i64: 2>, scalar_prefetch = 0 : i64, scratch_operands = 0 : i64, tpu.core_type = #tpu.core_type<tc>, window_params = [{transform_indices = @transform_0, window_bounds = array<i64: 1, 64, 576>}, {pipeline_mode = #tpu.pipeline_mode<synchronous>, transform_indices = @transform_1, window_bounds = array<i64: 576, 64>}, {pipeline_mode = #tpu.pipeline_mode<synchronous>, transform_indices = @transform_2, window_bounds = array<i64: 1, 64>}, {transform_indices = @transform_3, window_bounds = array<i64: 1, 64, 64>}]} {
    %c0 = arith.constant 0 : index
    %c0_0 = arith.constant 0 : index
    %c0_1 = arith.constant 0 : index
    %0 = vector.load %arg1[%c0, %c0_0, %c0_1] : memref<1x64x576xf32, #tpu.memory_space<vmem>>, vector<1x64x576xf32>
    %1 = vector.shape_cast %0 : vector<1x64x576xf32> to vector<64x576xf32>
    %c0_2 = arith.constant 0 : index
    %c0_3 = arith.constant 0 : index
    %2 = vector.load %arg2[%c0_2, %c0_3] : memref<576x64xf32, #tpu.memory_space<vmem>>, vector<576x64xf32>
    %cst = arith.constant dense<0.000000e+00> : vector<64x64xf32>
    %3 = tpu.matmul %1, %2, %cst {dimension_numbers = #tpu.dot_dimension_numbers<[1], [0], [0], [1], [0, 0, 1, 1], [], []>} : vector<64x576xf32>, vector<576x64xf32>, vector<64x64xf32> -> vector<64x64xf32>
    %c0_4 = arith.constant 0 : index
    %c0_5 = arith.constant 0 : index
    %4 = vector.load %arg3[%c0_4, %c0_5] : memref<1x64xf32, #tpu.memory_space<vmem>>, vector<1x64xf32>
    %5 = vector.broadcast %4 : vector<1x64xf32> to vector<64x64xf32>
    %6 = arith.addf %3, %5 : vector<64x64xf32>
    %cst_6 = arith.constant dense<0.000000e+00> : vector<64xf32>
    %7 = vector.multi_reduction <add>, %6, %cst_6 [0] : vector<64x64xf32> to vector<64xf32>
    %8 = vector.shape_cast %7 : vector<64xf32> to vector<1x64xf32>
    %cst_7 = arith.constant 6.400000e+01 : f32
    %9 = vector.broadcast %cst_7 : f32 to vector<1x64xf32>
    %10 = arith.divf %8, %9 : vector<1x64xf32>
    %11 = vector.broadcast %10 : vector<1x64xf32> to vector<64x64xf32>
    %12 = arith.subf %6, %11 : vector<64x64xf32>
    %13 = arith.mulf %12, %12 : vector<64x64xf32>
    %cst_8 = arith.constant dense<0.000000e+00> : vector<64xf32>
    %14 = vector.multi_reduction <add>, %13, %cst_8 [0] : vector<64x64xf32> to vector<64xf32>
    %15 = vector.shape_cast %14 : vector<64xf32> to vector<1x64xf32>
    %cst_9 = arith.constant 6.400000e+01 : f32
    %16 = vector.broadcast %cst_9 : f32 to vector<1x64xf32>
    %17 = arith.divf %15, %16 : vector<1x64xf32>
    %18 = vector.broadcast %10 : vector<1x64xf32> to vector<64x64xf32>
    %19 = arith.subf %6, %18 : vector<64x64xf32>
    %cst_10 = arith.constant 9.99999974E-6 : f32
    %20 = vector.broadcast %cst_10 : f32 to vector<1x64xf32>
    %21 = arith.addf %17, %20 : vector<1x64xf32>
    %22 = math.rsqrt %21 : vector<1x64xf32>
    %23 = vector.broadcast %22 : vector<1x64xf32> to vector<64x64xf32>
    %24 = arith.mulf %19, %23 : vector<64x64xf32>
    %cst_11 = arith.constant 0.000000e+00 : f32
    %25 = vector.broadcast %cst_11 : f32 to vector<64x64xf32>
    %26 = arith.cmpf oge, %24, %25 : vector<64x64xf32>
    %cst_12 = arith.constant 1.000000e-01 : f32
    %27 = vector.broadcast %cst_12 : f32 to vector<64x64xf32>
    %28 = arith.mulf %27, %24 : vector<64x64xf32>
    %29 = arith.select %26, %24, %28 : vector<64x64xi1>, vector<64x64xf32>
    %c0_13 = arith.constant 0 : index
    %c0_14 = arith.constant 0 : index
    %c0_15 = arith.constant 0 : index
    %30 = vector.load %arg4[%c0_13, %c0_14, %c0_15] : memref<1x64x64xf32, #tpu.memory_space<vmem>>, vector<1x64x64xf32>
    %31 = vector.shape_cast %30 : vector<1x64x64xf32> to vector<64x64xf32>
    %32 = vector.shape_cast %29 : vector<64x64xf32> to vector<1x64x64xf32>
    tpu.vector_store %arg4[%c0_13, %c0_14, %c0_15], %32 {strides = array<i32>} : memref<1x64x64xf32, #tpu.memory_space<vmem>>, vector<1x64x64xf32>,
    return
  }
  func.func @transform_0(%arg0: i32) -> (i32, i32, i32) {
    %c0_i32 = arith.constant 0 : i32
    %c0_i32_0 = arith.constant 0 : i32
    %c0_i32_1 = arith.constant 0 : i32
    return %arg0, %c0_i32, %c0_i32_0 : i32, i32, i32
  }
  func.func @transform_1(%arg0: i32) -> (i32, i32) {
    %c0_i32 = arith.constant 0 : i32
    %c0_i32_0 = arith.constant 0 : i32
    %c0_i32_1 = arith.constant 0 : i32
    return %c0_i32, %c0_i32_0 : i32, i32
  }
  func.func @transform_2(%arg0: i32) -> (i32, i32) {
    %c0_i32 = arith.constant 0 : i32
    %c0_i32_0 = arith.constant 0 : i32
    %c0_i32_1 = arith.constant 0 : i32
    return %c0_i32, %c0_i32_0 : i32, i32
  }
  func.func @transform_3(%arg0: i32) -> (i32, i32, i32) {
    %c0_i32 = arith.constant 0 : i32
    %c0_i32_0 = arith.constant 0 : i32
    %c0_i32_1 = arith.constant 0 : i32
    return %arg0, %c0_i32, %c0_i32_0 : i32, i32, i32
  }
}

module attributes {stable_mosaic.version = 11 : i64} {
  func.func @_conv_in_lrelu_kernel(%arg0: i32, %arg1: memref<1x16x576xf32, #tpu.memory_space<vmem>>, %arg2: memref<576x128xf32, #tpu.memory_space<vmem>>, %arg3: memref<1x128xf32, #tpu.memory_space<vmem>>, %arg4: memref<1x16x128xf32, #tpu.memory_space<vmem>>) attributes {dimension_semantics = [#tpu.dimension_semantics<parallel>], iteration_bounds = array<i64: 2>, scalar_prefetch = 0 : i64, scratch_operands = 0 : i64, tpu.core_type = #tpu.core_type<tc>, window_params = [{transform_indices = @transform_0, window_bounds = array<i64: 1, 16, 576>}, {pipeline_mode = #tpu.pipeline_mode<synchronous>, transform_indices = @transform_1, window_bounds = array<i64: 576, 128>}, {pipeline_mode = #tpu.pipeline_mode<synchronous>, transform_indices = @transform_2, window_bounds = array<i64: 1, 128>}, {transform_indices = @transform_3, window_bounds = array<i64: 1, 16, 128>}]} {
    %c0 = arith.constant 0 : index
    %c0_0 = arith.constant 0 : index
    %c0_1 = arith.constant 0 : index
    %0 = vector.load %arg1[%c0, %c0_0, %c0_1] : memref<1x16x576xf32, #tpu.memory_space<vmem>>, vector<1x16x576xf32>
    %1 = vector.shape_cast %0 : vector<1x16x576xf32> to vector<16x576xf32>
    %c0_2 = arith.constant 0 : index
    %c0_3 = arith.constant 0 : index
    %2 = vector.load %arg2[%c0_2, %c0_3] : memref<576x128xf32, #tpu.memory_space<vmem>>, vector<576x128xf32>
    %cst = arith.constant dense<0.000000e+00> : vector<16x128xf32>
    %3 = tpu.matmul %1, %2, %cst {dimension_numbers = #tpu.dot_dimension_numbers<[1], [0], [0], [1], [0, 0, 1, 1], [], []>} : vector<16x576xf32>, vector<576x128xf32>, vector<16x128xf32> -> vector<16x128xf32>
    %c0_4 = arith.constant 0 : index
    %c0_5 = arith.constant 0 : index
    %4 = vector.load %arg3[%c0_4, %c0_5] : memref<1x128xf32, #tpu.memory_space<vmem>>, vector<1x128xf32>
    %5 = vector.broadcast %4 : vector<1x128xf32> to vector<16x128xf32>
    %6 = arith.addf %3, %5 : vector<16x128xf32>
    %cst_6 = arith.constant dense<0.000000e+00> : vector<128xf32>
    %7 = vector.multi_reduction <add>, %6, %cst_6 [0] : vector<16x128xf32> to vector<128xf32>
    %8 = vector.shape_cast %7 : vector<128xf32> to vector<1x128xf32>
    %cst_7 = arith.constant 1.600000e+01 : f32
    %9 = vector.broadcast %cst_7 : f32 to vector<1x128xf32>
    %10 = arith.divf %8, %9 : vector<1x128xf32>
    %11 = vector.broadcast %10 : vector<1x128xf32> to vector<16x128xf32>
    %12 = arith.subf %6, %11 : vector<16x128xf32>
    %13 = arith.mulf %12, %12 : vector<16x128xf32>
    %cst_8 = arith.constant dense<0.000000e+00> : vector<128xf32>
    %14 = vector.multi_reduction <add>, %13, %cst_8 [0] : vector<16x128xf32> to vector<128xf32>
    %15 = vector.shape_cast %14 : vector<128xf32> to vector<1x128xf32>
    %cst_9 = arith.constant 1.600000e+01 : f32
    %16 = vector.broadcast %cst_9 : f32 to vector<1x128xf32>
    %17 = arith.divf %15, %16 : vector<1x128xf32>
    %18 = vector.broadcast %10 : vector<1x128xf32> to vector<16x128xf32>
    %19 = arith.subf %6, %18 : vector<16x128xf32>
    %cst_10 = arith.constant 9.99999974E-6 : f32
    %20 = vector.broadcast %cst_10 : f32 to vector<1x128xf32>
    %21 = arith.addf %17, %20 : vector<1x128xf32>
    %22 = math.rsqrt %21 : vector<1x128xf32>
    %23 = vector.broadcast %22 : vector<1x128xf32> to vector<16x128xf32>
    %24 = arith.mulf %19, %23 : vector<16x128xf32>
    %cst_11 = arith.constant 0.000000e+00 : f32
    %25 = vector.broadcast %cst_11 : f32 to vector<16x128xf32>
    %26 = arith.cmpf oge, %24, %25 : vector<16x128xf32>
    %cst_12 = arith.constant 1.000000e-01 : f32
    %27 = vector.broadcast %cst_12 : f32 to vector<16x128xf32>
    %28 = arith.mulf %27, %24 : vector<16x128xf32>
    %29 = arith.select %26, %24, %28 : vector<16x128xi1>, vector<16x128xf32>
    %c0_13 = arith.constant 0 : index
    %c0_14 = arith.constant 0 : index
    %c0_15 = arith.constant 0 : index
    %30 = vector.load %arg4[%c0_13, %c0_14, %c0_15] : memref<1x16x128xf32, #tpu.memory_space<vmem>>, vector<1x16x128xf32>
    %31 = vector.shape_cast %30 : vector<1x16x128xf32> to vector<16x128xf32>
    %32 = vector.shape_cast %29 : vector<16x128xf32> to vector<1x16x128xf32>
    tpu.vector_store %arg4[%c0_13, %c0_14, %c0_15], %32 {strides = array<i32>} : memref<1x16x128xf32, #tpu.memory_space<vmem>>, vector<1x16x128xf32>,
    return
  }
  func.func @transform_0(%arg0: i32) -> (i32, i32, i32) {
    %c0_i32 = arith.constant 0 : i32
    %c0_i32_0 = arith.constant 0 : i32
    %c0_i32_1 = arith.constant 0 : i32
    return %arg0, %c0_i32, %c0_i32_0 : i32, i32, i32
  }
  func.func @transform_1(%arg0: i32) -> (i32, i32) {
    %c0_i32 = arith.constant 0 : i32
    %c0_i32_0 = arith.constant 0 : i32
    %c0_i32_1 = arith.constant 0 : i32
    return %c0_i32, %c0_i32_0 : i32, i32
  }
  func.func @transform_2(%arg0: i32) -> (i32, i32) {
    %c0_i32 = arith.constant 0 : i32
    %c0_i32_0 = arith.constant 0 : i32
    %c0_i32_1 = arith.constant 0 : i32
    return %c0_i32, %c0_i32_0 : i32, i32
  }
  func.func @transform_3(%arg0: i32) -> (i32, i32, i32) {
    %c0_i32 = arith.constant 0 : i32
    %c0_i32_0 = arith.constant 0 : i32
    %c0_i32_1 = arith.constant 0 : i32
    return %arg0, %c0_i32, %c0_i32_0 : i32, i32, i32
  }
}

module attributes {stable_mosaic.version = 11 : i64} {
  func.func @_conv_in_lrelu_kernel(%arg0: i32, %arg1: memref<1x16x1152xf32, #tpu.memory_space<vmem>>, %arg2: memref<1152x128xf32, #tpu.memory_space<vmem>>, %arg3: memref<1x128xf32, #tpu.memory_space<vmem>>, %arg4: memref<1x16x128xf32, #tpu.memory_space<vmem>>) attributes {dimension_semantics = [#tpu.dimension_semantics<parallel>], iteration_bounds = array<i64: 2>, scalar_prefetch = 0 : i64, scratch_operands = 0 : i64, tpu.core_type = #tpu.core_type<tc>, window_params = [{transform_indices = @transform_0, window_bounds = array<i64: 1, 16, 1152>}, {pipeline_mode = #tpu.pipeline_mode<synchronous>, transform_indices = @transform_1, window_bounds = array<i64: 1152, 128>}, {pipeline_mode = #tpu.pipeline_mode<synchronous>, transform_indices = @transform_2, window_bounds = array<i64: 1, 128>}, {transform_indices = @transform_3, window_bounds = array<i64: 1, 16, 128>}]} {
    %c0 = arith.constant 0 : index
    %c0_0 = arith.constant 0 : index
    %c0_1 = arith.constant 0 : index
    %0 = vector.load %arg1[%c0, %c0_0, %c0_1] : memref<1x16x1152xf32, #tpu.memory_space<vmem>>, vector<1x16x1152xf32>
    %1 = vector.shape_cast %0 : vector<1x16x1152xf32> to vector<16x1152xf32>
    %c0_2 = arith.constant 0 : index
    %c0_3 = arith.constant 0 : index
    %2 = vector.load %arg2[%c0_2, %c0_3] : memref<1152x128xf32, #tpu.memory_space<vmem>>, vector<1152x128xf32>
    %cst = arith.constant dense<0.000000e+00> : vector<16x128xf32>
    %3 = tpu.matmul %1, %2, %cst {dimension_numbers = #tpu.dot_dimension_numbers<[1], [0], [0], [1], [0, 0, 1, 1], [], []>} : vector<16x1152xf32>, vector<1152x128xf32>, vector<16x128xf32> -> vector<16x128xf32>
    %c0_4 = arith.constant 0 : index
    %c0_5 = arith.constant 0 : index
    %4 = vector.load %arg3[%c0_4, %c0_5] : memref<1x128xf32, #tpu.memory_space<vmem>>, vector<1x128xf32>
    %5 = vector.broadcast %4 : vector<1x128xf32> to vector<16x128xf32>
    %6 = arith.addf %3, %5 : vector<16x128xf32>
    %cst_6 = arith.constant dense<0.000000e+00> : vector<128xf32>
    %7 = vector.multi_reduction <add>, %6, %cst_6 [0] : vector<16x128xf32> to vector<128xf32>
    %8 = vector.shape_cast %7 : vector<128xf32> to vector<1x128xf32>
    %cst_7 = arith.constant 1.600000e+01 : f32
    %9 = vector.broadcast %cst_7 : f32 to vector<1x128xf32>
    %10 = arith.divf %8, %9 : vector<1x128xf32>
    %11 = vector.broadcast %10 : vector<1x128xf32> to vector<16x128xf32>
    %12 = arith.subf %6, %11 : vector<16x128xf32>
    %13 = arith.mulf %12, %12 : vector<16x128xf32>
    %cst_8 = arith.constant dense<0.000000e+00> : vector<128xf32>
    %14 = vector.multi_reduction <add>, %13, %cst_8 [0] : vector<16x128xf32> to vector<128xf32>
    %15 = vector.shape_cast %14 : vector<128xf32> to vector<1x128xf32>
    %cst_9 = arith.constant 1.600000e+01 : f32
    %16 = vector.broadcast %cst_9 : f32 to vector<1x128xf32>
    %17 = arith.divf %15, %16 : vector<1x128xf32>
    %18 = vector.broadcast %10 : vector<1x128xf32> to vector<16x128xf32>
    %19 = arith.subf %6, %18 : vector<16x128xf32>
    %cst_10 = arith.constant 9.99999974E-6 : f32
    %20 = vector.broadcast %cst_10 : f32 to vector<1x128xf32>
    %21 = arith.addf %17, %20 : vector<1x128xf32>
    %22 = math.rsqrt %21 : vector<1x128xf32>
    %23 = vector.broadcast %22 : vector<1x128xf32> to vector<16x128xf32>
    %24 = arith.mulf %19, %23 : vector<16x128xf32>
    %cst_11 = arith.constant 0.000000e+00 : f32
    %25 = vector.broadcast %cst_11 : f32 to vector<16x128xf32>
    %26 = arith.cmpf oge, %24, %25 : vector<16x128xf32>
    %cst_12 = arith.constant 1.000000e-01 : f32
    %27 = vector.broadcast %cst_12 : f32 to vector<16x128xf32>
    %28 = arith.mulf %27, %24 : vector<16x128xf32>
    %29 = arith.select %26, %24, %28 : vector<16x128xi1>, vector<16x128xf32>
    %c0_13 = arith.constant 0 : index
    %c0_14 = arith.constant 0 : index
    %c0_15 = arith.constant 0 : index
    %30 = vector.load %arg4[%c0_13, %c0_14, %c0_15] : memref<1x16x128xf32, #tpu.memory_space<vmem>>, vector<1x16x128xf32>
    %31 = vector.shape_cast %30 : vector<1x16x128xf32> to vector<16x128xf32>
    %32 = vector.shape_cast %29 : vector<16x128xf32> to vector<1x16x128xf32>
    tpu.vector_store %arg4[%c0_13, %c0_14, %c0_15], %32 {strides = array<i32>} : memref<1x16x128xf32, #tpu.memory_space<vmem>>, vector<1x16x128xf32>,
    return
  }
  func.func @transform_0(%arg0: i32) -> (i32, i32, i32) {
    %c0_i32 = arith.constant 0 : i32
    %c0_i32_0 = arith.constant 0 : i32
    %c0_i32_1 = arith.constant 0 : i32
    return %arg0, %c0_i32, %c0_i32_0 : i32, i32, i32
  }
  func.func @transform_1(%arg0: i32) -> (i32, i32) {
    %c0_i32 = arith.constant 0 : i32
    %c0_i32_0 = arith.constant 0 : i32
    %c0_i32_1 = arith.constant 0 : i32
    return %c0_i32, %c0_i32_0 : i32, i32
  }
  func.func @transform_2(%arg0: i32) -> (i32, i32) {
    %c0_i32 = arith.constant 0 : i32
    %c0_i32_0 = arith.constant 0 : i32
    %c0_i32_1 = arith.constant 0 : i32
    return %c0_i32, %c0_i32_0 : i32, i32
  }
  func.func @transform_3(%arg0: i32) -> (i32, i32, i32) {
    %c0_i32 = arith.constant 0 : i32
    %c0_i32_0 = arith.constant 0 : i32
    %c0_i32_1 = arith.constant 0 : i32
    return %arg0, %c0_i32, %c0_i32_0 : i32, i32, i32
  }
}

module attributes {stable_mosaic.version = 11 : i64} {
  func.func @_conv_in_lrelu_kernel(%arg0: i32, %arg1: memref<1x64x1152xf32, #tpu.memory_space<vmem>>, %arg2: memref<1152x64xf32, #tpu.memory_space<vmem>>, %arg3: memref<1x64xf32, #tpu.memory_space<vmem>>, %arg4: memref<1x64x64xf32, #tpu.memory_space<vmem>>) attributes {dimension_semantics = [#tpu.dimension_semantics<parallel>], iteration_bounds = array<i64: 2>, scalar_prefetch = 0 : i64, scratch_operands = 0 : i64, tpu.core_type = #tpu.core_type<tc>, window_params = [{transform_indices = @transform_0, window_bounds = array<i64: 1, 64, 1152>}, {pipeline_mode = #tpu.pipeline_mode<synchronous>, transform_indices = @transform_1, window_bounds = array<i64: 1152, 64>}, {pipeline_mode = #tpu.pipeline_mode<synchronous>, transform_indices = @transform_2, window_bounds = array<i64: 1, 64>}, {transform_indices = @transform_3, window_bounds = array<i64: 1, 64, 64>}]} {
    %c0 = arith.constant 0 : index
    %c0_0 = arith.constant 0 : index
    %c0_1 = arith.constant 0 : index
    %0 = vector.load %arg1[%c0, %c0_0, %c0_1] : memref<1x64x1152xf32, #tpu.memory_space<vmem>>, vector<1x64x1152xf32>
    %1 = vector.shape_cast %0 : vector<1x64x1152xf32> to vector<64x1152xf32>
    %c0_2 = arith.constant 0 : index
    %c0_3 = arith.constant 0 : index
    %2 = vector.load %arg2[%c0_2, %c0_3] : memref<1152x64xf32, #tpu.memory_space<vmem>>, vector<1152x64xf32>
    %cst = arith.constant dense<0.000000e+00> : vector<64x64xf32>
    %3 = tpu.matmul %1, %2, %cst {dimension_numbers = #tpu.dot_dimension_numbers<[1], [0], [0], [1], [0, 0, 1, 1], [], []>} : vector<64x1152xf32>, vector<1152x64xf32>, vector<64x64xf32> -> vector<64x64xf32>
    %c0_4 = arith.constant 0 : index
    %c0_5 = arith.constant 0 : index
    %4 = vector.load %arg3[%c0_4, %c0_5] : memref<1x64xf32, #tpu.memory_space<vmem>>, vector<1x64xf32>
    %5 = vector.broadcast %4 : vector<1x64xf32> to vector<64x64xf32>
    %6 = arith.addf %3, %5 : vector<64x64xf32>
    %cst_6 = arith.constant dense<0.000000e+00> : vector<64xf32>
    %7 = vector.multi_reduction <add>, %6, %cst_6 [0] : vector<64x64xf32> to vector<64xf32>
    %8 = vector.shape_cast %7 : vector<64xf32> to vector<1x64xf32>
    %cst_7 = arith.constant 6.400000e+01 : f32
    %9 = vector.broadcast %cst_7 : f32 to vector<1x64xf32>
    %10 = arith.divf %8, %9 : vector<1x64xf32>
    %11 = vector.broadcast %10 : vector<1x64xf32> to vector<64x64xf32>
    %12 = arith.subf %6, %11 : vector<64x64xf32>
    %13 = arith.mulf %12, %12 : vector<64x64xf32>
    %cst_8 = arith.constant dense<0.000000e+00> : vector<64xf32>
    %14 = vector.multi_reduction <add>, %13, %cst_8 [0] : vector<64x64xf32> to vector<64xf32>
    %15 = vector.shape_cast %14 : vector<64xf32> to vector<1x64xf32>
    %cst_9 = arith.constant 6.400000e+01 : f32
    %16 = vector.broadcast %cst_9 : f32 to vector<1x64xf32>
    %17 = arith.divf %15, %16 : vector<1x64xf32>
    %18 = vector.broadcast %10 : vector<1x64xf32> to vector<64x64xf32>
    %19 = arith.subf %6, %18 : vector<64x64xf32>
    %cst_10 = arith.constant 9.99999974E-6 : f32
    %20 = vector.broadcast %cst_10 : f32 to vector<1x64xf32>
    %21 = arith.addf %17, %20 : vector<1x64xf32>
    %22 = math.rsqrt %21 : vector<1x64xf32>
    %23 = vector.broadcast %22 : vector<1x64xf32> to vector<64x64xf32>
    %24 = arith.mulf %19, %23 : vector<64x64xf32>
    %cst_11 = arith.constant 0.000000e+00 : f32
    %25 = vector.broadcast %cst_11 : f32 to vector<64x64xf32>
    %26 = arith.cmpf oge, %24, %25 : vector<64x64xf32>
    %cst_12 = arith.constant 1.000000e-01 : f32
    %27 = vector.broadcast %cst_12 : f32 to vector<64x64xf32>
    %28 = arith.mulf %27, %24 : vector<64x64xf32>
    %29 = arith.select %26, %24, %28 : vector<64x64xi1>, vector<64x64xf32>
    %c0_13 = arith.constant 0 : index
    %c0_14 = arith.constant 0 : index
    %c0_15 = arith.constant 0 : index
    %30 = vector.load %arg4[%c0_13, %c0_14, %c0_15] : memref<1x64x64xf32, #tpu.memory_space<vmem>>, vector<1x64x64xf32>
    %31 = vector.shape_cast %30 : vector<1x64x64xf32> to vector<64x64xf32>
    %32 = vector.shape_cast %29 : vector<64x64xf32> to vector<1x64x64xf32>
    tpu.vector_store %arg4[%c0_13, %c0_14, %c0_15], %32 {strides = array<i32>} : memref<1x64x64xf32, #tpu.memory_space<vmem>>, vector<1x64x64xf32>,
    return
  }
  func.func @transform_0(%arg0: i32) -> (i32, i32, i32) {
    %c0_i32 = arith.constant 0 : i32
    %c0_i32_0 = arith.constant 0 : i32
    %c0_i32_1 = arith.constant 0 : i32
    return %arg0, %c0_i32, %c0_i32_0 : i32, i32, i32
  }
  func.func @transform_1(%arg0: i32) -> (i32, i32) {
    %c0_i32 = arith.constant 0 : i32
    %c0_i32_0 = arith.constant 0 : i32
    %c0_i32_1 = arith.constant 0 : i32
    return %c0_i32, %c0_i32_0 : i32, i32
  }
  func.func @transform_2(%arg0: i32) -> (i32, i32) {
    %c0_i32 = arith.constant 0 : i32
    %c0_i32_0 = arith.constant 0 : i32
    %c0_i32_1 = arith.constant 0 : i32
    return %c0_i32, %c0_i32_0 : i32, i32
  }
  func.func @transform_3(%arg0: i32) -> (i32, i32, i32) {
    %c0_i32 = arith.constant 0 : i32
    %c0_i32_0 = arith.constant 0 : i32
    %c0_i32_1 = arith.constant 0 : i32
    return %arg0, %c0_i32, %c0_i32_0 : i32, i32, i32
  }
}

module attributes {stable_mosaic.version = 11 : i64} {
  func.func @_conv_in_lrelu_kernel(%arg0: i32, %arg1: memref<1x256x576xf32, #tpu.memory_space<vmem>>, %arg2: memref<576x32xf32, #tpu.memory_space<vmem>>, %arg3: memref<1x32xf32, #tpu.memory_space<vmem>>, %arg4: memref<1x256x32xf32, #tpu.memory_space<vmem>>) attributes {dimension_semantics = [#tpu.dimension_semantics<parallel>], iteration_bounds = array<i64: 2>, scalar_prefetch = 0 : i64, scratch_operands = 0 : i64, tpu.core_type = #tpu.core_type<tc>, window_params = [{transform_indices = @transform_0, window_bounds = array<i64: 1, 256, 576>}, {pipeline_mode = #tpu.pipeline_mode<synchronous>, transform_indices = @transform_1, window_bounds = array<i64: 576, 32>}, {pipeline_mode = #tpu.pipeline_mode<synchronous>, transform_indices = @transform_2, window_bounds = array<i64: 1, 32>}, {transform_indices = @transform_3, window_bounds = array<i64: 1, 256, 32>}]} {
    %c0 = arith.constant 0 : index
    %c0_0 = arith.constant 0 : index
    %c0_1 = arith.constant 0 : index
    %0 = vector.load %arg1[%c0, %c0_0, %c0_1] : memref<1x256x576xf32, #tpu.memory_space<vmem>>, vector<1x256x576xf32>
    %1 = vector.shape_cast %0 : vector<1x256x576xf32> to vector<256x576xf32>
    %c0_2 = arith.constant 0 : index
    %c0_3 = arith.constant 0 : index
    %2 = vector.load %arg2[%c0_2, %c0_3] : memref<576x32xf32, #tpu.memory_space<vmem>>, vector<576x32xf32>
    %cst = arith.constant dense<0.000000e+00> : vector<256x32xf32>
    %3 = tpu.matmul %1, %2, %cst {dimension_numbers = #tpu.dot_dimension_numbers<[1], [0], [0], [1], [0, 0, 1, 1], [], []>} : vector<256x576xf32>, vector<576x32xf32>, vector<256x32xf32> -> vector<256x32xf32>
    %c0_4 = arith.constant 0 : index
    %c0_5 = arith.constant 0 : index
    %4 = vector.load %arg3[%c0_4, %c0_5] : memref<1x32xf32, #tpu.memory_space<vmem>>, vector<1x32xf32>
    %5 = vector.broadcast %4 : vector<1x32xf32> to vector<256x32xf32>
    %6 = arith.addf %3, %5 : vector<256x32xf32>
    %cst_6 = arith.constant dense<0.000000e+00> : vector<32xf32>
    %7 = vector.multi_reduction <add>, %6, %cst_6 [0] : vector<256x32xf32> to vector<32xf32>
    %8 = vector.shape_cast %7 : vector<32xf32> to vector<1x32xf32>
    %cst_7 = arith.constant 2.560000e+02 : f32
    %9 = vector.broadcast %cst_7 : f32 to vector<1x32xf32>
    %10 = arith.divf %8, %9 : vector<1x32xf32>
    %11 = vector.broadcast %10 : vector<1x32xf32> to vector<256x32xf32>
    %12 = arith.subf %6, %11 : vector<256x32xf32>
    %13 = arith.mulf %12, %12 : vector<256x32xf32>
    %cst_8 = arith.constant dense<0.000000e+00> : vector<32xf32>
    %14 = vector.multi_reduction <add>, %13, %cst_8 [0] : vector<256x32xf32> to vector<32xf32>
    %15 = vector.shape_cast %14 : vector<32xf32> to vector<1x32xf32>
    %cst_9 = arith.constant 2.560000e+02 : f32
    %16 = vector.broadcast %cst_9 : f32 to vector<1x32xf32>
    %17 = arith.divf %15, %16 : vector<1x32xf32>
    %18 = vector.broadcast %10 : vector<1x32xf32> to vector<256x32xf32>
    %19 = arith.subf %6, %18 : vector<256x32xf32>
    %cst_10 = arith.constant 9.99999974E-6 : f32
    %20 = vector.broadcast %cst_10 : f32 to vector<1x32xf32>
    %21 = arith.addf %17, %20 : vector<1x32xf32>
    %22 = math.rsqrt %21 : vector<1x32xf32>
    %23 = vector.broadcast %22 : vector<1x32xf32> to vector<256x32xf32>
    %24 = arith.mulf %19, %23 : vector<256x32xf32>
    %cst_11 = arith.constant 0.000000e+00 : f32
    %25 = vector.broadcast %cst_11 : f32 to vector<256x32xf32>
    %26 = arith.cmpf oge, %24, %25 : vector<256x32xf32>
    %cst_12 = arith.constant 1.000000e-01 : f32
    %27 = vector.broadcast %cst_12 : f32 to vector<256x32xf32>
    %28 = arith.mulf %27, %24 : vector<256x32xf32>
    %29 = arith.select %26, %24, %28 : vector<256x32xi1>, vector<256x32xf32>
    %c0_13 = arith.constant 0 : index
    %c0_14 = arith.constant 0 : index
    %c0_15 = arith.constant 0 : index
    %30 = vector.load %arg4[%c0_13, %c0_14, %c0_15] : memref<1x256x32xf32, #tpu.memory_space<vmem>>, vector<1x256x32xf32>
    %31 = vector.shape_cast %30 : vector<1x256x32xf32> to vector<256x32xf32>
    %32 = vector.shape_cast %29 : vector<256x32xf32> to vector<1x256x32xf32>
    tpu.vector_store %arg4[%c0_13, %c0_14, %c0_15], %32 {strides = array<i32>} : memref<1x256x32xf32, #tpu.memory_space<vmem>>, vector<1x256x32xf32>,
    return
  }
  func.func @transform_0(%arg0: i32) -> (i32, i32, i32) {
    %c0_i32 = arith.constant 0 : i32
    %c0_i32_0 = arith.constant 0 : i32
    %c0_i32_1 = arith.constant 0 : i32
    return %arg0, %c0_i32, %c0_i32_0 : i32, i32, i32
  }
  func.func @transform_1(%arg0: i32) -> (i32, i32) {
    %c0_i32 = arith.constant 0 : i32
    %c0_i32_0 = arith.constant 0 : i32
    %c0_i32_1 = arith.constant 0 : i32
    return %c0_i32, %c0_i32_0 : i32, i32
  }
  func.func @transform_2(%arg0: i32) -> (i32, i32) {
    %c0_i32 = arith.constant 0 : i32
    %c0_i32_0 = arith.constant 0 : i32
    %c0_i32_1 = arith.constant 0 : i32
    return %c0_i32, %c0_i32_0 : i32, i32
  }
  func.func @transform_3(%arg0: i32) -> (i32, i32, i32) {
    %c0_i32 = arith.constant 0 : i32
    %c0_i32_0 = arith.constant 0 : i32
    %c0_i32_1 = arith.constant 0 : i32
    return %arg0, %c0_i32, %c0_i32_0 : i32, i32, i32
  }
}

module attributes {stable_mosaic.version = 11 : i64} {
  func.func @_conv_in_lrelu_kernel(%arg0: i32, %arg1: memref<1x256x288xf32, #tpu.memory_space<vmem>>, %arg2: memref<288x16xf32, #tpu.memory_space<vmem>>, %arg3: memref<1x16xf32, #tpu.memory_space<vmem>>, %arg4: memref<1x256x16xf32, #tpu.memory_space<vmem>>) attributes {dimension_semantics = [#tpu.dimension_semantics<parallel>], iteration_bounds = array<i64: 2>, scalar_prefetch = 0 : i64, scratch_operands = 0 : i64, tpu.core_type = #tpu.core_type<tc>, window_params = [{transform_indices = @transform_0, window_bounds = array<i64: 1, 256, 288>}, {pipeline_mode = #tpu.pipeline_mode<synchronous>, transform_indices = @transform_1, window_bounds = array<i64: 288, 16>}, {pipeline_mode = #tpu.pipeline_mode<synchronous>, transform_indices = @transform_2, window_bounds = array<i64: 1, 16>}, {transform_indices = @transform_3, window_bounds = array<i64: 1, 256, 16>}]} {
    %c0 = arith.constant 0 : index
    %c0_0 = arith.constant 0 : index
    %c0_1 = arith.constant 0 : index
    %0 = vector.load %arg1[%c0, %c0_0, %c0_1] : memref<1x256x288xf32, #tpu.memory_space<vmem>>, vector<1x256x288xf32>
    %1 = vector.shape_cast %0 : vector<1x256x288xf32> to vector<256x288xf32>
    %c0_2 = arith.constant 0 : index
    %c0_3 = arith.constant 0 : index
    %2 = vector.load %arg2[%c0_2, %c0_3] : memref<288x16xf32, #tpu.memory_space<vmem>>, vector<288x16xf32>
    %cst = arith.constant dense<0.000000e+00> : vector<256x16xf32>
    %3 = tpu.matmul %1, %2, %cst {dimension_numbers = #tpu.dot_dimension_numbers<[1], [0], [0], [1], [0, 0, 1, 1], [], []>} : vector<256x288xf32>, vector<288x16xf32>, vector<256x16xf32> -> vector<256x16xf32>
    %c0_4 = arith.constant 0 : index
    %c0_5 = arith.constant 0 : index
    %4 = vector.load %arg3[%c0_4, %c0_5] : memref<1x16xf32, #tpu.memory_space<vmem>>, vector<1x16xf32>
    %5 = vector.broadcast %4 : vector<1x16xf32> to vector<256x16xf32>
    %6 = arith.addf %3, %5 : vector<256x16xf32>
    %cst_6 = arith.constant 0.000000e+00 : f32
    %7 = vector.broadcast %cst_6 : f32 to vector<256x16xf32>
    %8 = arith.cmpf oge, %6, %7 : vector<256x16xf32>
    %cst_7 = arith.constant 1.000000e-01 : f32
    %9 = vector.broadcast %cst_7 : f32 to vector<256x16xf32>
    %10 = arith.mulf %9, %6 : vector<256x16xf32>
    %11 = arith.select %8, %6, %10 : vector<256x16xi1>, vector<256x16xf32>
    %c0_8 = arith.constant 0 : index
    %c0_9 = arith.constant 0 : index
    %c0_10 = arith.constant 0 : index
    %12 = vector.load %arg4[%c0_8, %c0_9, %c0_10] : memref<1x256x16xf32, #tpu.memory_space<vmem>>, vector<1x256x16xf32>
    %13 = vector.shape_cast %12 : vector<1x256x16xf32> to vector<256x16xf32>
    %14 = vector.shape_cast %11 : vector<256x16xf32> to vector<1x256x16xf32>
    tpu.vector_store %arg4[%c0_8, %c0_9, %c0_10], %14 {strides = array<i32>} : memref<1x256x16xf32, #tpu.memory_space<vmem>>, vector<1x256x16xf32>,
    return
  }
  func.func @transform_0(%arg0: i32) -> (i32, i32, i32) {
    %c0_i32 = arith.constant 0 : i32
    %c0_i32_0 = arith.constant 0 : i32
    %c0_i32_1 = arith.constant 0 : i32
    return %arg0, %c0_i32, %c0_i32_0 : i32, i32, i32
  }
  func.func @transform_1(%arg0: i32) -> (i32, i32) {
    %c0_i32 = arith.constant 0 : i32
    %c0_i32_0 = arith.constant 0 : i32
    %c0_i32_1 = arith.constant 0 : i32
    return %c0_i32, %c0_i32_0 : i32, i32
  }
  func.func @transform_2(%arg0: i32) -> (i32, i32) {
    %c0_i32 = arith.constant 0 : i32
    %c0_i32_0 = arith.constant 0 : i32
    %c0_i32_1 = arith.constant 0 : i32
    return %c0_i32, %c0_i32_0 : i32, i32
  }
  func.func @transform_3(%arg0: i32) -> (i32, i32, i32) {
    %c0_i32 = arith.constant 0 : i32
    %c0_i32_0 = arith.constant 0 : i32
    %c0_i32_1 = arith.constant 0 : i32
    return %arg0, %c0_i32, %c0_i32_0 : i32, i32, i32
  }
}

module attributes {stable_mosaic.version = 11 : i64} {
  func.func @_conv_in_lrelu_kernel(%arg0: i32, %arg1: memref<1x256x144xf32, #tpu.memory_space<vmem>>, %arg2: memref<144x3xf32, #tpu.memory_space<vmem>>, %arg3: memref<1x3xf32, #tpu.memory_space<vmem>>, %arg4: memref<1x256x3xf32, #tpu.memory_space<vmem>>) attributes {dimension_semantics = [#tpu.dimension_semantics<parallel>], iteration_bounds = array<i64: 2>, scalar_prefetch = 0 : i64, scratch_operands = 0 : i64, tpu.core_type = #tpu.core_type<tc>, window_params = [{transform_indices = @transform_0, window_bounds = array<i64: 1, 256, 144>}, {pipeline_mode = #tpu.pipeline_mode<synchronous>, transform_indices = @transform_1, window_bounds = array<i64: 144, 3>}, {pipeline_mode = #tpu.pipeline_mode<synchronous>, transform_indices = @transform_2, window_bounds = array<i64: 1, 3>}, {transform_indices = @transform_3, window_bounds = array<i64: 1, 256, 3>}]} {
    %c0 = arith.constant 0 : index
    %c0_0 = arith.constant 0 : index
    %c0_1 = arith.constant 0 : index
    %0 = vector.load %arg1[%c0, %c0_0, %c0_1] : memref<1x256x144xf32, #tpu.memory_space<vmem>>, vector<1x256x144xf32>
    %1 = vector.shape_cast %0 : vector<1x256x144xf32> to vector<256x144xf32>
    %c0_2 = arith.constant 0 : index
    %c0_3 = arith.constant 0 : index
    %2 = vector.load %arg2[%c0_2, %c0_3] : memref<144x3xf32, #tpu.memory_space<vmem>>, vector<144x3xf32>
    %cst = arith.constant dense<0.000000e+00> : vector<256x3xf32>
    %3 = tpu.matmul %1, %2, %cst {dimension_numbers = #tpu.dot_dimension_numbers<[1], [0], [0], [1], [0, 0, 1, 1], [], []>} : vector<256x144xf32>, vector<144x3xf32>, vector<256x3xf32> -> vector<256x3xf32>
    %c0_4 = arith.constant 0 : index
    %c0_5 = arith.constant 0 : index
    %4 = vector.load %arg3[%c0_4, %c0_5] : memref<1x3xf32, #tpu.memory_space<vmem>>, vector<1x3xf32>
    %5 = vector.broadcast %4 : vector<1x3xf32> to vector<256x3xf32>
    %6 = arith.addf %3, %5 : vector<256x3xf32>
    %c0_6 = arith.constant 0 : index
    %c0_7 = arith.constant 0 : index
    %c0_8 = arith.constant 0 : index
    %7 = vector.load %arg4[%c0_6, %c0_7, %c0_8] : memref<1x256x3xf32, #tpu.memory_space<vmem>>, vector<1x256x3xf32>
    %8 = vector.shape_cast %7 : vector<1x256x3xf32> to vector<256x3xf32>
    %9 = vector.shape_cast %6 : vector<256x3xf32> to vector<1x256x3xf32>
    tpu.vector_store %arg4[%c0_6, %c0_7, %c0_8], %9 {strides = array<i32>} : memref<1x256x3xf32, #tpu.memory_space<vmem>>, vector<1x256x3xf32>,
    return
  }
  func.func @transform_0(%arg0: i32) -> (i32, i32, i32) {
    %c0_i32 = arith.constant 0 : i32
    %c0_i32_0 = arith.constant 0 : i32
    %c0_i32_1 = arith.constant 0 : i32
    return %arg0, %c0_i32, %c0_i32_0 : i32, i32, i32
  }
  func.func @transform_1(%arg0: i32) -> (i32, i32) {
    %c0_i32 = arith.constant 0 : i32
    %c0_i32_0 = arith.constant 0 : i32
    %c0_i32_1 = arith.constant 0 : i32
    return %c0_i32, %c0_i32_0 : i32, i32
  }
  func.func @transform_2(%arg0: i32) -> (i32, i32) {
    %c0_i32 = arith.constant 0 : i32
    %c0_i32_0 = arith.constant 0 : i32
    %c0_i32_1 = arith.constant 0 : i32
    return %c0_i32, %c0_i32_0 : i32, i32
  }
  func.func @transform_3(%arg0: i32) -> (i32, i32, i32) {
    %c0_i32 = arith.constant 0 : i32
    %c0_i32_0 = arith.constant 0 : i32
    %c0_i32_1 = arith.constant 0 : i32
    return %arg0, %c0_i32, %c0_i32_0 : i32, i32, i32
  }
}

</mosaic_0001>

<llo_original>
// kernel: unet_forward.15
$region0: #{unet_forward.15}
  #allocation0 [shape = 'u32[]', space=smem, size = 0x4, offset = 0x4, fixed_abs, tag = 'smem constant byte address 0x4 - core index']
  #allocation1 [shape = 'u32[144,128]{1,0:T(1,128)}', space=vmem, size = 0x12000, scoped, tag = 'internal scratch']
  %s0 = inlined_call_operand.vmem [shape: f32[2,256,36], index: 0, kind: input, shape index: {}]
  %s1 = inlined_call_operand.vmem [shape: f32[36,16], index: 1, kind: input, shape index: {}]
  %s2 = inlined_call_operand.vmem [shape: f32[1,16], index: 2, kind: input, shape index: {}]
  %s3 = inlined_call_operand.vmem [shape: f32[2,256,16], index: 3, kind: output, shape index: {}]
  %s4 = sld [smem:[#allocation0]]
  $region45: #{unet_forward.15} parent=0
    _
  %s6 = ssub.s32 1, %s4
  %s7 = scalar_select 0, %s6, %s4
  loop: start=0, step=1, limit=4
  $region2: #{unet_forward.15} parent=0 // loop_pre_header
    _
  $region3: #{unet_forward.15} parent=0 // loop_header
    %s9 = sphi 0, %s13
    %p10 = scmp.ge.s32.totalorder %s9, 4
    %s19 = sphi 0, %s21
    %s22 = sphi 0, %s19
    %s23 = sphi 0, %s22
    %s39 = sphi 0, %s23
    %s43 = sphi 0, %s43
    %s45 = sphi 0, %s43
    %s46 = sphi 0, %s45
    %s60 = sphi 0, %s46
    %s64 = sphi 0, %s64
    %s66 = sphi 0, %s64
    %s67 = sphi 0, %s66
    %s81 = sphi 0, %s67
    %s87 = sphi 0, %s89
    %s90 = sphi 0, %s87
    %s91 = sphi 0, %s90
    %s107 = sphi 0, %s91
  $region4: #{unet_forward.15} parent=0 // loop_header_branch
    %12 = sbr.rel (%p10) target = $region8
  $region5: #{unet_forward.15} parent=0 // loop_body
    %s14 = ssub.s32 %s9, 1
    %s15 = ssub.s32 %s9, 2
    %s16 = sadd.s32 %s9, 1
    %s17 = ssub.s32 %s9, %s16
    %p18 = scmp.eq.s32.totalorder %s17, 0
    %s20 = sadd.s32 %s19, 1
    %s21 = scalar_select %p18, %s19, %s20
    %p24 = pneg %p18
    %p25 = scmp.eq.s32.totalorder %s9, 1
    %p26 = por %p24, %p25
    %p27 = scmp.ne.s32.totalorder %s19, %s22
    %p28 = scmp.eq.s32.totalorder %s9, 0
    %p29 = por %p27, %p28
    %p30 = scmp.ne.s32.totalorder %s19, %s22
    %p31 = scmp.eq.s32.totalorder %s14, 1
    %p32 = por %p30, %p31
    %p33 = scmp.ne.s32.totalorder %s22, %s23
    %p34 = scmp.eq.s32.totalorder %s14, 0
    %p35 = por %p33, %p34
    %p36 = scmp.ne.s32.totalorder %s22, %s23
    %p37 = scmp.eq.s32.totalorder %s15, 1
    %p38 = por %p36, %p37
    %p40 = scmp.ne.s32.totalorder %s23, %s39
    %p41 = scmp.eq.s32.totalorder %s15, 0
    %p42 = por %p40, %p41
    %s44 = sadd.s32 %s43, 1
    %p47 = scmp.eq.s32.totalorder %s9, 1
    %p48 = scmp.ne.s32.totalorder %s43, %s45
    %p49 = scmp.eq.s32.totalorder %s9, 0
    %p50 = por %p48, %p49
    %p51 = scmp.ne.s32.totalorder %s43, %s45
    %p52 = scmp.eq.s32.totalorder %s14, 1
    %p53 = por %p51, %p52
    %p54 = scmp.ne.s32.totalorder %s45, %s46
    %p55 = scmp.eq.s32.totalorder %s14, 0
    %p56 = por %p54, %p55
    %p57 = scmp.ne.s32.totalorder %s45, %s46
    %p58 = scmp.eq.s32.totalorder %s15, 1
    %p59 = por %p57, %p58
    %p61 = scmp.ne.s32.totalorder %s46, %s60
    %p62 = scmp.eq.s32.totalorder %s15, 0
    %p63 = por %p61, %p62
    %s65 = sadd.s32 %s64, 1
    %p68 = scmp.eq.s32.totalorder %s9, 1
    %p69 = scmp.ne.s32.totalorder %s64, %s66
    %p70 = scmp.eq.s32.totalorder %s9, 0
    %p71 = por %p69, %p70
    %p72 = scmp.ne.s32.totalorder %s64, %s66
    %p73 = scmp.eq.s32.totalorder %s14, 1
    %p74 = por %p72, %p73
    %p75 = scmp.ne.s32.totalorder %s66, %s67
    %p76 = scmp.eq.s32.totalorder %s14, 0
    %p77 = por %p75, %p76
    %p78 = scmp.ne.s32.totalorder %s66, %s67
    %p79 = scmp.eq.s32.totalorder %s15, 1
    %p80 = por %p78, %p79
    %p82 = scmp.ne.s32.totalorder %s67, %s81
    %p83 = scmp.eq.s32.totalorder %s15, 0
    %p84 = por %p82, %p83
    %s85 = ssub.s32 %s9, %s16
    %p86 = scmp.eq.s32.totalorder %s85, 0
    %s88 = sadd.s32 %s87, 1
    %s89 = scalar_select %p86, %s87, %s88
    %p92 = pneg %p86
    %p93 = scmp.eq.s32.totalorder %s9, 1
    %p94 = por %p92, %p93
    %p95 = scmp.ne.s32.totalorder %s87, %s90
    %p96 = scmp.eq.s32.totalorder %s9, 0
    %p97 = por %p95, %p96
    %p98 = scmp.ne.s32.totalorder %s87, %s90
    %p99 = scmp.eq.s32.totalorder %s14, 1
    %p100 = por %p98, %p99
    %p101 = scmp.ne.s32.totalorder %s90, %s91
    %p102 = scmp.eq.s32.totalorder %s14, 0
    %p103 = por %p101, %p102
    %p104 = scmp.ne.s32.totalorder %s90, %s91
    %p105 = scmp.eq.s32.totalorder %s15, 1
    %p106 = por %p104, %p105
    %p108 = scmp.ne.s32.totalorder %s91, %s107
    %p109 = scmp.eq.s32.totalorder %s15, 0
    %p110 = por %p108, %p109
    %p111 = scmp.le.s32.totalorder 1, %s9
    %p112 = scmp.lt.s32.totalorder %s9, 3
    %p113 = pnand %p111, %p112
    %p114 = pneg %p113
    // Predicated region
    $region9: #{unet_forward.15} parent=5 // pred_check
      _
    $region10: #{unet_forward.15} parent=5 // pred_check_branch
      %116 = sbr.rel (%p113) target = $region12
    $region11: #{unet_forward.15} parent=5 // pred_region
      %s117 = ssub.s32 %s9, 1
      // Predicated region
      $region13: #{unet_forward.15} parent=11 // pred_check
        %p118 = pneg %p56
      $region14: #{unet_forward.15} parent=11 // pred_check_branch
        %120 = sbr.rel (%p118) target = $region16
      $region15: #{unet_forward.15} parent=11 // pred_region
        _
      $region16: #{unet_forward.15} parent=11 // pred_fallthru
        _
      // Predicated region
      $region17: #{unet_forward.15} parent=11 // pred_check
        %p121 = pneg %p77
      $region18: #{unet_forward.15} parent=11 // pred_check_branch
        %123 = sbr.rel (%p121) target = $region20
      $region19: #{unet_forward.15} parent=11 // pred_region
        _
      $region20: #{unet_forward.15} parent=11 // pred_fallthru
        _
    $region12: #{unet_forward.15} parent=5 // pred_fallthru
      _
    %p124 = scmp.lt.s32.totalorder %s9, 2
    // Predicated region
    $region21: #{unet_forward.15} parent=5 // pred_check
      %p125 = pneg %p124
    $region22: #{unet_forward.15} parent=5 // pred_check_branch
      %127 = sbr.rel (%p125) target = $region24
    $region23: #{unet_forward.15} parent=5 // pred_region
      // Predicated region
      $region25: #{unet_forward.15} parent=23 // pred_check
        %p128 = pneg %p29
      $region26: #{unet_forward.15} parent=23 // pred_check_branch
        %130 = sbr.rel (%p128) target = $region28
      $region27: #{unet_forward.15} parent=23 // pred_region
        %p131 = scmp.lt.s32.totalorder %s9, 1
        %s132 = scalar_select %p131, %s9, 1
        %s133 = smul.addr %s132, 32
        %s134 = smul.addr %s133, 8
        %s135 = scalar_lea.vmem %s0, %s134
      $region28: #{unet_forward.15} parent=23 // pred_fallthru
        _
    $region24: #{unet_forward.15} parent=5 // pred_fallthru
      _
    %p136 = scmp.le.s32.totalorder 1, %s9
    %p137 = scmp.lt.s32.totalorder %s9, 3
    %p138 = pnand %p136, %p137
    %p139 = pneg %p138
    // Predicated region
    $region29: #{unet_forward.15} parent=5 // pred_check
      _
    $region30: #{unet_forward.15} parent=5 // pred_check_branch
      %141 = sbr.rel (%p138) target = $region32
    $region31: #{unet_forward.15} parent=5 // pred_region
      %s142 = ssub.s32 %s9, 1
      %p143 = scmp.lt.s32.totalorder %s14, 1
      %s144 = scalar_select %p143, %s14, 1
      %s145 = smul.addr %s144, 32
      %s146 = smul.addr %s145, 8
      %s147 = scalar_lea.vmem %s0, %s146
      %p148 = pneg %p35
      %p149 = pneg %p32
      %p150 = pneg %p56
      %p151 = pneg %p53
      %p152 = pneg %p77
      %p153 = pneg %p74
      %p154 = pneg %p103
      %p155 = pneg %p100
      %p156 = scmp.lt.s32.totalorder %s14, 1
      %s157 = scalar_select %p156, %s14, 1
      %s158 = smul.addr %s157, 32
      %s159 = smul.addr %s158, 8
      %s160 = scalar_lea.vmem %s3, %s159
      %p161 = scmp.lt.s32.totalorder %s14, 1
      %s162 = scalar_select %p161, %s14, 1
      %s163 = smul.addr %s162, 32
      %s164 = smul.addr %s163, 8
      %s165 = scalar_lea.vmem %s0, %s164
      %p166 = scmp.lt.s32.totalorder %s14, 1
      %s167 = scalar_select %p166, %s14, 1
      %s168 = smul.addr %s167, 32
      %s169 = smul.addr %s168, 8
      %s170 = scalar_lea.vmem %s3, %s169
      %v171 = vld [vmem:[%s165] sm:$0xff]
      %v172 = vld [vmem:[%s165 + $0x8] sm:$0xff]
      %v173 = vld [vmem:[%s165 + $0x10] sm:$0xff]
      %v174 = vld [vmem:[%s165 + $0x18] sm:$0xff]
      %v175 = vld [vmem:[%s165 + $0x20] sm:$0xff]
      %v176 = vld [vmem:[%s165 + $0x28] sm:$0xff]
      %v177 = vld [vmem:[%s165 + $0x30] sm:$0xff]
      %v178 = vld [vmem:[%s165 + $0x38] sm:$0xff]
      %v179 = vld [vmem:[%s165 + $0x40] sm:$0xff]
      %v180 = vld [vmem:[%s165 + $0x48] sm:$0xff]
      %v181 = vld [vmem:[%s165 + $0x50] sm:$0xff]
      %v182 = vld [vmem:[%s165 + $0x58] sm:$0xff]
      %v183 = vld [vmem:[%s165 + $0x60] sm:$0xff]
      %v184 = vld [vmem:[%s165 + $0x68] sm:$0xff]
      %v185 = vld [vmem:[%s165 + $0x70] sm:$0xff]
      %v186 = vld [vmem:[%s165 + $0x78] sm:$0xff]
      %v187 = vld [vmem:[%s165 + $0x80] sm:$0xff]
      %v188 = vld [vmem:[%s165 + $0x88] sm:$0xff]
      %v189 = vld [vmem:[%s165 + $0x90] sm:$0xff]
      %v190 = vld [vmem:[%s165 + $0x98] sm:$0xff]
      %v191 = vld [vmem:[%s165 + $0xa0] sm:$0xff]
      %v192 = vld [vmem:[%s165 + $0xa8] sm:$0xff]
      %v193 = vld [vmem:[%s165 + $0xb0] sm:$0xff]
      %v194 = vld [vmem:[%s165 + $0xb8] sm:$0xff]
      %v195 = vld [vmem:[%s165 + $0xc0] sm:$0xff]
      %v196 = vld [vmem:[%s165 + $0xc8] sm:$0xff]
      %v197 = vld [vmem:[%s165 + $0xd0] sm:$0xff]
      %v198 = vld [vmem:[%s165 + $0xd8] sm:$0xff]
      %v199 = vld [vmem:[%s165 + $0xe0] sm:$0xff]
      %v200 = vld [vmem:[%s165 + $0xe8] sm:$0xff]
      %v201 = vld [vmem:[%s165 + $0xf0] sm:$0xff]
      %v202 = vld [vmem:[%s165 + $0xf8] sm:$0xff]
      %v203 = vld [vmem:[%s1] sm:$0xff]
      %v204 = vld [vmem:[%s1 + $0x8] sm:$0xff]
      %v205 = vld [vmem:[%s1 + $0x10] sm:$0xff]
      %v206 = vld [vmem:[%s1 + $0x18] sm:$0xff]
      %v207 = vld [vmem:[%s1 + $0x20] sm:$0xf]
      %v208 = vld [vmem:[%s2] sm:$0x1]
      %v210 = vlaneseq
      %v211 = vshrl.u32 %v210, 7
      %v212 = vsub.s32 0, %v211
      %v213 = vrot.slane %v208, %v212
      %vm215 = vcmask 293888
      %v217 = vsel %vm215, %v171, 0
      %v220 = vsel %vm215, %v172, 0
      %v223 = vsel %vm215, %v173, 0
      %v226 = vsel %vm215, %v174, 0
      %v229 = vsel %vm215, %v175, 0
      %v232 = vsel %vm215, %v176, 0
      %v235 = vsel %vm215, %v177, 0
      %v238 = vsel %vm215, %v178, 0
      %v241 = vsel %vm215, %v179, 0
      %v244 = vsel %vm215, %v180, 0
      %v247 = vsel %vm215, %v181, 0
      %v250 = vsel %vm215, %v182, 0
      %v253 = vsel %vm215, %v183, 0
      %v256 = vsel %vm215, %v184, 0
      %v259 = vsel %vm215, %v185, 0
      %v262 = vsel %vm215, %v186, 0
      %v265 = vsel %vm215, %v187, 0
      %v268 = vsel %vm215, %v188, 0
      %v271 = vsel %vm215, %v189, 0
      %v274 = vsel %vm215, %v190, 0
      %v277 = vsel %vm215, %v191, 0
      %v280 = vsel %vm215, %v192, 0
      %v283 = vsel %vm215, %v193, 0
      %v286 = vsel %vm215, %v194, 0
      %v289 = vsel %vm215, %v195, 0
      %v292 = vsel %vm215, %v196, 0
      %v295 = vsel %vm215, %v197, 0
      %v298 = vsel %vm215, %v198, 0
      %v301 = vsel %vm215, %v199, 0
      %v304 = vsel %vm215, %v200, 0
      %v307 = vsel %vm215, %v201, 0
      %v310 = vsel %vm215, %v202, 0
      %vm312 = vcmask 1043456
      %v314 = vsel %vm312, %v207, 0
      %316 = vmatprep.subr.mxu0 0.0
      %317 = vmatpush1.msra.mxu0 %v203
      %318 = vmatprep.subr.mxu0 0.0
      %319 = vmatpush1.msra.mxu0 %v204
      %320 = vmatprep.subr.mxu0 0.0
      %321 = vmatpush1.msra.mxu0 %v205
      %322 = vmatprep.subr.mxu0 0.0
      %323 = vmatpush1.msra.mxu0 %v206
      %324 = vmatprep.subr.mxu0 0.0
      %325 = vmatpush1.msra.mxu0 %v314
      %326 = vmatprep.subr.mxu0 0.0
      %327 = vmatpush1.msra.mxu0 0.0
      %328 = vmatprep.subr.mxu0 0.0
      %329 = vmatpush1.msra.mxu0 0.0
      %330 = vmatprep.subr.mxu0 0.0
      %331 = vmatpush1.msra.mxu0 0.0
      %332 = vmatprep.subr.mxu0 0.0
      %333 = vmatpush1.msra.mxu0 0.0
      %334 = vmatprep.subr.mxu0 0.0
      %335 = vmatpush1.msra.mxu0 0.0
      %336 = vmatprep.subr.mxu0 0.0
      %337 = vmatpush1.msra.mxu0 0.0
      %338 = vmatprep.subr.mxu0 0.0
      %339 = vmatpush1.msra.mxu0 0.0
      %340 = vmatprep.subr.mxu0 0.0
      %341 = vmatpush1.msra.mxu0 0.0
      %342 = vmatprep.subr.mxu0 0.0
      %343 = vmatpush1.msra.mxu0 0.0
      %344 = vmatprep.subr.mxu0 0.0
      %345 = vmatpush1.msra.mxu0 0.0
      %346 = vmatprep.subr.mxu0 0.0
      %347 = vmatpush1.msra.mxu0 0.0
      %348 = vmatprep.subr.mxu0 0.0
      %349 = vmatpush1.msra.mxu0 0.0
      %350 = vmatprep.subr.mxu0 0.0
      %351 = vmatpush1.msra.mxu0 0.0
      %352 = vmatprep.subr.mxu0 0.0
      %353 = vmatpush1.msra.mxu0 0.0
      %354 = vmatprep.subr.mxu0 0.0
      %355 = vmatpush1.msra.mxu0 0.0
      %356 = vmatprep.subr.mxu0 0.0
      %357 = vmatpush1.msra.mxu0 0.0
      %358 = vmatprep.subr.mxu0 0.0
      %359 = vmatpush1.msra.mxu0 0.0
      %360 = vmatprep.subr.mxu0 0.0
      %361 = vmatpush1.msra.mxu0 0.0
      %362 = vmatprep.subr.mxu0 0.0
      %363 = vmatpush1.msra.mxu0 0.0
      %364 = vmatprep.subr.mxu0 0.0
      %365 = vmatpush1.msra.mxu0 0.0
      %366 = vmatprep.subr.mxu0 0.0
      %367 = vmatpush1.msra.mxu0 0.0
      %368 = vmatprep.subr.mxu0 0.0
      %369 = vmatpush1.msra.mxu0 0.0
      %370 = vmatprep.subr.mxu0 0.0
      %371 = vmatpush1.msra.mxu0 0.0
      %372 = vmatprep.subr.mxu0 0.0
      %373 = vmatpush1.msra.mxu0 0.0
      %374 = vmatprep.subr.mxu0 0.0
      %375 = vmatpush1.msra.mxu0 0.0
      %376 = vmatprep.subr.mxu0 0.0
      %377 = vmatpush1.msra.mxu0 0.0
      %378 = vmatprep.subr.mxu0 0.0
      %379 = vmatpush1.msra.mxu0 0.0
      %380 = vmatprep.mubr.f32.mxu0 0.0
      %381 = vmatmul.mubr.f32.gmra.mrb[0].mxu0 %v217
      %v382 = vpop.f32.mrb[0].mxu0
      %v383 = vadd.f32 %v213, %v382
      %v384 = vpop.f32.mrb[0].mxu0
      %385 = vmatprep.mubr.f32.mxu0 0.0
      %386 = vmatmul.mubr.f32.gmra.mrb[0].mxu0 %v220
      %v387 = vpop.f32.mrb[0].mxu0
      %v388 = vadd.f32 %v213, %v387
      %v389 = vpop.f32.mrb[0].mxu0
      %390 = vmatprep.mubr.f32.mxu0 0.0
      %391 = vmatmul.mubr.f32.gmra.mrb[0].mxu0 %v223
      %v392 = vpop.f32.mrb[0].mxu0
      %v393 = vadd.f32 %v213, %v392
      %v394 = vpop.f32.mrb[0].mxu0
      %395 = vmatprep.mubr.f32.mxu0 0.0
      %396 = vmatmul.mubr.f32.gmra.mrb[0].mxu0 %v226
      %v397 = vpop.f32.mrb[0].mxu0
      %v398 = vadd.f32 %v213, %v397
      %v399 = vpop.f32.mrb[0].mxu0
      %400 = vmatprep.mubr.f32.mxu0 0.0
      %401 = vmatmul.mubr.f32.gmra.mrb[0].mxu0 %v229
      %v402 = vpop.f32.mrb[0].mxu0
      %v403 = vadd.f32 %v213, %v402
      %v404 = vpop.f32.mrb[0].mxu0
      %405 = vmatprep.mubr.f32.mxu0 0.0
      %406 = vmatmul.mubr.f32.gmra.mrb[0].mxu0 %v232
      %v407 = vpop.f32.mrb[0].mxu0
      %v408 = vadd.f32 %v213, %v407
      %v409 = vpop.f32.mrb[0].mxu0
      %410 = vmatprep.mubr.f32.mxu0 0.0
      %411 = vmatmul.mubr.f32.gmra.mrb[0].mxu0 %v235
      %v412 = vpop.f32.mrb[0].mxu0
      %v413 = vadd.f32 %v213, %v412
      %v414 = vpop.f32.mrb[0].mxu0
      %415 = vmatprep.mubr.f32.mxu0 0.0
      %416 = vmatmul.mubr.f32.gmra.mrb[0].mxu0 %v238
      %v417 = vpop.f32.mrb[0].mxu0
      %v418 = vadd.f32 %v213, %v417
      %v419 = vpop.f32.mrb[0].mxu0
      %420 = vmatprep.mubr.f32.mxu0 0.0
      %421 = vmatmul.mubr.f32.gmra.mrb[0].mxu0 %v241
      %v422 = vpop.f32.mrb[0].mxu0
      %v423 = vadd.f32 %v213, %v422
      %v424 = vpop.f32.mrb[0].mxu0
      %425 = vmatprep.mubr.f32.mxu0 0.0
      %426 = vmatmul.mubr.f32.gmra.mrb[0].mxu0 %v244
      %v427 = vpop.f32.mrb[0].mxu0
      %v428 = vadd.f32 %v213, %v427
      %v429 = vpop.f32.mrb[0].mxu0
      %430 = vmatprep.mubr.f32.mxu0 0.0
      %431 = vmatmul.mubr.f32.gmra.mrb[0].mxu0 %v247
      %v432 = vpop.f32.mrb[0].mxu0
      %v433 = vadd.f32 %v213, %v432
      %v434 = vpop.f32.mrb[0].mxu0
      %435 = vmatprep.mubr.f32.mxu0 0.0
      %436 = vmatmul.mubr.f32.gmra.mrb[0].mxu0 %v250
      %v437 = vpop.f32.mrb[0].mxu0
      %v438 = vadd.f32 %v213, %v437
      %v439 = vpop.f32.mrb[0].mxu0
      %440 = vmatprep.mubr.f32.mxu0 0.0
      %441 = vmatmul.mubr.f32.gmra.mrb[0].mxu0 %v253
      %v442 = vpop.f32.mrb[0].mxu0
      %v443 = vadd.f32 %v213, %v442
      %v444 = vpop.f32.mrb[0].mxu0
      %445 = vmatprep.mubr.f32.mxu0 0.0
      %446 = vmatmul.mubr.f32.gmra.mrb[0].mxu0 %v256
      %v447 = vpop.f32.mrb[0].mxu0
      %v448 = vadd.f32 %v213, %v447
      %v449 = vpop.f32.mrb[0].mxu0
      %450 = vmatprep.mubr.f32.mxu0 0.0
      %451 = vmatmul.mubr.f32.gmra.mrb[0].mxu0 %v259
      %v452 = vpop.f32.mrb[0].mxu0
      %v453 = vadd.f32 %v213, %v452
      %v454 = vpop.f32.mrb[0].mxu0
      %455 = vmatprep.mubr.f32.mxu0 0.0
      %456 = vmatmul.mubr.f32.gmra.mrb[0].mxu0 %v262
      %v457 = vpop.f32.mrb[0].mxu0
      %v458 = vadd.f32 %v213, %v457
      %v459 = vpop.f32.mrb[0].mxu0
      %460 = vmatprep.mubr.f32.mxu0 0.0
      %461 = vmatmul.mubr.f32.gmra.mrb[0].mxu0 %v265
      %v462 = vpop.f32.mrb[0].mxu0
      %v463 = vadd.f32 %v213, %v462
      %v464 = vpop.f32.mrb[0].mxu0
      %465 = vmatprep.mubr.f32.mxu0 0.0
      %466 = vmatmul.mubr.f32.gmra.mrb[0].mxu0 %v268
      %v467 = vpop.f32.mrb[0].mxu0
      %v468 = vadd.f32 %v213, %v467
      %v469 = vpop.f32.mrb[0].mxu0
      %470 = vmatprep.mubr.f32.mxu0 0.0
      %471 = vmatmul.mubr.f32.gmra.mrb[0].mxu0 %v271
      %v472 = vpop.f32.mrb[0].mxu0
      %v473 = vadd.f32 %v213, %v472
      %v474 = vpop.f32.mrb[0].mxu0
      %475 = vmatprep.mubr.f32.mxu0 0.0
      %476 = vmatmul.mubr.f32.gmra.mrb[0].mxu0 %v274
      %v477 = vpop.f32.mrb[0].mxu0
      %v478 = vadd.f32 %v213, %v477
      %v479 = vpop.f32.mrb[0].mxu0
      %480 = vmatprep.mubr.f32.mxu0 0.0
      %481 = vmatmul.mubr.f32.gmra.mrb[0].mxu0 %v277
      %v482 = vpop.f32.mrb[0].mxu0
      %v483 = vadd.f32 %v213, %v482
      %v484 = vpop.f32.mrb[0].mxu0
      %485 = vmatprep.mubr.f32.mxu0 0.0
      %486 = vmatmul.mubr.f32.gmra.mrb[0].mxu0 %v280
      %v487 = vpop.f32.mrb[0].mxu0
      %v488 = vadd.f32 %v213, %v487
      %v489 = vpop.f32.mrb[0].mxu0
      %490 = vmatprep.mubr.f32.mxu0 0.0
      %491 = vmatmul.mubr.f32.gmra.mrb[0].mxu0 %v283
      %v492 = vpop.f32.mrb[0].mxu0
      %v493 = vadd.f32 %v213, %v492
      %v494 = vpop.f32.mrb[0].mxu0
      %495 = vmatprep.mubr.f32.mxu0 0.0
      %496 = vmatmul.mubr.f32.gmra.mrb[0].mxu0 %v286
      %v497 = vpop.f32.mrb[0].mxu0
      %v498 = vadd.f32 %v213, %v497
      %v499 = vpop.f32.mrb[0].mxu0
      %500 = vmatprep.mubr.f32.mxu0 0.0
      %501 = vmatmul.mubr.f32.gmra.mrb[0].mxu0 %v289
      %v502 = vpop.f32.mrb[0].mxu0
      %v503 = vadd.f32 %v213, %v502
      %v504 = vpop.f32.mrb[0].mxu0
      %505 = vmatprep.mubr.f32.mxu0 0.0
      %506 = vmatmul.mubr.f32.gmra.mrb[0].mxu0 %v292
      %v507 = vpop.f32.mrb[0].mxu0
      %v508 = vadd.f32 %v213, %v507
      %v509 = vpop.f32.mrb[0].mxu0
      %510 = vmatprep.mubr.f32.mxu0 0.0
      %511 = vmatmul.mubr.f32.gmra.mrb[0].mxu0 %v295
      %v512 = vpop.f32.mrb[0].mxu0
      %v513 = vadd.f32 %v213, %v512
      %v514 = vpop.f32.mrb[0].mxu0
      %515 = vmatprep.mubr.f32.mxu0 0.0
      %516 = vmatmul.mubr.f32.gmra.mrb[0].mxu0 %v298
      %v517 = vpop.f32.mrb[0].mxu0
      %v518 = vadd.f32 %v213, %v517
      %v519 = vpop.f32.mrb[0].mxu0
      %520 = vmatprep.mubr.f32.mxu0 0.0
      %521 = vmatmul.mubr.f32.gmra.mrb[0].mxu0 %v301
      %v522 = vpop.f32.mrb[0].mxu0
      %v523 = vadd.f32 %v213, %v522
      %v524 = vpop.f32.mrb[0].mxu0
      %525 = vmatprep.mubr.f32.mxu0 0.0
      %526 = vmatmul.mubr.f32.gmra.mrb[0].mxu0 %v304
      %v527 = vpop.f32.mrb[0].mxu0
      %v528 = vadd.f32 %v213, %v527
      %v529 = vpop.f32.mrb[0].mxu0
      %530 = vmatprep.mubr.f32.mxu0 0.0
      %531 = vmatmul.mubr.f32.gmra.mrb[0].mxu0 %v307
      %v532 = vpop.f32.mrb[0].mxu0
      %v533 = vadd.f32 %v213, %v532
      %v534 = vpop.f32.mrb[0].mxu0
      %535 = vmatprep.mubr.f32.mxu0 0.0
      %536 = vmatmul.mubr.f32.gmra.mrb[0].mxu0 %v310
      %v537 = vpop.f32.mrb[0].mxu0
      %v538 = vadd.f32 %v213, %v537
      %v539 = vpop.f32.mrb[0].mxu0
      %540 = vdwg.mxu0
      %vm541 = vcmask 130048
      %542 = vst.msk [vmem:[%s170] sm:$0xff] %vm541, %v383
      %543 = vst.msk [vmem:[%s170 + $0x8] sm:$0xff] %vm541, %v388
      %544 = vst.msk [vmem:[%s170 + $0x10] sm:$0xff] %vm541, %v393
      %545 = vst.msk [vmem:[%s170 + $0x18] sm:$0xff] %vm541, %v398
      %546 = vst.msk [vmem:[%s170 + $0x20] sm:$0xff] %vm541, %v403
      %547 = vst.msk [vmem:[%s170 + $0x28] sm:$0xff] %vm541, %v408
      %548 = vst.msk [vmem:[%s170 + $0x30] sm:$0xff] %vm541, %v413
      %549 = vst.msk [vmem:[%s170 + $0x38] sm:$0xff] %vm541, %v418
      %550 = vst.msk [vmem:[%s170 + $0x40] sm:$0xff] %vm541, %v423
      %551 = vst.msk [vmem:[%s170 + $0x48] sm:$0xff] %vm541, %v428
      %552 = vst.msk [vmem:[%s170 + $0x50] sm:$0xff] %vm541, %v433
      %553 = vst.msk [vmem:[%s170 + $0x58] sm:$0xff] %vm541, %v438
      %554 = vst.msk [vmem:[%s170 + $0x60] sm:$0xff] %vm541, %v443
      %555 = vst.msk [vmem:[%s170 + $0x68] sm:$0xff] %vm541, %v448
      %556 = vst.msk [vmem:[%s170 + $0x70] sm:$0xff] %vm541, %v453
      %557 = vst.msk [vmem:[%s170 + $0x78] sm:$0xff] %vm541, %v458
      %558 = vst.msk [vmem:[%s170 + $0x80] sm:$0xff] %vm541, %v463
      %559 = vst.msk [vmem:[%s170 + $0x88] sm:$0xff] %vm541, %v468
      %560 = vst.msk [vmem:[%s170 + $0x90] sm:$0xff] %vm541, %v473
      %561 = vst.msk [vmem:[%s170 + $0x98] sm:$0xff] %vm541, %v478
      %562 = vst.msk [vmem:[%s170 + $0xa0] sm:$0xff] %vm541, %v483
      %563 = vst.msk [vmem:[%s170 + $0xa8] sm:$0xff] %vm541, %v488
      %564 = vst.msk [vmem:[%s170 + $0xb0] sm:$0xff] %vm541, %v493
      %565 = vst.msk [vmem:[%s170 + $0xb8] sm:$0xff] %vm541, %v498
      %566 = vst.msk [vmem:[%s170 + $0xc0] sm:$0xff] %vm541, %v503
      %567 = vst.msk [vmem:[%s170 + $0xc8] sm:$0xff] %vm541, %v508
      %568 = vst.msk [vmem:[%s170 + $0xd0] sm:$0xff] %vm541, %v513
      %569 = vst.msk [vmem:[%s170 + $0xd8] sm:$0xff] %vm541, %v518
      %570 = vst.msk [vmem:[%s170 + $0xe0] sm:$0xff] %vm541, %v523
      %571 = vst.msk [vmem:[%s170 + $0xe8] sm:$0xff] %vm541, %v528
      %572 = vst.msk [vmem:[%s170 + $0xf0] sm:$0xff] %vm541, %v533
      %573 = vst.msk [vmem:[%s170 + $0xf8] sm:$0xff] %vm541, %v538
      %p574 = scmp.lt.s32.totalorder %s14, 1
      %s575 = scalar_select %p574, %s14, 1
      %s576 = smul.addr %s575, 32
      %s577 = smul.addr %s576, 8
      %s578 = scalar_lea.vmem %s3, %s577
      // Predicated region
      $region33: #{unet_forward.15} parent=31 // pred_check
        %p579 = pneg %p100
      $region34: #{unet_forward.15} parent=31 // pred_check_branch
        %581 = sbr.rel (%p579) target = $region36
      $region35: #{unet_forward.15} parent=31 // pred_region
        _
      $region36: #{unet_forward.15} parent=31 // pred_fallthru
        _
    $region32: #{unet_forward.15} parent=5 // pred_fallthru
      _
    %p582 = scmp.le.s32.totalorder 2, %s9
    // Predicated region
    $region37: #{unet_forward.15} parent=5 // pred_check
      %p583 = pneg %p582
    $region38: #{unet_forward.15} parent=5 // pred_check_branch
      %585 = sbr.rel (%p583) target = $region40
    $region39: #{unet_forward.15} parent=5 // pred_region
      %s586 = ssub.s32 %s9, 2
      // Predicated region
      $region41: #{unet_forward.15} parent=39 // pred_check
        %p587 = pneg %p106
      $region42: #{unet_forward.15} parent=39 // pred_check_branch
        %589 = sbr.rel (%p587) target = $region44
      $region43: #{unet_forward.15} parent=39 // pred_region
        %p590 = scmp.lt.s32.totalorder %s15, 1
        %s591 = scalar_select %p590, %s15, 1
        %s592 = smul.addr %s591, 32
        %s593 = smul.addr %s592, 8
        %s594 = scalar_lea.vmem %s3, %s593
      $region44: #{unet_forward.15} parent=39 // pred_fallthru
        _
    $region40: #{unet_forward.15} parent=5 // pred_fallthru
      _
  $region6: #{unet_forward.15} parent=0 // loop_footer
    %s13 = sadd.s32 1, %s9
  $region7: #{unet_forward.15} parent=0 // loop_footer_branch
    %8 = sbr.rel target = $region3
  $region8: #{unet_forward.15} parent=0 // loop_exit
    _

// kernel: unet_forward.16
$region0: #{unet_forward.16}
  #allocation0 [shape = 'u32[]', space=smem, size = 0x4, offset = 0x4, fixed_abs, tag = 'smem constant byte address 0x4 - core index']
  #allocation1 [shape = 'u32[144,128]{1,0:T(1,128)}', space=vmem, size = 0x12000, scoped, tag = 'internal scratch']
  %s0 = inlined_call_operand.vmem [shape: f32[2,256,144], index: 0, kind: input, shape index: {}]
  %s1 = inlined_call_operand.vmem [shape: f32[144,32], index: 1, kind: input, shape index: {}]
  %s2 = inlined_call_operand.vmem [shape: f32[1,32], index: 2, kind: input, shape index: {}]
  %s3 = inlined_call_operand.vmem [shape: f32[2,256,32], index: 3, kind: output, shape index: {}]
  %s4 = sld [smem:[#allocation0]]
  $region45: #{unet_forward.16} parent=0
    _
  %s6 = ssub.s32 1, %s4
  %s7 = scalar_select 0, %s6, %s4
  loop: start=0, step=1, limit=4
  $region2: #{unet_forward.16} parent=0 // loop_pre_header
    _
  $region3: #{unet_forward.16} parent=0 // loop_header
    %s9 = sphi 0, %s13
    %p10 = scmp.ge.s32.totalorder %s9, 4
    %s19 = sphi 0, %s21
    %s22 = sphi 0, %s19
    %s23 = sphi 0, %s22
    %s39 = sphi 0, %s23
    %s43 = sphi 0, %s43
    %s45 = sphi 0, %s43
    %s46 = sphi 0, %s45
    %s60 = sphi 0, %s46
    %s64 = sphi 0, %s64
    %s66 = sphi 0, %s64
    %s67 = sphi 0, %s66
    %s81 = sphi 0, %s67
    %s87 = sphi 0, %s89
    %s90 = sphi 0, %s87
    %s91 = sphi 0, %s90
    %s107 = sphi 0, %s91
  $region4: #{unet_forward.16} parent=0 // loop_header_branch
    %12 = sbr.rel (%p10) target = $region8
  $region5: #{unet_forward.16} parent=0 // loop_body
    %s14 = ssub.s32 %s9, 1
    %s15 = ssub.s32 %s9, 2
    %s16 = sadd.s32 %s9, 1
    %s17 = ssub.s32 %s9, %s16
    %p18 = scmp.eq.s32.totalorder %s17, 0
    %s20 = sadd.s32 %s19, 1
    %s21 = scalar_select %p18, %s19, %s20
    %p24 = pneg %p18
    %p25 = scmp.eq.s32.totalorder %s9, 1
    %p26 = por %p24, %p25
    %p27 = scmp.ne.s32.totalorder %s19, %s22
    %p28 = scmp.eq.s32.totalorder %s9, 0
    %p29 = por %p27, %p28
    %p30 = scmp.ne.s32.totalorder %s19, %s22
    %p31 = scmp.eq.s32.totalorder %s14, 1
    %p32 = por %p30, %p31
    %p33 = scmp.ne.s32.totalorder %s22, %s23
    %p34 = scmp.eq.s32.totalorder %s14, 0
    %p35 = por %p33, %p34
    %p36 = scmp.ne.s32.totalorder %s22, %s23
    %p37 = scmp.eq.s32.totalorder %s15, 1
    %p38 = por %p36, %p37
    %p40 = scmp.ne.s32.totalorder %s23, %s39
    %p41 = scmp.eq.s32.totalorder %s15, 0
    %p42 = por %p40, %p41
    %s44 = sadd.s32 %s43, 1
    %p47 = scmp.eq.s32.totalorder %s9, 1
    %p48 = scmp.ne.s32.totalorder %s43, %s45
    %p49 = scmp.eq.s32.totalorder %s9, 0
    %p50 = por %p48, %p49
    %p51 = scmp.ne.s32.totalorder %s43, %s45
    %p52 = scmp.eq.s32.totalorder %s14, 1
    %p53 = por %p51, %p52
    %p54 = scmp.ne.s32.totalorder %s45, %s46
    %p55 = scmp.eq.s32.totalorder %s14, 0
    %p56 = por %p54, %p55
    %p57 = scmp.ne.s32.totalorder %s45, %s46
    %p58 = scmp.eq.s32.totalorder %s15, 1
    %p59 = por %p57, %p58
    %p61 = scmp.ne.s32.totalorder %s46, %s60
    %p62 = scmp.eq.s32.totalorder %s15, 0
    %p63 = por %p61, %p62
    %s65 = sadd.s32 %s64, 1
    %p68 = scmp.eq.s32.totalorder %s9, 1
    %p69 = scmp.ne.s32.totalorder %s64, %s66
    %p70 = scmp.eq.s32.totalorder %s9, 0
    %p71 = por %p69, %p70
    %p72 = scmp.ne.s32.totalorder %s64, %s66
    %p73 = scmp.eq.s32.totalorder %s14, 1
    %p74 = por %p72, %p73
    %p75 = scmp.ne.s32.totalorder %s66, %s67
    %p76 = scmp.eq.s32.totalorder %s14, 0
    %p77 = por %p75, %p76
    %p78 = scmp.ne.s32.totalorder %s66, %s67
    %p79 = scmp.eq.s32.totalorder %s15, 1
    %p80 = por %p78, %p79
    %p82 = scmp.ne.s32.totalorder %s67, %s81
    %p83 = scmp.eq.s32.totalorder %s15, 0
    %p84 = por %p82, %p83
    %s85 = ssub.s32 %s9, %s16
    %p86 = scmp.eq.s32.totalorder %s85, 0
    %s88 = sadd.s32 %s87, 1
    %s89 = scalar_select %p86, %s87, %s88
    %p92 = pneg %p86
    %p93 = scmp.eq.s32.totalorder %s9, 1
    %p94 = por %p92, %p93
    %p95 = scmp.ne.s32.totalorder %s87, %s90
    %p96 = scmp.eq.s32.totalorder %s9, 0
    %p97 = por %p95, %p96
    %p98 = scmp.ne.s32.totalorder %s87, %s90
    %p99 = scmp.eq.s32.totalorder %s14, 1
    %p100 = por %p98, %p99
    %p101 = scmp.ne.s32.totalorder %s90, %s91
    %p102 = scmp.eq.s32.totalorder %s14, 0
    %p103 = por %p101, %p102
    %p104 = scmp.ne.s32.totalorder %s90, %s91
    %p105 = scmp.eq.s32.totalorder %s15, 1
    %p106 = por %p104, %p105
    %p108 = scmp.ne.s32.totalorder %s91, %s107
    %p109 = scmp.eq.s32.totalorder %s15, 0
    %p110 = por %p108, %p109
    %p111 = scmp.le.s32.totalorder 1, %s9
    %p112 = scmp.lt.s32.totalorder %s9, 3
    %p113 = pnand %p111, %p112
    %p114 = pneg %p113
    // Predicated region
    $region9: #{unet_forward.16} parent=5 // pred_check
      _
    $region10: #{unet_forward.16} parent=5 // pred_check_branch
      %116 = sbr.rel (%p113) target = $region12
    $region11: #{unet_forward.16} parent=5 // pred_region
      %s117 = ssub.s32 %s9, 1
      // Predicated region
      $region13: #{unet_forward.16} parent=11 // pred_check
        %p118 = pneg %p56
      $region14: #{unet_forward.16} parent=11 // pred_check_branch
        %120 = sbr.rel (%p118) target = $region16
      $region15: #{unet_forward.16} parent=11 // pred_region
        _
      $region16: #{unet_forward.16} parent=11 // pred_fallthru
        _
      // Predicated region
      $region17: #{unet_forward.16} parent=11 // pred_check
        %p121 = pneg %p77
      $region18: #{unet_forward.16} parent=11 // pred_check_branch
        %123 = sbr.rel (%p121) target = $region20
      $region19: #{unet_forward.16} parent=11 // pred_region
        _
      $region20: #{unet_forward.16} parent=11 // pred_fallthru
        _
    $region12: #{unet_forward.16} parent=5 // pred_fallthru
      _
    %p124 = scmp.lt.s32.totalorder %s9, 2
    // Predicated region
    $region21: #{unet_forward.16} parent=5 // pred_check
      %p125 = pneg %p124
    $region22: #{unet_forward.16} parent=5 // pred_check_branch
      %127 = sbr.rel (%p125) target = $region24
    $region23: #{unet_forward.16} parent=5 // pred_region
      // Predicated region
      $region25: #{unet_forward.16} parent=23 // pred_check
        %p128 = pneg %p29
      $region26: #{unet_forward.16} parent=23 // pred_check_branch
        %130 = sbr.rel (%p128) target = $region28
      $region27: #{unet_forward.16} parent=23 // pred_region
        %p131 = scmp.lt.s32.totalorder %s9, 1
        %s132 = scalar_select %p131, %s9, 1
        %s133 = smul.addr %s132, 64
        %s134 = smul.addr %s133, 8
        %s135 = scalar_lea.vmem %s0, %s134
      $region28: #{unet_forward.16} parent=23 // pred_fallthru
        _
    $region24: #{unet_forward.16} parent=5 // pred_fallthru
      _
    %p136 = scmp.le.s32.totalorder 1, %s9
    %p137 = scmp.lt.s32.totalorder %s9, 3
    %p138 = pnand %p136, %p137
    %p139 = pneg %p138
    // Predicated region
    $region29: #{unet_forward.16} parent=5 // pred_check
      _
    $region30: #{unet_forward.16} parent=5 // pred_check_branch
      %141 = sbr.rel (%p138) target = $region32
    $region31: #{unet_forward.16} parent=5 // pred_region
      %s142 = ssub.s32 %s9, 1
      %p143 = scmp.lt.s32.totalorder %s14, 1
      %s144 = scalar_select %p143, %s14, 1
      %s145 = smul.addr %s144, 64
      %s146 = smul.addr %s145, 8
      %s147 = scalar_lea.vmem %s0, %s146
      %p148 = pneg %p35
      %p149 = pneg %p32
      %p150 = pneg %p56
      %p151 = pneg %p53
      %p152 = pneg %p77
      %p153 = pneg %p74
      %p154 = pneg %p103
      %p155 = pneg %p100
      %p156 = scmp.lt.s32.totalorder %s14, 1
      %s157 = scalar_select %p156, %s14, 1
      %s158 = smul.addr %s157, 32
      %s159 = smul.addr %s158, 8
      %s160 = scalar_lea.vmem %s3, %s159
      %p161 = scmp.lt.s32.totalorder %s14, 1
      %s162 = scalar_select %p161, %s14, 1
      %s163 = smul.addr %s162, 64
      %s164 = smul.addr %s163, 8
      %s165 = scalar_lea.vmem %s0, %s164
      %p166 = scmp.lt.s32.totalorder %s14, 1
      %s167 = scalar_select %p166, %s14, 1
      %s168 = smul.addr %s167, 32
      %s169 = smul.addr %s168, 8
      %s170 = scalar_lea.vmem %s3, %s169
      %v171 = vld [vmem:[%s165] sm:$0xff]
      %v172 = vld [vmem:[%s165 + $0x8] sm:$0xff]
      %v173 = vld [vmem:[%s165 + $0x10] sm:$0xff]
      %v174 = vld [vmem:[%s165 + $0x18] sm:$0xff]
      %v175 = vld [vmem:[%s165 + $0x20] sm:$0xff]
      %v176 = vld [vmem:[%s165 + $0x28] sm:$0xff]
      %v177 = vld [vmem:[%s165 + $0x30] sm:$0xff]
      %v178 = vld [vmem:[%s165 + $0x38] sm:$0xff]
      %v179 = vld [vmem:[%s165 + $0x40] sm:$0xff]
      %v180 = vld [vmem:[%s165 + $0x48] sm:$0xff]
      %v181 = vld [vmem:[%s165 + $0x50] sm:$0xff]
      %v182 = vld [vmem:[%s165 + $0x58] sm:$0xff]
      %v183 = vld [vmem:[%s165 + $0x60] sm:$0xff]
      %v184 = vld [vmem:[%s165 + $0x68] sm:$0xff]
      %v185 = vld [vmem:[%s165 + $0x70] sm:$0xff]
      %v186 = vld [vmem:[%s165 + $0x78] sm:$0xff]
      %v187 = vld [vmem:[%s165 + $0x80] sm:$0xff]
      %v188 = vld [vmem:[%s165 + $0x88] sm:$0xff]
      %v189 = vld [vmem:[%s165 + $0x90] sm:$0xff]
      %v190 = vld [vmem:[%s165 + $0x98] sm:$0xff]
      %v191 = vld [vmem:[%s165 + $0xa0] sm:$0xff]
      %v192 = vld [vmem:[%s165 + $0xa8] sm:$0xff]
      %v193 = vld [vmem:[%s165 + $0xb0] sm:$0xff]
      %v194 = vld [vmem:[%s165 + $0xb8] sm:$0xff]
      %v195 = vld [vmem:[%s165 + $0xc0] sm:$0xff]
      %v196 = vld [vmem:[%s165 + $0xc8] sm:$0xff]
      %v197 = vld [vmem:[%s165 + $0xd0] sm:$0xff]
      %v198 = vld [vmem:[%s165 + $0xd8] sm:$0xff]
      %v199 = vld [vmem:[%s165 + $0xe0] sm:$0xff]
      %v200 = vld [vmem:[%s165 + $0xe8] sm:$0xff]
      %v201 = vld [vmem:[%s165 + $0xf0] sm:$0xff]
      %v202 = vld [vmem:[%s165 + $0xf8] sm:$0xff]
      %v203 = vld [vmem:[%s165 + $0x100] sm:$0xff]
      %v204 = vld [vmem:[%s165 + $0x108] sm:$0xff]
      %v205 = vld [vmem:[%s165 + $0x110] sm:$0xff]
      %v206 = vld [vmem:[%s165 + $0x118] sm:$0xff]
      %v207 = vld [vmem:[%s165 + $0x120] sm:$0xff]
      %v208 = vld [vmem:[%s165 + $0x128] sm:$0xff]
      %v209 = vld [vmem:[%s165 + $0x130] sm:$0xff]
      %v210 = vld [vmem:[%s165 + $0x138] sm:$0xff]
      %v211 = vld [vmem:[%s165 + $0x140] sm:$0xff]
      %v212 = vld [vmem:[%s165 + $0x148] sm:$0xff]
      %v213 = vld [vmem:[%s165 + $0x150] sm:$0xff]
      %v214 = vld [vmem:[%s165 + $0x158] sm:$0xff]
      %v215 = vld [vmem:[%s165 + $0x160] sm:$0xff]
      %v216 = vld [vmem:[%s165 + $0x168] sm:$0xff]
      %v217 = vld [vmem:[%s165 + $0x170] sm:$0xff]
      %v218 = vld [vmem:[%s165 + $0x178] sm:$0xff]
      %v219 = vld [vmem:[%s165 + $0x180] sm:$0xff]
      %v220 = vld [vmem:[%s165 + $0x188] sm:$0xff]
      %v221 = vld [vmem:[%s165 + $0x190] sm:$0xff]
      %v222 = vld [vmem:[%s165 + $0x198] sm:$0xff]
      %v223 = vld [vmem:[%s165 + $0x1a0] sm:$0xff]
      %v224 = vld [vmem:[%s165 + $0x1a8] sm:$0xff]
      %v225 = vld [vmem:[%s165 + $0x1b0] sm:$0xff]
      %v226 = vld [vmem:[%s165 + $0x1b8] sm:$0xff]
      %v227 = vld [vmem:[%s165 + $0x1c0] sm:$0xff]
      %v228 = vld [vmem:[%s165 + $0x1c8] sm:$0xff]
      %v229 = vld [vmem:[%s165 + $0x1d0] sm:$0xff]
      %v230 = vld [vmem:[%s165 + $0x1d8] sm:$0xff]
      %v231 = vld [vmem:[%s165 + $0x1e0] sm:$0xff]
      %v232 = vld [vmem:[%s165 + $0x1e8] sm:$0xff]
      %v233 = vld [vmem:[%s165 + $0x1f0] sm:$0xff]
      %v234 = vld [vmem:[%s165 + $0x1f8] sm:$0xff]
      %v235 = vld [vmem:[%s1] sm:$0xff]
      %v236 = vld [vmem:[%s1 + $0x8] sm:$0xff]
      %v237 = vld [vmem:[%s1 + $0x10] sm:$0xff]
      %v238 = vld [vmem:[%s1 + $0x18] sm:$0xff]
      %v239 = vld [vmem:[%s1 + $0x20] sm:$0xff]
      %v240 = vld [vmem:[%s1 + $0x28] sm:$0xff]
      %v241 = vld [vmem:[%s1 + $0x30] sm:$0xff]
      %v242 = vld [vmem:[%s1 + $0x38] sm:$0xff]
      %v243 = vld [vmem:[%s1 + $0x40] sm:$0xff]
      %v244 = vld [vmem:[%s1 + $0x48] sm:$0xff]
      %v245 = vld [vmem:[%s1 + $0x50] sm:$0xff]
      %v246 = vld [vmem:[%s1 + $0x58] sm:$0xff]
      %v247 = vld [vmem:[%s1 + $0x60] sm:$0xff]
      %v248 = vld [vmem:[%s1 + $0x68] sm:$0xff]
      %v249 = vld [vmem:[%s1 + $0x70] sm:$0xff]
      %v250 = vld [vmem:[%s1 + $0x78] sm:$0xff]
      %v251 = vld [vmem:[%s1 + $0x80] sm:$0xff]
      %v252 = vld [vmem:[%s1 + $0x88] sm:$0xff]
      %v253 = vld [vmem:[%s2] sm:$0x1]
      %v255 = vlaneseq
      %v256 = vshrl.u32 %v255, 7
      %v257 = vsub.s32 0, %v256
      %v258 = vrot.slane %v253, %v257
      %vm260 = vcmask 130048
      %v262 = vsel %vm260, %v172, 0
      %v265 = vsel %vm260, %v174, 0
      %v268 = vsel %vm260, %v176, 0
      %v271 = vsel %vm260, %v178, 0
      %v274 = vsel %vm260, %v180, 0
      %v277 = vsel %vm260, %v182, 0
      %v280 = vsel %vm260, %v184, 0
      %v283 = vsel %vm260, %v186, 0
      %v286 = vsel %vm260, %v188, 0
      %v289 = vsel %vm260, %v190, 0
      %v292 = vsel %vm260, %v192, 0
      %v295 = vsel %vm260, %v194, 0
      %v298 = vsel %vm260, %v196, 0
      %v301 = vsel %vm260, %v198, 0
      %v304 = vsel %vm260, %v200, 0
      %v307 = vsel %vm260, %v202, 0
      %v310 = vsel %vm260, %v204, 0
      %v313 = vsel %vm260, %v206, 0
      %v316 = vsel %vm260, %v208, 0
      %v319 = vsel %vm260, %v210, 0
      %v322 = vsel %vm260, %v212, 0
      %v325 = vsel %vm260, %v214, 0
      %v328 = vsel %vm260, %v216, 0
      %v331 = vsel %vm260, %v218, 0
      %v334 = vsel %vm260, %v220, 0
      %v337 = vsel %vm260, %v222, 0
      %v340 = vsel %vm260, %v224, 0
      %v343 = vsel %vm260, %v226, 0
      %v346 = vsel %vm260, %v228, 0
      %v349 = vsel %vm260, %v230, 0
      %v352 = vsel %vm260, %v232, 0
      %v355 = vsel %vm260, %v234, 0
      %357 = vmatprep.subr.mxu0 0.0
      %358 = vmatpush1.msra.mxu0 %v235
      %359 = vmatprep.subr.mxu0 0.0
      %360 = vmatpush1.msra.mxu0 %v236
      %361 = vmatprep.subr.mxu0 0.0
      %362 = vmatpush1.msra.mxu0 %v237
      %363 = vmatprep.subr.mxu0 0.0
      %364 = vmatpush1.msra.mxu0 %v238
      %365 = vmatprep.subr.mxu0 0.0
      %366 = vmatpush1.msra.mxu0 %v239
      %367 = vmatprep.subr.mxu0 0.0
      %368 = vmatpush1.msra.mxu0 %v240
      %369 = vmatprep.subr.mxu0 0.0
      %370 = vmatpush1.msra.mxu0 %v241
      %371 = vmatprep.subr.mxu0 0.0
      %372 = vmatpush1.msra.mxu0 %v242
      %373 = vmatprep.subr.mxu0 0.0
      %374 = vmatpush1.msra.mxu0 %v243
      %375 = vmatprep.subr.mxu0 0.0
      %376 = vmatpush1.msra.mxu0 %v244
      %377 = vmatprep.subr.mxu0 0.0
      %378 = vmatpush1.msra.mxu0 %v245
      %379 = vmatprep.subr.mxu0 0.0
      %380 = vmatpush1.msra.mxu0 %v246
      %381 = vmatprep.subr.mxu0 0.0
      %382 = vmatpush1.msra.mxu0 %v247
      %383 = vmatprep.subr.mxu0 0.0
      %384 = vmatpush1.msra.mxu0 %v248
      %385 = vmatprep.subr.mxu0 0.0
      %386 = vmatpush1.msra.mxu0 %v249
      %387 = vmatprep.subr.mxu0 0.0
      %388 = vmatpush1.msra.mxu0 %v250
      %389 = vmatprep.subr.mxu0 0.0
      %390 = vmatpush1.msra.mxu0 %v251
      %391 = vmatprep.subr.mxu0 0.0
      %392 = vmatpush1.msra.mxu0 %v252
      %393 = vmatprep.subr.mxu0 0.0
      %394 = vmatpush1.msra.mxu0 0.0
      %395 = vmatprep.subr.mxu0 0.0
      %396 = vmatpush1.msra.mxu0 0.0
      %397 = vmatprep.subr.mxu0 0.0
      %398 = vmatpush1.msra.mxu0 0.0
      %399 = vmatprep.subr.mxu0 0.0
      %400 = vmatpush1.msra.mxu0 0.0
      %401 = vmatprep.subr.mxu0 0.0
      %402 = vmatpush1.msra.mxu0 0.0
      %403 = vmatprep.subr.mxu0 0.0
      %404 = vmatpush1.msra.mxu0 0.0
      %405 = vmatprep.subr.mxu0 0.0
      %406 = vmatpush1.msra.mxu0 0.0
      %407 = vmatprep.subr.mxu0 0.0
      %408 = vmatpush1.msra.mxu0 0.0
      %409 = vmatprep.subr.mxu0 0.0
      %410 = vmatpush1.msra.mxu0 0.0
      %411 = vmatprep.subr.mxu0 0.0
      %412 = vmatpush1.msra.mxu0 0.0
      %413 = vmatprep.subr.mxu0 0.0
      %414 = vmatpush1.msra.mxu0 0.0
      %415 = vmatprep.subr.mxu0 0.0
      %416 = vmatpush1.msra.mxu0 0.0
      %417 = vmatprep.subr.mxu0 0.0
      %418 = vmatpush1.msra.mxu0 0.0
      %419 = vmatprep.subr.mxu0 0.0
      %420 = vmatpush1.msra.mxu0 0.0
      %421 = vmatprep.mubr.f32.mxu0 %v262
      %422 = vmatmul.mubr.f32.gmra.mrb[0].mxu0 %v171
      %v423 = vpop.f32.mrb[0].mxu0
      %v424 = vadd.f32 %v258, %v423
      %v425 = vpop.f32.mrb[0].mxu0
      %426 = vmatprep.mubr.f32.mxu0 %v265
      %427 = vmatmul.mubr.f32.gmra.mrb[0].mxu0 %v173
      %v428 = vpop.f32.mrb[0].mxu0
      %v429 = vadd.f32 %v258, %v428
      %v430 = vpop.f32.mrb[0].mxu0
      %431 = vmatprep.mubr.f32.mxu0 %v268
      %432 = vmatmul.mubr.f32.gmra.mrb[0].mxu0 %v175
      %v433 = vpop.f32.mrb[0].mxu0
      %v434 = vadd.f32 %v258, %v433
      %v435 = vpop.f32.mrb[0].mxu0
      %436 = vmatprep.mubr.f32.mxu0 %v271
      %437 = vmatmul.mubr.f32.gmra.mrb[0].mxu0 %v177
      %v438 = vpop.f32.mrb[0].mxu0
      %v439 = vadd.f32 %v258, %v438
      %v440 = vpop.f32.mrb[0].mxu0
      %441 = vmatprep.mubr.f32.mxu0 %v274
      %442 = vmatmul.mubr.f32.gmra.mrb[0].mxu0 %v179
      %v443 = vpop.f32.mrb[0].mxu0
      %v444 = vadd.f32 %v258, %v443
      %v445 = vpop.f32.mrb[0].mxu0
      %446 = vmatprep.mubr.f32.mxu0 %v277
      %447 = vmatmul.mubr.f32.gmra.mrb[0].mxu0 %v181
      %v448 = vpop.f32.mrb[0].mxu0
      %v449 = vadd.f32 %v258, %v448
      %v450 = vpop.f32.mrb[0].mxu0
      %451 = vmatprep.mubr.f32.mxu0 %v280
      %452 = vmatmul.mubr.f32.gmra.mrb[0].mxu0 %v183
      %v453 = vpop.f32.mrb[0].mxu0
      %v454 = vadd.f32 %v258, %v453
      %v455 = vpop.f32.mrb[0].mxu0
      %456 = vmatprep.mubr.f32.mxu0 %v283
      %457 = vmatmul.mubr.f32.gmra.mrb[0].mxu0 %v185
      %v458 = vpop.f32.mrb[0].mxu0
      %v459 = vadd.f32 %v258, %v458
      %v460 = vpop.f32.mrb[0].mxu0
      %461 = vmatprep.mubr.f32.mxu0 %v286
      %462 = vmatmul.mubr.f32.gmra.mrb[0].mxu0 %v187
      %v463 = vpop.f32.mrb[0].mxu0
      %v464 = vadd.f32 %v258, %v463
      %v465 = vpop.f32.mrb[0].mxu0
      %466 = vmatprep.mubr.f32.mxu0 %v289
      %467 = vmatmul.mubr.f32.gmra.mrb[0].mxu0 %v189
      %v468 = vpop.f32.mrb[0].mxu0
      %v469 = vadd.f32 %v258, %v468
      %v470 = vpop.f32.mrb[0].mxu0
      %471 = vmatprep.mubr.f32.mxu0 %v292
      %472 = vmatmul.mubr.f32.gmra.mrb[0].mxu0 %v191
      %v473 = vpop.f32.mrb[0].mxu0
      %v474 = vadd.f32 %v258, %v473
      %v475 = vpop.f32.mrb[0].mxu0
      %476 = vmatprep.mubr.f32.mxu0 %v295
      %477 = vmatmul.mubr.f32.gmra.mrb[0].mxu0 %v193
      %v478 = vpop.f32.mrb[0].mxu0
      %v479 = vadd.f32 %v258, %v478
      %v480 = vpop.f32.mrb[0].mxu0
      %481 = vmatprep.mubr.f32.mxu0 %v298
      %482 = vmatmul.mubr.f32.gmra.mrb[0].mxu0 %v195
      %v483 = vpop.f32.mrb[0].mxu0
      %v484 = vadd.f32 %v258, %v483
      %v485 = vpop.f32.mrb[0].mxu0
      %486 = vmatprep.mubr.f32.mxu0 %v301
      %487 = vmatmul.mubr.f32.gmra.mrb[0].mxu0 %v197
      %v488 = vpop.f32.mrb[0].mxu0
      %v489 = vadd.f32 %v258, %v488
      %v490 = vpop.f32.mrb[0].mxu0
      %491 = vmatprep.mubr.f32.mxu0 %v304
      %492 = vmatmul.mubr.f32.gmra.mrb[0].mxu0 %v199
      %v493 = vpop.f32.mrb[0].mxu0
      %v494 = vadd.f32 %v258, %v493
      %v495 = vpop.f32.mrb[0].mxu0
      %496 = vmatprep.mubr.f32.mxu0 %v307
      %497 = vmatmul.mubr.f32.gmra.mrb[0].mxu0 %v201
      %v498 = vpop.f32.mrb[0].mxu0
      %v499 = vadd.f32 %v258, %v498
      %v500 = vpop.f32.mrb[0].mxu0
      %501 = vmatprep.mubr.f32.mxu0 %v310
      %502 = vmatmul.mubr.f32.gmra.mrb[0].mxu0 %v203
      %v503 = vpop.f32.mrb[0].mxu0
      %v504 = vadd.f32 %v258, %v503
      %v505 = vpop.f32.mrb[0].mxu0
      %506 = vmatprep.mubr.f32.mxu0 %v313
      %507 = vmatmul.mubr.f32.gmra.mrb[0].mxu0 %v205
      %v508 = vpop.f32.mrb[0].mxu0
      %v509 = vadd.f32 %v258, %v508
      %v510 = vpop.f32.mrb[0].mxu0
      %511 = vmatprep.mubr.f32.mxu0 %v316
      %512 = vmatmul.mubr.f32.gmra.mrb[0].mxu0 %v207
      %v513 = vpop.f32.mrb[0].mxu0
      %v514 = vadd.f32 %v258, %v513
      %v515 = vpop.f32.mrb[0].mxu0
      %516 = vmatprep.mubr.f32.mxu0 %v319
      %517 = vmatmul.mubr.f32.gmra.mrb[0].mxu0 %v209
      %v518 = vpop.f32.mrb[0].mxu0
      %v519 = vadd.f32 %v258, %v518
      %v520 = vpop.f32.mrb[0].mxu0
      %521 = vmatprep.mubr.f32.mxu0 %v322
      %522 = vmatmul.mubr.f32.gmra.mrb[0].mxu0 %v211
      %v523 = vpop.f32.mrb[0].mxu0
      %v524 = vadd.f32 %v258, %v523
      %v525 = vpop.f32.mrb[0].mxu0
      %526 = vmatprep.mubr.f32.mxu0 %v325
      %527 = vmatmul.mubr.f32.gmra.mrb[0].mxu0 %v213
      %v528 = vpop.f32.mrb[0].mxu0
      %v529 = vadd.f32 %v258, %v528
      %v530 = vpop.f32.mrb[0].mxu0
      %531 = vmatprep.mubr.f32.mxu0 %v328
      %532 = vmatmul.mubr.f32.gmra.mrb[0].mxu0 %v215
      %v533 = vpop.f32.mrb[0].mxu0
      %v534 = vadd.f32 %v258, %v533
      %v535 = vpop.f32.mrb[0].mxu0
      %536 = vmatprep.mubr.f32.mxu0 %v331
      %537 = vmatmul.mubr.f32.gmra.mrb[0].mxu0 %v217
      %v538 = vpop.f32.mrb[0].mxu0
      %v539 = vadd.f32 %v258, %v538
      %v540 = vpop.f32.mrb[0].mxu0
      %541 = vmatprep.mubr.f32.mxu0 %v334
      %542 = vmatmul.mubr.f32.gmra.mrb[0].mxu0 %v219
      %v543 = vpop.f32.mrb[0].mxu0
      %v544 = vadd.f32 %v258, %v543
      %v545 = vpop.f32.mrb[0].mxu0
      %546 = vmatprep.mubr.f32.mxu0 %v337
      %547 = vmatmul.mubr.f32.gmra.mrb[0].mxu0 %v221
      %v548 = vpop.f32.mrb[0].mxu0
      %v549 = vadd.f32 %v258, %v548
      %v550 = vpop.f32.mrb[0].mxu0
      %551 = vmatprep.mubr.f32.mxu0 %v340
      %552 = vmatmul.mubr.f32.gmra.mrb[0].mxu0 %v223
      %v553 = vpop.f32.mrb[0].mxu0
      %v554 = vadd.f32 %v258, %v553
      %v555 = vpop.f32.mrb[0].mxu0
      %556 = vmatprep.mubr.f32.mxu0 %v343
      %557 = vmatmul.mubr.f32.gmra.mrb[0].mxu0 %v225
      %v558 = vpop.f32.mrb[0].mxu0
      %v559 = vadd.f32 %v258, %v558
      %v560 = vpop.f32.mrb[0].mxu0
      %561 = vmatprep.mubr.f32.mxu0 %v346
      %562 = vmatmul.mubr.f32.gmra.mrb[0].mxu0 %v227
      %v563 = vpop.f32.mrb[0].mxu0
      %v564 = vadd.f32 %v258, %v563
      %v565 = vpop.f32.mrb[0].mxu0
      %566 = vmatprep.mubr.f32.mxu0 %v349
      %567 = vmatmul.mubr.f32.gmra.mrb[0].mxu0 %v229
      %v568 = vpop.f32.mrb[0].mxu0
      %v569 = vadd.f32 %v258, %v568
      %v570 = vpop.f32.mrb[0].mxu0
      %571 = vmatprep.mubr.f32.mxu0 %v352
      %572 = vmatmul.mubr.f32.gmra.mrb[0].mxu0 %v231
      %v573 = vpop.f32.mrb[0].mxu0
      %v574 = vadd.f32 %v258, %v573
      %v575 = vpop.f32.mrb[0].mxu0
      %576 = vmatprep.mubr.f32.mxu0 %v355
      %577 = vmatmul.mubr.f32.gmra.mrb[0].mxu0 %v233
      %v578 = vpop.f32.mrb[0].mxu0
      %v579 = vadd.f32 %v258, %v578
      %v580 = vpop.f32.mrb[0].mxu0
      %581 = vdwg.mxu0
      %vm582 = vcmask 261120
      %v583 = vsel %vm582, %v424, 0.0
      %v584 = vsel %vm582, %v429, 0.0
      %v585 = vadd.f32 %v583, %v584
      %v586 = vsel %vm582, %v434, 0.0
      %v587 = vadd.f32 %v585, %v586
      %v588 = vsel %vm582, %v439, 0.0
      %v589 = vadd.f32 %v587, %v588
      %v590 = vsel %vm582, %v444, 0.0
      %v591 = vadd.f32 %v589, %v590
      %v592 = vsel %vm582, %v449, 0.0
      %v593 = vadd.f32 %v591, %v592
      %v594 = vsel %vm582, %v454, 0.0
      %v595 = vadd.f32 %v593, %v594
      %v596 = vsel %vm582, %v459, 0.0
      %v597 = vadd.f32 %v595, %v596
      %v598 = vsel %vm582, %v464, 0.0
      %v599 = vadd.f32 %v597, %v598
      %v600 = vsel %vm582, %v469, 0.0
      %v601 = vadd.f32 %v599, %v600
      %v602 = vsel %vm582, %v474, 0.0
      %v603 = vadd.f32 %v601, %v602
      %v604 = vsel %vm582, %v479, 0.0
      %v605 = vadd.f32 %v603, %v604
      %v606 = vsel %vm582, %v484, 0.0
      %v607 = vadd.f32 %v605, %v606
      %v608 = vsel %vm582, %v489, 0.0
      %v609 = vadd.f32 %v607, %v608
      %v610 = vsel %vm582, %v494, 0.0
      %v611 = vadd.f32 %v609, %v610
      %v612 = vsel %vm582, %v499, 0.0
      %v613 = vadd.f32 %v611, %v612
      %v614 = vsel %vm582, %v504, 0.0
      %v615 = vadd.f32 %v613, %v614
      %v616 = vsel %vm582, %v509, 0.0
      %v617 = vadd.f32 %v615, %v616
      %v618 = vsel %vm582, %v514, 0.0
      %v619 = vadd.f32 %v617, %v618
      %v620 = vsel %vm582, %v519, 0.0
      %v621 = vadd.f32 %v619, %v620
      %v622 = vsel %vm582, %v524, 0.0
      %v623 = vadd.f32 %v621, %v622
      %v624 = vsel %vm582, %v529, 0.0
      %v625 = vadd.f32 %v623, %v624
      %v626 = vsel %vm582, %v534, 0.0
      %v627 = vadd.f32 %v625, %v626
      %v628 = vsel %vm582, %v539, 0.0
      %v629 = vadd.f32 %v627, %v628
      %v630 = vsel %vm582, %v544, 0.0
      %v631 = vadd.f32 %v629, %v630
      %v632 = vsel %vm582, %v549, 0.0
      %v633 = vadd.f32 %v631, %v632
      %v634 = vsel %vm582, %v554, 0.0
      %v635 = vadd.f32 %v633, %v634
      %v636 = vsel %vm582, %v559, 0.0
      %v637 = vadd.f32 %v635, %v636
      %v638 = vsel %vm582, %v564, 0.0
      %v639 = vadd.f32 %v637, %v638
      %v640 = vsel %vm582, %v569, 0.0
      %v641 = vadd.f32 %v639, %v640
      %v642 = vsel %vm582, %v574, 0.0
      %v643 = vadd.f32 %v641, %v642
      %v644 = vsel %vm582, %v579, 0.0
      %v645 = vadd.f32 %v643, %v644
      %v646 = vrot.slane %v645, 4
      %v647 = vadd.f32 %v645, %v646
      %v648 = vrot.slane %v647, 2
      %v649 = vadd.f32 %v647, %v648
      %v650 = vrot.slane %v649, 1
      %v651 = vadd.f32 %v649, %v650
      %v652 = vrcp.pop 256.0
      %v653 = vmul.f32 %v651, %v652
      %v654 = vsub.f32 %v424, %v653
      %v655 = vsub.f32 %v429, %v653
      %v656 = vsub.f32 %v434, %v653
      %v657 = vsub.f32 %v439, %v653
      %v658 = vsub.f32 %v444, %v653
      %v659 = vsub.f32 %v449, %v653
      %v660 = vsub.f32 %v454, %v653
      %v661 = vsub.f32 %v459, %v653
      %v662 = vsub.f32 %v464, %v653
      %v663 = vsub.f32 %v469, %v653
      %v664 = vsub.f32 %v474, %v653
      %v665 = vsub.f32 %v479, %v653
      %v666 = vsub.f32 %v484, %v653
      %v667 = vsub.f32 %v489, %v653
      %v668 = vsub.f32 %v494, %v653
      %v669 = vsub.f32 %v499, %v653
      %v670 = vsub.f32 %v504, %v653
      %v671 = vsub.f32 %v509, %v653
      %v672 = vsub.f32 %v514, %v653
      %v673 = vsub.f32 %v519, %v653
      %v674 = vsub.f32 %v524, %v653
      %v675 = vsub.f32 %v529, %v653
      %v676 = vsub.f32 %v534, %v653
      %v677 = vsub.f32 %v539, %v653
      %v678 = vsub.f32 %v544, %v653
      %v679 = vsub.f32 %v549, %v653
      %v680 = vsub.f32 %v554, %v653
      %v681 = vsub.f32 %v559, %v653
      %v682 = vsub.f32 %v564, %v653
      %v683 = vsub.f32 %v569, %v653
      %v684 = vsub.f32 %v574, %v653
      %v685 = vsub.f32 %v579, %v653
      %v686 = vmul.f32 %v654, %v654
      %v687 = vmul.f32 %v655, %v655
      %v688 = vmul.f32 %v656, %v656
      %v689 = vmul.f32 %v657, %v657
      %v690 = vmul.f32 %v658, %v658
      %v691 = vmul.f32 %v659, %v659
      %v692 = vmul.f32 %v660, %v660
      %v693 = vmul.f32 %v661, %v661
      %v694 = vmul.f32 %v662, %v662
      %v695 = vmul.f32 %v663, %v663
      %v696 = vmul.f32 %v664, %v664
      %v697 = vmul.f32 %v665, %v665
      %v698 = vmul.f32 %v666, %v666
      %v699 = vmul.f32 %v667, %v667
      %v700 = vmul.f32 %v668, %v668
      %v701 = vmul.f32 %v669, %v669
      %v702 = vmul.f32 %v670, %v670
      %v703 = vmul.f32 %v671, %v671
      %v704 = vmul.f32 %v672, %v672
      %v705 = vmul.f32 %v673, %v673
      %v706 = vmul.f32 %v674, %v674
      %v707 = vmul.f32 %v675, %v675
      %v708 = vmul.f32 %v676, %v676
      %v709 = vmul.f32 %v677, %v677
      %v710 = vmul.f32 %v678, %v678
      %v711 = vmul.f32 %v679, %v679
      %v712 = vmul.f32 %v680, %v680
      %v713 = vmul.f32 %v681, %v681
      %v714 = vmul.f32 %v682, %v682
      %v715 = vmul.f32 %v683, %v683
      %v716 = vmul.f32 %v684, %v684
      %v717 = vmul.f32 %v685, %v685
      %v718 = vsel %vm582, %v686, 0.0
      %v719 = vsel %vm582, %v687, 0.0
      %v720 = vadd.f32 %v718, %v719
      %v721 = vsel %vm582, %v688, 0.0
      %v722 = vadd.f32 %v720, %v721
      %v723 = vsel %vm582, %v689, 0.0
      %v724 = vadd.f32 %v722, %v723
      %v725 = vsel %vm582, %v690, 0.0
      %v726 = vadd.f32 %v724, %v725
      %v727 = vsel %vm582, %v691, 0.0
      %v728 = vadd.f32 %v726, %v727
      %v729 = vsel %vm582, %v692, 0.0
      %v730 = vadd.f32 %v728, %v729
      %v731 = vsel %vm582, %v693, 0.0
      %v732 = vadd.f32 %v730, %v731
      %v733 = vsel %vm582, %v694, 0.0
      %v734 = vadd.f32 %v732, %v733
      %v735 = vsel %vm582, %v695, 0.0
      %v736 = vadd.f32 %v734, %v735
      %v737 = vsel %vm582, %v696, 0.0
      %v738 = vadd.f32 %v736, %v737
      %v739 = vsel %vm582, %v697, 0.0
      %v740 = vadd.f32 %v738, %v739
      %v741 = vsel %vm582, %v698, 0.0
      %v742 = vadd.f32 %v740, %v741
      %v743 = vsel %vm582, %v699, 0.0
      %v744 = vadd.f32 %v742, %v743
      %v745 = vsel %vm582, %v700, 0.0
      %v746 = vadd.f32 %v744, %v745
      %v747 = vsel %vm582, %v701, 0.0
      %v748 = vadd.f32 %v746, %v747
      %v749 = vsel %vm582, %v702, 0.0
      %v750 = vadd.f32 %v748, %v749
      %v751 = vsel %vm582, %v703, 0.0
      %v752 = vadd.f32 %v750, %v751
      %v753 = vsel %vm582, %v704, 0.0
      %v754 = vadd.f32 %v752, %v753
      %v755 = vsel %vm582, %v705, 0.0
      %v756 = vadd.f32 %v754, %v755
      %v757 = vsel %vm582, %v706, 0.0
      %v758 = vadd.f32 %v756, %v757
      %v759 = vsel %vm582, %v707, 0.0
      %v760 = vadd.f32 %v758, %v759
      %v761 = vsel %vm582, %v708, 0.0
      %v762 = vadd.f32 %v760, %v761
      %v763 = vsel %vm582, %v709, 0.0
      %v764 = vadd.f32 %v762, %v763
      %v765 = vsel %vm582, %v710, 0.0
      %v766 = vadd.f32 %v764, %v765
      %v767 = vsel %vm582, %v711, 0.0
      %v768 = vadd.f32 %v766, %v767
      %v769 = vsel %vm582, %v712, 0.0
      %v770 = vadd.f32 %v768, %v769
      %v771 = vsel %vm582, %v713, 0.0
      %v772 = vadd.f32 %v770, %v771
      %v773 = vsel %vm582, %v714, 0.0
      %v774 = vadd.f32 %v772, %v773
      %v775 = vsel %vm582, %v715, 0.0
      %v776 = vadd.f32 %v774, %v775
      %v777 = vsel %vm582, %v716, 0.0
      %v778 = vadd.f32 %v776, %v777
      %v779 = vsel %vm582, %v717, 0.0
      %v780 = vadd.f32 %v778, %v779
      %v781 = vrot.slane %v780, 4
      %v782 = vadd.f32 %v780, %v781
      %v783 = vrot.slane %v782, 2
      %v784 = vadd.f32 %v782, %v783
      %v785 = vrot.slane %v784, 1
      %v786 = vadd.f32 %v784, %v785
      %v787 = vmul.f32 %v786, %v652
      %v788 = vadd.f32 %v787, 1e-05
      %v789 = vrsqrt.pop %v788
      %v790 = vmul.f32 %v654, %v789
      %v791 = vmul.f32 %v655, %v789
      %v792 = vmul.f32 %v656, %v789
      %v793 = vmul.f32 %v657, %v789
      %v794 = vmul.f32 %v658, %v789
      %v795 = vmul.f32 %v659, %v789
      %v796 = vmul.f32 %v660, %v789
      %v797 = vmul.f32 %v661, %v789
      %v798 = vmul.f32 %v662, %v789
      %v799 = vmul.f32 %v663, %v789
      %v800 = vmul.f32 %v664, %v789
      %v801 = vmul.f32 %v665, %v789
      %v802 = vmul.f32 %v666, %v789
      %v803 = vmul.f32 %v667, %v789
      %v804 = vmul.f32 %v668, %v789
      %v805 = vmul.f32 %v669, %v789
      %v806 = vmul.f32 %v670, %v789
      %v807 = vmul.f32 %v671, %v789
      %v808 = vmul.f32 %v672, %v789
      %v809 = vmul.f32 %v673, %v789
      %v810 = vmul.f32 %v674, %v789
      %v811 = vmul.f32 %v675, %v789
      %v812 = vmul.f32 %v676, %v789
      %v813 = vmul.f32 %v677, %v789
      %v814 = vmul.f32 %v678, %v789
      %v815 = vmul.f32 %v679, %v789
      %v816 = vmul.f32 %v680, %v789
      %v817 = vmul.f32 %v681, %v789
      %v818 = vmul.f32 %v682, %v789
      %v819 = vmul.f32 %v683, %v789
      %v820 = vmul.f32 %v684, %v789
      %v821 = vmul.f32 %v685, %v789
      %vm822 = vcmp.ge.f32.partialorder %v790, 0.0
      %vm823 = vcmp.ge.f32.partialorder %v791, 0.0
      %vm824 = vcmp.ge.f32.partialorder %v792, 0.0
      %vm825 = vcmp.ge.f32.partialorder %v793, 0.0
      %vm826 = vcmp.ge.f32.partialorder %v794, 0.0
      %vm827 = vcmp.ge.f32.partialorder %v795, 0.0
      %vm828 = vcmp.ge.f32.partialorder %v796, 0.0
      %vm829 = vcmp.ge.f32.partialorder %v797, 0.0
      %vm830 = vcmp.ge.f32.partialorder %v798, 0.0
      %vm831 = vcmp.ge.f32.partialorder %v799, 0.0
      %vm832 = vcmp.ge.f32.partialorder %v800, 0.0
      %vm833 = vcmp.ge.f32.partialorder %v801, 0.0
      %vm834 = vcmp.ge.f32.partialorder %v802, 0.0
      %vm835 = vcmp.ge.f32.partialorder %v803, 0.0
      %vm836 = vcmp.ge.f32.partialorder %v804, 0.0
      %vm837 = vcmp.ge.f32.partialorder %v805, 0.0
      %vm838 = vcmp.ge.f32.partialorder %v806, 0.0
      %vm839 = vcmp.ge.f32.partialorder %v807, 0.0
      %vm840 = vcmp.ge.f32.partialorder %v808, 0.0
      %vm841 = vcmp.ge.f32.partialorder %v809, 0.0
      %vm842 = vcmp.ge.f32.partialorder %v810, 0.0
      %vm843 = vcmp.ge.f32.partialorder %v811, 0.0
      %vm844 = vcmp.ge.f32.partialorder %v812, 0.0
      %vm845 = vcmp.ge.f32.partialorder %v813, 0.0
      %vm846 = vcmp.ge.f32.partialorder %v814, 0.0
      %vm847 = vcmp.ge.f32.partialorder %v815, 0.0
      %vm848 = vcmp.ge.f32.partialorder %v816, 0.0
      %vm849 = vcmp.ge.f32.partialorder %v817, 0.0
      %vm850 = vcmp.ge.f32.partialorder %v818, 0.0
      %vm851 = vcmp.ge.f32.partialorder %v819, 0.0
      %vm852 = vcmp.ge.f32.partialorder %v820, 0.0
      %vm853 = vcmp.ge.f32.partialorder %v821, 0.0
      %v854 = vmul.f32 %v790, 0.1
      %v855 = vmul.f32 %v791, 0.1
      %v856 = vmul.f32 %v792, 0.1
      %v857 = vmul.f32 %v793, 0.1
      %v858 = vmul.f32 %v794, 0.1
      %v859 = vmul.f32 %v795, 0.1
      %v860 = vmul.f32 %v796, 0.1
      %v861 = vmul.f32 %v797, 0.1
      %v862 = vmul.f32 %v798, 0.1
      %v863 = vmul.f32 %v799, 0.1
      %v864 = vmul.f32 %v800, 0.1
      %v865 = vmul.f32 %v801, 0.1
      %v866 = vmul.f32 %v802, 0.1
      %v867 = vmul.f32 %v803, 0.1
      %v868 = vmul.f32 %v804, 0.1
      %v869 = vmul.f32 %v805, 0.1
      %v870 = vmul.f32 %v806, 0.1
      %v871 = vmul.f32 %v807, 0.1
      %v872 = vmul.f32 %v808, 0.1
      %v873 = vmul.f32 %v809, 0.1
      %v874 = vmul.f32 %v810, 0.1
      %v875 = vmul.f32 %v811, 0.1
      %v876 = vmul.f32 %v812, 0.1
      %v877 = vmul.f32 %v813, 0.1
      %v878 = vmul.f32 %v814, 0.1
      %v879 = vmul.f32 %v815, 0.1
      %v880 = vmul.f32 %v816, 0.1
      %v881 = vmul.f32 %v817, 0.1
      %v882 = vmul.f32 %v818, 0.1
      %v883 = vmul.f32 %v819, 0.1
      %v884 = vmul.f32 %v820, 0.1
      %v885 = vmul.f32 %v821, 0.1
      %v886 = vsel %vm822, %v790, %v854
      %v887 = vsel %vm823, %v791, %v855
      %v888 = vsel %vm824, %v792, %v856
      %v889 = vsel %vm825, %v793, %v857
      %v890 = vsel %vm826, %v794, %v858
      %v891 = vsel %vm827, %v795, %v859
      %v892 = vsel %vm828, %v796, %v860
      %v893 = vsel %vm829, %v797, %v861
      %v894 = vsel %vm830, %v798, %v862
      %v895 = vsel %vm831, %v799, %v863
      %v896 = vsel %vm832, %v800, %v864
      %v897 = vsel %vm833, %v801, %v865
      %v898 = vsel %vm834, %v802, %v866
      %v899 = vsel %vm835, %v803, %v867
      %v900 = vsel %vm836, %v804, %v868
      %v901 = vsel %vm837, %v805, %v869
      %v902 = vsel %vm838, %v806, %v870
      %v903 = vsel %vm839, %v807, %v871
      %v904 = vsel %vm840, %v808, %v872
      %v905 = vsel %vm841, %v809, %v873
      %v906 = vsel %vm842, %v810, %v874
      %v907 = vsel %vm843, %v811, %v875
      %v908 = vsel %vm844, %v812, %v876
      %v909 = vsel %vm845, %v813, %v877
      %v910 = vsel %vm846, %v814, %v878
      %v911 = vsel %vm847, %v815, %v879
      %v912 = vsel %vm848, %v816, %v880
      %v913 = vsel %vm849, %v817, %v881
      %v914 = vsel %vm850, %v818, %v882
      %v915 = vsel %vm851, %v819, %v883
      %v916 = vsel %vm852, %v820, %v884
      %v917 = vsel %vm853, %v821, %v885
      %918 = vst.msk [vmem:[%s170] sm:$0xff] %vm582, %v886
      %919 = vst.msk [vmem:[%s170 + $0x8] sm:$0xff] %vm582, %v887
      %920 = vst.msk [vmem:[%s170 + $0x10] sm:$0xff] %vm582, %v888
      %921 = vst.msk [vmem:[%s170 + $0x18] sm:$0xff] %vm582, %v889
      %922 = vst.msk [vmem:[%s170 + $0x20] sm:$0xff] %vm582, %v890
      %923 = vst.msk [vmem:[%s170 + $0x28] sm:$0xff] %vm582, %v891
      %924 = vst.msk [vmem:[%s170 + $0x30] sm:$0xff] %vm582, %v892
      %925 = vst.msk [vmem:[%s170 + $0x38] sm:$0xff] %vm582, %v893
      %926 = vst.msk [vmem:[%s170 + $0x40] sm:$0xff] %vm582, %v894
      %927 = vst.msk [vmem:[%s170 + $0x48] sm:$0xff] %vm582, %v895
      %928 = vst.msk [vmem:[%s170 + $0x50] sm:$0xff] %vm582, %v896
      %929 = vst.msk [vmem:[%s170 + $0x58] sm:$0xff] %vm582, %v897
      %930 = vst.msk [vmem:[%s170 + $0x60] sm:$0xff] %vm582, %v898
      %931 = vst.msk [vmem:[%s170 + $0x68] sm:$0xff] %vm582, %v899
      %932 = vst.msk [vmem:[%s170 + $0x70] sm:$0xff] %vm582, %v900
      %933 = vst.msk [vmem:[%s170 + $0x78] sm:$0xff] %vm582, %v901
      %934 = vst.msk [vmem:[%s170 + $0x80] sm:$0xff] %vm582, %v902
      %935 = vst.msk [vmem:[%s170 + $0x88] sm:$0xff] %vm582, %v903
      %936 = vst.msk [vmem:[%s170 + $0x90] sm:$0xff] %vm582, %v904
      %937 = vst.msk [vmem:[%s170 + $0x98] sm:$0xff] %vm582, %v905
      %938 = vst.msk [vmem:[%s170 + $0xa0] sm:$0xff] %vm582, %v906
      %939 = vst.msk [vmem:[%s170 + $0xa8] sm:$0xff] %vm582, %v907
      %940 = vst.msk [vmem:[%s170 + $0xb0] sm:$0xff] %vm582, %v908
      %941 = vst.msk [vmem:[%s170 + $0xb8] sm:$0xff] %vm582, %v909
      %942 = vst.msk [vmem:[%s170 + $0xc0] sm:$0xff] %vm582, %v910
      %943 = vst.msk [vmem:[%s170 + $0xc8] sm:$0xff] %vm582, %v911
      %944 = vst.msk [vmem:[%s170 + $0xd0] sm:$0xff] %vm582, %v912
      %945 = vst.msk [vmem:[%s170 + $0xd8] sm:$0xff] %vm582, %v913
      %946 = vst.msk [vmem:[%s170 + $0xe0] sm:$0xff] %vm582, %v914
      %947 = vst.msk [vmem:[%s170 + $0xe8] sm:$0xff] %vm582, %v915
      %948 = vst.msk [vmem:[%s170 + $0xf0] sm:$0xff] %vm582, %v916
      %949 = vst.msk [vmem:[%s170 + $0xf8] sm:$0xff] %vm582, %v917
      %p950 = scmp.lt.s32.totalorder %s14, 1
      %s951 = scalar_select %p950, %s14, 1
      %s952 = smul.addr %s951, 32
      %s953 = smul.addr %s952, 8
      %s954 = scalar_lea.vmem %s3, %s953
      // Predicated region
      $region33: #{unet_forward.16} parent=31 // pred_check
        %p955 = pneg %p100
      $region34: #{unet_forward.16} parent=31 // pred_check_branch
        %957 = sbr.rel (%p955) target = $region36
      $region35: #{unet_forward.16} parent=31 // pred_region
        _
      $region36: #{unet_forward.16} parent=31 // pred_fallthru
        _
    $region32: #{unet_forward.16} parent=5 // pred_fallthru
      _
    %p958 = scmp.le.s32.totalorder 2, %s9
    // Predicated region
    $region37: #{unet_forward.16} parent=5 // pred_check
      %p959 = pneg %p958
    $region38: #{unet_forward.16} parent=5 // pred_check_branch
      %961 = sbr.rel (%p959) target = $region40
    $region39: #{unet_forward.16} parent=5 // pred_region
      %s962 = ssub.s32 %s9, 2
      // Predicated region
      $region41: #{unet_forward.16} parent=39 // pred_check
        %p963 = pneg %p106
      $region42: #{unet_forward.16} parent=39 // pred_check_branch
        %965 = sbr.rel (%p963) target = $region44
      $region43: #{unet_forward.16} parent=39 // pred_region
        %p966 = scmp.lt.s32.totalorder %s15, 1
        %s967 = scalar_select %p966, %s15, 1
        %s968 = smul.addr %s967, 32
        %s969 = smul.addr %s968, 8
        %s970 = scalar_lea.vmem %s3, %s969
      $region44: #{unet_forward.16} parent=39 // pred_fallthru
        _
    $region40: #{unet_forward.16} parent=5 // pred_fallthru
      _
  $region6: #{unet_forward.16} parent=0 // loop_footer
    %s13 = sadd.s32 1, %s9
  $region7: #{unet_forward.16} parent=0 // loop_footer_branch
    %8 = sbr.rel target = $region3
  $region8: #{unet_forward.16} parent=0 // loop_exit
    _

// kernel: unet_forward.17
$region0: #{unet_forward.17}
  #allocation0 [shape = 'u32[]', space=smem, size = 0x4, offset = 0x4, fixed_abs, tag = 'smem constant byte address 0x4 - core index']
  #allocation1 [shape = 'u32[144,128]{1,0:T(1,128)}', space=vmem, size = 0x12000, scoped, tag = 'internal scratch']
  %s0 = inlined_call_operand.vmem [shape: f32[2,256,288], index: 0, kind: input, shape index: {}]
  %s1 = inlined_call_operand.vmem [shape: f32[288,32], index: 1, kind: input, shape index: {}]
  %s2 = inlined_call_operand.vmem [shape: f32[1,32], index: 2, kind: input, shape index: {}]
  %s3 = inlined_call_operand.vmem [shape: f32[2,256,32], index: 3, kind: output, shape index: {}]
  %s4 = sld [smem:[#allocation0]]
  $region45: #{unet_forward.17} parent=0
    _
  %s6 = ssub.s32 1, %s4
  %s7 = scalar_select 0, %s6, %s4
  loop: start=0, step=1, limit=4
  $region2: #{unet_forward.17} parent=0 // loop_pre_header
    _
  $region3: #{unet_forward.17} parent=0 // loop_header
    %s9 = sphi 0, %s13
    %p10 = scmp.ge.s32.totalorder %s9, 4
    %s19 = sphi 0, %s21
    %s22 = sphi 0, %s19
    %s23 = sphi 0, %s22
    %s39 = sphi 0, %s23
    %s43 = sphi 0, %s43
    %s45 = sphi 0, %s43
    %s46 = sphi 0, %s45
    %s60 = sphi 0, %s46
    %s64 = sphi 0, %s64
    %s66 = sphi 0, %s64
    %s67 = sphi 0, %s66
    %s81 = sphi 0, %s67
    %s87 = sphi 0, %s89
    %s90 = sphi 0, %s87
    %s91 = sphi 0, %s90
    %s107 = sphi 0, %s91
  $region4: #{unet_forward.17} parent=0 // loop_header_branch
    %12 = sbr.rel (%p10) target = $region8
  $region5: #{unet_forward.17} parent=0 // loop_body
    %s14 = ssub.s32 %s9, 1
    %s15 = ssub.s32 %s9, 2
    %s16 = sadd.s32 %s9, 1
    %s17 = ssub.s32 %s9, %s16
    %p18 = scmp.eq.s32.totalorder %s17, 0
    %s20 = sadd.s32 %s19, 1
    %s21 = scalar_select %p18, %s19, %s20
    %p24 = pneg %p18
    %p25 = scmp.eq.s32.totalorder %s9, 1
    %p26 = por %p24, %p25
    %p27 = scmp.ne.s32.totalorder %s19, %s22
    %p28 = scmp.eq.s32.totalorder %s9, 0
    %p29 = por %p27, %p28
    %p30 = scmp.ne.s32.totalorder %s19, %s22
    %p31 = scmp.eq.s32.totalorder %s14, 1
    %p32 = por %p30, %p31
    %p33 = scmp.ne.s32.totalorder %s22, %s23
    %p34 = scmp.eq.s32.totalorder %s14, 0
    %p35 = por %p33, %p34
    %p36 = scmp.ne.s32.totalorder %s22, %s23
    %p37 = scmp.eq.s32.totalorder %s15, 1
    %p38 = por %p36, %p37
    %p40 = scmp.ne.s32.totalorder %s23, %s39
    %p41 = scmp.eq.s32.totalorder %s15, 0
    %p42 = por %p40, %p41
    %s44 = sadd.s32 %s43, 1
    %p47 = scmp.eq.s32.totalorder %s9, 1
    %p48 = scmp.ne.s32.totalorder %s43, %s45
    %p49 = scmp.eq.s32.totalorder %s9, 0
    %p50 = por %p48, %p49
    %p51 = scmp.ne.s32.totalorder %s43, %s45
    %p52 = scmp.eq.s32.totalorder %s14, 1
    %p53 = por %p51, %p52
    %p54 = scmp.ne.s32.totalorder %s45, %s46
    %p55 = scmp.eq.s32.totalorder %s14, 0
    %p56 = por %p54, %p55
    %p57 = scmp.ne.s32.totalorder %s45, %s46
    %p58 = scmp.eq.s32.totalorder %s15, 1
    %p59 = por %p57, %p58
    %p61 = scmp.ne.s32.totalorder %s46, %s60
    %p62 = scmp.eq.s32.totalorder %s15, 0
    %p63 = por %p61, %p62
    %s65 = sadd.s32 %s64, 1
    %p68 = scmp.eq.s32.totalorder %s9, 1
    %p69 = scmp.ne.s32.totalorder %s64, %s66
    %p70 = scmp.eq.s32.totalorder %s9, 0
    %p71 = por %p69, %p70
    %p72 = scmp.ne.s32.totalorder %s64, %s66
    %p73 = scmp.eq.s32.totalorder %s14, 1
    %p74 = por %p72, %p73
    %p75 = scmp.ne.s32.totalorder %s66, %s67
    %p76 = scmp.eq.s32.totalorder %s14, 0
    %p77 = por %p75, %p76
    %p78 = scmp.ne.s32.totalorder %s66, %s67
    %p79 = scmp.eq.s32.totalorder %s15, 1
    %p80 = por %p78, %p79
    %p82 = scmp.ne.s32.totalorder %s67, %s81
    %p83 = scmp.eq.s32.totalorder %s15, 0
    %p84 = por %p82, %p83
    %s85 = ssub.s32 %s9, %s16
    %p86 = scmp.eq.s32.totalorder %s85, 0
    %s88 = sadd.s32 %s87, 1
    %s89 = scalar_select %p86, %s87, %s88
    %p92 = pneg %p86
    %p93 = scmp.eq.s32.totalorder %s9, 1
    %p94 = por %p92, %p93
    %p95 = scmp.ne.s32.totalorder %s87, %s90
    %p96 = scmp.eq.s32.totalorder %s9, 0
    %p97 = por %p95, %p96
    %p98 = scmp.ne.s32.totalorder %s87, %s90
    %p99 = scmp.eq.s32.totalorder %s14, 1
    %p100 = por %p98, %p99
    %p101 = scmp.ne.s32.totalorder %s90, %s91
    %p102 = scmp.eq.s32.totalorder %s14, 0
    %p103 = por %p101, %p102
    %p104 = scmp.ne.s32.totalorder %s90, %s91
    %p105 = scmp.eq.s32.totalorder %s15, 1
    %p106 = por %p104, %p105
    %p108 = scmp.ne.s32.totalorder %s91, %s107
    %p109 = scmp.eq.s32.totalorder %s15, 0
    %p110 = por %p108, %p109
    %p111 = scmp.le.s32.totalorder 1, %s9
    %p112 = scmp.lt.s32.totalorder %s9, 3
    %p113 = pnand %p111, %p112
    %p114 = pneg %p113
    // Predicated region
    $region9: #{unet_forward.17} parent=5 // pred_check
      _
    $region10: #{unet_forward.17} parent=5 // pred_check_branch
      %116 = sbr.rel (%p113) target = $region12
    $region11: #{unet_forward.17} parent=5 // pred_region
      %s117 = ssub.s32 %s9, 1
      // Predicated region
      $region13: #{unet_forward.17} parent=11 // pred_check
        %p118 = pneg %p56
      $region14: #{unet_forward.17} parent=11 // pred_check_branch
        %120 = sbr.rel (%p118) target = $region16
      $region15: #{unet_forward.17} parent=11 // pred_region
        _
      $region16: #{unet_forward.17} parent=11 // pred_fallthru
        _
      // Predicated region
      $region17: #{unet_forward.17} parent=11 // pred_check
        %p121 = pneg %p77
      $region18: #{unet_forward.17} parent=11 // pred_check_branch
        %123 = sbr.rel (%p121) target = $region20
      $region19: #{unet_forward.17} parent=11 // pred_region
        _
      $region20: #{unet_forward.17} parent=11 // pred_fallthru
        _
    $region12: #{unet_forward.17} parent=5 // pred_fallthru
      _
    %p124 = scmp.lt.s32.totalorder %s9, 2
    // Predicated region
    $region21: #{unet_forward.17} parent=5 // pred_check
      %p125 = pneg %p124
    $region22: #{unet_forward.17} parent=5 // pred_check_branch
      %127 = sbr.rel (%p125) target = $region24
    $region23: #{unet_forward.17} parent=5 // pred_region
      // Predicated region
      $region25: #{unet_forward.17} parent=23 // pred_check
        %p128 = pneg %p29
      $region26: #{unet_forward.17} parent=23 // pred_check_branch
        %130 = sbr.rel (%p128) target = $region28
      $region27: #{unet_forward.17} parent=23 // pred_region
        %p131 = scmp.lt.s32.totalorder %s9, 1
        %s132 = scalar_select %p131, %s9, 1
        %s133 = smul.addr %s132, 96
        %s134 = smul.addr %s133, 8
        %s135 = scalar_lea.vmem %s0, %s134
      $region28: #{unet_forward.17} parent=23 // pred_fallthru
        _
    $region24: #{unet_forward.17} parent=5 // pred_fallthru
      _
    %p136 = scmp.le.s32.totalorder 1, %s9
    %p137 = scmp.lt.s32.totalorder %s9, 3
    %p138 = pnand %p136, %p137
    %p139 = pneg %p138
    // Predicated region
    $region29: #{unet_forward.17} parent=5 // pred_check
      _
    $region30: #{unet_forward.17} parent=5 // pred_check_branch
      %141 = sbr.rel (%p138) target = $region32
    $region31: #{unet_forward.17} parent=5 // pred_region
      %s142 = ssub.s32 %s9, 1
      %p143 = scmp.lt.s32.totalorder %s14, 1
      %s144 = scalar_select %p143, %s14, 1
      %s145 = smul.addr %s144, 96
      %s146 = smul.addr %s145, 8
      %s147 = scalar_lea.vmem %s0, %s146
      %p148 = pneg %p35
      %p149 = pneg %p32
      %p150 = pneg %p56
      %p151 = pneg %p53
      %p152 = pneg %p77
      %p153 = pneg %p74
      %p154 = pneg %p103
      %p155 = pneg %p100
      %p156 = scmp.lt.s32.totalorder %s14, 1
      %s157 = scalar_select %p156, %s14, 1
      %s158 = smul.addr %s157, 32
      %s159 = smul.addr %s158, 8
      %s160 = scalar_lea.vmem %s3, %s159
      %p161 = scmp.lt.s32.totalorder %s14, 1
      %s162 = scalar_select %p161, %s14, 1
      %s163 = smul.addr %s162, 96
      %s164 = smul.addr %s163, 8
      %s165 = scalar_lea.vmem %s0, %s164
      %p166 = scmp.lt.s32.totalorder %s14, 1
      %s167 = scalar_select %p166, %s14, 1
      %s168 = smul.addr %s167, 32
      %s169 = smul.addr %s168, 8
      %s170 = scalar_lea.vmem %s3, %s169
      %v171 = vld [vmem:[%s165] sm:$0xff]
      %v172 = vld [vmem:[%s165 + $0x8] sm:$0xff]
      %v173 = vld [vmem:[%s165 + $0x10] sm:$0xff]
      %v174 = vld [vmem:[%s165 + $0x18] sm:$0xff]
      %v175 = vld [vmem:[%s165 + $0x20] sm:$0xff]
      %v176 = vld [vmem:[%s165 + $0x28] sm:$0xff]
      %v177 = vld [vmem:[%s165 + $0x30] sm:$0xff]
      %v178 = vld [vmem:[%s165 + $0x38] sm:$0xff]
      %v179 = vld [vmem:[%s165 + $0x40] sm:$0xff]
      %v180 = vld [vmem:[%s165 + $0x48] sm:$0xff]
      %v181 = vld [vmem:[%s165 + $0x50] sm:$0xff]
      %v182 = vld [vmem:[%s165 + $0x58] sm:$0xff]
      %v183 = vld [vmem:[%s165 + $0x60] sm:$0xff]
      %v184 = vld [vmem:[%s165 + $0x68] sm:$0xff]
      %v185 = vld [vmem:[%s165 + $0x70] sm:$0xff]
      %v186 = vld [vmem:[%s165 + $0x78] sm:$0xff]
      %v187 = vld [vmem:[%s165 + $0x80] sm:$0xff]
      %v188 = vld [vmem:[%s165 + $0x88] sm:$0xff]
      %v189 = vld [vmem:[%s165 + $0x90] sm:$0xff]
      %v190 = vld [vmem:[%s165 + $0x98] sm:$0xff]
      %v191 = vld [vmem:[%s165 + $0xa0] sm:$0xff]
      %v192 = vld [vmem:[%s165 + $0xa8] sm:$0xff]
      %v193 = vld [vmem:[%s165 + $0xb0] sm:$0xff]
      %v194 = vld [vmem:[%s165 + $0xb8] sm:$0xff]
      %v195 = vld [vmem:[%s165 + $0xc0] sm:$0xff]
      %v196 = vld [vmem:[%s165 + $0xc8] sm:$0xff]
      %v197 = vld [vmem:[%s165 + $0xd0] sm:$0xff]
      %v198 = vld [vmem:[%s165 + $0xd8] sm:$0xff]
      %v199 = vld [vmem:[%s165 + $0xe0] sm:$0xff]
      %v200 = vld [vmem:[%s165 + $0xe8] sm:$0xff]
      %v201 = vld [vmem:[%s165 + $0xf0] sm:$0xff]
      %v202 = vld [vmem:[%s165 + $0xf8] sm:$0xff]
      %v203 = vld [vmem:[%s165 + $0x100] sm:$0xff]
      %v204 = vld [vmem:[%s165 + $0x108] sm:$0xff]
      %v205 = vld [vmem:[%s165 + $0x110] sm:$0xff]
      %v206 = vld [vmem:[%s165 + $0x118] sm:$0xff]
      %v207 = vld [vmem:[%s165 + $0x120] sm:$0xff]
      %v208 = vld [vmem:[%s165 + $0x128] sm:$0xff]
      %v209 = vld [vmem:[%s165 + $0x130] sm:$0xff]
      %v210 = vld [vmem:[%s165 + $0x138] sm:$0xff]
      %v211 = vld [vmem:[%s165 + $0x140] sm:$0xff]
      %v212 = vld [vmem:[%s165 + $0x148] sm:$0xff]
      %v213 = vld [vmem:[%s165 + $0x150] sm:$0xff]
      %v214 = vld [vmem:[%s165 + $0x158] sm:$0xff]
      %v215 = vld [vmem:[%s165 + $0x160] sm:$0xff]
      %v216 = vld [vmem:[%s165 + $0x168] sm:$0xff]
      %v217 = vld [vmem:[%s165 + $0x170] sm:$0xff]
      %v218 = vld [vmem:[%s165 + $0x178] sm:$0xff]
      %v219 = vld [vmem:[%s165 + $0x180] sm:$0xff]
      %v220 = vld [vmem:[%s165 + $0x188] sm:$0xff]
      %v221 = vld [vmem:[%s165 + $0x190] sm:$0xff]
      %v222 = vld [vmem:[%s165 + $0x198] sm:$0xff]
      %v223 = vld [vmem:[%s165 + $0x1a0] sm:$0xff]
      %v224 = vld [vmem:[%s165 + $0x1a8] sm:$0xff]
      %v225 = vld [vmem:[%s165 + $0x1b0] sm:$0xff]
      %v226 = vld [vmem:[%s165 + $0x1b8] sm:$0xff]
      %v227 = vld [vmem:[%s165 + $0x1c0] sm:$0xff]
      %v228 = vld [vmem:[%s165 + $0x1c8] sm:$0xff]
      %v229 = vld [vmem:[%s165 + $0x1d0] sm:$0xff]
      %v230 = vld [vmem:[%s165 + $0x1d8] sm:$0xff]
      %v231 = vld [vmem:[%s165 + $0x1e0] sm:$0xff]
      %v232 = vld [vmem:[%s165 + $0x1e8] sm:$0xff]
      %v233 = vld [vmem:[%s165 + $0x1f0] sm:$0xff]
      %v234 = vld [vmem:[%s165 + $0x1f8] sm:$0xff]
      %v235 = vld [vmem:[%s165 + $0x200] sm:$0xff]
      %v236 = vld [vmem:[%s165 + $0x208] sm:$0xff]
      %v237 = vld [vmem:[%s165 + $0x210] sm:$0xff]
      %v238 = vld [vmem:[%s165 + $0x218] sm:$0xff]
      %v239 = vld [vmem:[%s165 + $0x220] sm:$0xff]
      %v240 = vld [vmem:[%s165 + $0x228] sm:$0xff]
      %v241 = vld [vmem:[%s165 + $0x230] sm:$0xff]
      %v242 = vld [vmem:[%s165 + $0x238] sm:$0xff]
      %v243 = vld [vmem:[%s165 + $0x240] sm:$0xff]
      %v244 = vld [vmem:[%s165 + $0x248] sm:$0xff]
      %v245 = vld [vmem:[%s165 + $0x250] sm:$0xff]
      %v246 = vld [vmem:[%s165 + $0x258] sm:$0xff]
      %v247 = vld [vmem:[%s165 + $0x260] sm:$0xff]
      %v248 = vld [vmem:[%s165 + $0x268] sm:$0xff]
      %v249 = vld [vmem:[%s165 + $0x270] sm:$0xff]
      %v250 = vld [vmem:[%s165 + $0x278] sm:$0xff]
      %v251 = vld [vmem:[%s165 + $0x280] sm:$0xff]
      %v252 = vld [vmem:[%s165 + $0x288] sm:$0xff]
      %v253 = vld [vmem:[%s165 + $0x290] sm:$0xff]
      %v254 = vld [vmem:[%s165 + $0x298] sm:$0xff]
      %v255 = vld [vmem:[%s165 + $0x2a0] sm:$0xff]
      %v256 = vld [vmem:[%s165 + $0x2a8] sm:$0xff]
      %v257 = vld [vmem:[%s165 + $0x2b0] sm:$0xff]
      %v258 = vld [vmem:[%s165 + $0x2b8] sm:$0xff]
      %v259 = vld [vmem:[%s165 + $0x2c0] sm:$0xff]
      %v260 = vld [vmem:[%s165 + $0x2c8] sm:$0xff]
      %v261 = vld [vmem:[%s165 + $0x2d0] sm:$0xff]
      %v262 = vld [vmem:[%s165 + $0x2d8] sm:$0xff]
      %v263 = vld [vmem:[%s165 + $0x2e0] sm:$0xff]
      %v264 = vld [vmem:[%s165 + $0x2e8] sm:$0xff]
      %v265 = vld [vmem:[%s165 + $0x2f0] sm:$0xff]
      %v266 = vld [vmem:[%s165 + $0x2f8] sm:$0xff]
      %v267 = vld [vmem:[%s1] sm:$0xff]
      %v268 = vld [vmem:[%s1 + $0x8] sm:$0xff]
      %v269 = vld [vmem:[%s1 + $0x10] sm:$0xff]
      %v270 = vld [vmem:[%s1 + $0x18] sm:$0xff]
      %v271 = vld [vmem:[%s1 + $0x20] sm:$0xff]
      %v272 = vld [vmem:[%s1 + $0x28] sm:$0xff]
      %v273 = vld [vmem:[%s1 + $0x30] sm:$0xff]
      %v274 = vld [vmem:[%s1 + $0x38] sm:$0xff]
      %v275 = vld [vmem:[%s1 + $0x40] sm:$0xff]
      %v276 = vld [vmem:[%s1 + $0x48] sm:$0xff]
      %v277 = vld [vmem:[%s1 + $0x50] sm:$0xff]
      %v278 = vld [vmem:[%s1 + $0x58] sm:$0xff]
      %v279 = vld [vmem:[%s1 + $0x60] sm:$0xff]
      %v280 = vld [vmem:[%s1 + $0x68] sm:$0xff]
      %v281 = vld [vmem:[%s1 + $0x70] sm:$0xff]
      %v282 = vld [vmem:[%s1 + $0x78] sm:$0xff]
      %v283 = vld [vmem:[%s1 + $0x80] sm:$0xff]
      %v284 = vld [vmem:[%s1 + $0x88] sm:$0xff]
      %v285 = vld [vmem:[%s1 + $0x90] sm:$0xff]
      %v286 = vld [vmem:[%s1 + $0x98] sm:$0xff]
      %v287 = vld [vmem:[%s1 + $0xa0] sm:$0xff]
      %v288 = vld [vmem:[%s1 + $0xa8] sm:$0xff]
      %v289 = vld [vmem:[%s1 + $0xb0] sm:$0xff]
      %v290 = vld [vmem:[%s1 + $0xb8] sm:$0xff]
      %v291 = vld [vmem:[%s1 + $0xc0] sm:$0xff]
      %v292 = vld [vmem:[%s1 + $0xc8] sm:$0xff]
      %v293 = vld [vmem:[%s1 + $0xd0] sm:$0xff]
      %v294 = vld [vmem:[%s1 + $0xd8] sm:$0xff]
      %v295 = vld [vmem:[%s1 + $0xe0] sm:$0xff]
      %v296 = vld [vmem:[%s1 + $0xe8] sm:$0xff]
      %v297 = vld [vmem:[%s1 + $0xf0] sm:$0xff]
      %v298 = vld [vmem:[%s1 + $0xf8] sm:$0xff]
      %v299 = vld [vmem:[%s1 + $0x100] sm:$0xff]
      %v300 = vld [vmem:[%s1 + $0x108] sm:$0xff]
      %v301 = vld [vmem:[%s1 + $0x110] sm:$0xff]
      %v302 = vld [vmem:[%s1 + $0x118] sm:$0xff]
      %v303 = vld [vmem:[%s2] sm:$0x1]
      %v305 = vlaneseq
      %v306 = vshrl.u32 %v305, 7
      %v307 = vsub.s32 0, %v306
      %v308 = vrot.slane %v303, %v307
      %vm310 = vcmask 261120
      %v312 = vsel %vm310, %v173, 0
      %v315 = vsel %vm310, %v176, 0
      %v318 = vsel %vm310, %v179, 0
      %v321 = vsel %vm310, %v182, 0
      %v324 = vsel %vm310, %v185, 0
      %v327 = vsel %vm310, %v188, 0
      %v330 = vsel %vm310, %v191, 0
      %v333 = vsel %vm310, %v194, 0
      %v336 = vsel %vm310, %v197, 0
      %v339 = vsel %vm310, %v200, 0
      %v342 = vsel %vm310, %v203, 0
      %v345 = vsel %vm310, %v206, 0
      %v348 = vsel %vm310, %v209, 0
      %v351 = vsel %vm310, %v212, 0
      %v354 = vsel %vm310, %v215, 0
      %v357 = vsel %vm310, %v218, 0
      %v360 = vsel %vm310, %v221, 0
      %v363 = vsel %vm310, %v224, 0
      %v366 = vsel %vm310, %v227, 0
      %v369 = vsel %vm310, %v230, 0
      %v372 = vsel %vm310, %v233, 0
      %v375 = vsel %vm310, %v236, 0
      %v378 = vsel %vm310, %v239, 0
      %v381 = vsel %vm310, %v242, 0
      %v384 = vsel %vm310, %v245, 0
      %v387 = vsel %vm310, %v248, 0
      %v390 = vsel %vm310, %v251, 0
      %v393 = vsel %vm310, %v254, 0
      %v396 = vsel %vm310, %v257, 0
      %v399 = vsel %vm310, %v260, 0
      %v402 = vsel %vm310, %v263, 0
      %v405 = vsel %vm310, %v266, 0
      %407 = vmatprep.subr.mxu0 0.0
      %408 = vmatpush1.msra.mxu0 %v267
      %409 = vmatprep.subr.mxu0 0.0
      %410 = vmatpush1.msra.mxu0 %v268
      %411 = vmatprep.subr.mxu0 0.0
      %412 = vmatpush1.msra.mxu0 %v269
      %413 = vmatprep.subr.mxu0 0.0
      %414 = vmatpush1.msra.mxu0 %v270
      %415 = vmatprep.subr.mxu0 0.0
      %416 = vmatpush1.msra.mxu0 %v271
      %417 = vmatprep.subr.mxu0 0.0
      %418 = vmatpush1.msra.mxu0 %v272
      %419 = vmatprep.subr.mxu0 0.0
      %420 = vmatpush1.msra.mxu0 %v273
      %421 = vmatprep.subr.mxu0 0.0
      %422 = vmatpush1.msra.mxu0 %v274
      %423 = vmatprep.subr.mxu0 0.0
      %424 = vmatpush1.msra.mxu0 %v275
      %425 = vmatprep.subr.mxu0 0.0
      %426 = vmatpush1.msra.mxu0 %v276
      %427 = vmatprep.subr.mxu0 0.0
      %428 = vmatpush1.msra.mxu0 %v277
      %429 = vmatprep.subr.mxu0 0.0
      %430 = vmatpush1.msra.mxu0 %v278
      %431 = vmatprep.subr.mxu0 0.0
      %432 = vmatpush1.msra.mxu0 %v279
      %433 = vmatprep.subr.mxu0 0.0
      %434 = vmatpush1.msra.mxu0 %v280
      %435 = vmatprep.subr.mxu0 0.0
      %436 = vmatpush1.msra.mxu0 %v281
      %437 = vmatprep.subr.mxu0 0.0
      %438 = vmatpush1.msra.mxu0 %v282
      %439 = vmatprep.subr.mxu0 0.0
      %440 = vmatpush1.msra.mxu0 %v283
      %441 = vmatprep.subr.mxu0 0.0
      %442 = vmatpush1.msra.mxu0 %v284
      %443 = vmatprep.subr.mxu0 0.0
      %444 = vmatpush1.msra.mxu0 %v285
      %445 = vmatprep.subr.mxu0 0.0
      %446 = vmatpush1.msra.mxu0 %v286
      %447 = vmatprep.subr.mxu0 0.0
      %448 = vmatpush1.msra.mxu0 %v287
      %449 = vmatprep.subr.mxu0 0.0
      %450 = vmatpush1.msra.mxu0 %v288
      %451 = vmatprep.subr.mxu0 0.0
      %452 = vmatpush1.msra.mxu0 %v289
      %453 = vmatprep.subr.mxu0 0.0
      %454 = vmatpush1.msra.mxu0 %v290
      %455 = vmatprep.subr.mxu0 0.0
      %456 = vmatpush1.msra.mxu0 %v291
      %457 = vmatprep.subr.mxu0 0.0
      %458 = vmatpush1.msra.mxu0 %v292
      %459 = vmatprep.subr.mxu0 0.0
      %460 = vmatpush1.msra.mxu0 %v293
      %461 = vmatprep.subr.mxu0 0.0
      %462 = vmatpush1.msra.mxu0 %v294
      %463 = vmatprep.subr.mxu0 0.0
      %464 = vmatpush1.msra.mxu0 %v295
      %465 = vmatprep.subr.mxu0 0.0
      %466 = vmatpush1.msra.mxu0 %v296
      %467 = vmatprep.subr.mxu0 0.0
      %468 = vmatpush1.msra.mxu0 %v297
      %469 = vmatprep.subr.mxu0 0.0
      %470 = vmatpush1.msra.mxu0 %v298
      %471 = vmatprep.mubr.f32.mxu0 %v172
      %472 = vmatmul.mubr.f32.gmra.mrb[0].mxu0 %v171
      %v473 = vpop.f32.mrb[0].mxu0
      %v474 = vadd.f32 %v308, %v473
      %v475 = vpop.f32.mrb[0].mxu0
      %476 = vmatprep.mubr.f32.mxu0 %v175
      %477 = vmatmul.mubr.f32.gmra.mrb[0].mxu0 %v174
      %v478 = vpop.f32.mrb[0].mxu0
      %v479 = vadd.f32 %v308, %v478
      %v480 = vpop.f32.mrb[0].mxu0
      %481 = vmatprep.mubr.f32.mxu0 %v178
      %482 = vmatmul.mubr.f32.gmra.mrb[0].mxu0 %v177
      %v483 = vpop.f32.mrb[0].mxu0
      %v484 = vadd.f32 %v308, %v483
      %v485 = vpop.f32.mrb[0].mxu0
      %486 = vmatprep.mubr.f32.mxu0 %v181
      %487 = vmatmul.mubr.f32.gmra.mrb[0].mxu0 %v180
      %v488 = vpop.f32.mrb[0].mxu0
      %v489 = vadd.f32 %v308, %v488
      %v490 = vpop.f32.mrb[0].mxu0
      %491 = vmatprep.mubr.f32.mxu0 %v184
      %492 = vmatmul.mubr.f32.gmra.mrb[0].mxu0 %v183
      %v493 = vpop.f32.mrb[0].mxu0
      %v494 = vadd.f32 %v308, %v493
      %v495 = vpop.f32.mrb[0].mxu0
      %496 = vmatprep.mubr.f32.mxu0 %v187
      %497 = vmatmul.mubr.f32.gmra.mrb[0].mxu0 %v186
      %v498 = vpop.f32.mrb[0].mxu0
      %v499 = vadd.f32 %v308, %v498
      %v500 = vpop.f32.mrb[0].mxu0
      %501 = vmatprep.mubr.f32.mxu0 %v190
      %502 = vmatmul.mubr.f32.gmra.mrb[0].mxu0 %v189
      %v503 = vpop.f32.mrb[0].mxu0
      %v504 = vadd.f32 %v308, %v503
      %v505 = vpop.f32.mrb[0].mxu0
      %506 = vmatprep.mubr.f32.mxu0 %v193
      %507 = vmatmul.mubr.f32.gmra.mrb[0].mxu0 %v192
      %v508 = vpop.f32.mrb[0].mxu0
      %v509 = vadd.f32 %v308, %v508
      %v510 = vpop.f32.mrb[0].mxu0
      %511 = vmatprep.mubr.f32.mxu0 %v196
      %512 = vmatmul.mubr.f32.gmra.mrb[0].mxu0 %v195
      %v513 = vpop.f32.mrb[0].mxu0
      %v514 = vadd.f32 %v308, %v513
      %v515 = vpop.f32.mrb[0].mxu0
      %516 = vmatprep.mubr.f32.mxu0 %v199
      %517 = vmatmul.mubr.f32.gmra.mrb[0].mxu0 %v198
      %v518 = vpop.f32.mrb[0].mxu0
      %v519 = vadd.f32 %v308, %v518
      %v520 = vpop.f32.mrb[0].mxu0
      %521 = vmatprep.mubr.f32.mxu0 %v202
      %522 = vmatmul.mubr.f32.gmra.mrb[0].mxu0 %v201
      %v523 = vpop.f32.mrb[0].mxu0
      %v524 = vadd.f32 %v308, %v523
      %v525 = vpop.f32.mrb[0].mxu0
      %526 = vmatprep.mubr.f32.mxu0 %v205
      %527 = vmatmul.mubr.f32.gmra.mrb[0].mxu0 %v204
      %v528 = vpop.f32.mrb[0].mxu0
      %v529 = vadd.f32 %v308, %v528
      %v530 = vpop.f32.mrb[0].mxu0
      %531 = vmatprep.mubr.f32.mxu0 %v208
      %532 = vmatmul.mubr.f32.gmra.mrb[0].mxu0 %v207
      %v533 = vpop.f32.mrb[0].mxu0
      %v534 = vadd.f32 %v308, %v533
      %v535 = vpop.f32.mrb[0].mxu0
      %536 = vmatprep.mubr.f32.mxu0 %v211
      %537 = vmatmul.mubr.f32.gmra.mrb[0].mxu0 %v210
      %v538 = vpop.f32.mrb[0].mxu0
      %v539 = vadd.f32 %v308, %v538
      %v540 = vpop.f32.mrb[0].mxu0
      %541 = vmatprep.mubr.f32.mxu0 %v214
      %542 = vmatmul.mubr.f32.gmra.mrb[0].mxu0 %v213
      %v543 = vpop.f32.mrb[0].mxu0
      %v544 = vadd.f32 %v308, %v543
      %v545 = vpop.f32.mrb[0].mxu0
      %546 = vmatprep.mubr.f32.mxu0 %v217
      %547 = vmatmul.mubr.f32.gmra.mrb[0].mxu0 %v216
      %v548 = vpop.f32.mrb[0].mxu0
      %v549 = vadd.f32 %v308, %v548
      %v550 = vpop.f32.mrb[0].mxu0
      %551 = vmatprep.mubr.f32.mxu0 %v220
      %552 = vmatmul.mubr.f32.gmra.mrb[0].mxu0 %v219
      %v553 = vpop.f32.mrb[0].mxu0
      %v554 = vadd.f32 %v308, %v553
      %v555 = vpop.f32.mrb[0].mxu0
      %556 = vmatprep.mubr.f32.mxu0 %v223
      %557 = vmatmul.mubr.f32.gmra.mrb[0].mxu0 %v222
      %v558 = vpop.f32.mrb[0].mxu0
      %v559 = vadd.f32 %v308, %v558
      %v560 = vpop.f32.mrb[0].mxu0
      %561 = vmatprep.mubr.f32.mxu0 %v226
      %562 = vmatmul.mubr.f32.gmra.mrb[0].mxu0 %v225
      %v563 = vpop.f32.mrb[0].mxu0
      %v564 = vadd.f32 %v308, %v563
      %v565 = vpop.f32.mrb[0].mxu0
      %566 = vmatprep.mubr.f32.mxu0 %v229
      %567 = vmatmul.mubr.f32.gmra.mrb[0].mxu0 %v228
      %v568 = vpop.f32.mrb[0].mxu0
      %v569 = vadd.f32 %v308, %v568
      %v570 = vpop.f32.mrb[0].mxu0
      %571 = vmatprep.mubr.f32.mxu0 %v232
      %572 = vmatmul.mubr.f32.gmra.mrb[0].mxu0 %v231
      %v573 = vpop.f32.mrb[0].mxu0
      %v574 = vadd.f32 %v308, %v573
      %v575 = vpop.f32.mrb[0].mxu0
      %576 = vmatprep.mubr.f32.mxu0 %v235
      %577 = vmatmul.mubr.f32.gmra.mrb[0].mxu0 %v234
      %v578 = vpop.f32.mrb[0].mxu0
      %v579 = vadd.f32 %v308, %v578
      %v580 = vpop.f32.mrb[0].mxu0
      %581 = vmatprep.mubr.f32.mxu0 %v238
      %582 = vmatmul.mubr.f32.gmra.mrb[0].mxu0 %v237
      %v583 = vpop.f32.mrb[0].mxu0
      %v584 = vadd.f32 %v308, %v583
      %v585 = vpop.f32.mrb[0].mxu0
      %586 = vmatprep.mubr.f32.mxu0 %v241
      %587 = vmatmul.mubr.f32.gmra.mrb[0].mxu0 %v240
      %v588 = vpop.f32.mrb[0].mxu0
      %v589 = vadd.f32 %v308, %v588
      %v590 = vpop.f32.mrb[0].mxu0
      %591 = vmatprep.mubr.f32.mxu0 %v244
      %592 = vmatmul.mubr.f32.gmra.mrb[0].mxu0 %v243
      %v593 = vpop.f32.mrb[0].mxu0
      %v594 = vadd.f32 %v308, %v593
      %v595 = vpop.f32.mrb[0].mxu0
      %596 = vmatprep.mubr.f32.mxu0 %v247
      %597 = vmatmul.mubr.f32.gmra.mrb[0].mxu0 %v246
      %v598 = vpop.f32.mrb[0].mxu0
      %v599 = vadd.f32 %v308, %v598
      %v600 = vpop.f32.mrb[0].mxu0
      %601 = vmatprep.mubr.f32.mxu0 %v250
      %602 = vmatmul.mubr.f32.gmra.mrb[0].mxu0 %v249
      %v603 = vpop.f32.mrb[0].mxu0
      %v604 = vadd.f32 %v308, %v603
      %v605 = vpop.f32.mrb[0].mxu0
      %606 = vmatprep.mubr.f32.mxu0 %v253
      %607 = vmatmul.mubr.f32.gmra.mrb[0].mxu0 %v252
      %v608 = vpop.f32.mrb[0].mxu0
      %v609 = vadd.f32 %v308, %v608
      %v610 = vpop.f32.mrb[0].mxu0
      %611 = vmatprep.mubr.f32.mxu0 %v256
      %612 = vmatmul.mubr.f32.gmra.mrb[0].mxu0 %v255
      %v613 = vpop.f32.mrb[0].mxu0
      %v614 = vadd.f32 %v308, %v613
      %v615 = vpop.f32.mrb[0].mxu0
      %616 = vmatprep.mubr.f32.mxu0 %v259
      %617 = vmatmul.mubr.f32.gmra.mrb[0].mxu0 %v258
      %v618 = vpop.f32.mrb[0].mxu0
      %v619 = vadd.f32 %v308, %v618
      %v620 = vpop.f32.mrb[0].mxu0
      %621 = vmatprep.mubr.f32.mxu0 %v262
      %622 = vmatmul.mubr.f32.gmra.mrb[0].mxu0 %v261
      %v623 = vpop.f32.mrb[0].mxu0
      %v624 = vadd.f32 %v308, %v623
      %v625 = vpop.f32.mrb[0].mxu0
      %626 = vmatprep.mubr.f32.mxu0 %v265
      %627 = vmatmul.mubr.f32.gmra.mrb[0].mxu0 %v264
      %v628 = vpop.f32.mrb[0].mxu0
      %v629 = vadd.f32 %v308, %v628
      %v630 = vpop.f32.mrb[0].mxu0
      %631 = vdwg.mxu0
      %632 = vmatprep.subr.mxu0 0.0
      %633 = vmatpush1.msra.mxu0 %v299
      %634 = vmatprep.subr.mxu0 0.0
      %635 = vmatpush1.msra.mxu0 %v300
      %636 = vmatprep.subr.mxu0 0.0
      %637 = vmatpush1.msra.mxu0 %v301
      %638 = vmatprep.subr.mxu0 0.0
      %639 = vmatpush1.msra.mxu0 %v302
      %640 = vmatprep.subr.mxu0 0.0
      %641 = vmatpush1.msra.mxu0 0.0
      %642 = vmatprep.subr.mxu0 0.0
      %643 = vmatpush1.msra.mxu0 0.0
      %644 = vmatprep.subr.mxu0 0.0
      %645 = vmatpush1.msra.mxu0 0.0
      %646 = vmatprep.subr.mxu0 0.0
      %647 = vmatpush1.msra.mxu0 0.0
      %648 = vmatprep.subr.mxu0 0.0
      %649 = vmatpush1.msra.mxu0 0.0
      %650 = vmatprep.subr.mxu0 0.0
      %651 = vmatpush1.msra.mxu0 0.0
      %652 = vmatprep.subr.mxu0 0.0
      %653 = vmatpush1.msra.mxu0 0.0
      %654 = vmatprep.subr.mxu0 0.0
      %655 = vmatpush1.msra.mxu0 0.0
      %656 = vmatprep.subr.mxu0 0.0
      %657 = vmatpush1.msra.mxu0 0.0
      %658 = vmatprep.subr.mxu0 0.0
      %659 = vmatpush1.msra.mxu0 0.0
      %660 = vmatprep.subr.mxu0 0.0
      %661 = vmatpush1.msra.mxu0 0.0
      %662 = vmatprep.subr.mxu0 0.0
      %663 = vmatpush1.msra.mxu0 0.0
      %664 = vmatprep.subr.mxu0 0.0
      %665 = vmatpush1.msra.mxu0 0.0
      %666 = vmatprep.subr.mxu0 0.0
      %667 = vmatpush1.msra.mxu0 0.0
      %668 = vmatprep.subr.mxu0 0.0
      %669 = vmatpush1.msra.mxu0 0.0
      %670 = vmatprep.subr.mxu0 0.0
      %671 = vmatpush1.msra.mxu0 0.0
      %672 = vmatprep.subr.mxu0 0.0
      %673 = vmatpush1.msra.mxu0 0.0
      %674 = vmatprep.subr.mxu0 0.0
      %675 = vmatpush1.msra.mxu0 0.0
      %676 = vmatprep.subr.mxu0 0.0
      %677 = vmatpush1.msra.mxu0 0.0
      %678 = vmatprep.subr.mxu0 0.0
      %679 = vmatpush1.msra.mxu0 0.0
      %680 = vmatprep.subr.mxu0 0.0
      %681 = vmatpush1.msra.mxu0 0.0
      %682 = vmatprep.subr.mxu0 0.0
      %683 = vmatpush1.msra.mxu0 0.0
      %684 = vmatprep.subr.mxu0 0.0
      %685 = vmatpush1.msra.mxu0 0.0
      %686 = vmatprep.subr.mxu0 0.0
      %687 = vmatpush1.msra.mxu0 0.0
      %688 = vmatprep.subr.mxu0 0.0
      %689 = vmatpush1.msra.mxu0 0.0
      %690 = vmatprep.subr.mxu0 0.0
      %691 = vmatpush1.msra.mxu0 0.0
      %692 = vmatprep.subr.mxu0 0.0
      %693 = vmatpush1.msra.mxu0 0.0
      %694 = vmatprep.subr.mxu0 0.0
      %695 = vmatpush1.msra.mxu0 0.0
      %696 = vmatprep.mubr.f32.mxu0 0.0
      %697 = vmatmul.mubr.f32.gmra.mrb[0].mxu0 %v312
      %v698 = vpop.f32.mrb[0].mxu0
      %v699 = vadd.f32 %v474, %v698
      %v700 = vpop.f32.mrb[0].mxu0
      %701 = vmatprep.mubr.f32.mxu0 0.0
      %702 = vmatmul.mubr.f32.gmra.mrb[0].mxu0 %v315
      %v703 = vpop.f32.mrb[0].mxu0
      %v704 = vadd.f32 %v479, %v703
      %v705 = vpop.f32.mrb[0].mxu0
      %706 = vmatprep.mubr.f32.mxu0 0.0
      %707 = vmatmul.mubr.f32.gmra.mrb[0].mxu0 %v318
      %v708 = vpop.f32.mrb[0].mxu0
      %v709 = vadd.f32 %v484, %v708
      %v710 = vpop.f32.mrb[0].mxu0
      %711 = vmatprep.mubr.f32.mxu0 0.0
      %712 = vmatmul.mubr.f32.gmra.mrb[0].mxu0 %v321
      %v713 = vpop.f32.mrb[0].mxu0
      %v714 = vadd.f32 %v489, %v713
      %v715 = vpop.f32.mrb[0].mxu0
      %716 = vmatprep.mubr.f32.mxu0 0.0
      %717 = vmatmul.mubr.f32.gmra.mrb[0].mxu0 %v324
      %v718 = vpop.f32.mrb[0].mxu0
      %v719 = vadd.f32 %v494, %v718
      %v720 = vpop.f32.mrb[0].mxu0
      %721 = vmatprep.mubr.f32.mxu0 0.0
      %722 = vmatmul.mubr.f32.gmra.mrb[0].mxu0 %v327
      %v723 = vpop.f32.mrb[0].mxu0
      %v724 = vadd.f32 %v499, %v723
      %v725 = vpop.f32.mrb[0].mxu0
      %726 = vmatprep.mubr.f32.mxu0 0.0
      %727 = vmatmul.mubr.f32.gmra.mrb[0].mxu0 %v330
      %v728 = vpop.f32.mrb[0].mxu0
      %v729 = vadd.f32 %v504, %v728
      %v730 = vpop.f32.mrb[0].mxu0
      %731 = vmatprep.mubr.f32.mxu0 0.0
      %732 = vmatmul.mubr.f32.gmra.mrb[0].mxu0 %v333
      %v733 = vpop.f32.mrb[0].mxu0
      %v734 = vadd.f32 %v509, %v733
      %v735 = vpop.f32.mrb[0].mxu0
      %736 = vmatprep.mubr.f32.mxu0 0.0
      %737 = vmatmul.mubr.f32.gmra.mrb[0].mxu0 %v336
      %v738 = vpop.f32.mrb[0].mxu0
      %v739 = vadd.f32 %v514, %v738
      %v740 = vpop.f32.mrb[0].mxu0
      %741 = vmatprep.mubr.f32.mxu0 0.0
      %742 = vmatmul.mubr.f32.gmra.mrb[0].mxu0 %v339
      %v743 = vpop.f32.mrb[0].mxu0
      %v744 = vadd.f32 %v519, %v743
      %v745 = vpop.f32.mrb[0].mxu0
      %746 = vmatprep.mubr.f32.mxu0 0.0
      %747 = vmatmul.mubr.f32.gmra.mrb[0].mxu0 %v342
      %v748 = vpop.f32.mrb[0].mxu0
      %v749 = vadd.f32 %v524, %v748
      %v750 = vpop.f32.mrb[0].mxu0
      %751 = vmatprep.mubr.f32.mxu0 0.0
      %752 = vmatmul.mubr.f32.gmra.mrb[0].mxu0 %v345
      %v753 = vpop.f32.mrb[0].mxu0
      %v754 = vadd.f32 %v529, %v753
      %v755 = vpop.f32.mrb[0].mxu0
      %756 = vmatprep.mubr.f32.mxu0 0.0
      %757 = vmatmul.mubr.f32.gmra.mrb[0].mxu0 %v348
      %v758 = vpop.f32.mrb[0].mxu0
      %v759 = vadd.f32 %v534, %v758
      %v760 = vpop.f32.mrb[0].mxu0
      %761 = vmatprep.mubr.f32.mxu0 0.0
      %762 = vmatmul.mubr.f32.gmra.mrb[0].mxu0 %v351
      %v763 = vpop.f32.mrb[0].mxu0
      %v764 = vadd.f32 %v539, %v763
      %v765 = vpop.f32.mrb[0].mxu0
      %766 = vmatprep.mubr.f32.mxu0 0.0
      %767 = vmatmul.mubr.f32.gmra.mrb[0].mxu0 %v354
      %v768 = vpop.f32.mrb[0].mxu0
      %v769 = vadd.f32 %v544, %v768
      %v770 = vpop.f32.mrb[0].mxu0
      %771 = vmatprep.mubr.f32.mxu0 0.0
      %772 = vmatmul.mubr.f32.gmra.mrb[0].mxu0 %v357
      %v773 = vpop.f32.mrb[0].mxu0
      %v774 = vadd.f32 %v549, %v773
      %v775 = vpop.f32.mrb[0].mxu0
      %776 = vmatprep.mubr.f32.mxu0 0.0
      %777 = vmatmul.mubr.f32.gmra.mrb[0].mxu0 %v360
      %v778 = vpop.f32.mrb[0].mxu0
      %v779 = vadd.f32 %v554, %v778
      %v780 = vpop.f32.mrb[0].mxu0
      %781 = vmatprep.mubr.f32.mxu0 0.0
      %782 = vmatmul.mubr.f32.gmra.mrb[0].mxu0 %v363
      %v783 = vpop.f32.mrb[0].mxu0
      %v784 = vadd.f32 %v559, %v783
      %v785 = vpop.f32.mrb[0].mxu0
      %786 = vmatprep.mubr.f32.mxu0 0.0
      %787 = vmatmul.mubr.f32.gmra.mrb[0].mxu0 %v366
      %v788 = vpop.f32.mrb[0].mxu0
      %v789 = vadd.f32 %v564, %v788
      %v790 = vpop.f32.mrb[0].mxu0
      %791 = vmatprep.mubr.f32.mxu0 0.0
      %792 = vmatmul.mubr.f32.gmra.mrb[0].mxu0 %v369
      %v793 = vpop.f32.mrb[0].mxu0
      %v794 = vadd.f32 %v569, %v793
      %v795 = vpop.f32.mrb[0].mxu0
      %796 = vmatprep.mubr.f32.mxu0 0.0
      %797 = vmatmul.mubr.f32.gmra.mrb[0].mxu0 %v372
      %v798 = vpop.f32.mrb[0].mxu0
      %v799 = vadd.f32 %v574, %v798
      %v800 = vpop.f32.mrb[0].mxu0
      %801 = vmatprep.mubr.f32.mxu0 0.0
      %802 = vmatmul.mubr.f32.gmra.mrb[0].mxu0 %v375
      %v803 = vpop.f32.mrb[0].mxu0
      %v804 = vadd.f32 %v579, %v803
      %v805 = vpop.f32.mrb[0].mxu0
      %806 = vmatprep.mubr.f32.mxu0 0.0
      %807 = vmatmul.mubr.f32.gmra.mrb[0].mxu0 %v378
      %v808 = vpop.f32.mrb[0].mxu0
      %v809 = vadd.f32 %v584, %v808
      %v810 = vpop.f32.mrb[0].mxu0
      %811 = vmatprep.mubr.f32.mxu0 0.0
      %812 = vmatmul.mubr.f32.gmra.mrb[0].mxu0 %v381
      %v813 = vpop.f32.mrb[0].mxu0
      %v814 = vadd.f32 %v589, %v813
      %v815 = vpop.f32.mrb[0].mxu0
      %816 = vmatprep.mubr.f32.mxu0 0.0
      %817 = vmatmul.mubr.f32.gmra.mrb[0].mxu0 %v384
      %v818 = vpop.f32.mrb[0].mxu0
      %v819 = vadd.f32 %v594, %v818
      %v820 = vpop.f32.mrb[0].mxu0
      %821 = vmatprep.mubr.f32.mxu0 0.0
      %822 = vmatmul.mubr.f32.gmra.mrb[0].mxu0 %v387
      %v823 = vpop.f32.mrb[0].mxu0
      %v824 = vadd.f32 %v599, %v823
      %v825 = vpop.f32.mrb[0].mxu0
      %826 = vmatprep.mubr.f32.mxu0 0.0
      %827 = vmatmul.mubr.f32.gmra.mrb[0].mxu0 %v390
      %v828 = vpop.f32.mrb[0].mxu0
      %v829 = vadd.f32 %v604, %v828
      %v830 = vpop.f32.mrb[0].mxu0
      %831 = vmatprep.mubr.f32.mxu0 0.0
      %832 = vmatmul.mubr.f32.gmra.mrb[0].mxu0 %v393
      %v833 = vpop.f32.mrb[0].mxu0
      %v834 = vadd.f32 %v609, %v833
      %v835 = vpop.f32.mrb[0].mxu0
      %836 = vmatprep.mubr.f32.mxu0 0.0
      %837 = vmatmul.mubr.f32.gmra.mrb[0].mxu0 %v396
      %v838 = vpop.f32.mrb[0].mxu0
      %v839 = vadd.f32 %v614, %v838
      %v840 = vpop.f32.mrb[0].mxu0
      %841 = vmatprep.mubr.f32.mxu0 0.0
      %842 = vmatmul.mubr.f32.gmra.mrb[0].mxu0 %v399
      %v843 = vpop.f32.mrb[0].mxu0
      %v844 = vadd.f32 %v619, %v843
      %v845 = vpop.f32.mrb[0].mxu0
      %846 = vmatprep.mubr.f32.mxu0 0.0
      %847 = vmatmul.mubr.f32.gmra.mrb[0].mxu0 %v402
      %v848 = vpop.f32.mrb[0].mxu0
      %v849 = vadd.f32 %v624, %v848
      %v850 = vpop.f32.mrb[0].mxu0
      %851 = vmatprep.mubr.f32.mxu0 0.0
      %852 = vmatmul.mubr.f32.gmra.mrb[0].mxu0 %v405
      %v853 = vpop.f32.mrb[0].mxu0
      %v854 = vadd.f32 %v629, %v853
      %v855 = vpop.f32.mrb[0].mxu0
      %856 = vdwg.mxu0
      %v857 = vsel %vm310, %v699, 0.0
      %v858 = vsel %vm310, %v704, 0.0
      %v859 = vadd.f32 %v857, %v858
      %v860 = vsel %vm310, %v709, 0.0
      %v861 = vadd.f32 %v859, %v860
      %v862 = vsel %vm310, %v714, 0.0
      %v863 = vadd.f32 %v861, %v862
      %v864 = vsel %vm310, %v719, 0.0
      %v865 = vadd.f32 %v863, %v864
      %v866 = vsel %vm310, %v724, 0.0
      %v867 = vadd.f32 %v865, %v866
      %v868 = vsel %vm310, %v729, 0.0
      %v869 = vadd.f32 %v867, %v868
      %v870 = vsel %vm310, %v734, 0.0
      %v871 = vadd.f32 %v869, %v870
      %v872 = vsel %vm310, %v739, 0.0
      %v873 = vadd.f32 %v871, %v872
      %v874 = vsel %vm310, %v744, 0.0
      %v875 = vadd.f32 %v873, %v874
      %v876 = vsel %vm310, %v749, 0.0
      %v877 = vadd.f32 %v875, %v876
      %v878 = vsel %vm310, %v754, 0.0
      %v879 = vadd.f32 %v877, %v878
      %v880 = vsel %vm310, %v759, 0.0
      %v881 = vadd.f32 %v879, %v880
      %v882 = vsel %vm310, %v764, 0.0
      %v883 = vadd.f32 %v881, %v882
      %v884 = vsel %vm310, %v769, 0.0
      %v885 = vadd.f32 %v883, %v884
      %v886 = vsel %vm310, %v774, 0.0
      %v887 = vadd.f32 %v885, %v886
      %v888 = vsel %vm310, %v779, 0.0
      %v889 = vadd.f32 %v887, %v888
      %v890 = vsel %vm310, %v784, 0.0
      %v891 = vadd.f32 %v889, %v890
      %v892 = vsel %vm310, %v789, 0.0
      %v893 = vadd.f32 %v891, %v892
      %v894 = vsel %vm310, %v794, 0.0
      %v895 = vadd.f32 %v893, %v894
      %v896 = vsel %vm310, %v799, 0.0
      %v897 = vadd.f32 %v895, %v896
      %v898 = vsel %vm310, %v804, 0.0
      %v899 = vadd.f32 %v897, %v898
      %v900 = vsel %vm310, %v809, 0.0
      %v901 = vadd.f32 %v899, %v900
      %v902 = vsel %vm310, %v814, 0.0
      %v903 = vadd.f32 %v901, %v902
      %v904 = vsel %vm310, %v819, 0.0
      %v905 = vadd.f32 %v903, %v904
      %v906 = vsel %vm310, %v824, 0.0
      %v907 = vadd.f32 %v905, %v906
      %v908 = vsel %vm310, %v829, 0.0
      %v909 = vadd.f32 %v907, %v908
      %v910 = vsel %vm310, %v834, 0.0
      %v911 = vadd.f32 %v909, %v910
      %v912 = vsel %vm310, %v839, 0.0
      %v913 = vadd.f32 %v911, %v912
      %v914 = vsel %vm310, %v844, 0.0
      %v915 = vadd.f32 %v913, %v914
      %v916 = vsel %vm310, %v849, 0.0
      %v917 = vadd.f32 %v915, %v916
      %v918 = vsel %vm310, %v854, 0.0
      %v919 = vadd.f32 %v917, %v918
      %v920 = vrot.slane %v919, 4
      %v921 = vadd.f32 %v919, %v920
      %v922 = vrot.slane %v921, 2
      %v923 = vadd.f32 %v921, %v922
      %v924 = vrot.slane %v923, 1
      %v925 = vadd.f32 %v923, %v924
      %v926 = vrcp.pop 256.0
      %v927 = vmul.f32 %v925, %v926
      %v928 = vsub.f32 %v699, %v927
      %v929 = vsub.f32 %v704, %v927
      %v930 = vsub.f32 %v709, %v927
      %v931 = vsub.f32 %v714, %v927
      %v932 = vsub.f32 %v719, %v927
      %v933 = vsub.f32 %v724, %v927
      %v934 = vsub.f32 %v729, %v927
      %v935 = vsub.f32 %v734, %v927
      %v936 = vsub.f32 %v739, %v927
      %v937 = vsub.f32 %v744, %v927
      %v938 = vsub.f32 %v749, %v927
      %v939 = vsub.f32 %v754, %v927
      %v940 = vsub.f32 %v759, %v927
      %v941 = vsub.f32 %v764, %v927
      %v942 = vsub.f32 %v769, %v927
      %v943 = vsub.f32 %v774, %v927
      %v944 = vsub.f32 %v779, %v927
      %v945 = vsub.f32 %v784, %v927
      %v946 = vsub.f32 %v789, %v927
      %v947 = vsub.f32 %v794, %v927
      %v948 = vsub.f32 %v799, %v927
      %v949 = vsub.f32 %v804, %v927
      %v950 = vsub.f32 %v809, %v927
      %v951 = vsub.f32 %v814, %v927
      %v952 = vsub.f32 %v819, %v927
      %v953 = vsub.f32 %v824, %v927
      %v954 = vsub.f32 %v829, %v927
      %v955 = vsub.f32 %v834, %v927
      %v956 = vsub.f32 %v839, %v927
      %v957 = vsub.f32 %v844, %v927
      %v958 = vsub.f32 %v849, %v927
      %v959 = vsub.f32 %v854, %v927
      %v960 = vmul.f32 %v928, %v928
      %v961 = vmul.f32 %v929, %v929
      %v962 = vmul.f32 %v930, %v930
      %v963 = vmul.f32 %v931, %v931
      %v964 = vmul.f32 %v932, %v932
      %v965 = vmul.f32 %v933, %v933
      %v966 = vmul.f32 %v934, %v934
      %v967 = vmul.f32 %v935, %v935
      %v968 = vmul.f32 %v936, %v936
      %v969 = vmul.f32 %v937, %v937
      %v970 = vmul.f32 %v938, %v938
      %v971 = vmul.f32 %v939, %v939
      %v972 = vmul.f32 %v940, %v940
      %v973 = vmul.f32 %v941, %v941
      %v974 = vmul.f32 %v942, %v942
      %v975 = vmul.f32 %v943, %v943
      %v976 = vmul.f32 %v944, %v944
      %v977 = vmul.f32 %v945, %v945
      %v978 = vmul.f32 %v946, %v946
      %v979 = vmul.f32 %v947, %v947
      %v980 = vmul.f32 %v948, %v948
      %v981 = vmul.f32 %v949, %v949
      %v982 = vmul.f32 %v950, %v950
      %v983 = vmul.f32 %v951, %v951
      %v984 = vmul.f32 %v952, %v952
      %v985 = vmul.f32 %v953, %v953
      %v986 = vmul.f32 %v954, %v954
      %v987 = vmul.f32 %v955, %v955
      %v988 = vmul.f32 %v956, %v956
      %v989 = vmul.f32 %v957, %v957
      %v990 = vmul.f32 %v958, %v958
      %v991 = vmul.f32 %v959, %v959
      %v992 = vsel %vm310, %v960, 0.0
      %v993 = vsel %vm310, %v961, 0.0
      %v994 = vadd.f32 %v992, %v993
      %v995 = vsel %vm310, %v962, 0.0
      %v996 = vadd.f32 %v994, %v995
      %v997 = vsel %vm310, %v963, 0.0
      %v998 = vadd.f32 %v996, %v997
      %v999 = vsel %vm310, %v964, 0.0
      %v1000 = vadd.f32 %v998, %v999
      %v1001 = vsel %vm310, %v965, 0.0
      %v1002 = vadd.f32 %v1000, %v1001
      %v1003 = vsel %vm310, %v966, 0.0
      %v1004 = vadd.f32 %v1002, %v1003
      %v1005 = vsel %vm310, %v967, 0.0
      %v1006 = vadd.f32 %v1004, %v1005
      %v1007 = vsel %vm310, %v968, 0.0
      %v1008 = vadd.f32 %v1006, %v1007
      %v1009 = vsel %vm310, %v969, 0.0
      %v1010 = vadd.f32 %v1008, %v1009
      %v1011 = vsel %vm310, %v970, 0.0
      %v1012 = vadd.f32 %v1010, %v1011
      %v1013 = vsel %vm310, %v971, 0.0
      %v1014 = vadd.f32 %v1012, %v1013
      %v1015 = vsel %vm310, %v972, 0.0
      %v1016 = vadd.f32 %v1014, %v1015
      %v1017 = vsel %vm310, %v973, 0.0
      %v1018 = vadd.f32 %v1016, %v1017
      %v1019 = vsel %vm310, %v974, 0.0
      %v1020 = vadd.f32 %v1018, %v1019
      %v1021 = vsel %vm310, %v975, 0.0
      %v1022 = vadd.f32 %v1020, %v1021
      %v1023 = vsel %vm310, %v976, 0.0
      %v1024 = vadd.f32 %v1022, %v1023
      %v1025 = vsel %vm310, %v977, 0.0
      %v1026 = vadd.f32 %v1024, %v1025
      %v1027 = vsel %vm310, %v978, 0.0
      %v1028 = vadd.f32 %v1026, %v1027
      %v1029 = vsel %vm310, %v979, 0.0
      %v1030 = vadd.f32 %v1028, %v1029
      %v1031 = vsel %vm310, %v980, 0.0
      %v1032 = vadd.f32 %v1030, %v1031
      %v1033 = vsel %vm310, %v981, 0.0
      %v1034 = vadd.f32 %v1032, %v1033
      %v1035 = vsel %vm310, %v982, 0.0
      %v1036 = vadd.f32 %v1034, %v1035
      %v1037 = vsel %vm310, %v983, 0.0
      %v1038 = vadd.f32 %v1036, %v1037
      %v1039 = vsel %vm310, %v984, 0.0
      %v1040 = vadd.f32 %v1038, %v1039
      %v1041 = vsel %vm310, %v985, 0.0
      %v1042 = vadd.f32 %v1040, %v1041
      %v1043 = vsel %vm310, %v986, 0.0
      %v1044 = vadd.f32 %v1042, %v1043
      %v1045 = vsel %vm310, %v987, 0.0
      %v1046 = vadd.f32 %v1044, %v1045
      %v1047 = vsel %vm310, %v988, 0.0
      %v1048 = vadd.f32 %v1046, %v1047
      %v1049 = vsel %vm310, %v989, 0.0
      %v1050 = vadd.f32 %v1048, %v1049
      %v1051 = vsel %vm310, %v990, 0.0
      %v1052 = vadd.f32 %v1050, %v1051
      %v1053 = vsel %vm310, %v991, 0.0
      %v1054 = vadd.f32 %v1052, %v1053
      %v1055 = vrot.slane %v1054, 4
      %v1056 = vadd.f32 %v1054, %v1055
      %v1057 = vrot.slane %v1056, 2
      %v1058 = vadd.f32 %v1056, %v1057
      %v1059 = vrot.slane %v1058, 1
      %v1060 = vadd.f32 %v1058, %v1059
      %v1061 = vmul.f32 %v1060, %v926
      %v1062 = vadd.f32 %v1061, 1e-05
      %v1063 = vrsqrt.pop %v1062
      %v1064 = vmul.f32 %v928, %v1063
      %v1065 = vmul.f32 %v929, %v1063
      %v1066 = vmul.f32 %v930, %v1063
      %v1067 = vmul.f32 %v931, %v1063
      %v1068 = vmul.f32 %v932, %v1063
      %v1069 = vmul.f32 %v933, %v1063
      %v1070 = vmul.f32 %v934, %v1063
      %v1071 = vmul.f32 %v935, %v1063
      %v1072 = vmul.f32 %v936, %v1063
      %v1073 = vmul.f32 %v937, %v1063
      %v1074 = vmul.f32 %v938, %v1063
      %v1075 = vmul.f32 %v939, %v1063
      %v1076 = vmul.f32 %v940, %v1063
      %v1077 = vmul.f32 %v941, %v1063
      %v1078 = vmul.f32 %v942, %v1063
      %v1079 = vmul.f32 %v943, %v1063
      %v1080 = vmul.f32 %v944, %v1063
      %v1081 = vmul.f32 %v945, %v1063
      %v1082 = vmul.f32 %v946, %v1063
      %v1083 = vmul.f32 %v947, %v1063
      %v1084 = vmul.f32 %v948, %v1063
      %v1085 = vmul.f32 %v949, %v1063
      %v1086 = vmul.f32 %v950, %v1063
      %v1087 = vmul.f32 %v951, %v1063
      %v1088 = vmul.f32 %v952, %v1063
      %v1089 = vmul.f32 %v953, %v1063
      %v1090 = vmul.f32 %v954, %v1063
      %v1091 = vmul.f32 %v955, %v1063
      %v1092 = vmul.f32 %v956, %v1063
      %v1093 = vmul.f32 %v957, %v1063
      %v1094 = vmul.f32 %v958, %v1063
      %v1095 = vmul.f32 %v959, %v1063
      %vm1096 = vcmp.ge.f32.partialorder %v1064, 0.0
      %vm1097 = vcmp.ge.f32.partialorder %v1065, 0.0
      %vm1098 = vcmp.ge.f32.partialorder %v1066, 0.0
      %vm1099 = vcmp.ge.f32.partialorder %v1067, 0.0
      %vm1100 = vcmp.ge.f32.partialorder %v1068, 0.0
      %vm1101 = vcmp.ge.f32.partialorder %v1069, 0.0
      %vm1102 = vcmp.ge.f32.partialorder %v1070, 0.0
      %vm1103 = vcmp.ge.f32.partialorder %v1071, 0.0
      %vm1104 = vcmp.ge.f32.partialorder %v1072, 0.0
      %vm1105 = vcmp.ge.f32.partialorder %v1073, 0.0
      %vm1106 = vcmp.ge.f32.partialorder %v1074, 0.0
      %vm1107 = vcmp.ge.f32.partialorder %v1075, 0.0
      %vm1108 = vcmp.ge.f32.partialorder %v1076, 0.0
      %vm1109 = vcmp.ge.f32.partialorder %v1077, 0.0
      %vm1110 = vcmp.ge.f32.partialorder %v1078, 0.0
      %vm1111 = vcmp.ge.f32.partialorder %v1079, 0.0
      %vm1112 = vcmp.ge.f32.partialorder %v1080, 0.0
      %vm1113 = vcmp.ge.f32.partialorder %v1081, 0.0
      %vm1114 = vcmp.ge.f32.partialorder %v1082, 0.0
      %vm1115 = vcmp.ge.f32.partialorder %v1083, 0.0
      %vm1116 = vcmp.ge.f32.partialorder %v1084, 0.0
      %vm1117 = vcmp.ge.f32.partialorder %v1085, 0.0
      %vm1118 = vcmp.ge.f32.partialorder %v1086, 0.0
      %vm1119 = vcmp.ge.f32.partialorder %v1087, 0.0
      %vm1120 = vcmp.ge.f32.partialorder %v1088, 0.0
      %vm1121 = vcmp.ge.f32.partialorder %v1089, 0.0
      %vm1122 = vcmp.ge.f32.partialorder %v1090, 0.0
      %vm1123 = vcmp.ge.f32.partialorder %v1091, 0.0
      %vm1124 = vcmp.ge.f32.partialorder %v1092, 0.0
      %vm1125 = vcmp.ge.f32.partialorder %v1093, 0.0
      %vm1126 = vcmp.ge.f32.partialorder %v1094, 0.0
      %vm1127 = vcmp.ge.f32.partialorder %v1095, 0.0
      %v1128 = vmul.f32 %v1064, 0.1
      %v1129 = vmul.f32 %v1065, 0.1
      %v1130 = vmul.f32 %v1066, 0.1
      %v1131 = vmul.f32 %v1067, 0.1
      %v1132 = vmul.f32 %v1068, 0.1
      %v1133 = vmul.f32 %v1069, 0.1
      %v1134 = vmul.f32 %v1070, 0.1
      %v1135 = vmul.f32 %v1071, 0.1
      %v1136 = vmul.f32 %v1072, 0.1
      %v1137 = vmul.f32 %v1073, 0.1
      %v1138 = vmul.f32 %v1074, 0.1
      %v1139 = vmul.f32 %v1075, 0.1
      %v1140 = vmul.f32 %v1076, 0.1
      %v1141 = vmul.f32 %v1077, 0.1
      %v1142 = vmul.f32 %v1078, 0.1
      %v1143 = vmul.f32 %v1079, 0.1
      %v1144 = vmul.f32 %v1080, 0.1
      %v1145 = vmul.f32 %v1081, 0.1
      %v1146 = vmul.f32 %v1082, 0.1
      %v1147 = vmul.f32 %v1083, 0.1
      %v1148 = vmul.f32 %v1084, 0.1
      %v1149 = vmul.f32 %v1085, 0.1
      %v1150 = vmul.f32 %v1086, 0.1
      %v1151 = vmul.f32 %v1087, 0.1
      %v1152 = vmul.f32 %v1088, 0.1
      %v1153 = vmul.f32 %v1089, 0.1
      %v1154 = vmul.f32 %v1090, 0.1
      %v1155 = vmul.f32 %v1091, 0.1
      %v1156 = vmul.f32 %v1092, 0.1
      %v1157 = vmul.f32 %v1093, 0.1
      %v1158 = vmul.f32 %v1094, 0.1
      %v1159 = vmul.f32 %v1095, 0.1
      %v1160 = vsel %vm1096, %v1064, %v1128
      %v1161 = vsel %vm1097, %v1065, %v1129
      %v1162 = vsel %vm1098, %v1066, %v1130
      %v1163 = vsel %vm1099, %v1067, %v1131
      %v1164 = vsel %vm1100, %v1068, %v1132
      %v1165 = vsel %vm1101, %v1069, %v1133
      %v1166 = vsel %vm1102, %v1070, %v1134
      %v1167 = vsel %vm1103, %v1071, %v1135
      %v1168 = vsel %vm1104, %v1072, %v1136
      %v1169 = vsel %vm1105, %v1073, %v1137
      %v1170 = vsel %vm1106, %v1074, %v1138
      %v1171 = vsel %vm1107, %v1075, %v1139
      %v1172 = vsel %vm1108, %v1076, %v1140
      %v1173 = vsel %vm1109, %v1077, %v1141
      %v1174 = vsel %vm1110, %v1078, %v1142
      %v1175 = vsel %vm1111, %v1079, %v1143
      %v1176 = vsel %vm1112, %v1080, %v1144
      %v1177 = vsel %vm1113, %v1081, %v1145
      %v1178 = vsel %vm1114, %v1082, %v1146
      %v1179 = vsel %vm1115, %v1083, %v1147
      %v1180 = vsel %vm1116, %v1084, %v1148
      %v1181 = vsel %vm1117, %v1085, %v1149
      %v1182 = vsel %vm1118, %v1086, %v1150
      %v1183 = vsel %vm1119, %v1087, %v1151
      %v1184 = vsel %vm1120, %v1088, %v1152
      %v1185 = vsel %vm1121, %v1089, %v1153
      %v1186 = vsel %vm1122, %v1090, %v1154
      %v1187 = vsel %vm1123, %v1091, %v1155
      %v1188 = vsel %vm1124, %v1092, %v1156
      %v1189 = vsel %vm1125, %v1093, %v1157
      %v1190 = vsel %vm1126, %v1094, %v1158
      %v1191 = vsel %vm1127, %v1095, %v1159
      %1192 = vst.msk [vmem:[%s170] sm:$0xff] %vm310, %v1160
      %1193 = vst.msk [vmem:[%s170 + $0x8] sm:$0xff] %vm310, %v1161
      %1194 = vst.msk [vmem:[%s170 + $0x10] sm:$0xff] %vm310, %v1162
      %1195 = vst.msk [vmem:[%s170 + $0x18] sm:$0xff] %vm310, %v1163
      %1196 = vst.msk [vmem:[%s170 + $0x20] sm:$0xff] %vm310, %v1164
      %1197 = vst.msk [vmem:[%s170 + $0x28] sm:$0xff] %vm310, %v1165
      %1198 = vst.msk [vmem:[%s170 + $0x30] sm:$0xff] %vm310, %v1166
      %1199 = vst.msk [vmem:[%s170 + $0x38] sm:$0xff] %vm310, %v1167
      %1200 = vst.msk [vmem:[%s170 + $0x40] sm:$0xff] %vm310, %v1168
      %1201 = vst.msk [vmem:[%s170 + $0x48] sm:$0xff] %vm310, %v1169
      %1202 = vst.msk [vmem:[%s170 + $0x50] sm:$0xff] %vm310, %v1170
      %1203 = vst.msk [vmem:[%s170 + $0x58] sm:$0xff] %vm310, %v1171
      %1204 = vst.msk [vmem:[%s170 + $0x60] sm:$0xff] %vm310, %v1172
      %1205 = vst.msk [vmem:[%s170 + $0x68] sm:$0xff] %vm310, %v1173
      %1206 = vst.msk [vmem:[%s170 + $0x70] sm:$0xff] %vm310, %v1174
      %1207 = vst.msk [vmem:[%s170 + $0x78] sm:$0xff] %vm310, %v1175
      %1208 = vst.msk [vmem:[%s170 + $0x80] sm:$0xff] %vm310, %v1176
      %1209 = vst.msk [vmem:[%s170 + $0x88] sm:$0xff] %vm310, %v1177
      %1210 = vst.msk [vmem:[%s170 + $0x90] sm:$0xff] %vm310, %v1178
      %1211 = vst.msk [vmem:[%s170 + $0x98] sm:$0xff] %vm310, %v1179
      %1212 = vst.msk [vmem:[%s170 + $0xa0] sm:$0xff] %vm310, %v1180
      %1213 = vst.msk [vmem:[%s170 + $0xa8] sm:$0xff] %vm310, %v1181
      %1214 = vst.msk [vmem:[%s170 + $0xb0] sm:$0xff] %vm310, %v1182
      %1215 = vst.msk [vmem:[%s170 + $0xb8] sm:$0xff] %vm310, %v1183
      %1216 = vst.msk [vmem:[%s170 + $0xc0] sm:$0xff] %vm310, %v1184
      %1217 = vst.msk [vmem:[%s170 + $0xc8] sm:$0xff] %vm310, %v1185
      %1218 = vst.msk [vmem:[%s170 + $0xd0] sm:$0xff] %vm310, %v1186
      %1219 = vst.msk [vmem:[%s170 + $0xd8] sm:$0xff] %vm310, %v1187
      %1220 = vst.msk [vmem:[%s170 + $0xe0] sm:$0xff] %vm310, %v1188
      %1221 = vst.msk [vmem:[%s170 + $0xe8] sm:$0xff] %vm310, %v1189
      %1222 = vst.msk [vmem:[%s170 + $0xf0] sm:$0xff] %vm310, %v1190
      %1223 = vst.msk [vmem:[%s170 + $0xf8] sm:$0xff] %vm310, %v1191
      %p1224 = scmp.lt.s32.totalorder %s14, 1
      %s1225 = scalar_select %p1224, %s14, 1
      %s1226 = smul.addr %s1225, 32
      %s1227 = smul.addr %s1226, 8
      %s1228 = scalar_lea.vmem %s3, %s1227
      // Predicated region
      $region33: #{unet_forward.17} parent=31 // pred_check
        %p1229 = pneg %p100
      $region34: #{unet_forward.17} parent=31 // pred_check_branch
        %1231 = sbr.rel (%p1229) target = $region36
      $region35: #{unet_forward.17} parent=31 // pred_region
        _
      $region36: #{unet_forward.17} parent=31 // pred_fallthru
        _
    $region32: #{unet_forward.17} parent=5 // pred_fallthru
      _
    %p1232 = scmp.le.s32.totalorder 2, %s9
    // Predicated region
    $region37: #{unet_forward.17} parent=5 // pred_check
      %p1233 = pneg %p1232
    $region38: #{unet_forward.17} parent=5 // pred_check_branch
      %1235 = sbr.rel (%p1233) target = $region40
    $region39: #{unet_forward.17} parent=5 // pred_region
      %s1236 = ssub.s32 %s9, 2
      // Predicated region
      $region41: #{unet_forward.17} parent=39 // pred_check
        %p1237 = pneg %p106
      $region42: #{unet_forward.17} parent=39 // pred_check_branch
        %1239 = sbr.rel (%p1237) target = $region44
      $region43: #{unet_forward.17} parent=39 // pred_region
        %p1240 = scmp.lt.s32.totalorder %s15, 1
        %s1241 = scalar_select %p1240, %s15, 1
        %s1242 = smul.addr %s1241, 32
        %s1243 = smul.addr %s1242, 8
        %s1244 = scalar_lea.vmem %s3, %s1243
      $region44: #{unet_forward.17} parent=39 // pred_fallthru
        _
    $region40: #{unet_forward.17} parent=5 // pred_fallthru
      _
  $region6: #{unet_forward.17} parent=0 // loop_footer
    %s13 = sadd.s32 1, %s9
  $region7: #{unet_forward.17} parent=0 // loop_footer_branch
    %8 = sbr.rel target = $region3
  $region8: #{unet_forward.17} parent=0 // loop_exit
    _

// kernel: unet_forward.18
$region0: #{unet_forward.18}
  #allocation0 [shape = 'u32[]', space=smem, size = 0x4, offset = 0x4, fixed_abs, tag = 'smem constant byte address 0x4 - core index']
  #allocation1 [shape = 'u32[144,128]{1,0:T(1,128)}', space=vmem, size = 0x12000, scoped, tag = 'internal scratch']
  %s0 = inlined_call_operand.vmem [shape: f32[2,64,288], index: 0, kind: input, shape index: {}]
  %s1 = inlined_call_operand.vmem [shape: f32[288,64], index: 1, kind: input, shape index: {}]
  %s2 = inlined_call_operand.vmem [shape: f32[1,64], index: 2, kind: input, shape index: {}]
  %s3 = inlined_call_operand.vmem [shape: f32[2,64,64], index: 3, kind: output, shape index: {}]
  %s4 = sld [smem:[#allocation0]]
  $region45: #{unet_forward.18} parent=0
    _
  %s6 = ssub.s32 1, %s4
  %s7 = scalar_select 0, %s6, %s4
  loop: start=0, step=1, limit=4
  $region2: #{unet_forward.18} parent=0 // loop_pre_header
    _
  $region3: #{unet_forward.18} parent=0 // loop_header
    %s9 = sphi 0, %s13
    %p10 = scmp.ge.s32.totalorder %s9, 4
    %s19 = sphi 0, %s21
    %s22 = sphi 0, %s19
    %s23 = sphi 0, %s22
    %s39 = sphi 0, %s23
    %s43 = sphi 0, %s43
    %s45 = sphi 0, %s43
    %s46 = sphi 0, %s45
    %s60 = sphi 0, %s46
    %s64 = sphi 0, %s64
    %s66 = sphi 0, %s64
    %s67 = sphi 0, %s66
    %s81 = sphi 0, %s67
    %s87 = sphi 0, %s89
    %s90 = sphi 0, %s87
    %s91 = sphi 0, %s90
    %s107 = sphi 0, %s91
  $region4: #{unet_forward.18} parent=0 // loop_header_branch
    %12 = sbr.rel (%p10) target = $region8
  $region5: #{unet_forward.18} parent=0 // loop_body
    %s14 = ssub.s32 %s9, 1
    %s15 = ssub.s32 %s9, 2
    %s16 = sadd.s32 %s9, 1
    %s17 = ssub.s32 %s9, %s16
    %p18 = scmp.eq.s32.totalorder %s17, 0
    %s20 = sadd.s32 %s19, 1
    %s21 = scalar_select %p18, %s19, %s20
    %p24 = pneg %p18
    %p25 = scmp.eq.s32.totalorder %s9, 1
    %p26 = por %p24, %p25
    %p27 = scmp.ne.s32.totalorder %s19, %s22
    %p28 = scmp.eq.s32.totalorder %s9, 0
    %p29 = por %p27, %p28
    %p30 = scmp.ne.s32.totalorder %s19, %s22
    %p31 = scmp.eq.s32.totalorder %s14, 1
    %p32 = por %p30, %p31
    %p33 = scmp.ne.s32.totalorder %s22, %s23
    %p34 = scmp.eq.s32.totalorder %s14, 0
    %p35 = por %p33, %p34
    %p36 = scmp.ne.s32.totalorder %s22, %s23
    %p37 = scmp.eq.s32.totalorder %s15, 1
    %p38 = por %p36, %p37
    %p40 = scmp.ne.s32.totalorder %s23, %s39
    %p41 = scmp.eq.s32.totalorder %s15, 0
    %p42 = por %p40, %p41
    %s44 = sadd.s32 %s43, 1
    %p47 = scmp.eq.s32.totalorder %s9, 1
    %p48 = scmp.ne.s32.totalorder %s43, %s45
    %p49 = scmp.eq.s32.totalorder %s9, 0
    %p50 = por %p48, %p49
    %p51 = scmp.ne.s32.totalorder %s43, %s45
    %p52 = scmp.eq.s32.totalorder %s14, 1
    %p53 = por %p51, %p52
    %p54 = scmp.ne.s32.totalorder %s45, %s46
    %p55 = scmp.eq.s32.totalorder %s14, 0
    %p56 = por %p54, %p55
    %p57 = scmp.ne.s32.totalorder %s45, %s46
    %p58 = scmp.eq.s32.totalorder %s15, 1
    %p59 = por %p57, %p58
    %p61 = scmp.ne.s32.totalorder %s46, %s60
    %p62 = scmp.eq.s32.totalorder %s15, 0
    %p63 = por %p61, %p62
    %s65 = sadd.s32 %s64, 1
    %p68 = scmp.eq.s32.totalorder %s9, 1
    %p69 = scmp.ne.s32.totalorder %s64, %s66
    %p70 = scmp.eq.s32.totalorder %s9, 0
    %p71 = por %p69, %p70
    %p72 = scmp.ne.s32.totalorder %s64, %s66
    %p73 = scmp.eq.s32.totalorder %s14, 1
    %p74 = por %p72, %p73
    %p75 = scmp.ne.s32.totalorder %s66, %s67
    %p76 = scmp.eq.s32.totalorder %s14, 0
    %p77 = por %p75, %p76
    %p78 = scmp.ne.s32.totalorder %s66, %s67
    %p79 = scmp.eq.s32.totalorder %s15, 1
    %p80 = por %p78, %p79
    %p82 = scmp.ne.s32.totalorder %s67, %s81
    %p83 = scmp.eq.s32.totalorder %s15, 0
    %p84 = por %p82, %p83
    %s85 = ssub.s32 %s9, %s16
    %p86 = scmp.eq.s32.totalorder %s85, 0
    %s88 = sadd.s32 %s87, 1
    %s89 = scalar_select %p86, %s87, %s88
    %p92 = pneg %p86
    %p93 = scmp.eq.s32.totalorder %s9, 1
    %p94 = por %p92, %p93
    %p95 = scmp.ne.s32.totalorder %s87, %s90
    %p96 = scmp.eq.s32.totalorder %s9, 0
    %p97 = por %p95, %p96
    %p98 = scmp.ne.s32.totalorder %s87, %s90
    %p99 = scmp.eq.s32.totalorder %s14, 1
    %p100 = por %p98, %p99
    %p101 = scmp.ne.s32.totalorder %s90, %s91
    %p102 = scmp.eq.s32.totalorder %s14, 0
    %p103 = por %p101, %p102
    %p104 = scmp.ne.s32.totalorder %s90, %s91
    %p105 = scmp.eq.s32.totalorder %s15, 1
    %p106 = por %p104, %p105
    %p108 = scmp.ne.s32.totalorder %s91, %s107
    %p109 = scmp.eq.s32.totalorder %s15, 0
    %p110 = por %p108, %p109
    %p111 = scmp.le.s32.totalorder 1, %s9
    %p112 = scmp.lt.s32.totalorder %s9, 3
    %p113 = pnand %p111, %p112
    %p114 = pneg %p113
    // Predicated region
    $region9: #{unet_forward.18} parent=5 // pred_check
      _
    $region10: #{unet_forward.18} parent=5 // pred_check_branch
      %116 = sbr.rel (%p113) target = $region12
    $region11: #{unet_forward.18} parent=5 // pred_region
      %s117 = ssub.s32 %s9, 1
      // Predicated region
      $region13: #{unet_forward.18} parent=11 // pred_check
        %p118 = pneg %p56
      $region14: #{unet_forward.18} parent=11 // pred_check_branch
        %120 = sbr.rel (%p118) target = $region16
      $region15: #{unet_forward.18} parent=11 // pred_region
        _
      $region16: #{unet_forward.18} parent=11 // pred_fallthru
        _
      // Predicated region
      $region17: #{unet_forward.18} parent=11 // pred_check
        %p121 = pneg %p77
      $region18: #{unet_forward.18} parent=11 // pred_check_branch
        %123 = sbr.rel (%p121) target = $region20
      $region19: #{unet_forward.18} parent=11 // pred_region
        _
      $region20: #{unet_forward.18} parent=11 // pred_fallthru
        _
    $region12: #{unet_forward.18} parent=5 // pred_fallthru
      _
    %p124 = scmp.lt.s32.totalorder %s9, 2
    // Predicated region
    $region21: #{unet_forward.18} parent=5 // pred_check
      %p125 = pneg %p124
    $region22: #{unet_forward.18} parent=5 // pred_check_branch
      %127 = sbr.rel (%p125) target = $region24
    $region23: #{unet_forward.18} parent=5 // pred_region
      // Predicated region
      $region25: #{unet_forward.18} parent=23 // pred_check
        %p128 = pneg %p29
      $region26: #{unet_forward.18} parent=23 // pred_check_branch
        %130 = sbr.rel (%p128) target = $region28
      $region27: #{unet_forward.18} parent=23 // pred_region
        %p131 = scmp.lt.s32.totalorder %s9, 1
        %s132 = scalar_select %p131, %s9, 1
        %s133 = smul.addr %s132, 24
        %s134 = smul.addr %s133, 8
        %s135 = scalar_lea.vmem %s0, %s134
      $region28: #{unet_forward.18} parent=23 // pred_fallthru
        _
    $region24: #{unet_forward.18} parent=5 // pred_fallthru
      _
    %p136 = scmp.le.s32.totalorder 1, %s9
    %p137 = scmp.lt.s32.totalorder %s9, 3
    %p138 = pnand %p136, %p137
    %p139 = pneg %p138
    // Predicated region
    $region29: #{unet_forward.18} parent=5 // pred_check
      _
    $region30: #{unet_forward.18} parent=5 // pred_check_branch
      %141 = sbr.rel (%p138) target = $region32
    $region31: #{unet_forward.18} parent=5 // pred_region
      %s142 = ssub.s32 %s9, 1
      %p143 = scmp.lt.s32.totalorder %s14, 1
      %s144 = scalar_select %p143, %s14, 1
      %s145 = smul.addr %s144, 24
      %s146 = smul.addr %s145, 8
      %s147 = scalar_lea.vmem %s0, %s146
      %p148 = pneg %p35
      %p149 = pneg %p32
      %p150 = pneg %p56
      %p151 = pneg %p53
      %p152 = pneg %p77
      %p153 = pneg %p74
      %p154 = pneg %p103
      %p155 = pneg %p100
      %p156 = scmp.lt.s32.totalorder %s14, 1
      %s157 = scalar_select %p156, %s14, 1
      %s158 = smul.addr %s157, 8
      %s159 = smul.addr %s158, 8
      %s160 = scalar_lea.vmem %s3, %s159
      %p161 = scmp.lt.s32.totalorder %s14, 1
      %s162 = scalar_select %p161, %s14, 1
      %s163 = smul.addr %s162, 24
      %s164 = smul.addr %s163, 8
      %s165 = scalar_lea.vmem %s0, %s164
      %p166 = scmp.lt.s32.totalorder %s14, 1
      %s167 = scalar_select %p166, %s14, 1
      %s168 = smul.addr %s167, 8
      %s169 = smul.addr %s168, 8
      %s170 = scalar_lea.vmem %s3, %s169
      %v171 = vld [vmem:[%s165] sm:$0xff]
      %v172 = vld [vmem:[%s165 + $0x8] sm:$0xff]
      %v173 = vld [vmem:[%s165 + $0x10] sm:$0xff]
      %v174 = vld [vmem:[%s165 + $0x18] sm:$0xff]
      %v175 = vld [vmem:[%s165 + $0x20] sm:$0xff]
      %v176 = vld [vmem:[%s165 + $0x28] sm:$0xff]
      %v177 = vld [vmem:[%s165 + $0x30] sm:$0xff]
      %v178 = vld [vmem:[%s165 + $0x38] sm:$0xff]
      %v179 = vld [vmem:[%s165 + $0x40] sm:$0xff]
      %v180 = vld [vmem:[%s165 + $0x48] sm:$0xff]
      %v181 = vld [vmem:[%s165 + $0x50] sm:$0xff]
      %v182 = vld [vmem:[%s165 + $0x58] sm:$0xff]
      %v183 = vld [vmem:[%s165 + $0x60] sm:$0xff]
      %v184 = vld [vmem:[%s165 + $0x68] sm:$0xff]
      %v185 = vld [vmem:[%s165 + $0x70] sm:$0xff]
      %v186 = vld [vmem:[%s165 + $0x78] sm:$0xff]
      %v187 = vld [vmem:[%s165 + $0x80] sm:$0xff]
      %v188 = vld [vmem:[%s165 + $0x88] sm:$0xff]
      %v189 = vld [vmem:[%s165 + $0x90] sm:$0xff]
      %v190 = vld [vmem:[%s165 + $0x98] sm:$0xff]
      %v191 = vld [vmem:[%s165 + $0xa0] sm:$0xff]
      %v192 = vld [vmem:[%s165 + $0xa8] sm:$0xff]
      %v193 = vld [vmem:[%s165 + $0xb0] sm:$0xff]
      %v194 = vld [vmem:[%s165 + $0xb8] sm:$0xff]
      %v195 = vld [vmem:[%s1] sm:$0xff]
      %v196 = vld [vmem:[%s1 + $0x8] sm:$0xff]
      %v197 = vld [vmem:[%s1 + $0x10] sm:$0xff]
      %v198 = vld [vmem:[%s1 + $0x18] sm:$0xff]
      %v199 = vld [vmem:[%s1 + $0x20] sm:$0xff]
      %v200 = vld [vmem:[%s1 + $0x28] sm:$0xff]
      %v201 = vld [vmem:[%s1 + $0x30] sm:$0xff]
      %v202 = vld [vmem:[%s1 + $0x38] sm:$0xff]
      %v203 = vld [vmem:[%s1 + $0x40] sm:$0xff]
      %v204 = vld [vmem:[%s1 + $0x48] sm:$0xff]
      %v205 = vld [vmem:[%s1 + $0x50] sm:$0xff]
      %v206 = vld [vmem:[%s1 + $0x58] sm:$0xff]
      %v207 = vld [vmem:[%s1 + $0x60] sm:$0xff]
      %v208 = vld [vmem:[%s1 + $0x68] sm:$0xff]
      %v209 = vld [vmem:[%s1 + $0x70] sm:$0xff]
      %v210 = vld [vmem:[%s1 + $0x78] sm:$0xff]
      %v211 = vld [vmem:[%s1 + $0x80] sm:$0xff]
      %v212 = vld [vmem:[%s1 + $0x88] sm:$0xff]
      %v213 = vld [vmem:[%s1 + $0x90] sm:$0xff]
      %v214 = vld [vmem:[%s1 + $0x98] sm:$0xff]
      %v215 = vld [vmem:[%s1 + $0xa0] sm:$0xff]
      %v216 = vld [vmem:[%s1 + $0xa8] sm:$0xff]
      %v217 = vld [vmem:[%s1 + $0xb0] sm:$0xff]
      %v218 = vld [vmem:[%s1 + $0xb8] sm:$0xff]
      %v219 = vld [vmem:[%s1 + $0xc0] sm:$0xff]
      %v220 = vld [vmem:[%s1 + $0xc8] sm:$0xff]
      %v221 = vld [vmem:[%s1 + $0xd0] sm:$0xff]
      %v222 = vld [vmem:[%s1 + $0xd8] sm:$0xff]
      %v223 = vld [vmem:[%s1 + $0xe0] sm:$0xff]
      %v224 = vld [vmem:[%s1 + $0xe8] sm:$0xff]
      %v225 = vld [vmem:[%s1 + $0xf0] sm:$0xff]
      %v226 = vld [vmem:[%s1 + $0xf8] sm:$0xff]
      %v227 = vld [vmem:[%s1 + $0x100] sm:$0xff]
      %v228 = vld [vmem:[%s1 + $0x108] sm:$0xff]
      %v229 = vld [vmem:[%s1 + $0x110] sm:$0xff]
      %v230 = vld [vmem:[%s1 + $0x118] sm:$0xff]
      %v231 = vld [vmem:[%s2] sm:$0x1]
      %v233 = vlaneseq
      %v234 = vshrl.u32 %v233, 7
      %v235 = vsub.s32 0, %v234
      %v236 = vrot.slane %v231, %v235
      %vm238 = vcmask 261120
      %v240 = vsel %vm238, %v173, 0
      %v243 = vsel %vm238, %v176, 0
      %v246 = vsel %vm238, %v179, 0
      %v249 = vsel %vm238, %v182, 0
      %v252 = vsel %vm238, %v185, 0
      %v255 = vsel %vm238, %v188, 0
      %v258 = vsel %vm238, %v191, 0
      %v261 = vsel %vm238, %v194, 0
      %263 = vmatprep.subr.mxu0 0.0
      %264 = vmatpush1.msra.mxu0 %v195
      %265 = vmatprep.subr.mxu0 0.0
      %266 = vmatpush1.msra.mxu0 %v196
      %267 = vmatprep.subr.mxu0 0.0
      %268 = vmatpush1.msra.mxu0 %v197
      %269 = vmatprep.subr.mxu0 0.0
      %270 = vmatpush1.msra.mxu0 %v198
      %271 = vmatprep.subr.mxu0 0.0
      %272 = vmatpush1.msra.mxu0 %v199
      %273 = vmatprep.subr.mxu0 0.0
      %274 = vmatpush1.msra.mxu0 %v200
      %275 = vmatprep.subr.mxu0 0.0
      %276 = vmatpush1.msra.mxu0 %v201
      %277 = vmatprep.subr.mxu0 0.0
      %278 = vmatpush1.msra.mxu0 %v202
      %279 = vmatprep.subr.mxu0 0.0
      %280 = vmatpush1.msra.mxu0 %v203
      %281 = vmatprep.subr.mxu0 0.0
      %282 = vmatpush1.msra.mxu0 %v204
      %283 = vmatprep.subr.mxu0 0.0
      %284 = vmatpush1.msra.mxu0 %v205
      %285 = vmatprep.subr.mxu0 0.0
      %286 = vmatpush1.msra.mxu0 %v206
      %287 = vmatprep.subr.mxu0 0.0
      %288 = vmatpush1.msra.mxu0 %v207
      %289 = vmatprep.subr.mxu0 0.0
      %290 = vmatpush1.msra.mxu0 %v208
      %291 = vmatprep.subr.mxu0 0.0
      %292 = vmatpush1.msra.mxu0 %v209
      %293 = vmatprep.subr.mxu0 0.0
      %294 = vmatpush1.msra.mxu0 %v210
      %295 = vmatprep.subr.mxu0 0.0
      %296 = vmatpush1.msra.mxu0 %v211
      %297 = vmatprep.subr.mxu0 0.0
      %298 = vmatpush1.msra.mxu0 %v212
      %299 = vmatprep.subr.mxu0 0.0
      %300 = vmatpush1.msra.mxu0 %v213
      %301 = vmatprep.subr.mxu0 0.0
      %302 = vmatpush1.msra.mxu0 %v214
      %303 = vmatprep.subr.mxu0 0.0
      %304 = vmatpush1.msra.mxu0 %v215
      %305 = vmatprep.subr.mxu0 0.0
      %306 = vmatpush1.msra.mxu0 %v216
      %307 = vmatprep.subr.mxu0 0.0
      %308 = vmatpush1.msra.mxu0 %v217
      %309 = vmatprep.subr.mxu0 0.0
      %310 = vmatpush1.msra.mxu0 %v218
      %311 = vmatprep.subr.mxu0 0.0
      %312 = vmatpush1.msra.mxu0 %v219
      %313 = vmatprep.subr.mxu0 0.0
      %314 = vmatpush1.msra.mxu0 %v220
      %315 = vmatprep.subr.mxu0 0.0
      %316 = vmatpush1.msra.mxu0 %v221
      %317 = vmatprep.subr.mxu0 0.0
      %318 = vmatpush1.msra.mxu0 %v222
      %319 = vmatprep.subr.mxu0 0.0
      %320 = vmatpush1.msra.mxu0 %v223
      %321 = vmatprep.subr.mxu0 0.0
      %322 = vmatpush1.msra.mxu0 %v224
      %323 = vmatprep.subr.mxu0 0.0
      %324 = vmatpush1.msra.mxu0 %v225
      %325 = vmatprep.subr.mxu0 0.0
      %326 = vmatpush1.msra.mxu0 %v226
      %327 = vmatprep.mubr.f32.mxu0 %v172
      %328 = vmatmul.mubr.f32.gmra.mrb[0].mxu0 %v171
      %v329 = vpop.f32.mrb[0].mxu0
      %v330 = vadd.f32 %v236, %v329
      %v331 = vpop.f32.mrb[0].mxu0
      %332 = vmatprep.mubr.f32.mxu0 %v175
      %333 = vmatmul.mubr.f32.gmra.mrb[0].mxu0 %v174
      %v334 = vpop.f32.mrb[0].mxu0
      %v335 = vadd.f32 %v236, %v334
      %v336 = vpop.f32.mrb[0].mxu0
      %337 = vmatprep.mubr.f32.mxu0 %v178
      %338 = vmatmul.mubr.f32.gmra.mrb[0].mxu0 %v177
      %v339 = vpop.f32.mrb[0].mxu0
      %v340 = vadd.f32 %v236, %v339
      %v341 = vpop.f32.mrb[0].mxu0
      %342 = vmatprep.mubr.f32.mxu0 %v181
      %343 = vmatmul.mubr.f32.gmra.mrb[0].mxu0 %v180
      %v344 = vpop.f32.mrb[0].mxu0
      %v345 = vadd.f32 %v236, %v344
      %v346 = vpop.f32.mrb[0].mxu0
      %347 = vmatprep.mubr.f32.mxu0 %v184
      %348 = vmatmul.mubr.f32.gmra.mrb[0].mxu0 %v183
      %v349 = vpop.f32.mrb[0].mxu0
      %v350 = vadd.f32 %v236, %v349
      %v351 = vpop.f32.mrb[0].mxu0
      %352 = vmatprep.mubr.f32.mxu0 %v187
      %353 = vmatmul.mubr.f32.gmra.mrb[0].mxu0 %v186
      %v354 = vpop.f32.mrb[0].mxu0
      %v355 = vadd.f32 %v236, %v354
      %v356 = vpop.f32.mrb[0].mxu0
      %357 = vmatprep.mubr.f32.mxu0 %v190
      %358 = vmatmul.mubr.f32.gmra.mrb[0].mxu0 %v189
      %v359 = vpop.f32.mrb[0].mxu0
      %v360 = vadd.f32 %v236, %v359
      %v361 = vpop.f32.mrb[0].mxu0
      %362 = vmatprep.mubr.f32.mxu0 %v193
      %363 = vmatmul.mubr.f32.gmra.mrb[0].mxu0 %v192
      %v364 = vpop.f32.mrb[0].mxu0
      %v365 = vadd.f32 %v236, %v364
      %v366 = vpop.f32.mrb[0].mxu0
      %367 = vdwg.mxu0
      %368 = vmatprep.subr.mxu0 0.0
      %369 = vmatpush1.msra.mxu0 %v227
      %370 = vmatprep.subr.mxu0 0.0
      %371 = vmatpush1.msra.mxu0 %v228
      %372 = vmatprep.subr.mxu0 0.0
      %373 = vmatpush1.msra.mxu0 %v229
      %374 = vmatprep.subr.mxu0 0.0
      %375 = vmatpush1.msra.mxu0 %v230
      %376 = vmatprep.subr.mxu0 0.0
      %377 = vmatpush1.msra.mxu0 0.0
      %378 = vmatprep.subr.mxu0 0.0
      %379 = vmatpush1.msra.mxu0 0.0
      %380 = vmatprep.subr.mxu0 0.0
      %381 = vmatpush1.msra.mxu0 0.0
      %382 = vmatprep.subr.mxu0 0.0
      %383 = vmatpush1.msra.mxu0 0.0
      %384 = vmatprep.subr.mxu0 0.0
      %385 = vmatpush1.msra.mxu0 0.0
      %386 = vmatprep.subr.mxu0 0.0
      %387 = vmatpush1.msra.mxu0 0.0
      %388 = vmatprep.subr.mxu0 0.0
      %389 = vmatpush1.msra.mxu0 0.0
      %390 = vmatprep.subr.mxu0 0.0
      %391 = vmatpush1.msra.mxu0 0.0
      %392 = vmatprep.subr.mxu0 0.0
      %393 = vmatpush1.msra.mxu0 0.0
      %394 = vmatprep.subr.mxu0 0.0
      %395 = vmatpush1.msra.mxu0 0.0
      %396 = vmatprep.subr.mxu0 0.0
      %397 = vmatpush1.msra.mxu0 0.0
      %398 = vmatprep.subr.mxu0 0.0
      %399 = vmatpush1.msra.mxu0 0.0
      %400 = vmatprep.subr.mxu0 0.0
      %401 = vmatpush1.msra.mxu0 0.0
      %402 = vmatprep.subr.mxu0 0.0
      %403 = vmatpush1.msra.mxu0 0.0
      %404 = vmatprep.subr.mxu0 0.0
      %405 = vmatpush1.msra.mxu0 0.0
      %406 = vmatprep.subr.mxu0 0.0
      %407 = vmatpush1.msra.mxu0 0.0
      %408 = vmatprep.subr.mxu0 0.0
      %409 = vmatpush1.msra.mxu0 0.0
      %410 = vmatprep.subr.mxu0 0.0
      %411 = vmatpush1.msra.mxu0 0.0
      %412 = vmatprep.subr.mxu0 0.0
      %413 = vmatpush1.msra.mxu0 0.0
      %414 = vmatprep.subr.mxu0 0.0
      %415 = vmatpush1.msra.mxu0 0.0
      %416 = vmatprep.subr.mxu0 0.0
      %417 = vmatpush1.msra.mxu0 0.0
      %418 = vmatprep.subr.mxu0 0.0
      %419 = vmatpush1.msra.mxu0 0.0
      %420 = vmatprep.subr.mxu0 0.0
      %421 = vmatpush1.msra.mxu0 0.0
      %422 = vmatprep.subr.mxu0 0.0
      %423 = vmatpush1.msra.mxu0 0.0
      %424 = vmatprep.subr.mxu0 0.0
      %425 = vmatpush1.msra.mxu0 0.0
      %426 = vmatprep.subr.mxu0 0.0
      %427 = vmatpush1.msra.mxu0 0.0
      %428 = vmatprep.subr.mxu0 0.0
      %429 = vmatpush1.msra.mxu0 0.0
      %430 = vmatprep.subr.mxu0 0.0
      %431 = vmatpush1.msra.mxu0 0.0
      %432 = vmatprep.mubr.f32.mxu0 0.0
      %433 = vmatmul.mubr.f32.gmra.mrb[0].mxu0 %v240
      %v434 = vpop.f32.mrb[0].mxu0
      %v435 = vadd.f32 %v330, %v434
      %v436 = vpop.f32.mrb[0].mxu0
      %437 = vmatprep.mubr.f32.mxu0 0.0
      %438 = vmatmul.mubr.f32.gmra.mrb[0].mxu0 %v243
      %v439 = vpop.f32.mrb[0].mxu0
      %v440 = vadd.f32 %v335, %v439
      %v441 = vpop.f32.mrb[0].mxu0
      %442 = vmatprep.mubr.f32.mxu0 0.0
      %443 = vmatmul.mubr.f32.gmra.mrb[0].mxu0 %v246
      %v444 = vpop.f32.mrb[0].mxu0
      %v445 = vadd.f32 %v340, %v444
      %v446 = vpop.f32.mrb[0].mxu0
      %447 = vmatprep.mubr.f32.mxu0 0.0
      %448 = vmatmul.mubr.f32.gmra.mrb[0].mxu0 %v249
      %v449 = vpop.f32.mrb[0].mxu0
      %v450 = vadd.f32 %v345, %v449
      %v451 = vpop.f32.mrb[0].mxu0
      %452 = vmatprep.mubr.f32.mxu0 0.0
      %453 = vmatmul.mubr.f32.gmra.mrb[0].mxu0 %v252
      %v454 = vpop.f32.mrb[0].mxu0
      %v455 = vadd.f32 %v350, %v454
      %v456 = vpop.f32.mrb[0].mxu0
      %457 = vmatprep.mubr.f32.mxu0 0.0
      %458 = vmatmul.mubr.f32.gmra.mrb[0].mxu0 %v255
      %v459 = vpop.f32.mrb[0].mxu0
      %v460 = vadd.f32 %v355, %v459
      %v461 = vpop.f32.mrb[0].mxu0
      %462 = vmatprep.mubr.f32.mxu0 0.0
      %463 = vmatmul.mubr.f32.gmra.mrb[0].mxu0 %v258
      %v464 = vpop.f32.mrb[0].mxu0
      %v465 = vadd.f32 %v360, %v464
      %v466 = vpop.f32.mrb[0].mxu0
      %467 = vmatprep.mubr.f32.mxu0 0.0
      %468 = vmatmul.mubr.f32.gmra.mrb[0].mxu0 %v261
      %v469 = vpop.f32.mrb[0].mxu0
      %v470 = vadd.f32 %v365, %v469
      %v471 = vpop.f32.mrb[0].mxu0
      %472 = vdwg.mxu0
      %vm473 = vcmask 523264
      %v474 = vsel %vm473, %v435, 0.0
      %v475 = vsel %vm473, %v440, 0.0
      %v476 = vadd.f32 %v474, %v475
      %v477 = vsel %vm473, %v445, 0.0
      %v478 = vadd.f32 %v476, %v477
      %v479 = vsel %vm473, %v450, 0.0
      %v480 = vadd.f32 %v478, %v479
      %v481 = vsel %vm473, %v455, 0.0
      %v482 = vadd.f32 %v480, %v481
      %v483 = vsel %vm473, %v460, 0.0
      %v484 = vadd.f32 %v482, %v483
      %v485 = vsel %vm473, %v465, 0.0
      %v486 = vadd.f32 %v484, %v485
      %v487 = vsel %vm473, %v470, 0.0
      %v488 = vadd.f32 %v486, %v487
      %v489 = vrot.slane %v488, 4
      %v490 = vadd.f32 %v488, %v489
      %v491 = vrot.slane %v490, 2
      %v492 = vadd.f32 %v490, %v491
      %v493 = vrot.slane %v492, 1
      %v494 = vadd.f32 %v492, %v493
      %v495 = vrcp.pop 64.0
      %v496 = vmul.f32 %v494, %v495
      %v497 = vsub.f32 %v435, %v496
      %v498 = vsub.f32 %v440, %v496
      %v499 = vsub.f32 %v445, %v496
      %v500 = vsub.f32 %v450, %v496
      %v501 = vsub.f32 %v455, %v496
      %v502 = vsub.f32 %v460, %v496
      %v503 = vsub.f32 %v465, %v496
      %v504 = vsub.f32 %v470, %v496
      %v505 = vmul.f32 %v497, %v497
      %v506 = vmul.f32 %v498, %v498
      %v507 = vmul.f32 %v499, %v499
      %v508 = vmul.f32 %v500, %v500
      %v509 = vmul.f32 %v501, %v501
      %v510 = vmul.f32 %v502, %v502
      %v511 = vmul.f32 %v503, %v503
      %v512 = vmul.f32 %v504, %v504
      %v513 = vsel %vm473, %v505, 0.0
      %v514 = vsel %vm473, %v506, 0.0
      %v515 = vadd.f32 %v513, %v514
      %v516 = vsel %vm473, %v507, 0.0
      %v517 = vadd.f32 %v515, %v516
      %v518 = vsel %vm473, %v508, 0.0
      %v519 = vadd.f32 %v517, %v518
      %v520 = vsel %vm473, %v509, 0.0
      %v521 = vadd.f32 %v519, %v520
      %v522 = vsel %vm473, %v510, 0.0
      %v523 = vadd.f32 %v521, %v522
      %v524 = vsel %vm473, %v511, 0.0
      %v525 = vadd.f32 %v523, %v524
      %v526 = vsel %vm473, %v512, 0.0
      %v527 = vadd.f32 %v525, %v526
      %v528 = vrot.slane %v527, 4
      %v529 = vadd.f32 %v527, %v528
      %v530 = vrot.slane %v529, 2
      %v531 = vadd.f32 %v529, %v530
      %v532 = vrot.slane %v531, 1
      %v533 = vadd.f32 %v531, %v532
      %v534 = vmul.f32 %v533, %v495
      %v535 = vadd.f32 %v534, 1e-05
      %v536 = vrsqrt.pop %v535
      %v537 = vmul.f32 %v497, %v536
      %v538 = vmul.f32 %v498, %v536
      %v539 = vmul.f32 %v499, %v536
      %v540 = vmul.f32 %v500, %v536
      %v541 = vmul.f32 %v501, %v536
      %v542 = vmul.f32 %v502, %v536
      %v543 = vmul.f32 %v503, %v536
      %v544 = vmul.f32 %v504, %v536
      %vm545 = vcmp.ge.f32.partialorder %v537, 0.0
      %vm546 = vcmp.ge.f32.partialorder %v538, 0.0
      %vm547 = vcmp.ge.f32.partialorder %v539, 0.0
      %vm548 = vcmp.ge.f32.partialorder %v540, 0.0
      %vm549 = vcmp.ge.f32.partialorder %v541, 0.0
      %vm550 = vcmp.ge.f32.partialorder %v542, 0.0
      %vm551 = vcmp.ge.f32.partialorder %v543, 0.0
      %vm552 = vcmp.ge.f32.partialorder %v544, 0.0
      %v553 = vmul.f32 %v537, 0.1
      %v554 = vmul.f32 %v538, 0.1
      %v555 = vmul.f32 %v539, 0.1
      %v556 = vmul.f32 %v540, 0.1
      %v557 = vmul.f32 %v541, 0.1
      %v558 = vmul.f32 %v542, 0.1
      %v559 = vmul.f32 %v543, 0.1
      %v560 = vmul.f32 %v544, 0.1
      %v561 = vsel %vm545, %v537, %v553
      %v562 = vsel %vm546, %v538, %v554
      %v563 = vsel %vm547, %v539, %v555
      %v564 = vsel %vm548, %v540, %v556
      %v565 = vsel %vm549, %v541, %v557
      %v566 = vsel %vm550, %v542, %v558
      %v567 = vsel %vm551, %v543, %v559
      %v568 = vsel %vm552, %v544, %v560
      %569 = vst.msk [vmem:[%s170] sm:$0xff] %vm473, %v561
      %570 = vst.msk [vmem:[%s170 + $0x8] sm:$0xff] %vm473, %v562
      %571 = vst.msk [vmem:[%s170 + $0x10] sm:$0xff] %vm473, %v563
      %572 = vst.msk [vmem:[%s170 + $0x18] sm:$0xff] %vm473, %v564
      %573 = vst.msk [vmem:[%s170 + $0x20] sm:$0xff] %vm473, %v565
      %574 = vst.msk [vmem:[%s170 + $0x28] sm:$0xff] %vm473, %v566
      %575 = vst.msk [vmem:[%s170 + $0x30] sm:$0xff] %vm473, %v567
      %576 = vst.msk [vmem:[%s170 + $0x38] sm:$0xff] %vm473, %v568
      %p577 = scmp.lt.s32.totalorder %s14, 1
      %s578 = scalar_select %p577, %s14, 1
      %s579 = smul.addr %s578, 8
      %s580 = smul.addr %s579, 8
      %s581 = scalar_lea.vmem %s3, %s580
      // Predicated region
      $region33: #{unet_forward.18} parent=31 // pred_check
        %p582 = pneg %p100
      $region34: #{unet_forward.18} parent=31 // pred_check_branch
        %584 = sbr.rel (%p582) target = $region36
      $region35: #{unet_forward.18} parent=31 // pred_region
        _
      $region36: #{unet_forward.18} parent=31 // pred_fallthru
        _
    $region32: #{unet_forward.18} parent=5 // pred_fallthru
      _
    %p585 = scmp.le.s32.totalorder 2, %s9
    // Predicated region
    $region37: #{unet_forward.18} parent=5 // pred_check
      %p586 = pneg %p585
    $region38: #{unet_forward.18} parent=5 // pred_check_branch
      %588 = sbr.rel (%p586) target = $region40
    $region39: #{unet_forward.18} parent=5 // pred_region
      %s589 = ssub.s32 %s9, 2
      // Predicated region
      $region41: #{unet_forward.18} parent=39 // pred_check
        %p590 = pneg %p106
      $region42: #{unet_forward.18} parent=39 // pred_check_branch
        %592 = sbr.rel (%p590) target = $region44
      $region43: #{unet_forward.18} parent=39 // pred_region
        %p593 = scmp.lt.s32.totalorder %s15, 1
        %s594 = scalar_select %p593, %s15, 1
        %s595 = smul.addr %s594, 8
        %s596 = smul.addr %s595, 8
        %s597 = scalar_lea.vmem %s3, %s596
      $region44: #{unet_forward.18} parent=39 // pred_fallthru
        _
    $region40: #{unet_forward.18} parent=5 // pred_fallthru
      _
  $region6: #{unet_forward.18} parent=0 // loop_footer
    %s13 = sadd.s32 1, %s9
  $region7: #{unet_forward.18} parent=0 // loop_footer_branch
    %8 = sbr.rel target = $region3
  $region8: #{unet_forward.18} parent=0 // loop_exit
    _

// kernel: unet_forward.19
$region0: #{unet_forward.19}
  #allocation0 [shape = 'u32[]', space=smem, size = 0x4, offset = 0x4, fixed_abs, tag = 'smem constant byte address 0x4 - core index']
  #allocation1 [shape = 'u32[144,128]{1,0:T(1,128)}', space=vmem, size = 0x12000, scoped, tag = 'internal scratch']
  %s0 = inlined_call_operand.vmem [shape: f32[2,64,576], index: 0, kind: input, shape index: {}]
  %s1 = inlined_call_operand.vmem [shape: f32[576,64], index: 1, kind: input, shape index: {}]
  %s2 = inlined_call_operand.vmem [shape: f32[1,64], index: 2, kind: input, shape index: {}]
  %s3 = inlined_call_operand.vmem [shape: f32[2,64,64], index: 3, kind: output, shape index: {}]
  %s4 = sld [smem:[#allocation0]]
  $region45: #{unet_forward.19} parent=0
    _
  %s6 = ssub.s32 1, %s4
  %s7 = scalar_select 0, %s6, %s4
  loop: start=0, step=1, limit=4
  $region2: #{unet_forward.19} parent=0 // loop_pre_header
    _
  $region3: #{unet_forward.19} parent=0 // loop_header
    %s9 = sphi 0, %s13
    %p10 = scmp.ge.s32.totalorder %s9, 4
    %s19 = sphi 0, %s21
    %s22 = sphi 0, %s19
    %s23 = sphi 0, %s22
    %s39 = sphi 0, %s23
    %s43 = sphi 0, %s43
    %s45 = sphi 0, %s43
    %s46 = sphi 0, %s45
    %s60 = sphi 0, %s46
    %s64 = sphi 0, %s64
    %s66 = sphi 0, %s64
    %s67 = sphi 0, %s66
    %s81 = sphi 0, %s67
    %s87 = sphi 0, %s89
    %s90 = sphi 0, %s87
    %s91 = sphi 0, %s90
    %s107 = sphi 0, %s91
  $region4: #{unet_forward.19} parent=0 // loop_header_branch
    %12 = sbr.rel (%p10) target = $region8
  $region5: #{unet_forward.19} parent=0 // loop_body
    %s14 = ssub.s32 %s9, 1
    %s15 = ssub.s32 %s9, 2
    %s16 = sadd.s32 %s9, 1
    %s17 = ssub.s32 %s9, %s16
    %p18 = scmp.eq.s32.totalorder %s17, 0
    %s20 = sadd.s32 %s19, 1
    %s21 = scalar_select %p18, %s19, %s20
    %p24 = pneg %p18
    %p25 = scmp.eq.s32.totalorder %s9, 1
    %p26 = por %p24, %p25
    %p27 = scmp.ne.s32.totalorder %s19, %s22
    %p28 = scmp.eq.s32.totalorder %s9, 0
    %p29 = por %p27, %p28
    %p30 = scmp.ne.s32.totalorder %s19, %s22
    %p31 = scmp.eq.s32.totalorder %s14, 1
    %p32 = por %p30, %p31
    %p33 = scmp.ne.s32.totalorder %s22, %s23
    %p34 = scmp.eq.s32.totalorder %s14, 0
    %p35 = por %p33, %p34
    %p36 = scmp.ne.s32.totalorder %s22, %s23
    %p37 = scmp.eq.s32.totalorder %s15, 1
    %p38 = por %p36, %p37
    %p40 = scmp.ne.s32.totalorder %s23, %s39
    %p41 = scmp.eq.s32.totalorder %s15, 0
    %p42 = por %p40, %p41
    %s44 = sadd.s32 %s43, 1
    %p47 = scmp.eq.s32.totalorder %s9, 1
    %p48 = scmp.ne.s32.totalorder %s43, %s45
    %p49 = scmp.eq.s32.totalorder %s9, 0
    %p50 = por %p48, %p49
    %p51 = scmp.ne.s32.totalorder %s43, %s45
    %p52 = scmp.eq.s32.totalorder %s14, 1
    %p53 = por %p51, %p52
    %p54 = scmp.ne.s32.totalorder %s45, %s46
    %p55 = scmp.eq.s32.totalorder %s14, 0
    %p56 = por %p54, %p55
    %p57 = scmp.ne.s32.totalorder %s45, %s46
    %p58 = scmp.eq.s32.totalorder %s15, 1
    %p59 = por %p57, %p58
    %p61 = scmp.ne.s32.totalorder %s46, %s60
    %p62 = scmp.eq.s32.totalorder %s15, 0
    %p63 = por %p61, %p62
    %s65 = sadd.s32 %s64, 1
    %p68 = scmp.eq.s32.totalorder %s9, 1
    %p69 = scmp.ne.s32.totalorder %s64, %s66
    %p70 = scmp.eq.s32.totalorder %s9, 0
    %p71 = por %p69, %p70
    %p72 = scmp.ne.s32.totalorder %s64, %s66
    %p73 = scmp.eq.s32.totalorder %s14, 1
    %p74 = por %p72, %p73
    %p75 = scmp.ne.s32.totalorder %s66, %s67
    %p76 = scmp.eq.s32.totalorder %s14, 0
    %p77 = por %p75, %p76
    %p78 = scmp.ne.s32.totalorder %s66, %s67
    %p79 = scmp.eq.s32.totalorder %s15, 1
    %p80 = por %p78, %p79
    %p82 = scmp.ne.s32.totalorder %s67, %s81
    %p83 = scmp.eq.s32.totalorder %s15, 0
    %p84 = por %p82, %p83
    %s85 = ssub.s32 %s9, %s16
    %p86 = scmp.eq.s32.totalorder %s85, 0
    %s88 = sadd.s32 %s87, 1
    %s89 = scalar_select %p86, %s87, %s88
    %p92 = pneg %p86
    %p93 = scmp.eq.s32.totalorder %s9, 1
    %p94 = por %p92, %p93
    %p95 = scmp.ne.s32.totalorder %s87, %s90
    %p96 = scmp.eq.s32.totalorder %s9, 0
    %p97 = por %p95, %p96
    %p98 = scmp.ne.s32.totalorder %s87, %s90
    %p99 = scmp.eq.s32.totalorder %s14, 1
    %p100 = por %p98, %p99
    %p101 = scmp.ne.s32.totalorder %s90, %s91
    %p102 = scmp.eq.s32.totalorder %s14, 0
    %p103 = por %p101, %p102
    %p104 = scmp.ne.s32.totalorder %s90, %s91
    %p105 = scmp.eq.s32.totalorder %s15, 1
    %p106 = por %p104, %p105
    %p108 = scmp.ne.s32.totalorder %s91, %s107
    %p109 = scmp.eq.s32.totalorder %s15, 0
    %p110 = por %p108, %p109
    %p111 = scmp.le.s32.totalorder 1, %s9
    %p112 = scmp.lt.s32.totalorder %s9, 3
    %p113 = pnand %p111, %p112
    %p114 = pneg %p113
    // Predicated region
    $region9: #{unet_forward.19} parent=5 // pred_check
      _
    $region10: #{unet_forward.19} parent=5 // pred_check_branch
      %116 = sbr.rel (%p113) target = $region12
    $region11: #{unet_forward.19} parent=5 // pred_region
      %s117 = ssub.s32 %s9, 1
      // Predicated region
      $region13: #{unet_forward.19} parent=11 // pred_check
        %p118 = pneg %p56
      $region14: #{unet_forward.19} parent=11 // pred_check_branch
        %120 = sbr.rel (%p118) target = $region16
      $region15: #{unet_forward.19} parent=11 // pred_region
        _
      $region16: #{unet_forward.19} parent=11 // pred_fallthru
        _
      // Predicated region
      $region17: #{unet_forward.19} parent=11 // pred_check
        %p121 = pneg %p77
      $region18: #{unet_forward.19} parent=11 // pred_check_branch
        %123 = sbr.rel (%p121) target = $region20
      $region19: #{unet_forward.19} parent=11 // pred_region
        _
      $region20: #{unet_forward.19} parent=11 // pred_fallthru
        _
    $region12: #{unet_forward.19} parent=5 // pred_fallthru
      _
    %p124 = scmp.lt.s32.totalorder %s9, 2
    // Predicated region
    $region21: #{unet_forward.19} parent=5 // pred_check
      %p125 = pneg %p124
    $region22: #{unet_forward.19} parent=5 // pred_check_branch
      %127 = sbr.rel (%p125) target = $region24
    $region23: #{unet_forward.19} parent=5 // pred_region
      // Predicated region
      $region25: #{unet_forward.19} parent=23 // pred_check
        %p128 = pneg %p29
      $region26: #{unet_forward.19} parent=23 // pred_check_branch
        %130 = sbr.rel (%p128) target = $region28
      $region27: #{unet_forward.19} parent=23 // pred_region
        %p131 = scmp.lt.s32.totalorder %s9, 1
        %s132 = scalar_select %p131, %s9, 1
        %s133 = smul.addr %s132, 40
        %s134 = smul.addr %s133, 8
        %s135 = scalar_lea.vmem %s0, %s134
      $region28: #{unet_forward.19} parent=23 // pred_fallthru
        _
    $region24: #{unet_forward.19} parent=5 // pred_fallthru
      _
    %p136 = scmp.le.s32.totalorder 1, %s9
    %p137 = scmp.lt.s32.totalorder %s9, 3
    %p138 = pnand %p136, %p137
    %p139 = pneg %p138
    // Predicated region
    $region29: #{unet_forward.19} parent=5 // pred_check
      _
    $region30: #{unet_forward.19} parent=5 // pred_check_branch
      %141 = sbr.rel (%p138) target = $region32
    $region31: #{unet_forward.19} parent=5 // pred_region
      %s142 = ssub.s32 %s9, 1
      %p143 = scmp.lt.s32.totalorder %s14, 1
      %s144 = scalar_select %p143, %s14, 1
      %s145 = smul.addr %s144, 40
      %s146 = smul.addr %s145, 8
      %s147 = scalar_lea.vmem %s0, %s146
      %p148 = pneg %p35
      %p149 = pneg %p32
      %p150 = pneg %p56
      %p151 = pneg %p53
      %p152 = pneg %p77
      %p153 = pneg %p74
      %p154 = pneg %p103
      %p155 = pneg %p100
      %p156 = scmp.lt.s32.totalorder %s14, 1
      %s157 = scalar_select %p156, %s14, 1
      %s158 = smul.addr %s157, 8
      %s159 = smul.addr %s158, 8
      %s160 = scalar_lea.vmem %s3, %s159
      %p161 = scmp.lt.s32.totalorder %s14, 1
      %s162 = scalar_select %p161, %s14, 1
      %s163 = smul.addr %s162, 40
      %s164 = smul.addr %s163, 8
      %s165 = scalar_lea.vmem %s0, %s164
      %p166 = scmp.lt.s32.totalorder %s14, 1
      %s167 = scalar_select %p166, %s14, 1
      %s168 = smul.addr %s167, 8
      %s169 = smul.addr %s168, 8
      %s170 = scalar_lea.vmem %s3, %s169
      %v171 = vld [vmem:[%s165] sm:$0xff]
      %v172 = vld [vmem:[%s165 + $0x8] sm:$0xff]
      %v173 = vld [vmem:[%s165 + $0x10] sm:$0xff]
      %v174 = vld [vmem:[%s165 + $0x18] sm:$0xff]
      %v175 = vld [vmem:[%s165 + $0x20] sm:$0xff]
      %v176 = vld [vmem:[%s165 + $0x28] sm:$0xff]
      %v177 = vld [vmem:[%s165 + $0x30] sm:$0xff]
      %v178 = vld [vmem:[%s165 + $0x38] sm:$0xff]
      %v179 = vld [vmem:[%s165 + $0x40] sm:$0xff]
      %v180 = vld [vmem:[%s165 + $0x48] sm:$0xff]
      %v181 = vld [vmem:[%s165 + $0x50] sm:$0xff]
      %v182 = vld [vmem:[%s165 + $0x58] sm:$0xff]
      %v183 = vld [vmem:[%s165 + $0x60] sm:$0xff]
      %v184 = vld [vmem:[%s165 + $0x68] sm:$0xff]
      %v185 = vld [vmem:[%s165 + $0x70] sm:$0xff]
      %v186 = vld [vmem:[%s165 + $0x78] sm:$0xff]
      %v187 = vld [vmem:[%s165 + $0x80] sm:$0xff]
      %v188 = vld [vmem:[%s165 + $0x88] sm:$0xff]
      %v189 = vld [vmem:[%s165 + $0x90] sm:$0xff]
      %v190 = vld [vmem:[%s165 + $0x98] sm:$0xff]
      %v191 = vld [vmem:[%s165 + $0xa0] sm:$0xff]
      %v192 = vld [vmem:[%s165 + $0xa8] sm:$0xff]
      %v193 = vld [vmem:[%s165 + $0xb0] sm:$0xff]
      %v194 = vld [vmem:[%s165 + $0xb8] sm:$0xff]
      %v195 = vld [vmem:[%s165 + $0xc0] sm:$0xff]
      %v196 = vld [vmem:[%s165 + $0xc8] sm:$0xff]
      %v197 = vld [vmem:[%s165 + $0xd0] sm:$0xff]
      %v198 = vld [vmem:[%s165 + $0xd8] sm:$0xff]
      %v199 = vld [vmem:[%s165 + $0xe0] sm:$0xff]
      %v200 = vld [vmem:[%s165 + $0xe8] sm:$0xff]
      %v201 = vld [vmem:[%s165 + $0xf0] sm:$0xff]
      %v202 = vld [vmem:[%s165 + $0xf8] sm:$0xff]
      %v203 = vld [vmem:[%s165 + $0x100] sm:$0xff]
      %v204 = vld [vmem:[%s165 + $0x108] sm:$0xff]
      %v205 = vld [vmem:[%s165 + $0x110] sm:$0xff]
      %v206 = vld [vmem:[%s165 + $0x118] sm:$0xff]
      %v207 = vld [vmem:[%s165 + $0x120] sm:$0xff]
      %v208 = vld [vmem:[%s165 + $0x128] sm:$0xff]
      %v209 = vld [vmem:[%s165 + $0x130] sm:$0xff]
      %v210 = vld [vmem:[%s165 + $0x138] sm:$0xff]
      %v211 = vld [vmem:[%s1] sm:$0xff]
      %v212 = vld [vmem:[%s1 + $0x8] sm:$0xff]
      %v213 = vld [vmem:[%s1 + $0x10] sm:$0xff]
      %v214 = vld [vmem:[%s1 + $0x18] sm:$0xff]
      %v215 = vld [vmem:[%s1 + $0x20] sm:$0xff]
      %v216 = vld [vmem:[%s1 + $0x28] sm:$0xff]
      %v217 = vld [vmem:[%s1 + $0x30] sm:$0xff]
      %v218 = vld [vmem:[%s1 + $0x38] sm:$0xff]
      %v219 = vld [vmem:[%s1 + $0x40] sm:$0xff]
      %v220 = vld [vmem:[%s1 + $0x48] sm:$0xff]
      %v221 = vld [vmem:[%s1 + $0x50] sm:$0xff]
      %v222 = vld [vmem:[%s1 + $0x58] sm:$0xff]
      %v223 = vld [vmem:[%s1 + $0x60] sm:$0xff]
      %v224 = vld [vmem:[%s1 + $0x68] sm:$0xff]
      %v225 = vld [vmem:[%s1 + $0x70] sm:$0xff]
      %v226 = vld [vmem:[%s1 + $0x78] sm:$0xff]
      %v227 = vld [vmem:[%s1 + $0x80] sm:$0xff]
      %v228 = vld [vmem:[%s1 + $0x88] sm:$0xff]
      %v229 = vld [vmem:[%s1 + $0x90] sm:$0xff]
      %v230 = vld [vmem:[%s1 + $0x98] sm:$0xff]
      %v231 = vld [vmem:[%s1 + $0xa0] sm:$0xff]
      %v232 = vld [vmem:[%s1 + $0xa8] sm:$0xff]
      %v233 = vld [vmem:[%s1 + $0xb0] sm:$0xff]
      %v234 = vld [vmem:[%s1 + $0xb8] sm:$0xff]
      %v235 = vld [vmem:[%s1 + $0xc0] sm:$0xff]
      %v236 = vld [vmem:[%s1 + $0xc8] sm:$0xff]
      %v237 = vld [vmem:[%s1 + $0xd0] sm:$0xff]
      %v238 = vld [vmem:[%s1 + $0xd8] sm:$0xff]
      %v239 = vld [vmem:[%s1 + $0xe0] sm:$0xff]
      %v240 = vld [vmem:[%s1 + $0xe8] sm:$0xff]
      %v241 = vld [vmem:[%s1 + $0xf0] sm:$0xff]
      %v242 = vld [vmem:[%s1 + $0xf8] sm:$0xff]
      %v243 = vld [vmem:[%s1 + $0x100] sm:$0xff]
      %v244 = vld [vmem:[%s1 + $0x108] sm:$0xff]
      %v245 = vld [vmem:[%s1 + $0x110] sm:$0xff]
      %v246 = vld [vmem:[%s1 + $0x118] sm:$0xff]
      %v247 = vld [vmem:[%s1 + $0x120] sm:$0xff]
      %v248 = vld [vmem:[%s1 + $0x128] sm:$0xff]
      %v249 = vld [vmem:[%s1 + $0x130] sm:$0xff]
      %v250 = vld [vmem:[%s1 + $0x138] sm:$0xff]
      %v251 = vld [vmem:[%s1 + $0x140] sm:$0xff]
      %v252 = vld [vmem:[%s1 + $0x148] sm:$0xff]
      %v253 = vld [vmem:[%s1 + $0x150] sm:$0xff]
      %v254 = vld [vmem:[%s1 + $0x158] sm:$0xff]
      %v255 = vld [vmem:[%s1 + $0x160] sm:$0xff]
      %v256 = vld [vmem:[%s1 + $0x168] sm:$0xff]
      %v257 = vld [vmem:[%s1 + $0x170] sm:$0xff]
      %v258 = vld [vmem:[%s1 + $0x178] sm:$0xff]
      %v259 = vld [vmem:[%s1 + $0x180] sm:$0xff]
      %v260 = vld [vmem:[%s1 + $0x188] sm:$0xff]
      %v261 = vld [vmem:[%s1 + $0x190] sm:$0xff]
      %v262 = vld [vmem:[%s1 + $0x198] sm:$0xff]
      %v263 = vld [vmem:[%s1 + $0x1a0] sm:$0xff]
      %v264 = vld [vmem:[%s1 + $0x1a8] sm:$0xff]
      %v265 = vld [vmem:[%s1 + $0x1b0] sm:$0xff]
      %v266 = vld [vmem:[%s1 + $0x1b8] sm:$0xff]
      %v267 = vld [vmem:[%s1 + $0x1c0] sm:$0xff]
      %v268 = vld [vmem:[%s1 + $0x1c8] sm:$0xff]
      %v269 = vld [vmem:[%s1 + $0x1d0] sm:$0xff]
      %v270 = vld [vmem:[%s1 + $0x1d8] sm:$0xff]
      %v271 = vld [vmem:[%s1 + $0x1e0] sm:$0xff]
      %v272 = vld [vmem:[%s1 + $0x1e8] sm:$0xff]
      %v273 = vld [vmem:[%s1 + $0x1f0] sm:$0xff]
      %v274 = vld [vmem:[%s1 + $0x1f8] sm:$0xff]
      %v275 = vld [vmem:[%s1 + $0x200] sm:$0xff]
      %v276 = vld [vmem:[%s1 + $0x208] sm:$0xff]
      %v277 = vld [vmem:[%s1 + $0x210] sm:$0xff]
      %v278 = vld [vmem:[%s1 + $0x218] sm:$0xff]
      %v279 = vld [vmem:[%s1 + $0x220] sm:$0xff]
      %v280 = vld [vmem:[%s1 + $0x228] sm:$0xff]
      %v281 = vld [vmem:[%s1 + $0x230] sm:$0xff]
      %v282 = vld [vmem:[%s1 + $0x238] sm:$0xff]
      %v283 = vld [vmem:[%s2] sm:$0x1]
      %v285 = vlaneseq
      %v286 = vshrl.u32 %v285, 7
      %v287 = vsub.s32 0, %v286
      %v288 = vrot.slane %v283, %v287
      %vm290 = vcmask 523264
      %v292 = vsel %vm290, %v175, 0
      %v295 = vsel %vm290, %v180, 0
      %v298 = vsel %vm290, %v185, 0
      %v301 = vsel %vm290, %v190, 0
      %v304 = vsel %vm290, %v195, 0
      %v307 = vsel %vm290, %v200, 0
      %v310 = vsel %vm290, %v205, 0
      %v313 = vsel %vm290, %v210, 0
      %315 = vmatprep.subr.mxu0 0.0
      %316 = vmatpush1.msra.mxu0 %v211
      %317 = vmatprep.subr.mxu0 0.0
      %318 = vmatpush1.msra.mxu0 %v212
      %319 = vmatprep.subr.mxu0 0.0
      %320 = vmatpush1.msra.mxu0 %v213
      %321 = vmatprep.subr.mxu0 0.0
      %322 = vmatpush1.msra.mxu0 %v214
      %323 = vmatprep.subr.mxu0 0.0
      %324 = vmatpush1.msra.mxu0 %v215
      %325 = vmatprep.subr.mxu0 0.0
      %326 = vmatpush1.msra.mxu0 %v216
      %327 = vmatprep.subr.mxu0 0.0
      %328 = vmatpush1.msra.mxu0 %v217
      %329 = vmatprep.subr.mxu0 0.0
      %330 = vmatpush1.msra.mxu0 %v218
      %331 = vmatprep.subr.mxu0 0.0
      %332 = vmatpush1.msra.mxu0 %v219
      %333 = vmatprep.subr.mxu0 0.0
      %334 = vmatpush1.msra.mxu0 %v220
      %335 = vmatprep.subr.mxu0 0.0
      %336 = vmatpush1.msra.mxu0 %v221
      %337 = vmatprep.subr.mxu0 0.0
      %338 = vmatpush1.msra.mxu0 %v222
      %339 = vmatprep.subr.mxu0 0.0
      %340 = vmatpush1.msra.mxu0 %v223
      %341 = vmatprep.subr.mxu0 0.0
      %342 = vmatpush1.msra.mxu0 %v224
      %343 = vmatprep.subr.mxu0 0.0
      %344 = vmatpush1.msra.mxu0 %v225
      %345 = vmatprep.subr.mxu0 0.0
      %346 = vmatpush1.msra.mxu0 %v226
      %347 = vmatprep.subr.mxu0 0.0
      %348 = vmatpush1.msra.mxu0 %v227
      %349 = vmatprep.subr.mxu0 0.0
      %350 = vmatpush1.msra.mxu0 %v228
      %351 = vmatprep.subr.mxu0 0.0
      %352 = vmatpush1.msra.mxu0 %v229
      %353 = vmatprep.subr.mxu0 0.0
      %354 = vmatpush1.msra.mxu0 %v230
      %355 = vmatprep.subr.mxu0 0.0
      %356 = vmatpush1.msra.mxu0 %v231
      %357 = vmatprep.subr.mxu0 0.0
      %358 = vmatpush1.msra.mxu0 %v232
      %359 = vmatprep.subr.mxu0 0.0
      %360 = vmatpush1.msra.mxu0 %v233
      %361 = vmatprep.subr.mxu0 0.0
      %362 = vmatpush1.msra.mxu0 %v234
      %363 = vmatprep.subr.mxu0 0.0
      %364 = vmatpush1.msra.mxu0 %v235
      %365 = vmatprep.subr.mxu0 0.0
      %366 = vmatpush1.msra.mxu0 %v236
      %367 = vmatprep.subr.mxu0 0.0
      %368 = vmatpush1.msra.mxu0 %v237
      %369 = vmatprep.subr.mxu0 0.0
      %370 = vmatpush1.msra.mxu0 %v238
      %371 = vmatprep.subr.mxu0 0.0
      %372 = vmatpush1.msra.mxu0 %v239
      %373 = vmatprep.subr.mxu0 0.0
      %374 = vmatpush1.msra.mxu0 %v240
      %375 = vmatprep.subr.mxu0 0.0
      %376 = vmatpush1.msra.mxu0 %v241
      %377 = vmatprep.subr.mxu0 0.0
      %378 = vmatpush1.msra.mxu0 %v242
      %379 = vmatprep.mubr.f32.mxu0 %v172
      %380 = vmatmul.mubr.f32.gmra.mrb[0].mxu0 %v171
      %v381 = vpop.f32.mrb[0].mxu0
      %v382 = vadd.f32 %v288, %v381
      %v383 = vpop.f32.mrb[0].mxu0
      %384 = vmatprep.mubr.f32.mxu0 %v177
      %385 = vmatmul.mubr.f32.gmra.mrb[0].mxu0 %v176
      %v386 = vpop.f32.mrb[0].mxu0
      %v387 = vadd.f32 %v288, %v386
      %v388 = vpop.f32.mrb[0].mxu0
      %389 = vmatprep.mubr.f32.mxu0 %v182
      %390 = vmatmul.mubr.f32.gmra.mrb[0].mxu0 %v181
      %v391 = vpop.f32.mrb[0].mxu0
      %v392 = vadd.f32 %v288, %v391
      %v393 = vpop.f32.mrb[0].mxu0
      %394 = vmatprep.mubr.f32.mxu0 %v187
      %395 = vmatmul.mubr.f32.gmra.mrb[0].mxu0 %v186
      %v396 = vpop.f32.mrb[0].mxu0
      %v397 = vadd.f32 %v288, %v396
      %v398 = vpop.f32.mrb[0].mxu0
      %399 = vmatprep.mubr.f32.mxu0 %v192
      %400 = vmatmul.mubr.f32.gmra.mrb[0].mxu0 %v191
      %v401 = vpop.f32.mrb[0].mxu0
      %v402 = vadd.f32 %v288, %v401
      %v403 = vpop.f32.mrb[0].mxu0
      %404 = vmatprep.mubr.f32.mxu0 %v197
      %405 = vmatmul.mubr.f32.gmra.mrb[0].mxu0 %v196
      %v406 = vpop.f32.mrb[0].mxu0
      %v407 = vadd.f32 %v288, %v406
      %v408 = vpop.f32.mrb[0].mxu0
      %409 = vmatprep.mubr.f32.mxu0 %v202
      %410 = vmatmul.mubr.f32.gmra.mrb[0].mxu0 %v201
      %v411 = vpop.f32.mrb[0].mxu0
      %v412 = vadd.f32 %v288, %v411
      %v413 = vpop.f32.mrb[0].mxu0
      %414 = vmatprep.mubr.f32.mxu0 %v207
      %415 = vmatmul.mubr.f32.gmra.mrb[0].mxu0 %v206
      %v416 = vpop.f32.mrb[0].mxu0
      %v417 = vadd.f32 %v288, %v416
      %v418 = vpop.f32.mrb[0].mxu0
      %419 = vdwg.mxu0
      %420 = vmatprep.subr.mxu0 0.0
      %421 = vmatpush1.msra.mxu0 %v243
      %422 = vmatprep.subr.mxu0 0.0
      %423 = vmatpush1.msra.mxu0 %v244
      %424 = vmatprep.subr.mxu0 0.0
      %425 = vmatpush1.msra.mxu0 %v245
      %426 = vmatprep.subr.mxu0 0.0
      %427 = vmatpush1.msra.mxu0 %v246
      %428 = vmatprep.subr.mxu0 0.0
      %429 = vmatpush1.msra.mxu0 %v247
      %430 = vmatprep.subr.mxu0 0.0
      %431 = vmatpush1.msra.mxu0 %v248
      %432 = vmatprep.subr.mxu0 0.0
      %433 = vmatpush1.msra.mxu0 %v249
      %434 = vmatprep.subr.mxu0 0.0
      %435 = vmatpush1.msra.mxu0 %v250
      %436 = vmatprep.subr.mxu0 0.0
      %437 = vmatpush1.msra.mxu0 %v251
      %438 = vmatprep.subr.mxu0 0.0
      %439 = vmatpush1.msra.mxu0 %v252
      %440 = vmatprep.subr.mxu0 0.0
      %441 = vmatpush1.msra.mxu0 %v253
      %442 = vmatprep.subr.mxu0 0.0
      %443 = vmatpush1.msra.mxu0 %v254
      %444 = vmatprep.subr.mxu0 0.0
      %445 = vmatpush1.msra.mxu0 %v255
      %446 = vmatprep.subr.mxu0 0.0
      %447 = vmatpush1.msra.mxu0 %v256
      %448 = vmatprep.subr.mxu0 0.0
      %449 = vmatpush1.msra.mxu0 %v257
      %450 = vmatprep.subr.mxu0 0.0
      %451 = vmatpush1.msra.mxu0 %v258
      %452 = vmatprep.subr.mxu0 0.0
      %453 = vmatpush1.msra.mxu0 %v259
      %454 = vmatprep.subr.mxu0 0.0
      %455 = vmatpush1.msra.mxu0 %v260
      %456 = vmatprep.subr.mxu0 0.0
      %457 = vmatpush1.msra.mxu0 %v261
      %458 = vmatprep.subr.mxu0 0.0
      %459 = vmatpush1.msra.mxu0 %v262
      %460 = vmatprep.subr.mxu0 0.0
      %461 = vmatpush1.msra.mxu0 %v263
      %462 = vmatprep.subr.mxu0 0.0
      %463 = vmatpush1.msra.mxu0 %v264
      %464 = vmatprep.subr.mxu0 0.0
      %465 = vmatpush1.msra.mxu0 %v265
      %466 = vmatprep.subr.mxu0 0.0
      %467 = vmatpush1.msra.mxu0 %v266
      %468 = vmatprep.subr.mxu0 0.0
      %469 = vmatpush1.msra.mxu0 %v267
      %470 = vmatprep.subr.mxu0 0.0
      %471 = vmatpush1.msra.mxu0 %v268
      %472 = vmatprep.subr.mxu0 0.0
      %473 = vmatpush1.msra.mxu0 %v269
      %474 = vmatprep.subr.mxu0 0.0
      %475 = vmatpush1.msra.mxu0 %v270
      %476 = vmatprep.subr.mxu0 0.0
      %477 = vmatpush1.msra.mxu0 %v271
      %478 = vmatprep.subr.mxu0 0.0
      %479 = vmatpush1.msra.mxu0 %v272
      %480 = vmatprep.subr.mxu0 0.0
      %481 = vmatpush1.msra.mxu0 %v273
      %482 = vmatprep.subr.mxu0 0.0
      %483 = vmatpush1.msra.mxu0 %v274
      %484 = vmatprep.mubr.f32.mxu0 %v174
      %485 = vmatmul.mubr.f32.gmra.mrb[0].mxu0 %v173
      %v486 = vpop.f32.mrb[0].mxu0
      %v487 = vadd.f32 %v382, %v486
      %v488 = vpop.f32.mrb[0].mxu0
      %489 = vmatprep.mubr.f32.mxu0 %v179
      %490 = vmatmul.mubr.f32.gmra.mrb[0].mxu0 %v178
      %v491 = vpop.f32.mrb[0].mxu0
      %v492 = vadd.f32 %v387, %v491
      %v493 = vpop.f32.mrb[0].mxu0
      %494 = vmatprep.mubr.f32.mxu0 %v184
      %495 = vmatmul.mubr.f32.gmra.mrb[0].mxu0 %v183
      %v496 = vpop.f32.mrb[0].mxu0
      %v497 = vadd.f32 %v392, %v496
      %v498 = vpop.f32.mrb[0].mxu0
      %499 = vmatprep.mubr.f32.mxu0 %v189
      %500 = vmatmul.mubr.f32.gmra.mrb[0].mxu0 %v188
      %v501 = vpop.f32.mrb[0].mxu0
      %v502 = vadd.f32 %v397, %v501
      %v503 = vpop.f32.mrb[0].mxu0
      %504 = vmatprep.mubr.f32.mxu0 %v194
      %505 = vmatmul.mubr.f32.gmra.mrb[0].mxu0 %v193
      %v506 = vpop.f32.mrb[0].mxu0
      %v507 = vadd.f32 %v402, %v506
      %v508 = vpop.f32.mrb[0].mxu0
      %509 = vmatprep.mubr.f32.mxu0 %v199
      %510 = vmatmul.mubr.f32.gmra.mrb[0].mxu0 %v198
      %v511 = vpop.f32.mrb[0].mxu0
      %v512 = vadd.f32 %v407, %v511
      %v513 = vpop.f32.mrb[0].mxu0
      %514 = vmatprep.mubr.f32.mxu0 %v204
      %515 = vmatmul.mubr.f32.gmra.mrb[0].mxu0 %v203
      %v516 = vpop.f32.mrb[0].mxu0
      %v517 = vadd.f32 %v412, %v516
      %v518 = vpop.f32.mrb[0].mxu0
      %519 = vmatprep.mubr.f32.mxu0 %v209
      %520 = vmatmul.mubr.f32.gmra.mrb[0].mxu0 %v208
      %v521 = vpop.f32.mrb[0].mxu0
      %v522 = vadd.f32 %v417, %v521
      %v523 = vpop.f32.mrb[0].mxu0
      %524 = vdwg.mxu0
      %525 = vmatprep.subr.mxu0 0.0
      %526 = vmatpush1.msra.mxu0 %v275
      %527 = vmatprep.subr.mxu0 0.0
      %528 = vmatpush1.msra.mxu0 %v276
      %529 = vmatprep.subr.mxu0 0.0
      %530 = vmatpush1.msra.mxu0 %v277
      %531 = vmatprep.subr.mxu0 0.0
      %532 = vmatpush1.msra.mxu0 %v278
      %533 = vmatprep.subr.mxu0 0.0
      %534 = vmatpush1.msra.mxu0 %v279
      %535 = vmatprep.subr.mxu0 0.0
      %536 = vmatpush1.msra.mxu0 %v280
      %537 = vmatprep.subr.mxu0 0.0
      %538 = vmatpush1.msra.mxu0 %v281
      %539 = vmatprep.subr.mxu0 0.0
      %540 = vmatpush1.msra.mxu0 %v282
      %541 = vmatprep.subr.mxu0 0.0
      %542 = vmatpush1.msra.mxu0 0.0
      %543 = vmatprep.subr.mxu0 0.0
      %544 = vmatpush1.msra.mxu0 0.0
      %545 = vmatprep.subr.mxu0 0.0
      %546 = vmatpush1.msra.mxu0 0.0
      %547 = vmatprep.subr.mxu0 0.0
      %548 = vmatpush1.msra.mxu0 0.0
      %549 = vmatprep.subr.mxu0 0.0
      %550 = vmatpush1.msra.mxu0 0.0
      %551 = vmatprep.subr.mxu0 0.0
      %552 = vmatpush1.msra.mxu0 0.0
      %553 = vmatprep.subr.mxu0 0.0
      %554 = vmatpush1.msra.mxu0 0.0
      %555 = vmatprep.subr.mxu0 0.0
      %556 = vmatpush1.msra.mxu0 0.0
      %557 = vmatprep.subr.mxu0 0.0
      %558 = vmatpush1.msra.mxu0 0.0
      %559 = vmatprep.subr.mxu0 0.0
      %560 = vmatpush1.msra.mxu0 0.0
      %561 = vmatprep.subr.mxu0 0.0
      %562 = vmatpush1.msra.mxu0 0.0
      %563 = vmatprep.subr.mxu0 0.0
      %564 = vmatpush1.msra.mxu0 0.0
      %565 = vmatprep.subr.mxu0 0.0
      %566 = vmatpush1.msra.mxu0 0.0
      %567 = vmatprep.subr.mxu0 0.0
      %568 = vmatpush1.msra.mxu0 0.0
      %569 = vmatprep.subr.mxu0 0.0
      %570 = vmatpush1.msra.mxu0 0.0
      %571 = vmatprep.subr.mxu0 0.0
      %572 = vmatpush1.msra.mxu0 0.0
      %573 = vmatprep.subr.mxu0 0.0
      %574 = vmatpush1.msra.mxu0 0.0
      %575 = vmatprep.subr.mxu0 0.0
      %576 = vmatpush1.msra.mxu0 0.0
      %577 = vmatprep.subr.mxu0 0.0
      %578 = vmatpush1.msra.mxu0 0.0
      %579 = vmatprep.subr.mxu0 0.0
      %580 = vmatpush1.msra.mxu0 0.0
      %581 = vmatprep.subr.mxu0 0.0
      %582 = vmatpush1.msra.mxu0 0.0
      %583 = vmatprep.subr.mxu0 0.0
      %584 = vmatpush1.msra.mxu0 0.0
      %585 = vmatprep.subr.mxu0 0.0
      %586 = vmatpush1.msra.mxu0 0.0
      %587 = vmatprep.subr.mxu0 0.0
      %588 = vmatpush1.msra.mxu0 0.0
      %589 = vmatprep.mubr.f32.mxu0 0.0
      %590 = vmatmul.mubr.f32.gmra.mrb[0].mxu0 %v292
      %v591 = vpop.f32.mrb[0].mxu0
      %v592 = vadd.f32 %v487, %v591
      %v593 = vpop.f32.mrb[0].mxu0
      %594 = vmatprep.mubr.f32.mxu0 0.0
      %595 = vmatmul.mubr.f32.gmra.mrb[0].mxu0 %v295
      %v596 = vpop.f32.mrb[0].mxu0
      %v597 = vadd.f32 %v492, %v596
      %v598 = vpop.f32.mrb[0].mxu0
      %599 = vmatprep.mubr.f32.mxu0 0.0
      %600 = vmatmul.mubr.f32.gmra.mrb[0].mxu0 %v298
      %v601 = vpop.f32.mrb[0].mxu0
      %v602 = vadd.f32 %v497, %v601
      %v603 = vpop.f32.mrb[0].mxu0
      %604 = vmatprep.mubr.f32.mxu0 0.0
      %605 = vmatmul.mubr.f32.gmra.mrb[0].mxu0 %v301
      %v606 = vpop.f32.mrb[0].mxu0
      %v607 = vadd.f32 %v502, %v606
      %v608 = vpop.f32.mrb[0].mxu0
      %609 = vmatprep.mubr.f32.mxu0 0.0
      %610 = vmatmul.mubr.f32.gmra.mrb[0].mxu0 %v304
      %v611 = vpop.f32.mrb[0].mxu0
      %v612 = vadd.f32 %v507, %v611
      %v613 = vpop.f32.mrb[0].mxu0
      %614 = vmatprep.mubr.f32.mxu0 0.0
      %615 = vmatmul.mubr.f32.gmra.mrb[0].mxu0 %v307
      %v616 = vpop.f32.mrb[0].mxu0
      %v617 = vadd.f32 %v512, %v616
      %v618 = vpop.f32.mrb[0].mxu0
      %619 = vmatprep.mubr.f32.mxu0 0.0
      %620 = vmatmul.mubr.f32.gmra.mrb[0].mxu0 %v310
      %v621 = vpop.f32.mrb[0].mxu0
      %v622 = vadd.f32 %v517, %v621
      %v623 = vpop.f32.mrb[0].mxu0
      %624 = vmatprep.mubr.f32.mxu0 0.0
      %625 = vmatmul.mubr.f32.gmra.mrb[0].mxu0 %v313
      %v626 = vpop.f32.mrb[0].mxu0
      %v627 = vadd.f32 %v522, %v626
      %v628 = vpop.f32.mrb[0].mxu0
      %629 = vdwg.mxu0
      %v630 = vsel %vm290, %v592, 0.0
      %v631 = vsel %vm290, %v597, 0.0
      %v632 = vadd.f32 %v630, %v631
      %v633 = vsel %vm290, %v602, 0.0
      %v634 = vadd.f32 %v632, %v633
      %v635 = vsel %vm290, %v607, 0.0
      %v636 = vadd.f32 %v634, %v635
      %v637 = vsel %vm290, %v612, 0.0
      %v638 = vadd.f32 %v636, %v637
      %v639 = vsel %vm290, %v617, 0.0
      %v640 = vadd.f32 %v638, %v639
      %v641 = vsel %vm290, %v622, 0.0
      %v642 = vadd.f32 %v640, %v641
      %v643 = vsel %vm290, %v627, 0.0
      %v644 = vadd.f32 %v642, %v643
      %v645 = vrot.slane %v644, 4
      %v646 = vadd.f32 %v644, %v645
      %v647 = vrot.slane %v646, 2
      %v648 = vadd.f32 %v646, %v647
      %v649 = vrot.slane %v648, 1
      %v650 = vadd.f32 %v648, %v649
      %v651 = vrcp.pop 64.0
      %v652 = vmul.f32 %v650, %v651
      %v653 = vsub.f32 %v592, %v652
      %v654 = vsub.f32 %v597, %v652
      %v655 = vsub.f32 %v602, %v652
      %v656 = vsub.f32 %v607, %v652
      %v657 = vsub.f32 %v612, %v652
      %v658 = vsub.f32 %v617, %v652
      %v659 = vsub.f32 %v622, %v652
      %v660 = vsub.f32 %v627, %v652
      %v661 = vmul.f32 %v653, %v653
      %v662 = vmul.f32 %v654, %v654
      %v663 = vmul.f32 %v655, %v655
      %v664 = vmul.f32 %v656, %v656
      %v665 = vmul.f32 %v657, %v657
      %v666 = vmul.f32 %v658, %v658
      %v667 = vmul.f32 %v659, %v659
      %v668 = vmul.f32 %v660, %v660
      %v669 = vsel %vm290, %v661, 0.0
      %v670 = vsel %vm290, %v662, 0.0
      %v671 = vadd.f32 %v669, %v670
      %v672 = vsel %vm290, %v663, 0.0
      %v673 = vadd.f32 %v671, %v672
      %v674 = vsel %vm290, %v664, 0.0
      %v675 = vadd.f32 %v673, %v674
      %v676 = vsel %vm290, %v665, 0.0
      %v677 = vadd.f32 %v675, %v676
      %v678 = vsel %vm290, %v666, 0.0
      %v679 = vadd.f32 %v677, %v678
      %v680 = vsel %vm290, %v667, 0.0
      %v681 = vadd.f32 %v679, %v680
      %v682 = vsel %vm290, %v668, 0.0
      %v683 = vadd.f32 %v681, %v682
      %v684 = vrot.slane %v683, 4
      %v685 = vadd.f32 %v683, %v684
      %v686 = vrot.slane %v685, 2
      %v687 = vadd.f32 %v685, %v686
      %v688 = vrot.slane %v687, 1
      %v689 = vadd.f32 %v687, %v688
      %v690 = vmul.f32 %v689, %v651
      %v691 = vadd.f32 %v690, 1e-05
      %v692 = vrsqrt.pop %v691
      %v693 = vmul.f32 %v653, %v692
      %v694 = vmul.f32 %v654, %v692
      %v695 = vmul.f32 %v655, %v692
      %v696 = vmul.f32 %v656, %v692
      %v697 = vmul.f32 %v657, %v692
      %v698 = vmul.f32 %v658, %v692
      %v699 = vmul.f32 %v659, %v692
      %v700 = vmul.f32 %v660, %v692
      %vm701 = vcmp.ge.f32.partialorder %v693, 0.0
      %vm702 = vcmp.ge.f32.partialorder %v694, 0.0
      %vm703 = vcmp.ge.f32.partialorder %v695, 0.0
      %vm704 = vcmp.ge.f32.partialorder %v696, 0.0
      %vm705 = vcmp.ge.f32.partialorder %v697, 0.0
      %vm706 = vcmp.ge.f32.partialorder %v698, 0.0
      %vm707 = vcmp.ge.f32.partialorder %v699, 0.0
      %vm708 = vcmp.ge.f32.partialorder %v700, 0.0
      %v709 = vmul.f32 %v693, 0.1
      %v710 = vmul.f32 %v694, 0.1
      %v711 = vmul.f32 %v695, 0.1
      %v712 = vmul.f32 %v696, 0.1
      %v713 = vmul.f32 %v697, 0.1
      %v714 = vmul.f32 %v698, 0.1
      %v715 = vmul.f32 %v699, 0.1
      %v716 = vmul.f32 %v700, 0.1
      %v717 = vsel %vm701, %v693, %v709
      %v718 = vsel %vm702, %v694, %v710
      %v719 = vsel %vm703, %v695, %v711
      %v720 = vsel %vm704, %v696, %v712
      %v721 = vsel %vm705, %v697, %v713
      %v722 = vsel %vm706, %v698, %v714
      %v723 = vsel %vm707, %v699, %v715
      %v724 = vsel %vm708, %v700, %v716
      %725 = vst.msk [vmem:[%s170] sm:$0xff] %vm290, %v717
      %726 = vst.msk [vmem:[%s170 + $0x8] sm:$0xff] %vm290, %v718
      %727 = vst.msk [vmem:[%s170 + $0x10] sm:$0xff] %vm290, %v719
      %728 = vst.msk [vmem:[%s170 + $0x18] sm:$0xff] %vm290, %v720
      %729 = vst.msk [vmem:[%s170 + $0x20] sm:$0xff] %vm290, %v721
      %730 = vst.msk [vmem:[%s170 + $0x28] sm:$0xff] %vm290, %v722
      %731 = vst.msk [vmem:[%s170 + $0x30] sm:$0xff] %vm290, %v723
      %732 = vst.msk [vmem:[%s170 + $0x38] sm:$0xff] %vm290, %v724
      %p733 = scmp.lt.s32.totalorder %s14, 1
      %s734 = scalar_select %p733, %s14, 1
      %s735 = smul.addr %s734, 8
      %s736 = smul.addr %s735, 8
      %s737 = scalar_lea.vmem %s3, %s736
      // Predicated region
      $region33: #{unet_forward.19} parent=31 // pred_check
        %p738 = pneg %p100
      $region34: #{unet_forward.19} parent=31 // pred_check_branch
        %740 = sbr.rel (%p738) target = $region36
      $region35: #{unet_forward.19} parent=31 // pred_region
        _
      $region36: #{unet_forward.19} parent=31 // pred_fallthru
        _
    $region32: #{unet_forward.19} parent=5 // pred_fallthru
      _
    %p741 = scmp.le.s32.totalorder 2, %s9
    // Predicated region
    $region37: #{unet_forward.19} parent=5 // pred_check
      %p742 = pneg %p741
    $region38: #{unet_forward.19} parent=5 // pred_check_branch
      %744 = sbr.rel (%p742) target = $region40
    $region39: #{unet_forward.19} parent=5 // pred_region
      %s745 = ssub.s32 %s9, 2
      // Predicated region
      $region41: #{unet_forward.19} parent=39 // pred_check
        %p746 = pneg %p106
      $region42: #{unet_forward.19} parent=39 // pred_check_branch
        %748 = sbr.rel (%p746) target = $region44
      $region43: #{unet_forward.19} parent=39 // pred_region
        %p749 = scmp.lt.s32.totalorder %s15, 1
        %s750 = scalar_select %p749, %s15, 1
        %s751 = smul.addr %s750, 8
        %s752 = smul.addr %s751, 8
        %s753 = scalar_lea.vmem %s3, %s752
      $region44: #{unet_forward.19} parent=39 // pred_fallthru
        _
    $region40: #{unet_forward.19} parent=5 // pred_fallthru
      _
  $region6: #{unet_forward.19} parent=0 // loop_footer
    %s13 = sadd.s32 1, %s9
  $region7: #{unet_forward.19} parent=0 // loop_footer_branch
    %8 = sbr.rel target = $region3
  $region8: #{unet_forward.19} parent=0 // loop_exit
    _

// kernel: unet_forward.20
$region0: #{unet_forward.20}
  #allocation0 [shape = 'u32[]', space=smem, size = 0x4, offset = 0x4, fixed_abs, tag = 'smem constant byte address 0x4 - core index']
  #allocation1 [shape = 'u32[144,128]{1,0:T(1,128)}', space=vmem, size = 0x12000, scoped, tag = 'internal scratch']
  %s0 = inlined_call_operand.vmem [shape: f32[2,16,576], index: 0, kind: input, shape index: {}]
  %s1 = inlined_call_operand.vmem [shape: f32[576,128], index: 1, kind: input, shape index: {}]
  %s2 = inlined_call_operand.vmem [shape: f32[1,128], index: 2, kind: input, shape index: {}]
  %s3 = inlined_call_operand.vmem [shape: f32[2,16,128], index: 3, kind: output, shape index: {}]
  %s4 = sld [smem:[#allocation0]]
  $region45: #{unet_forward.20} parent=0
    _
  %s6 = ssub.s32 1, %s4
  %s7 = scalar_select 0, %s6, %s4
  loop: start=0, step=1, limit=4
  $region2: #{unet_forward.20} parent=0 // loop_pre_header
    _
  $region3: #{unet_forward.20} parent=0 // loop_header
    %s9 = sphi 0, %s13
    %p10 = scmp.ge.s32.totalorder %s9, 4
    %s19 = sphi 0, %s21
    %s22 = sphi 0, %s19
    %s23 = sphi 0, %s22
    %s39 = sphi 0, %s23
    %s43 = sphi 0, %s43
    %s45 = sphi 0, %s43
    %s46 = sphi 0, %s45
    %s60 = sphi 0, %s46
    %s64 = sphi 0, %s64
    %s66 = sphi 0, %s64
    %s67 = sphi 0, %s66
    %s81 = sphi 0, %s67
    %s87 = sphi 0, %s89
    %s90 = sphi 0, %s87
    %s91 = sphi 0, %s90
    %s107 = sphi 0, %s91
  $region4: #{unet_forward.20} parent=0 // loop_header_branch
    %12 = sbr.rel (%p10) target = $region8
  $region5: #{unet_forward.20} parent=0 // loop_body
    %s14 = ssub.s32 %s9, 1
    %s15 = ssub.s32 %s9, 2
    %s16 = sadd.s32 %s9, 1
    %s17 = ssub.s32 %s9, %s16
    %p18 = scmp.eq.s32.totalorder %s17, 0
    %s20 = sadd.s32 %s19, 1
    %s21 = scalar_select %p18, %s19, %s20
    %p24 = pneg %p18
    %p25 = scmp.eq.s32.totalorder %s9, 1
    %p26 = por %p24, %p25
    %p27 = scmp.ne.s32.totalorder %s19, %s22
    %p28 = scmp.eq.s32.totalorder %s9, 0
    %p29 = por %p27, %p28
    %p30 = scmp.ne.s32.totalorder %s19, %s22
    %p31 = scmp.eq.s32.totalorder %s14, 1
    %p32 = por %p30, %p31
    %p33 = scmp.ne.s32.totalorder %s22, %s23
    %p34 = scmp.eq.s32.totalorder %s14, 0
    %p35 = por %p33, %p34
    %p36 = scmp.ne.s32.totalorder %s22, %s23
    %p37 = scmp.eq.s32.totalorder %s15, 1
    %p38 = por %p36, %p37
    %p40 = scmp.ne.s32.totalorder %s23, %s39
    %p41 = scmp.eq.s32.totalorder %s15, 0
    %p42 = por %p40, %p41
    %s44 = sadd.s32 %s43, 1
    %p47 = scmp.eq.s32.totalorder %s9, 1
    %p48 = scmp.ne.s32.totalorder %s43, %s45
    %p49 = scmp.eq.s32.totalorder %s9, 0
    %p50 = por %p48, %p49
    %p51 = scmp.ne.s32.totalorder %s43, %s45
    %p52 = scmp.eq.s32.totalorder %s14, 1
    %p53 = por %p51, %p52
    %p54 = scmp.ne.s32.totalorder %s45, %s46
    %p55 = scmp.eq.s32.totalorder %s14, 0
    %p56 = por %p54, %p55
    %p57 = scmp.ne.s32.totalorder %s45, %s46
    %p58 = scmp.eq.s32.totalorder %s15, 1
    %p59 = por %p57, %p58
    %p61 = scmp.ne.s32.totalorder %s46, %s60
    %p62 = scmp.eq.s32.totalorder %s15, 0
    %p63 = por %p61, %p62
    %s65 = sadd.s32 %s64, 1
    %p68 = scmp.eq.s32.totalorder %s9, 1
    %p69 = scmp.ne.s32.totalorder %s64, %s66
    %p70 = scmp.eq.s32.totalorder %s9, 0
    %p71 = por %p69, %p70
    %p72 = scmp.ne.s32.totalorder %s64, %s66
    %p73 = scmp.eq.s32.totalorder %s14, 1
    %p74 = por %p72, %p73
    %p75 = scmp.ne.s32.totalorder %s66, %s67
    %p76 = scmp.eq.s32.totalorder %s14, 0
    %p77 = por %p75, %p76
    %p78 = scmp.ne.s32.totalorder %s66, %s67
    %p79 = scmp.eq.s32.totalorder %s15, 1
    %p80 = por %p78, %p79
    %p82 = scmp.ne.s32.totalorder %s67, %s81
    %p83 = scmp.eq.s32.totalorder %s15, 0
    %p84 = por %p82, %p83
    %s85 = ssub.s32 %s9, %s16
    %p86 = scmp.eq.s32.totalorder %s85, 0
    %s88 = sadd.s32 %s87, 1
    %s89 = scalar_select %p86, %s87, %s88
    %p92 = pneg %p86
    %p93 = scmp.eq.s32.totalorder %s9, 1
    %p94 = por %p92, %p93
    %p95 = scmp.ne.s32.totalorder %s87, %s90
    %p96 = scmp.eq.s32.totalorder %s9, 0
    %p97 = por %p95, %p96
    %p98 = scmp.ne.s32.totalorder %s87, %s90
    %p99 = scmp.eq.s32.totalorder %s14, 1
    %p100 = por %p98, %p99
    %p101 = scmp.ne.s32.totalorder %s90, %s91
    %p102 = scmp.eq.s32.totalorder %s14, 0
    %p103 = por %p101, %p102
    %p104 = scmp.ne.s32.totalorder %s90, %s91
    %p105 = scmp.eq.s32.totalorder %s15, 1
    %p106 = por %p104, %p105
    %p108 = scmp.ne.s32.totalorder %s91, %s107
    %p109 = scmp.eq.s32.totalorder %s15, 0
    %p110 = por %p108, %p109
    %p111 = scmp.le.s32.totalorder 1, %s9
    %p112 = scmp.lt.s32.totalorder %s9, 3
    %p113 = pnand %p111, %p112
    %p114 = pneg %p113
    // Predicated region
    $region9: #{unet_forward.20} parent=5 // pred_check
      _
    $region10: #{unet_forward.20} parent=5 // pred_check_branch
      %116 = sbr.rel (%p113) target = $region12
    $region11: #{unet_forward.20} parent=5 // pred_region
      %s117 = ssub.s32 %s9, 1
      // Predicated region
      $region13: #{unet_forward.20} parent=11 // pred_check
        %p118 = pneg %p56
      $region14: #{unet_forward.20} parent=11 // pred_check_branch
        %120 = sbr.rel (%p118) target = $region16
      $region15: #{unet_forward.20} parent=11 // pred_region
        _
      $region16: #{unet_forward.20} parent=11 // pred_fallthru
        _
      // Predicated region
      $region17: #{unet_forward.20} parent=11 // pred_check
        %p121 = pneg %p77
      $region18: #{unet_forward.20} parent=11 // pred_check_branch
        %123 = sbr.rel (%p121) target = $region20
      $region19: #{unet_forward.20} parent=11 // pred_region
        _
      $region20: #{unet_forward.20} parent=11 // pred_fallthru
        _
    $region12: #{unet_forward.20} parent=5 // pred_fallthru
      _
    %p124 = scmp.lt.s32.totalorder %s9, 2
    // Predicated region
    $region21: #{unet_forward.20} parent=5 // pred_check
      %p125 = pneg %p124
    $region22: #{unet_forward.20} parent=5 // pred_check_branch
      %127 = sbr.rel (%p125) target = $region24
    $region23: #{unet_forward.20} parent=5 // pred_region
      // Predicated region
      $region25: #{unet_forward.20} parent=23 // pred_check
        %p128 = pneg %p29
      $region26: #{unet_forward.20} parent=23 // pred_check_branch
        %130 = sbr.rel (%p128) target = $region28
      $region27: #{unet_forward.20} parent=23 // pred_region
        %p131 = scmp.lt.s32.totalorder %s9, 1
        %s132 = scalar_select %p131, %s9, 1
        %s133 = smul.addr %s132, 10
        %s134 = smul.addr %s133, 8
        %s135 = scalar_lea.vmem %s0, %s134
      $region28: #{unet_forward.20} parent=23 // pred_fallthru
        _
    $region24: #{unet_forward.20} parent=5 // pred_fallthru
      _
    %p136 = scmp.le.s32.totalorder 1, %s9
    %p137 = scmp.lt.s32.totalorder %s9, 3
    %p138 = pnand %p136, %p137
    %p139 = pneg %p138
    // Predicated region
    $region29: #{unet_forward.20} parent=5 // pred_check
      _
    $region30: #{unet_forward.20} parent=5 // pred_check_branch
      %141 = sbr.rel (%p138) target = $region32
    $region31: #{unet_forward.20} parent=5 // pred_region
      %s142 = ssub.s32 %s9, 1
      %p143 = scmp.lt.s32.totalorder %s14, 1
      %s144 = scalar_select %p143, %s14, 1
      %s145 = smul.addr %s144, 10
      %s146 = smul.addr %s145, 8
      %s147 = scalar_lea.vmem %s0, %s146
      %p148 = pneg %p35
      %p149 = pneg %p32
      %p150 = pneg %p56
      %p151 = pneg %p53
      %p152 = pneg %p77
      %p153 = pneg %p74
      %p154 = pneg %p103
      %p155 = pneg %p100
      %p156 = scmp.lt.s32.totalorder %s14, 1
      %s157 = scalar_select %p156, %s14, 1
      %s158 = smul.addr %s157, 2
      %s159 = smul.addr %s158, 8
      %s160 = scalar_lea.vmem %s3, %s159
      %p161 = scmp.lt.s32.totalorder %s14, 1
      %s162 = scalar_select %p161, %s14, 1
      %s163 = smul.addr %s162, 10
      %s164 = smul.addr %s163, 8
      %s165 = scalar_lea.vmem %s0, %s164
      %p166 = scmp.lt.s32.totalorder %s14, 1
      %s167 = scalar_select %p166, %s14, 1
      %s168 = smul.addr %s167, 2
      %s169 = smul.addr %s168, 8
      %s170 = scalar_lea.vmem %s3, %s169
      %v171 = vld [vmem:[%s165] sm:$0xff]
      %v172 = vld [vmem:[%s165 + $0x8] sm:$0xff]
      %v173 = vld [vmem:[%s165 + $0x10] sm:$0xff]
      %v174 = vld [vmem:[%s165 + $0x18] sm:$0xff]
      %v175 = vld [vmem:[%s165 + $0x20] sm:$0xff]
      %v176 = vld [vmem:[%s165 + $0x28] sm:$0xff]
      %v177 = vld [vmem:[%s165 + $0x30] sm:$0xff]
      %v178 = vld [vmem:[%s165 + $0x38] sm:$0xff]
      %v179 = vld [vmem:[%s165 + $0x40] sm:$0xff]
      %v180 = vld [vmem:[%s165 + $0x48] sm:$0xff]
      %v181 = vld [vmem:[%s1] sm:$0xff]
      %v182 = vld [vmem:[%s1 + $0x8] sm:$0xff]
      %v183 = vld [vmem:[%s1 + $0x10] sm:$0xff]
      %v184 = vld [vmem:[%s1 + $0x18] sm:$0xff]
      %v185 = vld [vmem:[%s1 + $0x20] sm:$0xff]
      %v186 = vld [vmem:[%s1 + $0x28] sm:$0xff]
      %v187 = vld [vmem:[%s1 + $0x30] sm:$0xff]
      %v188 = vld [vmem:[%s1 + $0x38] sm:$0xff]
      %v189 = vld [vmem:[%s1 + $0x40] sm:$0xff]
      %v190 = vld [vmem:[%s1 + $0x48] sm:$0xff]
      %v191 = vld [vmem:[%s1 + $0x50] sm:$0xff]
      %v192 = vld [vmem:[%s1 + $0x58] sm:$0xff]
      %v193 = vld [vmem:[%s1 + $0x60] sm:$0xff]
      %v194 = vld [vmem:[%s1 + $0x68] sm:$0xff]
      %v195 = vld [vmem:[%s1 + $0x70] sm:$0xff]
      %v196 = vld [vmem:[%s1 + $0x78] sm:$0xff]
      %v197 = vld [vmem:[%s1 + $0x80] sm:$0xff]
      %v198 = vld [vmem:[%s1 + $0x88] sm:$0xff]
      %v199 = vld [vmem:[%s1 + $0x90] sm:$0xff]
      %v200 = vld [vmem:[%s1 + $0x98] sm:$0xff]
      %v201 = vld [vmem:[%s1 + $0xa0] sm:$0xff]
      %v202 = vld [vmem:[%s1 + $0xa8] sm:$0xff]
      %v203 = vld [vmem:[%s1 + $0xb0] sm:$0xff]
      %v204 = vld [vmem:[%s1 + $0xb8] sm:$0xff]
      %v205 = vld [vmem:[%s1 + $0xc0] sm:$0xff]
      %v206 = vld [vmem:[%s1 + $0xc8] sm:$0xff]
      %v207 = vld [vmem:[%s1 + $0xd0] sm:$0xff]
      %v208 = vld [vmem:[%s1 + $0xd8] sm:$0xff]
      %v209 = vld [vmem:[%s1 + $0xe0] sm:$0xff]
      %v210 = vld [vmem:[%s1 + $0xe8] sm:$0xff]
      %v211 = vld [vmem:[%s1 + $0xf0] sm:$0xff]
      %v212 = vld [vmem:[%s1 + $0xf8] sm:$0xff]
      %v213 = vld [vmem:[%s1 + $0x100] sm:$0xff]
      %v214 = vld [vmem:[%s1 + $0x108] sm:$0xff]
      %v215 = vld [vmem:[%s1 + $0x110] sm:$0xff]
      %v216 = vld [vmem:[%s1 + $0x118] sm:$0xff]
      %v217 = vld [vmem:[%s1 + $0x120] sm:$0xff]
      %v218 = vld [vmem:[%s1 + $0x128] sm:$0xff]
      %v219 = vld [vmem:[%s1 + $0x130] sm:$0xff]
      %v220 = vld [vmem:[%s1 + $0x138] sm:$0xff]
      %v221 = vld [vmem:[%s1 + $0x140] sm:$0xff]
      %v222 = vld [vmem:[%s1 + $0x148] sm:$0xff]
      %v223 = vld [vmem:[%s1 + $0x150] sm:$0xff]
      %v224 = vld [vmem:[%s1 + $0x158] sm:$0xff]
      %v225 = vld [vmem:[%s1 + $0x160] sm:$0xff]
      %v226 = vld [vmem:[%s1 + $0x168] sm:$0xff]
      %v227 = vld [vmem:[%s1 + $0x170] sm:$0xff]
      %v228 = vld [vmem:[%s1 + $0x178] sm:$0xff]
      %v229 = vld [vmem:[%s1 + $0x180] sm:$0xff]
      %v230 = vld [vmem:[%s1 + $0x188] sm:$0xff]
      %v231 = vld [vmem:[%s1 + $0x190] sm:$0xff]
      %v232 = vld [vmem:[%s1 + $0x198] sm:$0xff]
      %v233 = vld [vmem:[%s1 + $0x1a0] sm:$0xff]
      %v234 = vld [vmem:[%s1 + $0x1a8] sm:$0xff]
      %v235 = vld [vmem:[%s1 + $0x1b0] sm:$0xff]
      %v236 = vld [vmem:[%s1 + $0x1b8] sm:$0xff]
      %v237 = vld [vmem:[%s1 + $0x1c0] sm:$0xff]
      %v238 = vld [vmem:[%s1 + $0x1c8] sm:$0xff]
      %v239 = vld [vmem:[%s1 + $0x1d0] sm:$0xff]
      %v240 = vld [vmem:[%s1 + $0x1d8] sm:$0xff]
      %v241 = vld [vmem:[%s1 + $0x1e0] sm:$0xff]
      %v242 = vld [vmem:[%s1 + $0x1e8] sm:$0xff]
      %v243 = vld [vmem:[%s1 + $0x1f0] sm:$0xff]
      %v244 = vld [vmem:[%s1 + $0x1f8] sm:$0xff]
      %v245 = vld [vmem:[%s1 + $0x200] sm:$0xff]
      %v246 = vld [vmem:[%s1 + $0x208] sm:$0xff]
      %v247 = vld [vmem:[%s1 + $0x210] sm:$0xff]
      %v248 = vld [vmem:[%s1 + $0x218] sm:$0xff]
      %v249 = vld [vmem:[%s1 + $0x220] sm:$0xff]
      %v250 = vld [vmem:[%s1 + $0x228] sm:$0xff]
      %v251 = vld [vmem:[%s1 + $0x230] sm:$0xff]
      %v252 = vld [vmem:[%s1 + $0x238] sm:$0xff]
      %v253 = vld [vmem:[%s2] sm:$0x1]
      %v255 = vlaneseq
      %v256 = vshrl.u32 %v255, 7
      %v257 = vsub.s32 0, %v256
      %v258 = vrot.slane %v253, %v257
      %vm260 = vcmask 523264
      %v262 = vsel %vm260, %v175, 0
      %v265 = vsel %vm260, %v180, 0
      %267 = vmatprep.subr.mxu0 0.0
      %268 = vmatpush1.msra.mxu0 %v181
      %269 = vmatprep.subr.mxu0 0.0
      %270 = vmatpush1.msra.mxu0 %v182
      %271 = vmatprep.subr.mxu0 0.0
      %272 = vmatpush1.msra.mxu0 %v183
      %273 = vmatprep.subr.mxu0 0.0
      %274 = vmatpush1.msra.mxu0 %v184
      %275 = vmatprep.subr.mxu0 0.0
      %276 = vmatpush1.msra.mxu0 %v185
      %277 = vmatprep.subr.mxu0 0.0
      %278 = vmatpush1.msra.mxu0 %v186
      %279 = vmatprep.subr.mxu0 0.0
      %280 = vmatpush1.msra.mxu0 %v187
      %281 = vmatprep.subr.mxu0 0.0
      %282 = vmatpush1.msra.mxu0 %v188
      %283 = vmatprep.subr.mxu0 0.0
      %284 = vmatpush1.msra.mxu0 %v189
      %285 = vmatprep.subr.mxu0 0.0
      %286 = vmatpush1.msra.mxu0 %v190
      %287 = vmatprep.subr.mxu0 0.0
      %288 = vmatpush1.msra.mxu0 %v191
      %289 = vmatprep.subr.mxu0 0.0
      %290 = vmatpush1.msra.mxu0 %v192
      %291 = vmatprep.subr.mxu0 0.0
      %292 = vmatpush1.msra.mxu0 %v193
      %293 = vmatprep.subr.mxu0 0.0
      %294 = vmatpush1.msra.mxu0 %v194
      %295 = vmatprep.subr.mxu0 0.0
      %296 = vmatpush1.msra.mxu0 %v195
      %297 = vmatprep.subr.mxu0 0.0
      %298 = vmatpush1.msra.mxu0 %v196
      %299 = vmatprep.subr.mxu0 0.0
      %300 = vmatpush1.msra.mxu0 %v197
      %301 = vmatprep.subr.mxu0 0.0
      %302 = vmatpush1.msra.mxu0 %v198
      %303 = vmatprep.subr.mxu0 0.0
      %304 = vmatpush1.msra.mxu0 %v199
      %305 = vmatprep.subr.mxu0 0.0
      %306 = vmatpush1.msra.mxu0 %v200
      %307 = vmatprep.subr.mxu0 0.0
      %308 = vmatpush1.msra.mxu0 %v201
      %309 = vmatprep.subr.mxu0 0.0
      %310 = vmatpush1.msra.mxu0 %v202
      %311 = vmatprep.subr.mxu0 0.0
      %312 = vmatpush1.msra.mxu0 %v203
      %313 = vmatprep.subr.mxu0 0.0
      %314 = vmatpush1.msra.mxu0 %v204
      %315 = vmatprep.subr.mxu0 0.0
      %316 = vmatpush1.msra.mxu0 %v205
      %317 = vmatprep.subr.mxu0 0.0
      %318 = vmatpush1.msra.mxu0 %v206
      %319 = vmatprep.subr.mxu0 0.0
      %320 = vmatpush1.msra.mxu0 %v207
      %321 = vmatprep.subr.mxu0 0.0
      %322 = vmatpush1.msra.mxu0 %v208
      %323 = vmatprep.subr.mxu0 0.0
      %324 = vmatpush1.msra.mxu0 %v209
      %325 = vmatprep.subr.mxu0 0.0
      %326 = vmatpush1.msra.mxu0 %v210
      %327 = vmatprep.subr.mxu0 0.0
      %328 = vmatpush1.msra.mxu0 %v211
      %329 = vmatprep.subr.mxu0 0.0
      %330 = vmatpush1.msra.mxu0 %v212
      %331 = vmatprep.mubr.f32.mxu0 %v172
      %332 = vmatmul.mubr.f32.gmra.mrb[0].mxu0 %v171
      %v333 = vpop.f32.mrb[0].mxu0
      %v334 = vadd.f32 %v258, %v333
      %v335 = vpop.f32.mrb[0].mxu0
      %336 = vmatprep.mubr.f32.mxu0 %v177
      %337 = vmatmul.mubr.f32.gmra.mrb[0].mxu0 %v176
      %v338 = vpop.f32.mrb[0].mxu0
      %v339 = vadd.f32 %v258, %v338
      %v340 = vpop.f32.mrb[0].mxu0
      %341 = vdwg.mxu0
      %342 = vmatprep.subr.mxu0 0.0
      %343 = vmatpush1.msra.mxu0 %v213
      %344 = vmatprep.subr.mxu0 0.0
      %345 = vmatpush1.msra.mxu0 %v214
      %346 = vmatprep.subr.mxu0 0.0
      %347 = vmatpush1.msra.mxu0 %v215
      %348 = vmatprep.subr.mxu0 0.0
      %349 = vmatpush1.msra.mxu0 %v216
      %350 = vmatprep.subr.mxu0 0.0
      %351 = vmatpush1.msra.mxu0 %v217
      %352 = vmatprep.subr.mxu0 0.0
      %353 = vmatpush1.msra.mxu0 %v218
      %354 = vmatprep.subr.mxu0 0.0
      %355 = vmatpush1.msra.mxu0 %v219
      %356 = vmatprep.subr.mxu0 0.0
      %357 = vmatpush1.msra.mxu0 %v220
      %358 = vmatprep.subr.mxu0 0.0
      %359 = vmatpush1.msra.mxu0 %v221
      %360 = vmatprep.subr.mxu0 0.0
      %361 = vmatpush1.msra.mxu0 %v222
      %362 = vmatprep.subr.mxu0 0.0
      %363 = vmatpush1.msra.mxu0 %v223
      %364 = vmatprep.subr.mxu0 0.0
      %365 = vmatpush1.msra.mxu0 %v224
      %366 = vmatprep.subr.mxu0 0.0
      %367 = vmatpush1.msra.mxu0 %v225
      %368 = vmatprep.subr.mxu0 0.0
      %369 = vmatpush1.msra.mxu0 %v226
      %370 = vmatprep.subr.mxu0 0.0
      %371 = vmatpush1.msra.mxu0 %v227
      %372 = vmatprep.subr.mxu0 0.0
      %373 = vmatpush1.msra.mxu0 %v228
      %374 = vmatprep.subr.mxu0 0.0
      %375 = vmatpush1.msra.mxu0 %v229
      %376 = vmatprep.subr.mxu0 0.0
      %377 = vmatpush1.msra.mxu0 %v230
      %378 = vmatprep.subr.mxu0 0.0
      %379 = vmatpush1.msra.mxu0 %v231
      %380 = vmatprep.subr.mxu0 0.0
      %381 = vmatpush1.msra.mxu0 %v232
      %382 = vmatprep.subr.mxu0 0.0
      %383 = vmatpush1.msra.mxu0 %v233
      %384 = vmatprep.subr.mxu0 0.0
      %385 = vmatpush1.msra.mxu0 %v234
      %386 = vmatprep.subr.mxu0 0.0
      %387 = vmatpush1.msra.mxu0 %v235
      %388 = vmatprep.subr.mxu0 0.0
      %389 = vmatpush1.msra.mxu0 %v236
      %390 = vmatprep.subr.mxu0 0.0
      %391 = vmatpush1.msra.mxu0 %v237
      %392 = vmatprep.subr.mxu0 0.0
      %393 = vmatpush1.msra.mxu0 %v238
      %394 = vmatprep.subr.mxu0 0.0
      %395 = vmatpush1.msra.mxu0 %v239
      %396 = vmatprep.subr.mxu0 0.0
      %397 = vmatpush1.msra.mxu0 %v240
      %398 = vmatprep.subr.mxu0 0.0
      %399 = vmatpush1.msra.mxu0 %v241
      %400 = vmatprep.subr.mxu0 0.0
      %401 = vmatpush1.msra.mxu0 %v242
      %402 = vmatprep.subr.mxu0 0.0
      %403 = vmatpush1.msra.mxu0 %v243
      %404 = vmatprep.subr.mxu0 0.0
      %405 = vmatpush1.msra.mxu0 %v244
      %406 = vmatprep.mubr.f32.mxu0 %v174
      %407 = vmatmul.mubr.f32.gmra.mrb[0].mxu0 %v173
      %v408 = vpop.f32.mrb[0].mxu0
      %v409 = vadd.f32 %v334, %v408
      %v410 = vpop.f32.mrb[0].mxu0
      %411 = vmatprep.mubr.f32.mxu0 %v179
      %412 = vmatmul.mubr.f32.gmra.mrb[0].mxu0 %v178
      %v413 = vpop.f32.mrb[0].mxu0
      %v414 = vadd.f32 %v339, %v413
      %v415 = vpop.f32.mrb[0].mxu0
      %416 = vdwg.mxu0
      %417 = vmatprep.subr.mxu0 0.0
      %418 = vmatpush1.msra.mxu0 %v245
      %419 = vmatprep.subr.mxu0 0.0
      %420 = vmatpush1.msra.mxu0 %v246
      %421 = vmatprep.subr.mxu0 0.0
      %422 = vmatpush1.msra.mxu0 %v247
      %423 = vmatprep.subr.mxu0 0.0
      %424 = vmatpush1.msra.mxu0 %v248
      %425 = vmatprep.subr.mxu0 0.0
      %426 = vmatpush1.msra.mxu0 %v249
      %427 = vmatprep.subr.mxu0 0.0
      %428 = vmatpush1.msra.mxu0 %v250
      %429 = vmatprep.subr.mxu0 0.0
      %430 = vmatpush1.msra.mxu0 %v251
      %431 = vmatprep.subr.mxu0 0.0
      %432 = vmatpush1.msra.mxu0 %v252
      %433 = vmatprep.subr.mxu0 0.0
      %434 = vmatpush1.msra.mxu0 0.0
      %435 = vmatprep.subr.mxu0 0.0
      %436 = vmatpush1.msra.mxu0 0.0
      %437 = vmatprep.subr.mxu0 0.0
      %438 = vmatpush1.msra.mxu0 0.0
      %439 = vmatprep.subr.mxu0 0.0
      %440 = vmatpush1.msra.mxu0 0.0
      %441 = vmatprep.subr.mxu0 0.0
      %442 = vmatpush1.msra.mxu0 0.0
      %443 = vmatprep.subr.mxu0 0.0
      %444 = vmatpush1.msra.mxu0 0.0
      %445 = vmatprep.subr.mxu0 0.0
      %446 = vmatpush1.msra.mxu0 0.0
      %447 = vmatprep.subr.mxu0 0.0
      %448 = vmatpush1.msra.mxu0 0.0
      %449 = vmatprep.subr.mxu0 0.0
      %450 = vmatpush1.msra.mxu0 0.0
      %451 = vmatprep.subr.mxu0 0.0
      %452 = vmatpush1.msra.mxu0 0.0
      %453 = vmatprep.subr.mxu0 0.0
      %454 = vmatpush1.msra.mxu0 0.0
      %455 = vmatprep.subr.mxu0 0.0
      %456 = vmatpush1.msra.mxu0 0.0
      %457 = vmatprep.subr.mxu0 0.0
      %458 = vmatpush1.msra.mxu0 0.0
      %459 = vmatprep.subr.mxu0 0.0
      %460 = vmatpush1.msra.mxu0 0.0
      %461 = vmatprep.subr.mxu0 0.0
      %462 = vmatpush1.msra.mxu0 0.0
      %463 = vmatprep.subr.mxu0 0.0
      %464 = vmatpush1.msra.mxu0 0.0
      %465 = vmatprep.subr.mxu0 0.0
      %466 = vmatpush1.msra.mxu0 0.0
      %467 = vmatprep.subr.mxu0 0.0
      %468 = vmatpush1.msra.mxu0 0.0
      %469 = vmatprep.subr.mxu0 0.0
      %470 = vmatpush1.msra.mxu0 0.0
      %471 = vmatprep.subr.mxu0 0.0
      %472 = vmatpush1.msra.mxu0 0.0
      %473 = vmatprep.subr.mxu0 0.0
      %474 = vmatpush1.msra.mxu0 0.0
      %475 = vmatprep.subr.mxu0 0.0
      %476 = vmatpush1.msra.mxu0 0.0
      %477 = vmatprep.subr.mxu0 0.0
      %478 = vmatpush1.msra.mxu0 0.0
      %479 = vmatprep.subr.mxu0 0.0
      %480 = vmatpush1.msra.mxu0 0.0
      %481 = vmatprep.mubr.f32.mxu0 0.0
      %482 = vmatmul.mubr.f32.gmra.mrb[0].mxu0 %v262
      %v483 = vpop.f32.mrb[0].mxu0
      %v484 = vadd.f32 %v409, %v483
      %v485 = vpop.f32.mrb[0].mxu0
      %486 = vmatprep.mubr.f32.mxu0 0.0
      %487 = vmatmul.mubr.f32.gmra.mrb[0].mxu0 %v265
      %v488 = vpop.f32.mrb[0].mxu0
      %v489 = vadd.f32 %v414, %v488
      %v490 = vpop.f32.mrb[0].mxu0
      %491 = vdwg.mxu0
      %v492 = vadd.f32 %v484, %v489
      %v493 = vrot.slane %v492, 4
      %v494 = vadd.f32 %v492, %v493
      %v495 = vrot.slane %v494, 2
      %v496 = vadd.f32 %v494, %v495
      %v497 = vrot.slane %v496, 1
      %v498 = vadd.f32 %v496, %v497
      %v499 = vrcp.pop 16.0
      %v500 = vmul.f32 %v498, %v499
      %v501 = vsub.f32 %v484, %v500
      %v502 = vsub.f32 %v489, %v500
      %v503 = vmul.f32 %v501, %v501
      %v504 = vmul.f32 %v502, %v502
      %v505 = vadd.f32 %v503, %v504
      %v506 = vrot.slane %v505, 4
      %v507 = vadd.f32 %v505, %v506
      %v508 = vrot.slane %v507, 2
      %v509 = vadd.f32 %v507, %v508
      %v510 = vrot.slane %v509, 1
      %v511 = vadd.f32 %v509, %v510
      %v512 = vmul.f32 %v511, %v499
      %v513 = vadd.f32 %v512, 1e-05
      %v514 = vrsqrt.pop %v513
      %v515 = vmul.f32 %v501, %v514
      %v516 = vmul.f32 %v502, %v514
      %vm517 = vcmp.ge.f32.partialorder %v515, 0.0
      %vm518 = vcmp.ge.f32.partialorder %v516, 0.0
      %v519 = vmul.f32 %v515, 0.1
      %v520 = vmul.f32 %v516, 0.1
      %v521 = vsel %vm517, %v515, %v519
      %v522 = vsel %vm518, %v516, %v520
      %523 = vst [vmem:[%s170] sm:$0xff] %v521
      %524 = vst [vmem:[%s170 + $0x8] sm:$0xff] %v522
      %p525 = scmp.lt.s32.totalorder %s14, 1
      %s526 = scalar_select %p525, %s14, 1
      %s527 = smul.addr %s526, 2
      %s528 = smul.addr %s527, 8
      %s529 = scalar_lea.vmem %s3, %s528
      // Predicated region
      $region33: #{unet_forward.20} parent=31 // pred_check
        %p530 = pneg %p100
      $region34: #{unet_forward.20} parent=31 // pred_check_branch
        %532 = sbr.rel (%p530) target = $region36
      $region35: #{unet_forward.20} parent=31 // pred_region
        _
      $region36: #{unet_forward.20} parent=31 // pred_fallthru
        _
    $region32: #{unet_forward.20} parent=5 // pred_fallthru
      _
    %p533 = scmp.le.s32.totalorder 2, %s9
    // Predicated region
    $region37: #{unet_forward.20} parent=5 // pred_check
      %p534 = pneg %p533
    $region38: #{unet_forward.20} parent=5 // pred_check_branch
      %536 = sbr.rel (%p534) target = $region40
    $region39: #{unet_forward.20} parent=5 // pred_region
      %s537 = ssub.s32 %s9, 2
      // Predicated region
      $region41: #{unet_forward.20} parent=39 // pred_check
        %p538 = pneg %p106
      $region42: #{unet_forward.20} parent=39 // pred_check_branch
        %540 = sbr.rel (%p538) target = $region44
      $region43: #{unet_forward.20} parent=39 // pred_region
        %p541 = scmp.lt.s32.totalorder %s15, 1
        %s542 = scalar_select %p541, %s15, 1
        %s543 = smul.addr %s542, 2
        %s544 = smul.addr %s543, 8
        %s545 = scalar_lea.vmem %s3, %s544
      $region44: #{unet_forward.20} parent=39 // pred_fallthru
        _
    $region40: #{unet_forward.20} parent=5 // pred_fallthru
      _
  $region6: #{unet_forward.20} parent=0 // loop_footer
    %s13 = sadd.s32 1, %s9
  $region7: #{unet_forward.20} parent=0 // loop_footer_branch
    %8 = sbr.rel target = $region3
  $region8: #{unet_forward.20} parent=0 // loop_exit
    _

// kernel: unet_forward.21
$region0: #{unet_forward.21}
  #allocation0 [shape = 'u32[]', space=smem, size = 0x4, offset = 0x4, fixed_abs, tag = 'smem constant byte address 0x4 - core index']
  #allocation1 [shape = 'u32[144,128]{1,0:T(1,128)}', space=vmem, size = 0x12000, scoped, tag = 'internal scratch']
  %s0 = inlined_call_operand.vmem [shape: f32[2,16,1152], index: 0, kind: input, shape index: {}]
  %s1 = inlined_call_operand.vmem [shape: f32[1152,128], index: 1, kind: input, shape index: {}]
  %s2 = inlined_call_operand.vmem [shape: f32[1,128], index: 2, kind: input, shape index: {}]
  %s3 = inlined_call_operand.vmem [shape: f32[2,16,128], index: 3, kind: output, shape index: {}]
  %s4 = sld [smem:[#allocation0]]
  $region45: #{unet_forward.21} parent=0
    _
  %s6 = ssub.s32 1, %s4
  %s7 = scalar_select 0, %s6, %s4
  loop: start=0, step=1, limit=4
  $region2: #{unet_forward.21} parent=0 // loop_pre_header
    _
  $region3: #{unet_forward.21} parent=0 // loop_header
    %s9 = sphi 0, %s13
    %p10 = scmp.ge.s32.totalorder %s9, 4
    %s19 = sphi 0, %s21
    %s22 = sphi 0, %s19
    %s23 = sphi 0, %s22
    %s39 = sphi 0, %s23
    %s43 = sphi 0, %s43
    %s45 = sphi 0, %s43
    %s46 = sphi 0, %s45
    %s60 = sphi 0, %s46
    %s64 = sphi 0, %s64
    %s66 = sphi 0, %s64
    %s67 = sphi 0, %s66
    %s81 = sphi 0, %s67
    %s87 = sphi 0, %s89
    %s90 = sphi 0, %s87
    %s91 = sphi 0, %s90
    %s107 = sphi 0, %s91
  $region4: #{unet_forward.21} parent=0 // loop_header_branch
    %12 = sbr.rel (%p10) target = $region8
  $region5: #{unet_forward.21} parent=0 // loop_body
    %s14 = ssub.s32 %s9, 1
    %s15 = ssub.s32 %s9, 2
    %s16 = sadd.s32 %s9, 1
    %s17 = ssub.s32 %s9, %s16
    %p18 = scmp.eq.s32.totalorder %s17, 0
    %s20 = sadd.s32 %s19, 1
    %s21 = scalar_select %p18, %s19, %s20
    %p24 = pneg %p18
    %p25 = scmp.eq.s32.totalorder %s9, 1
    %p26 = por %p24, %p25
    %p27 = scmp.ne.s32.totalorder %s19, %s22
    %p28 = scmp.eq.s32.totalorder %s9, 0
    %p29 = por %p27, %p28
    %p30 = scmp.ne.s32.totalorder %s19, %s22
    %p31 = scmp.eq.s32.totalorder %s14, 1
    %p32 = por %p30, %p31
    %p33 = scmp.ne.s32.totalorder %s22, %s23
    %p34 = scmp.eq.s32.totalorder %s14, 0
    %p35 = por %p33, %p34
    %p36 = scmp.ne.s32.totalorder %s22, %s23
    %p37 = scmp.eq.s32.totalorder %s15, 1
    %p38 = por %p36, %p37
    %p40 = scmp.ne.s32.totalorder %s23, %s39
    %p41 = scmp.eq.s32.totalorder %s15, 0
    %p42 = por %p40, %p41
    %s44 = sadd.s32 %s43, 1
    %p47 = scmp.eq.s32.totalorder %s9, 1
    %p48 = scmp.ne.s32.totalorder %s43, %s45
    %p49 = scmp.eq.s32.totalorder %s9, 0
    %p50 = por %p48, %p49
    %p51 = scmp.ne.s32.totalorder %s43, %s45
    %p52 = scmp.eq.s32.totalorder %s14, 1
    %p53 = por %p51, %p52
    %p54 = scmp.ne.s32.totalorder %s45, %s46
    %p55 = scmp.eq.s32.totalorder %s14, 0
    %p56 = por %p54, %p55
    %p57 = scmp.ne.s32.totalorder %s45, %s46
    %p58 = scmp.eq.s32.totalorder %s15, 1
    %p59 = por %p57, %p58
    %p61 = scmp.ne.s32.totalorder %s46, %s60
    %p62 = scmp.eq.s32.totalorder %s15, 0
    %p63 = por %p61, %p62
    %s65 = sadd.s32 %s64, 1
    %p68 = scmp.eq.s32.totalorder %s9, 1
    %p69 = scmp.ne.s32.totalorder %s64, %s66
    %p70 = scmp.eq.s32.totalorder %s9, 0
    %p71 = por %p69, %p70
    %p72 = scmp.ne.s32.totalorder %s64, %s66
    %p73 = scmp.eq.s32.totalorder %s14, 1
    %p74 = por %p72, %p73
    %p75 = scmp.ne.s32.totalorder %s66, %s67
    %p76 = scmp.eq.s32.totalorder %s14, 0
    %p77 = por %p75, %p76
    %p78 = scmp.ne.s32.totalorder %s66, %s67
    %p79 = scmp.eq.s32.totalorder %s15, 1
    %p80 = por %p78, %p79
    %p82 = scmp.ne.s32.totalorder %s67, %s81
    %p83 = scmp.eq.s32.totalorder %s15, 0
    %p84 = por %p82, %p83
    %s85 = ssub.s32 %s9, %s16
    %p86 = scmp.eq.s32.totalorder %s85, 0
    %s88 = sadd.s32 %s87, 1
    %s89 = scalar_select %p86, %s87, %s88
    %p92 = pneg %p86
    %p93 = scmp.eq.s32.totalorder %s9, 1
    %p94 = por %p92, %p93
    %p95 = scmp.ne.s32.totalorder %s87, %s90
    %p96 = scmp.eq.s32.totalorder %s9, 0
    %p97 = por %p95, %p96
    %p98 = scmp.ne.s32.totalorder %s87, %s90
    %p99 = scmp.eq.s32.totalorder %s14, 1
    %p100 = por %p98, %p99
    %p101 = scmp.ne.s32.totalorder %s90, %s91
    %p102 = scmp.eq.s32.totalorder %s14, 0
    %p103 = por %p101, %p102
    %p104 = scmp.ne.s32.totalorder %s90, %s91
    %p105 = scmp.eq.s32.totalorder %s15, 1
    %p106 = por %p104, %p105
    %p108 = scmp.ne.s32.totalorder %s91, %s107
    %p109 = scmp.eq.s32.totalorder %s15, 0
    %p110 = por %p108, %p109
    %p111 = scmp.le.s32.totalorder 1, %s9
    %p112 = scmp.lt.s32.totalorder %s9, 3
    %p113 = pnand %p111, %p112
    %p114 = pneg %p113
    // Predicated region
    $region9: #{unet_forward.21} parent=5 // pred_check
      _
    $region10: #{unet_forward.21} parent=5 // pred_check_branch
      %116 = sbr.rel (%p113) target = $region12
    $region11: #{unet_forward.21} parent=5 // pred_region
      %s117 = ssub.s32 %s9, 1
      // Predicated region
      $region13: #{unet_forward.21} parent=11 // pred_check
        %p118 = pneg %p56
      $region14: #{unet_forward.21} parent=11 // pred_check_branch
        %120 = sbr.rel (%p118) target = $region16
      $region15: #{unet_forward.21} parent=11 // pred_region
        _
      $region16: #{unet_forward.21} parent=11 // pred_fallthru
        _
      // Predicated region
      $region17: #{unet_forward.21} parent=11 // pred_check
        %p121 = pneg %p77
      $region18: #{unet_forward.21} parent=11 // pred_check_branch
        %123 = sbr.rel (%p121) target = $region20
      $region19: #{unet_forward.21} parent=11 // pred_region
        _
      $region20: #{unet_forward.21} parent=11 // pred_fallthru
        _
    $region12: #{unet_forward.21} parent=5 // pred_fallthru
      _
    %p124 = scmp.lt.s32.totalorder %s9, 2
    // Predicated region
    $region21: #{unet_forward.21} parent=5 // pred_check
      %p125 = pneg %p124
    $region22: #{unet_forward.21} parent=5 // pred_check_branch
      %127 = sbr.rel (%p125) target = $region24
    $region23: #{unet_forward.21} parent=5 // pred_region
      // Predicated region
      $region25: #{unet_forward.21} parent=23 // pred_check
        %p128 = pneg %p29
      $region26: #{unet_forward.21} parent=23 // pred_check_branch
        %130 = sbr.rel (%p128) target = $region28
      $region27: #{unet_forward.21} parent=23 // pred_region
        %p131 = scmp.lt.s32.totalorder %s9, 1
        %s132 = scalar_select %p131, %s9, 1
        %s133 = smul.addr %s132, 18
        %s134 = smul.addr %s133, 8
        %s135 = scalar_lea.vmem %s0, %s134
      $region28: #{unet_forward.21} parent=23 // pred_fallthru
        _
    $region24: #{unet_forward.21} parent=5 // pred_fallthru
      _
    %p136 = scmp.le.s32.totalorder 1, %s9
    %p137 = scmp.lt.s32.totalorder %s9, 3
    %p138 = pnand %p136, %p137
    %p139 = pneg %p138
    // Predicated region
    $region29: #{unet_forward.21} parent=5 // pred_check
      _
    $region30: #{unet_forward.21} parent=5 // pred_check_branch
      %141 = sbr.rel (%p138) target = $region32
    $region31: #{unet_forward.21} parent=5 // pred_region
      %s142 = ssub.s32 %s9, 1
      %p143 = scmp.lt.s32.totalorder %s14, 1
      %s144 = scalar_select %p143, %s14, 1
      %s145 = smul.addr %s144, 18
      %s146 = smul.addr %s145, 8
      %s147 = scalar_lea.vmem %s0, %s146
      %p148 = pneg %p35
      %p149 = pneg %p32
      %p150 = pneg %p56
      %p151 = pneg %p53
      %p152 = pneg %p77
      %p153 = pneg %p74
      %p154 = pneg %p103
      %p155 = pneg %p100
      %p156 = scmp.lt.s32.totalorder %s14, 1
      %s157 = scalar_select %p156, %s14, 1
      %s158 = smul.addr %s157, 2
      %s159 = smul.addr %s158, 8
      %s160 = scalar_lea.vmem %s3, %s159
      %p161 = scmp.lt.s32.totalorder %s14, 1
      %s162 = scalar_select %p161, %s14, 1
      %s163 = smul.addr %s162, 18
      %s164 = smul.addr %s163, 8
      %s165 = scalar_lea.vmem %s0, %s164
      %p166 = scmp.lt.s32.totalorder %s14, 1
      %s167 = scalar_select %p166, %s14, 1
      %s168 = smul.addr %s167, 2
      %s169 = smul.addr %s168, 8
      %s170 = scalar_lea.vmem %s3, %s169
      %v171 = vld [vmem:[%s165] sm:$0xff]
      %v172 = vld [vmem:[%s165 + $0x8] sm:$0xff]
      %v173 = vld [vmem:[%s165 + $0x10] sm:$0xff]
      %v174 = vld [vmem:[%s165 + $0x18] sm:$0xff]
      %v175 = vld [vmem:[%s165 + $0x20] sm:$0xff]
      %v176 = vld [vmem:[%s165 + $0x28] sm:$0xff]
      %v177 = vld [vmem:[%s165 + $0x30] sm:$0xff]
      %v178 = vld [vmem:[%s165 + $0x38] sm:$0xff]
      %v179 = vld [vmem:[%s165 + $0x40] sm:$0xff]
      %v180 = vld [vmem:[%s165 + $0x48] sm:$0xff]
      %v181 = vld [vmem:[%s165 + $0x50] sm:$0xff]
      %v182 = vld [vmem:[%s165 + $0x58] sm:$0xff]
      %v183 = vld [vmem:[%s165 + $0x60] sm:$0xff]
      %v184 = vld [vmem:[%s165 + $0x68] sm:$0xff]
      %v185 = vld [vmem:[%s165 + $0x70] sm:$0xff]
      %v186 = vld [vmem:[%s165 + $0x78] sm:$0xff]
      %v187 = vld [vmem:[%s165 + $0x80] sm:$0xff]
      %v188 = vld [vmem:[%s165 + $0x88] sm:$0xff]
      %v189 = vld [vmem:[%s1] sm:$0xff]
      %v190 = vld [vmem:[%s1 + $0x8] sm:$0xff]
      %v191 = vld [vmem:[%s1 + $0x10] sm:$0xff]
      %v192 = vld [vmem:[%s1 + $0x18] sm:$0xff]
      %v193 = vld [vmem:[%s1 + $0x20] sm:$0xff]
      %v194 = vld [vmem:[%s1 + $0x28] sm:$0xff]
      %v195 = vld [vmem:[%s1 + $0x30] sm:$0xff]
      %v196 = vld [vmem:[%s1 + $0x38] sm:$0xff]
      %v197 = vld [vmem:[%s1 + $0x40] sm:$0xff]
      %v198 = vld [vmem:[%s1 + $0x48] sm:$0xff]
      %v199 = vld [vmem:[%s1 + $0x50] sm:$0xff]
      %v200 = vld [vmem:[%s1 + $0x58] sm:$0xff]
      %v201 = vld [vmem:[%s1 + $0x60] sm:$0xff]
      %v202 = vld [vmem:[%s1 + $0x68] sm:$0xff]
      %v203 = vld [vmem:[%s1 + $0x70] sm:$0xff]
      %v204 = vld [vmem:[%s1 + $0x78] sm:$0xff]
      %v205 = vld [vmem:[%s1 + $0x80] sm:$0xff]
      %v206 = vld [vmem:[%s1 + $0x88] sm:$0xff]
      %v207 = vld [vmem:[%s1 + $0x90] sm:$0xff]
      %v208 = vld [vmem:[%s1 + $0x98] sm:$0xff]
      %v209 = vld [vmem:[%s1 + $0xa0] sm:$0xff]
      %v210 = vld [vmem:[%s1 + $0xa8] sm:$0xff]
      %v211 = vld [vmem:[%s1 + $0xb0] sm:$0xff]
      %v212 = vld [vmem:[%s1 + $0xb8] sm:$0xff]
      %v213 = vld [vmem:[%s1 + $0xc0] sm:$0xff]
      %v214 = vld [vmem:[%s1 + $0xc8] sm:$0xff]
      %v215 = vld [vmem:[%s1 + $0xd0] sm:$0xff]
      %v216 = vld [vmem:[%s1 + $0xd8] sm:$0xff]
      %v217 = vld [vmem:[%s1 + $0xe0] sm:$0xff]
      %v218 = vld [vmem:[%s1 + $0xe8] sm:$0xff]
      %v219 = vld [vmem:[%s1 + $0xf0] sm:$0xff]
      %v220 = vld [vmem:[%s1 + $0xf8] sm:$0xff]
      %v221 = vld [vmem:[%s1 + $0x100] sm:$0xff]
      %v222 = vld [vmem:[%s1 + $0x108] sm:$0xff]
      %v223 = vld [vmem:[%s1 + $0x110] sm:$0xff]
      %v224 = vld [vmem:[%s1 + $0x118] sm:$0xff]
      %v225 = vld [vmem:[%s1 + $0x120] sm:$0xff]
      %v226 = vld [vmem:[%s1 + $0x128] sm:$0xff]
      %v227 = vld [vmem:[%s1 + $0x130] sm:$0xff]
      %v228 = vld [vmem:[%s1 + $0x138] sm:$0xff]
      %v229 = vld [vmem:[%s1 + $0x140] sm:$0xff]
      %v230 = vld [vmem:[%s1 + $0x148] sm:$0xff]
      %v231 = vld [vmem:[%s1 + $0x150] sm:$0xff]
      %v232 = vld [vmem:[%s1 + $0x158] sm:$0xff]
      %v233 = vld [vmem:[%s1 + $0x160] sm:$0xff]
      %v234 = vld [vmem:[%s1 + $0x168] sm:$0xff]
      %v235 = vld [vmem:[%s1 + $0x170] sm:$0xff]
      %v236 = vld [vmem:[%s1 + $0x178] sm:$0xff]
      %v237 = vld [vmem:[%s1 + $0x180] sm:$0xff]
      %v238 = vld [vmem:[%s1 + $0x188] sm:$0xff]
      %v239 = vld [vmem:[%s1 + $0x190] sm:$0xff]
      %v240 = vld [vmem:[%s1 + $0x198] sm:$0xff]
      %v241 = vld [vmem:[%s1 + $0x1a0] sm:$0xff]
      %v242 = vld [vmem:[%s1 + $0x1a8] sm:$0xff]
      %v243 = vld [vmem:[%s1 + $0x1b0] sm:$0xff]
      %v244 = vld [vmem:[%s1 + $0x1b8] sm:$0xff]
      %v245 = vld [vmem:[%s1 + $0x1c0] sm:$0xff]
      %v246 = vld [vmem:[%s1 + $0x1c8] sm:$0xff]
      %v247 = vld [vmem:[%s1 + $0x1d0] sm:$0xff]
      %v248 = vld [vmem:[%s1 + $0x1d8] sm:$0xff]
      %v249 = vld [vmem:[%s1 + $0x1e0] sm:$0xff]
      %v250 = vld [vmem:[%s1 + $0x1e8] sm:$0xff]
      %v251 = vld [vmem:[%s1 + $0x1f0] sm:$0xff]
      %v252 = vld [vmem:[%s1 + $0x1f8] sm:$0xff]
      %v253 = vld [vmem:[%s1 + $0x200] sm:$0xff]
      %v254 = vld [vmem:[%s1 + $0x208] sm:$0xff]
      %v255 = vld [vmem:[%s1 + $0x210] sm:$0xff]
      %v256 = vld [vmem:[%s1 + $0x218] sm:$0xff]
      %v257 = vld [vmem:[%s1 + $0x220] sm:$0xff]
      %v258 = vld [vmem:[%s1 + $0x228] sm:$0xff]
      %v259 = vld [vmem:[%s1 + $0x230] sm:$0xff]
      %v260 = vld [vmem:[%s1 + $0x238] sm:$0xff]
      %v261 = vld [vmem:[%s1 + $0x240] sm:$0xff]
      %v262 = vld [vmem:[%s1 + $0x248] sm:$0xff]
      %v263 = vld [vmem:[%s1 + $0x250] sm:$0xff]
      %v264 = vld [vmem:[%s1 + $0x258] sm:$0xff]
      %v265 = vld [vmem:[%s1 + $0x260] sm:$0xff]
      %v266 = vld [vmem:[%s1 + $0x268] sm:$0xff]
      %v267 = vld [vmem:[%s1 + $0x270] sm:$0xff]
      %v268 = vld [vmem:[%s1 + $0x278] sm:$0xff]
      %v269 = vld [vmem:[%s1 + $0x280] sm:$0xff]
      %v270 = vld [vmem:[%s1 + $0x288] sm:$0xff]
      %v271 = vld [vmem:[%s1 + $0x290] sm:$0xff]
      %v272 = vld [vmem:[%s1 + $0x298] sm:$0xff]
      %v273 = vld [vmem:[%s1 + $0x2a0] sm:$0xff]
      %v274 = vld [vmem:[%s1 + $0x2a8] sm:$0xff]
      %v275 = vld [vmem:[%s1 + $0x2b0] sm:$0xff]
      %v276 = vld [vmem:[%s1 + $0x2b8] sm:$0xff]
      %v277 = vld [vmem:[%s1 + $0x2c0] sm:$0xff]
      %v278 = vld [vmem:[%s1 + $0x2c8] sm:$0xff]
      %v279 = vld [vmem:[%s1 + $0x2d0] sm:$0xff]
      %v280 = vld [vmem:[%s1 + $0x2d8] sm:$0xff]
      %v281 = vld [vmem:[%s1 + $0x2e0] sm:$0xff]
      %v282 = vld [vmem:[%s1 + $0x2e8] sm:$0xff]
      %v283 = vld [vmem:[%s1 + $0x2f0] sm:$0xff]
      %v284 = vld [vmem:[%s1 + $0x2f8] sm:$0xff]
      %v285 = vld [vmem:[%s1 + $0x300] sm:$0xff]
      %v286 = vld [vmem:[%s1 + $0x308] sm:$0xff]
      %v287 = vld [vmem:[%s1 + $0x310] sm:$0xff]
      %v288 = vld [vmem:[%s1 + $0x318] sm:$0xff]
      %v289 = vld [vmem:[%s1 + $0x320] sm:$0xff]
      %v290 = vld [vmem:[%s1 + $0x328] sm:$0xff]
      %v291 = vld [vmem:[%s1 + $0x330] sm:$0xff]
      %v292 = vld [vmem:[%s1 + $0x338] sm:$0xff]
      %v293 = vld [vmem:[%s1 + $0x340] sm:$0xff]
      %v294 = vld [vmem:[%s1 + $0x348] sm:$0xff]
      %v295 = vld [vmem:[%s1 + $0x350] sm:$0xff]
      %v296 = vld [vmem:[%s1 + $0x358] sm:$0xff]
      %v297 = vld [vmem:[%s1 + $0x360] sm:$0xff]
      %v298 = vld [vmem:[%s1 + $0x368] sm:$0xff]
      %v299 = vld [vmem:[%s1 + $0x370] sm:$0xff]
      %v300 = vld [vmem:[%s1 + $0x378] sm:$0xff]
      %v301 = vld [vmem:[%s1 + $0x380] sm:$0xff]
      %v302 = vld [vmem:[%s1 + $0x388] sm:$0xff]
      %v303 = vld [vmem:[%s1 + $0x390] sm:$0xff]
      %v304 = vld [vmem:[%s1 + $0x398] sm:$0xff]
      %v305 = vld [vmem:[%s1 + $0x3a0] sm:$0xff]
      %v306 = vld [vmem:[%s1 + $0x3a8] sm:$0xff]
      %v307 = vld [vmem:[%s1 + $0x3b0] sm:$0xff]
      %v308 = vld [vmem:[%s1 + $0x3b8] sm:$0xff]
      %v309 = vld [vmem:[%s1 + $0x3c0] sm:$0xff]
      %v310 = vld [vmem:[%s1 + $0x3c8] sm:$0xff]
      %v311 = vld [vmem:[%s1 + $0x3d0] sm:$0xff]
      %v312 = vld [vmem:[%s1 + $0x3d8] sm:$0xff]
      %v313 = vld [vmem:[%s1 + $0x3e0] sm:$0xff]
      %v314 = vld [vmem:[%s1 + $0x3e8] sm:$0xff]
      %v315 = vld [vmem:[%s1 + $0x3f0] sm:$0xff]
      %v316 = vld [vmem:[%s1 + $0x3f8] sm:$0xff]
      %v317 = vld [vmem:[%s1 + $0x400] sm:$0xff]
      %v318 = vld [vmem:[%s1 + $0x408] sm:$0xff]
      %v319 = vld [vmem:[%s1 + $0x410] sm:$0xff]
      %v320 = vld [vmem:[%s1 + $0x418] sm:$0xff]
      %v321 = vld [vmem:[%s1 + $0x420] sm:$0xff]
      %v322 = vld [vmem:[%s1 + $0x428] sm:$0xff]
      %v323 = vld [vmem:[%s1 + $0x430] sm:$0xff]
      %v324 = vld [vmem:[%s1 + $0x438] sm:$0xff]
      %v325 = vld [vmem:[%s1 + $0x440] sm:$0xff]
      %v326 = vld [vmem:[%s1 + $0x448] sm:$0xff]
      %v327 = vld [vmem:[%s1 + $0x450] sm:$0xff]
      %v328 = vld [vmem:[%s1 + $0x458] sm:$0xff]
      %v329 = vld [vmem:[%s1 + $0x460] sm:$0xff]
      %v330 = vld [vmem:[%s1 + $0x468] sm:$0xff]
      %v331 = vld [vmem:[%s1 + $0x470] sm:$0xff]
      %v332 = vld [vmem:[%s1 + $0x478] sm:$0xff]
      %v333 = vld [vmem:[%s2] sm:$0x1]
      %v335 = vlaneseq
      %v336 = vshrl.u32 %v335, 7
      %v337 = vsub.s32 0, %v336
      %v338 = vrot.slane %v333, %v337
      %340 = vmatprep.subr.mxu0 0.0
      %341 = vmatpush1.msra.mxu0 %v189
      %342 = vmatprep.subr.mxu0 0.0
      %343 = vmatpush1.msra.mxu0 %v190
      %344 = vmatprep.subr.mxu0 0.0
      %345 = vmatpush1.msra.mxu0 %v191
      %346 = vmatprep.subr.mxu0 0.0
      %347 = vmatpush1.msra.mxu0 %v192
      %348 = vmatprep.subr.mxu0 0.0
      %349 = vmatpush1.msra.mxu0 %v193
      %350 = vmatprep.subr.mxu0 0.0
      %351 = vmatpush1.msra.mxu0 %v194
      %352 = vmatprep.subr.mxu0 0.0
      %353 = vmatpush1.msra.mxu0 %v195
      %354 = vmatprep.subr.mxu0 0.0
      %355 = vmatpush1.msra.mxu0 %v196
      %356 = vmatprep.subr.mxu0 0.0
      %357 = vmatpush1.msra.mxu0 %v197
      %358 = vmatprep.subr.mxu0 0.0
      %359 = vmatpush1.msra.mxu0 %v198
      %360 = vmatprep.subr.mxu0 0.0
      %361 = vmatpush1.msra.mxu0 %v199
      %362 = vmatprep.subr.mxu0 0.0
      %363 = vmatpush1.msra.mxu0 %v200
      %364 = vmatprep.subr.mxu0 0.0
      %365 = vmatpush1.msra.mxu0 %v201
      %366 = vmatprep.subr.mxu0 0.0
      %367 = vmatpush1.msra.mxu0 %v202
      %368 = vmatprep.subr.mxu0 0.0
      %369 = vmatpush1.msra.mxu0 %v203
      %370 = vmatprep.subr.mxu0 0.0
      %371 = vmatpush1.msra.mxu0 %v204
      %372 = vmatprep.subr.mxu0 0.0
      %373 = vmatpush1.msra.mxu0 %v205
      %374 = vmatprep.subr.mxu0 0.0
      %375 = vmatpush1.msra.mxu0 %v206
      %376 = vmatprep.subr.mxu0 0.0
      %377 = vmatpush1.msra.mxu0 %v207
      %378 = vmatprep.subr.mxu0 0.0
      %379 = vmatpush1.msra.mxu0 %v208
      %380 = vmatprep.subr.mxu0 0.0
      %381 = vmatpush1.msra.mxu0 %v209
      %382 = vmatprep.subr.mxu0 0.0
      %383 = vmatpush1.msra.mxu0 %v210
      %384 = vmatprep.subr.mxu0 0.0
      %385 = vmatpush1.msra.mxu0 %v211
      %386 = vmatprep.subr.mxu0 0.0
      %387 = vmatpush1.msra.mxu0 %v212
      %388 = vmatprep.subr.mxu0 0.0
      %389 = vmatpush1.msra.mxu0 %v213
      %390 = vmatprep.subr.mxu0 0.0
      %391 = vmatpush1.msra.mxu0 %v214
      %392 = vmatprep.subr.mxu0 0.0
      %393 = vmatpush1.msra.mxu0 %v215
      %394 = vmatprep.subr.mxu0 0.0
      %395 = vmatpush1.msra.mxu0 %v216
      %396 = vmatprep.subr.mxu0 0.0
      %397 = vmatpush1.msra.mxu0 %v217
      %398 = vmatprep.subr.mxu0 0.0
      %399 = vmatpush1.msra.mxu0 %v218
      %400 = vmatprep.subr.mxu0 0.0
      %401 = vmatpush1.msra.mxu0 %v219
      %402 = vmatprep.subr.mxu0 0.0
      %403 = vmatpush1.msra.mxu0 %v220
      %404 = vmatprep.mubr.f32.mxu0 %v172
      %405 = vmatmul.mubr.f32.gmra.mrb[0].mxu0 %v171
      %v406 = vpop.f32.mrb[0].mxu0
      %v407 = vadd.f32 %v338, %v406
      %v408 = vpop.f32.mrb[0].mxu0
      %409 = vmatprep.mubr.f32.mxu0 %v181
      %410 = vmatmul.mubr.f32.gmra.mrb[0].mxu0 %v180
      %v411 = vpop.f32.mrb[0].mxu0
      %v412 = vadd.f32 %v338, %v411
      %v413 = vpop.f32.mrb[0].mxu0
      %414 = vdwg.mxu0
      %415 = vmatprep.subr.mxu0 0.0
      %416 = vmatpush1.msra.mxu0 %v221
      %417 = vmatprep.subr.mxu0 0.0
      %418 = vmatpush1.msra.mxu0 %v222
      %419 = vmatprep.subr.mxu0 0.0
      %420 = vmatpush1.msra.mxu0 %v223
      %421 = vmatprep.subr.mxu0 0.0
      %422 = vmatpush1.msra.mxu0 %v224
      %423 = vmatprep.subr.mxu0 0.0
      %424 = vmatpush1.msra.mxu0 %v225
      %425 = vmatprep.subr.mxu0 0.0
      %426 = vmatpush1.msra.mxu0 %v226
      %427 = vmatprep.subr.mxu0 0.0
      %428 = vmatpush1.msra.mxu0 %v227
      %429 = vmatprep.subr.mxu0 0.0
      %430 = vmatpush1.msra.mxu0 %v228
      %431 = vmatprep.subr.mxu0 0.0
      %432 = vmatpush1.msra.mxu0 %v229
      %433 = vmatprep.subr.mxu0 0.0
      %434 = vmatpush1.msra.mxu0 %v230
      %435 = vmatprep.subr.mxu0 0.0
      %436 = vmatpush1.msra.mxu0 %v231
      %437 = vmatprep.subr.mxu0 0.0
      %438 = vmatpush1.msra.mxu0 %v232
      %439 = vmatprep.subr.mxu0 0.0
      %440 = vmatpush1.msra.mxu0 %v233
      %441 = vmatprep.subr.mxu0 0.0
      %442 = vmatpush1.msra.mxu0 %v234
      %443 = vmatprep.subr.mxu0 0.0
      %444 = vmatpush1.msra.mxu0 %v235
      %445 = vmatprep.subr.mxu0 0.0
      %446 = vmatpush1.msra.mxu0 %v236
      %447 = vmatprep.subr.mxu0 0.0
      %448 = vmatpush1.msra.mxu0 %v237
      %449 = vmatprep.subr.mxu0 0.0
      %450 = vmatpush1.msra.mxu0 %v238
      %451 = vmatprep.subr.mxu0 0.0
      %452 = vmatpush1.msra.mxu0 %v239
      %453 = vmatprep.subr.mxu0 0.0
      %454 = vmatpush1.msra.mxu0 %v240
      %455 = vmatprep.subr.mxu0 0.0
      %456 = vmatpush1.msra.mxu0 %v241
      %457 = vmatprep.subr.mxu0 0.0
      %458 = vmatpush1.msra.mxu0 %v242
      %459 = vmatprep.subr.mxu0 0.0
      %460 = vmatpush1.msra.mxu0 %v243
      %461 = vmatprep.subr.mxu0 0.0
      %462 = vmatpush1.msra.mxu0 %v244
      %463 = vmatprep.subr.mxu0 0.0
      %464 = vmatpush1.msra.mxu0 %v245
      %465 = vmatprep.subr.mxu0 0.0
      %466 = vmatpush1.msra.mxu0 %v246
      %467 = vmatprep.subr.mxu0 0.0
      %468 = vmatpush1.msra.mxu0 %v247
      %469 = vmatprep.subr.mxu0 0.0
      %470 = vmatpush1.msra.mxu0 %v248
      %471 = vmatprep.subr.mxu0 0.0
      %472 = vmatpush1.msra.mxu0 %v249
      %473 = vmatprep.subr.mxu0 0.0
      %474 = vmatpush1.msra.mxu0 %v250
      %475 = vmatprep.subr.mxu0 0.0
      %476 = vmatpush1.msra.mxu0 %v251
      %477 = vmatprep.subr.mxu0 0.0
      %478 = vmatpush1.msra.mxu0 %v252
      %479 = vmatprep.mubr.f32.mxu0 %v174
      %480 = vmatmul.mubr.f32.gmra.mrb[0].mxu0 %v173
      %v481 = vpop.f32.mrb[0].mxu0
      %v482 = vadd.f32 %v407, %v481
      %v483 = vpop.f32.mrb[0].mxu0
      %484 = vmatprep.mubr.f32.mxu0 %v183
      %485 = vmatmul.mubr.f32.gmra.mrb[0].mxu0 %v182
      %v486 = vpop.f32.mrb[0].mxu0
      %v487 = vadd.f32 %v412, %v486
      %v488 = vpop.f32.mrb[0].mxu0
      %489 = vdwg.mxu0
      %490 = vmatprep.subr.mxu0 0.0
      %491 = vmatpush1.msra.mxu0 %v253
      %492 = vmatprep.subr.mxu0 0.0
      %493 = vmatpush1.msra.mxu0 %v254
      %494 = vmatprep.subr.mxu0 0.0
      %495 = vmatpush1.msra.mxu0 %v255
      %496 = vmatprep.subr.mxu0 0.0
      %497 = vmatpush1.msra.mxu0 %v256
      %498 = vmatprep.subr.mxu0 0.0
      %499 = vmatpush1.msra.mxu0 %v257
      %500 = vmatprep.subr.mxu0 0.0
      %501 = vmatpush1.msra.mxu0 %v258
      %502 = vmatprep.subr.mxu0 0.0
      %503 = vmatpush1.msra.mxu0 %v259
      %504 = vmatprep.subr.mxu0 0.0
      %505 = vmatpush1.msra.mxu0 %v260
      %506 = vmatprep.subr.mxu0 0.0
      %507 = vmatpush1.msra.mxu0 %v261
      %508 = vmatprep.subr.mxu0 0.0
      %509 = vmatpush1.msra.mxu0 %v262
      %510 = vmatprep.subr.mxu0 0.0
      %511 = vmatpush1.msra.mxu0 %v263
      %512 = vmatprep.subr.mxu0 0.0
      %513 = vmatpush1.msra.mxu0 %v264
      %514 = vmatprep.subr.mxu0 0.0
      %515 = vmatpush1.msra.mxu0 %v265
      %516 = vmatprep.subr.mxu0 0.0
      %517 = vmatpush1.msra.mxu0 %v266
      %518 = vmatprep.subr.mxu0 0.0
      %519 = vmatpush1.msra.mxu0 %v267
      %520 = vmatprep.subr.mxu0 0.0
      %521 = vmatpush1.msra.mxu0 %v268
      %522 = vmatprep.subr.mxu0 0.0
      %523 = vmatpush1.msra.mxu0 %v269
      %524 = vmatprep.subr.mxu0 0.0
      %525 = vmatpush1.msra.mxu0 %v270
      %526 = vmatprep.subr.mxu0 0.0
      %527 = vmatpush1.msra.mxu0 %v271
      %528 = vmatprep.subr.mxu0 0.0
      %529 = vmatpush1.msra.mxu0 %v272
      %530 = vmatprep.subr.mxu0 0.0
      %531 = vmatpush1.msra.mxu0 %v273
      %532 = vmatprep.subr.mxu0 0.0
      %533 = vmatpush1.msra.mxu0 %v274
      %534 = vmatprep.subr.mxu0 0.0
      %535 = vmatpush1.msra.mxu0 %v275
      %536 = vmatprep.subr.mxu0 0.0
      %537 = vmatpush1.msra.mxu0 %v276
      %538 = vmatprep.subr.mxu0 0.0
      %539 = vmatpush1.msra.mxu0 %v277
      %540 = vmatprep.subr.mxu0 0.0
      %541 = vmatpush1.msra.mxu0 %v278
      %542 = vmatprep.subr.mxu0 0.0
      %543 = vmatpush1.msra.mxu0 %v279
      %544 = vmatprep.subr.mxu0 0.0
      %545 = vmatpush1.msra.mxu0 %v280
      %546 = vmatprep.subr.mxu0 0.0
      %547 = vmatpush1.msra.mxu0 %v281
      %548 = vmatprep.subr.mxu0 0.0
      %549 = vmatpush1.msra.mxu0 %v282
      %550 = vmatprep.subr.mxu0 0.0
      %551 = vmatpush1.msra.mxu0 %v283
      %552 = vmatprep.subr.mxu0 0.0
      %553 = vmatpush1.msra.mxu0 %v284
      %554 = vmatprep.mubr.f32.mxu0 %v176
      %555 = vmatmul.mubr.f32.gmra.mrb[0].mxu0 %v175
      %v556 = vpop.f32.mrb[0].mxu0
      %v557 = vadd.f32 %v482, %v556
      %v558 = vpop.f32.mrb[0].mxu0
      %559 = vmatprep.mubr.f32.mxu0 %v185
      %560 = vmatmul.mubr.f32.gmra.mrb[0].mxu0 %v184
      %v561 = vpop.f32.mrb[0].mxu0
      %v562 = vadd.f32 %v487, %v561
      %v563 = vpop.f32.mrb[0].mxu0
      %564 = vdwg.mxu0
      %565 = vmatprep.subr.mxu0 0.0
      %566 = vmatpush1.msra.mxu0 %v285
      %567 = vmatprep.subr.mxu0 0.0
      %568 = vmatpush1.msra.mxu0 %v286
      %569 = vmatprep.subr.mxu0 0.0
      %570 = vmatpush1.msra.mxu0 %v287
      %571 = vmatprep.subr.mxu0 0.0
      %572 = vmatpush1.msra.mxu0 %v288
      %573 = vmatprep.subr.mxu0 0.0
      %574 = vmatpush1.msra.mxu0 %v289
      %575 = vmatprep.subr.mxu0 0.0
      %576 = vmatpush1.msra.mxu0 %v290
      %577 = vmatprep.subr.mxu0 0.0
      %578 = vmatpush1.msra.mxu0 %v291
      %579 = vmatprep.subr.mxu0 0.0
      %580 = vmatpush1.msra.mxu0 %v292
      %581 = vmatprep.subr.mxu0 0.0
      %582 = vmatpush1.msra.mxu0 %v293
      %583 = vmatprep.subr.mxu0 0.0
      %584 = vmatpush1.msra.mxu0 %v294
      %585 = vmatprep.subr.mxu0 0.0
      %586 = vmatpush1.msra.mxu0 %v295
      %587 = vmatprep.subr.mxu0 0.0
      %588 = vmatpush1.msra.mxu0 %v296
      %589 = vmatprep.subr.mxu0 0.0
      %590 = vmatpush1.msra.mxu0 %v297
      %591 = vmatprep.subr.mxu0 0.0
      %592 = vmatpush1.msra.mxu0 %v298
      %593 = vmatprep.subr.mxu0 0.0
      %594 = vmatpush1.msra.mxu0 %v299
      %595 = vmatprep.subr.mxu0 0.0
      %596 = vmatpush1.msra.mxu0 %v300
      %597 = vmatprep.subr.mxu0 0.0
      %598 = vmatpush1.msra.mxu0 %v301
      %599 = vmatprep.subr.mxu0 0.0
      %600 = vmatpush1.msra.mxu0 %v302
      %601 = vmatprep.subr.mxu0 0.0
      %602 = vmatpush1.msra.mxu0 %v303
      %603 = vmatprep.subr.mxu0 0.0
      %604 = vmatpush1.msra.mxu0 %v304
      %605 = vmatprep.subr.mxu0 0.0
      %606 = vmatpush1.msra.mxu0 %v305
      %607 = vmatprep.subr.mxu0 0.0
      %608 = vmatpush1.msra.mxu0 %v306
      %609 = vmatprep.subr.mxu0 0.0
      %610 = vmatpush1.msra.mxu0 %v307
      %611 = vmatprep.subr.mxu0 0.0
      %612 = vmatpush1.msra.mxu0 %v308
      %613 = vmatprep.subr.mxu0 0.0
      %614 = vmatpush1.msra.mxu0 %v309
      %615 = vmatprep.subr.mxu0 0.0
      %616 = vmatpush1.msra.mxu0 %v310
      %617 = vmatprep.subr.mxu0 0.0
      %618 = vmatpush1.msra.mxu0 %v311
      %619 = vmatprep.subr.mxu0 0.0
      %620 = vmatpush1.msra.mxu0 %v312
      %621 = vmatprep.subr.mxu0 0.0
      %622 = vmatpush1.msra.mxu0 %v313
      %623 = vmatprep.subr.mxu0 0.0
      %624 = vmatpush1.msra.mxu0 %v314
      %625 = vmatprep.subr.mxu0 0.0
      %626 = vmatpush1.msra.mxu0 %v315
      %627 = vmatprep.subr.mxu0 0.0
      %628 = vmatpush1.msra.mxu0 %v316
      %629 = vmatprep.mubr.f32.mxu0 %v178
      %630 = vmatmul.mubr.f32.gmra.mrb[0].mxu0 %v177
      %v631 = vpop.f32.mrb[0].mxu0
      %v632 = vadd.f32 %v557, %v631
      %v633 = vpop.f32.mrb[0].mxu0
      %634 = vmatprep.mubr.f32.mxu0 %v187
      %635 = vmatmul.mubr.f32.gmra.mrb[0].mxu0 %v186
      %v636 = vpop.f32.mrb[0].mxu0
      %v637 = vadd.f32 %v562, %v636
      %v638 = vpop.f32.mrb[0].mxu0
      %639 = vdwg.mxu0
      %640 = vmatprep.subr.mxu0 0.0
      %641 = vmatpush1.msra.mxu0 %v317
      %642 = vmatprep.subr.mxu0 0.0
      %643 = vmatpush1.msra.mxu0 %v318
      %644 = vmatprep.subr.mxu0 0.0
      %645 = vmatpush1.msra.mxu0 %v319
      %646 = vmatprep.subr.mxu0 0.0
      %647 = vmatpush1.msra.mxu0 %v320
      %648 = vmatprep.subr.mxu0 0.0
      %649 = vmatpush1.msra.mxu0 %v321
      %650 = vmatprep.subr.mxu0 0.0
      %651 = vmatpush1.msra.mxu0 %v322
      %652 = vmatprep.subr.mxu0 0.0
      %653 = vmatpush1.msra.mxu0 %v323
      %654 = vmatprep.subr.mxu0 0.0
      %655 = vmatpush1.msra.mxu0 %v324
      %656 = vmatprep.subr.mxu0 0.0
      %657 = vmatpush1.msra.mxu0 %v325
      %658 = vmatprep.subr.mxu0 0.0
      %659 = vmatpush1.msra.mxu0 %v326
      %660 = vmatprep.subr.mxu0 0.0
      %661 = vmatpush1.msra.mxu0 %v327
      %662 = vmatprep.subr.mxu0 0.0
      %663 = vmatpush1.msra.mxu0 %v328
      %664 = vmatprep.subr.mxu0 0.0
      %665 = vmatpush1.msra.mxu0 %v329
      %666 = vmatprep.subr.mxu0 0.0
      %667 = vmatpush1.msra.mxu0 %v330
      %668 = vmatprep.subr.mxu0 0.0
      %669 = vmatpush1.msra.mxu0 %v331
      %670 = vmatprep.subr.mxu0 0.0
      %671 = vmatpush1.msra.mxu0 %v332
      %672 = vmatprep.subr.mxu0 0.0
      %673 = vmatpush1.msra.mxu0 0.0
      %674 = vmatprep.subr.mxu0 0.0
      %675 = vmatpush1.msra.mxu0 0.0
      %676 = vmatprep.subr.mxu0 0.0
      %677 = vmatpush1.msra.mxu0 0.0
      %678 = vmatprep.subr.mxu0 0.0
      %679 = vmatpush1.msra.mxu0 0.0
      %680 = vmatprep.subr.mxu0 0.0
      %681 = vmatpush1.msra.mxu0 0.0
      %682 = vmatprep.subr.mxu0 0.0
      %683 = vmatpush1.msra.mxu0 0.0
      %684 = vmatprep.subr.mxu0 0.0
      %685 = vmatpush1.msra.mxu0 0.0
      %686 = vmatprep.subr.mxu0 0.0
      %687 = vmatpush1.msra.mxu0 0.0
      %688 = vmatprep.subr.mxu0 0.0
      %689 = vmatpush1.msra.mxu0 0.0
      %690 = vmatprep.subr.mxu0 0.0
      %691 = vmatpush1.msra.mxu0 0.0
      %692 = vmatprep.subr.mxu0 0.0
      %693 = vmatpush1.msra.mxu0 0.0
      %694 = vmatprep.subr.mxu0 0.0
      %695 = vmatpush1.msra.mxu0 0.0
      %696 = vmatprep.subr.mxu0 0.0
      %697 = vmatpush1.msra.mxu0 0.0
      %698 = vmatprep.subr.mxu0 0.0
      %699 = vmatpush1.msra.mxu0 0.0
      %700 = vmatprep.subr.mxu0 0.0
      %701 = vmatpush1.msra.mxu0 0.0
      %702 = vmatprep.subr.mxu0 0.0
      %703 = vmatpush1.msra.mxu0 0.0
      %704 = vmatprep.mubr.f32.mxu0 0.0
      %705 = vmatmul.mubr.f32.gmra.mrb[0].mxu0 %v179
      %v706 = vpop.f32.mrb[0].mxu0
      %v707 = vadd.f32 %v632, %v706
      %v708 = vpop.f32.mrb[0].mxu0
      %709 = vmatprep.mubr.f32.mxu0 0.0
      %710 = vmatmul.mubr.f32.gmra.mrb[0].mxu0 %v188
      %v711 = vpop.f32.mrb[0].mxu0
      %v712 = vadd.f32 %v637, %v711
      %v713 = vpop.f32.mrb[0].mxu0
      %714 = vdwg.mxu0
      %v715 = vadd.f32 %v707, %v712
      %v716 = vrot.slane %v715, 4
      %v717 = vadd.f32 %v715, %v716
      %v718 = vrot.slane %v717, 2
      %v719 = vadd.f32 %v717, %v718
      %v720 = vrot.slane %v719, 1
      %v721 = vadd.f32 %v719, %v720
      %v722 = vrcp.pop 16.0
      %v723 = vmul.f32 %v721, %v722
      %v724 = vsub.f32 %v707, %v723
      %v725 = vsub.f32 %v712, %v723
      %v726 = vmul.f32 %v724, %v724
      %v727 = vmul.f32 %v725, %v725
      %v728 = vadd.f32 %v726, %v727
      %v729 = vrot.slane %v728, 4
      %v730 = vadd.f32 %v728, %v729
      %v731 = vrot.slane %v730, 2
      %v732 = vadd.f32 %v730, %v731
      %v733 = vrot.slane %v732, 1
      %v734 = vadd.f32 %v732, %v733
      %v735 = vmul.f32 %v734, %v722
      %v736 = vadd.f32 %v735, 1e-05
      %v737 = vrsqrt.pop %v736
      %v738 = vmul.f32 %v724, %v737
      %v739 = vmul.f32 %v725, %v737
      %vm740 = vcmp.ge.f32.partialorder %v738, 0.0
      %vm741 = vcmp.ge.f32.partialorder %v739, 0.0
      %v742 = vmul.f32 %v738, 0.1
      %v743 = vmul.f32 %v739, 0.1
      %v744 = vsel %vm740, %v738, %v742
      %v745 = vsel %vm741, %v739, %v743
      %746 = vst [vmem:[%s170] sm:$0xff] %v744
      %747 = vst [vmem:[%s170 + $0x8] sm:$0xff] %v745
      %p748 = scmp.lt.s32.totalorder %s14, 1
      %s749 = scalar_select %p748, %s14, 1
      %s750 = smul.addr %s749, 2
      %s751 = smul.addr %s750, 8
      %s752 = scalar_lea.vmem %s3, %s751
      // Predicated region
      $region33: #{unet_forward.21} parent=31 // pred_check
        %p753 = pneg %p100
      $region34: #{unet_forward.21} parent=31 // pred_check_branch
        %755 = sbr.rel (%p753) target = $region36
      $region35: #{unet_forward.21} parent=31 // pred_region
        _
      $region36: #{unet_forward.21} parent=31 // pred_fallthru
        _
    $region32: #{unet_forward.21} parent=5 // pred_fallthru
      _
    %p756 = scmp.le.s32.totalorder 2, %s9
    // Predicated region
    $region37: #{unet_forward.21} parent=5 // pred_check
      %p757 = pneg %p756
    $region38: #{unet_forward.21} parent=5 // pred_check_branch
      %759 = sbr.rel (%p757) target = $region40
    $region39: #{unet_forward.21} parent=5 // pred_region
      %s760 = ssub.s32 %s9, 2
      // Predicated region
      $region41: #{unet_forward.21} parent=39 // pred_check
        %p761 = pneg %p106
      $region42: #{unet_forward.21} parent=39 // pred_check_branch
        %763 = sbr.rel (%p761) target = $region44
      $region43: #{unet_forward.21} parent=39 // pred_region
        %p764 = scmp.lt.s32.totalorder %s15, 1
        %s765 = scalar_select %p764, %s15, 1
        %s766 = smul.addr %s765, 2
        %s767 = smul.addr %s766, 8
        %s768 = scalar_lea.vmem %s3, %s767
      $region44: #{unet_forward.21} parent=39 // pred_fallthru
        _
    $region40: #{unet_forward.21} parent=5 // pred_fallthru
      _
  $region6: #{unet_forward.21} parent=0 // loop_footer
    %s13 = sadd.s32 1, %s9
  $region7: #{unet_forward.21} parent=0 // loop_footer_branch
    %8 = sbr.rel target = $region3
  $region8: #{unet_forward.21} parent=0 // loop_exit
    _

// kernel: unet_forward.22
$region0: #{unet_forward.22}
  #allocation0 [shape = 'u32[]', space=smem, size = 0x4, offset = 0x4, fixed_abs, tag = 'smem constant byte address 0x4 - core index']
  #allocation1 [shape = 'u32[144,128]{1,0:T(1,128)}', space=vmem, size = 0x12000, scoped, tag = 'internal scratch']
  %s0 = inlined_call_operand.vmem [shape: f32[2,64,1152], index: 0, kind: input, shape index: {}]
  %s1 = inlined_call_operand.vmem [shape: f32[1152,64], index: 1, kind: input, shape index: {}]
  %s2 = inlined_call_operand.vmem [shape: f32[1,64], index: 2, kind: input, shape index: {}]
  %s3 = inlined_call_operand.vmem [shape: f32[2,64,64], index: 3, kind: output, shape index: {}]
  %s4 = sld [smem:[#allocation0]]
  $region45: #{unet_forward.22} parent=0
    _
  %s6 = ssub.s32 1, %s4
  %s7 = scalar_select 0, %s6, %s4
  loop: start=0, step=1, limit=4
  $region2: #{unet_forward.22} parent=0 // loop_pre_header
    _
  $region3: #{unet_forward.22} parent=0 // loop_header
    %s9 = sphi 0, %s13
    %p10 = scmp.ge.s32.totalorder %s9, 4
    %s19 = sphi 0, %s21
    %s22 = sphi 0, %s19
    %s23 = sphi 0, %s22
    %s39 = sphi 0, %s23
    %s43 = sphi 0, %s43
    %s45 = sphi 0, %s43
    %s46 = sphi 0, %s45
    %s60 = sphi 0, %s46
    %s64 = sphi 0, %s64
    %s66 = sphi 0, %s64
    %s67 = sphi 0, %s66
    %s81 = sphi 0, %s67
    %s87 = sphi 0, %s89
    %s90 = sphi 0, %s87
    %s91 = sphi 0, %s90
    %s107 = sphi 0, %s91
  $region4: #{unet_forward.22} parent=0 // loop_header_branch
    %12 = sbr.rel (%p10) target = $region8
  $region5: #{unet_forward.22} parent=0 // loop_body
    %s14 = ssub.s32 %s9, 1
    %s15 = ssub.s32 %s9, 2
    %s16 = sadd.s32 %s9, 1
    %s17 = ssub.s32 %s9, %s16
    %p18 = scmp.eq.s32.totalorder %s17, 0
    %s20 = sadd.s32 %s19, 1
    %s21 = scalar_select %p18, %s19, %s20
    %p24 = pneg %p18
    %p25 = scmp.eq.s32.totalorder %s9, 1
    %p26 = por %p24, %p25
    %p27 = scmp.ne.s32.totalorder %s19, %s22
    %p28 = scmp.eq.s32.totalorder %s9, 0
    %p29 = por %p27, %p28
    %p30 = scmp.ne.s32.totalorder %s19, %s22
    %p31 = scmp.eq.s32.totalorder %s14, 1
    %p32 = por %p30, %p31
    %p33 = scmp.ne.s32.totalorder %s22, %s23
    %p34 = scmp.eq.s32.totalorder %s14, 0
    %p35 = por %p33, %p34
    %p36 = scmp.ne.s32.totalorder %s22, %s23
    %p37 = scmp.eq.s32.totalorder %s15, 1
    %p38 = por %p36, %p37
    %p40 = scmp.ne.s32.totalorder %s23, %s39
    %p41 = scmp.eq.s32.totalorder %s15, 0
    %p42 = por %p40, %p41
    %s44 = sadd.s32 %s43, 1
    %p47 = scmp.eq.s32.totalorder %s9, 1
    %p48 = scmp.ne.s32.totalorder %s43, %s45
    %p49 = scmp.eq.s32.totalorder %s9, 0
    %p50 = por %p48, %p49
    %p51 = scmp.ne.s32.totalorder %s43, %s45
    %p52 = scmp.eq.s32.totalorder %s14, 1
    %p53 = por %p51, %p52
    %p54 = scmp.ne.s32.totalorder %s45, %s46
    %p55 = scmp.eq.s32.totalorder %s14, 0
    %p56 = por %p54, %p55
    %p57 = scmp.ne.s32.totalorder %s45, %s46
    %p58 = scmp.eq.s32.totalorder %s15, 1
    %p59 = por %p57, %p58
    %p61 = scmp.ne.s32.totalorder %s46, %s60
    %p62 = scmp.eq.s32.totalorder %s15, 0
    %p63 = por %p61, %p62
    %s65 = sadd.s32 %s64, 1
    %p68 = scmp.eq.s32.totalorder %s9, 1
    %p69 = scmp.ne.s32.totalorder %s64, %s66
    %p70 = scmp.eq.s32.totalorder %s9, 0
    %p71 = por %p69, %p70
    %p72 = scmp.ne.s32.totalorder %s64, %s66
    %p73 = scmp.eq.s32.totalorder %s14, 1
    %p74 = por %p72, %p73
    %p75 = scmp.ne.s32.totalorder %s66, %s67
    %p76 = scmp.eq.s32.totalorder %s14, 0
    %p77 = por %p75, %p76
    %p78 = scmp.ne.s32.totalorder %s66, %s67
    %p79 = scmp.eq.s32.totalorder %s15, 1
    %p80 = por %p78, %p79
    %p82 = scmp.ne.s32.totalorder %s67, %s81
    %p83 = scmp.eq.s32.totalorder %s15, 0
    %p84 = por %p82, %p83
    %s85 = ssub.s32 %s9, %s16
    %p86 = scmp.eq.s32.totalorder %s85, 0
    %s88 = sadd.s32 %s87, 1
    %s89 = scalar_select %p86, %s87, %s88
    %p92 = pneg %p86
    %p93 = scmp.eq.s32.totalorder %s9, 1
    %p94 = por %p92, %p93
    %p95 = scmp.ne.s32.totalorder %s87, %s90
    %p96 = scmp.eq.s32.totalorder %s9, 0
    %p97 = por %p95, %p96
    %p98 = scmp.ne.s32.totalorder %s87, %s90
    %p99 = scmp.eq.s32.totalorder %s14, 1
    %p100 = por %p98, %p99
    %p101 = scmp.ne.s32.totalorder %s90, %s91
    %p102 = scmp.eq.s32.totalorder %s14, 0
    %p103 = por %p101, %p102
    %p104 = scmp.ne.s32.totalorder %s90, %s91
    %p105 = scmp.eq.s32.totalorder %s15, 1
    %p106 = por %p104, %p105
    %p108 = scmp.ne.s32.totalorder %s91, %s107
    %p109 = scmp.eq.s32.totalorder %s15, 0
    %p110 = por %p108, %p109
    %p111 = scmp.le.s32.totalorder 1, %s9
    %p112 = scmp.lt.s32.totalorder %s9, 3
    %p113 = pnand %p111, %p112
    %p114 = pneg %p113
    // Predicated region
    $region9: #{unet_forward.22} parent=5 // pred_check
      _
    $region10: #{unet_forward.22} parent=5 // pred_check_branch
      %116 = sbr.rel (%p113) target = $region12
    $region11: #{unet_forward.22} parent=5 // pred_region
      %s117 = ssub.s32 %s9, 1
      // Predicated region
      $region13: #{unet_forward.22} parent=11 // pred_check
        %p118 = pneg %p56
      $region14: #{unet_forward.22} parent=11 // pred_check_branch
        %120 = sbr.rel (%p118) target = $region16
      $region15: #{unet_forward.22} parent=11 // pred_region
        _
      $region16: #{unet_forward.22} parent=11 // pred_fallthru
        _
      // Predicated region
      $region17: #{unet_forward.22} parent=11 // pred_check
        %p121 = pneg %p77
      $region18: #{unet_forward.22} parent=11 // pred_check_branch
        %123 = sbr.rel (%p121) target = $region20
      $region19: #{unet_forward.22} parent=11 // pred_region
        _
      $region20: #{unet_forward.22} parent=11 // pred_fallthru
        _
    $region12: #{unet_forward.22} parent=5 // pred_fallthru
      _
    %p124 = scmp.lt.s32.totalorder %s9, 2
    // Predicated region
    $region21: #{unet_forward.22} parent=5 // pred_check
      %p125 = pneg %p124
    $region22: #{unet_forward.22} parent=5 // pred_check_branch
      %127 = sbr.rel (%p125) target = $region24
    $region23: #{unet_forward.22} parent=5 // pred_region
      // Predicated region
      $region25: #{unet_forward.22} parent=23 // pred_check
        %p128 = pneg %p29
      $region26: #{unet_forward.22} parent=23 // pred_check_branch
        %130 = sbr.rel (%p128) target = $region28
      $region27: #{unet_forward.22} parent=23 // pred_region
        %p131 = scmp.lt.s32.totalorder %s9, 1
        %s132 = scalar_select %p131, %s9, 1
        %s133 = smul.addr %s132, 72
        %s134 = smul.addr %s133, 8
        %s135 = scalar_lea.vmem %s0, %s134
      $region28: #{unet_forward.22} parent=23 // pred_fallthru
        _
    $region24: #{unet_forward.22} parent=5 // pred_fallthru
      _
    %p136 = scmp.le.s32.totalorder 1, %s9
    %p137 = scmp.lt.s32.totalorder %s9, 3
    %p138 = pnand %p136, %p137
    %p139 = pneg %p138
    // Predicated region
    $region29: #{unet_forward.22} parent=5 // pred_check
      _
    $region30: #{unet_forward.22} parent=5 // pred_check_branch
      %141 = sbr.rel (%p138) target = $region32
    $region31: #{unet_forward.22} parent=5 // pred_region
      %s142 = ssub.s32 %s9, 1
      %p143 = scmp.lt.s32.totalorder %s14, 1
      %s144 = scalar_select %p143, %s14, 1
      %s145 = smul.addr %s144, 72
      %s146 = smul.addr %s145, 8
      %s147 = scalar_lea.vmem %s0, %s146
      %p148 = pneg %p35
      %p149 = pneg %p32
      %p150 = pneg %p56
      %p151 = pneg %p53
      %p152 = pneg %p77
      %p153 = pneg %p74
      %p154 = pneg %p103
      %p155 = pneg %p100
      %p156 = scmp.lt.s32.totalorder %s14, 1
      %s157 = scalar_select %p156, %s14, 1
      %s158 = smul.addr %s157, 8
      %s159 = smul.addr %s158, 8
      %s160 = scalar_lea.vmem %s3, %s159
      %p161 = scmp.lt.s32.totalorder %s14, 1
      %s162 = scalar_select %p161, %s14, 1
      %s163 = smul.addr %s162, 72
      %s164 = smul.addr %s163, 8
      %s165 = scalar_lea.vmem %s0, %s164
      %p166 = scmp.lt.s32.totalorder %s14, 1
      %s167 = scalar_select %p166, %s14, 1
      %s168 = smul.addr %s167, 8
      %s169 = smul.addr %s168, 8
      %s170 = scalar_lea.vmem %s3, %s169
      %v171 = vld [vmem:[%s165] sm:$0xff]
      %v172 = vld [vmem:[%s165 + $0x8] sm:$0xff]
      %v173 = vld [vmem:[%s165 + $0x10] sm:$0xff]
      %v174 = vld [vmem:[%s165 + $0x18] sm:$0xff]
      %v175 = vld [vmem:[%s165 + $0x20] sm:$0xff]
      %v176 = vld [vmem:[%s165 + $0x28] sm:$0xff]
      %v177 = vld [vmem:[%s165 + $0x30] sm:$0xff]
      %v178 = vld [vmem:[%s165 + $0x38] sm:$0xff]
      %v179 = vld [vmem:[%s165 + $0x40] sm:$0xff]
      %v180 = vld [vmem:[%s165 + $0x48] sm:$0xff]
      %v181 = vld [vmem:[%s165 + $0x50] sm:$0xff]
      %v182 = vld [vmem:[%s165 + $0x58] sm:$0xff]
      %v183 = vld [vmem:[%s165 + $0x60] sm:$0xff]
      %v184 = vld [vmem:[%s165 + $0x68] sm:$0xff]
      %v185 = vld [vmem:[%s165 + $0x70] sm:$0xff]
      %v186 = vld [vmem:[%s165 + $0x78] sm:$0xff]
      %v187 = vld [vmem:[%s165 + $0x80] sm:$0xff]
      %v188 = vld [vmem:[%s165 + $0x88] sm:$0xff]
      %v189 = vld [vmem:[%s165 + $0x90] sm:$0xff]
      %v190 = vld [vmem:[%s165 + $0x98] sm:$0xff]
      %v191 = vld [vmem:[%s165 + $0xa0] sm:$0xff]
      %v192 = vld [vmem:[%s165 + $0xa8] sm:$0xff]
      %v193 = vld [vmem:[%s165 + $0xb0] sm:$0xff]
      %v194 = vld [vmem:[%s165 + $0xb8] sm:$0xff]
      %v195 = vld [vmem:[%s165 + $0xc0] sm:$0xff]
      %v196 = vld [vmem:[%s165 + $0xc8] sm:$0xff]
      %v197 = vld [vmem:[%s165 + $0xd0] sm:$0xff]
      %v198 = vld [vmem:[%s165 + $0xd8] sm:$0xff]
      %v199 = vld [vmem:[%s165 + $0xe0] sm:$0xff]
      %v200 = vld [vmem:[%s165 + $0xe8] sm:$0xff]
      %v201 = vld [vmem:[%s165 + $0xf0] sm:$0xff]
      %v202 = vld [vmem:[%s165 + $0xf8] sm:$0xff]
      %v203 = vld [vmem:[%s165 + $0x100] sm:$0xff]
      %v204 = vld [vmem:[%s165 + $0x108] sm:$0xff]
      %v205 = vld [vmem:[%s165 + $0x110] sm:$0xff]
      %v206 = vld [vmem:[%s165 + $0x118] sm:$0xff]
      %v207 = vld [vmem:[%s165 + $0x120] sm:$0xff]
      %v208 = vld [vmem:[%s165 + $0x128] sm:$0xff]
      %v209 = vld [vmem:[%s165 + $0x130] sm:$0xff]
      %v210 = vld [vmem:[%s165 + $0x138] sm:$0xff]
      %v211 = vld [vmem:[%s165 + $0x140] sm:$0xff]
      %v212 = vld [vmem:[%s165 + $0x148] sm:$0xff]
      %v213 = vld [vmem:[%s165 + $0x150] sm:$0xff]
      %v214 = vld [vmem:[%s165 + $0x158] sm:$0xff]
      %v215 = vld [vmem:[%s165 + $0x160] sm:$0xff]
      %v216 = vld [vmem:[%s165 + $0x168] sm:$0xff]
      %v217 = vld [vmem:[%s165 + $0x170] sm:$0xff]
      %v218 = vld [vmem:[%s165 + $0x178] sm:$0xff]
      %v219 = vld [vmem:[%s165 + $0x180] sm:$0xff]
      %v220 = vld [vmem:[%s165 + $0x188] sm:$0xff]
      %v221 = vld [vmem:[%s165 + $0x190] sm:$0xff]
      %v222 = vld [vmem:[%s165 + $0x198] sm:$0xff]
      %v223 = vld [vmem:[%s165 + $0x1a0] sm:$0xff]
      %v224 = vld [vmem:[%s165 + $0x1a8] sm:$0xff]
      %v225 = vld [vmem:[%s165 + $0x1b0] sm:$0xff]
      %v226 = vld [vmem:[%s165 + $0x1b8] sm:$0xff]
      %v227 = vld [vmem:[%s165 + $0x1c0] sm:$0xff]
      %v228 = vld [vmem:[%s165 + $0x1c8] sm:$0xff]
      %v229 = vld [vmem:[%s165 + $0x1d0] sm:$0xff]
      %v230 = vld [vmem:[%s165 + $0x1d8] sm:$0xff]
      %v231 = vld [vmem:[%s165 + $0x1e0] sm:$0xff]
      %v232 = vld [vmem:[%s165 + $0x1e8] sm:$0xff]
      %v233 = vld [vmem:[%s165 + $0x1f0] sm:$0xff]
      %v234 = vld [vmem:[%s165 + $0x1f8] sm:$0xff]
      %v235 = vld [vmem:[%s165 + $0x200] sm:$0xff]
      %v236 = vld [vmem:[%s165 + $0x208] sm:$0xff]
      %v237 = vld [vmem:[%s165 + $0x210] sm:$0xff]
      %v238 = vld [vmem:[%s165 + $0x218] sm:$0xff]
      %v239 = vld [vmem:[%s165 + $0x220] sm:$0xff]
      %v240 = vld [vmem:[%s165 + $0x228] sm:$0xff]
      %v241 = vld [vmem:[%s165 + $0x230] sm:$0xff]
      %v242 = vld [vmem:[%s165 + $0x238] sm:$0xff]
      %v243 = vld [vmem:[%s1] sm:$0xff]
      %v244 = vld [vmem:[%s1 + $0x8] sm:$0xff]
      %v245 = vld [vmem:[%s1 + $0x10] sm:$0xff]
      %v246 = vld [vmem:[%s1 + $0x18] sm:$0xff]
      %v247 = vld [vmem:[%s1 + $0x20] sm:$0xff]
      %v248 = vld [vmem:[%s1 + $0x28] sm:$0xff]
      %v249 = vld [vmem:[%s1 + $0x30] sm:$0xff]
      %v250 = vld [vmem:[%s1 + $0x38] sm:$0xff]
      %v251 = vld [vmem:[%s1 + $0x40] sm:$0xff]
      %v252 = vld [vmem:[%s1 + $0x48] sm:$0xff]
      %v253 = vld [vmem:[%s1 + $0x50] sm:$0xff]
      %v254 = vld [vmem:[%s1 + $0x58] sm:$0xff]
      %v255 = vld [vmem:[%s1 + $0x60] sm:$0xff]
      %v256 = vld [vmem:[%s1 + $0x68] sm:$0xff]
      %v257 = vld [vmem:[%s1 + $0x70] sm:$0xff]
      %v258 = vld [vmem:[%s1 + $0x78] sm:$0xff]
      %v259 = vld [vmem:[%s1 + $0x80] sm:$0xff]
      %v260 = vld [vmem:[%s1 + $0x88] sm:$0xff]
      %v261 = vld [vmem:[%s1 + $0x90] sm:$0xff]
      %v262 = vld [vmem:[%s1 + $0x98] sm:$0xff]
      %v263 = vld [vmem:[%s1 + $0xa0] sm:$0xff]
      %v264 = vld [vmem:[%s1 + $0xa8] sm:$0xff]
      %v265 = vld [vmem:[%s1 + $0xb0] sm:$0xff]
      %v266 = vld [vmem:[%s1 + $0xb8] sm:$0xff]
      %v267 = vld [vmem:[%s1 + $0xc0] sm:$0xff]
      %v268 = vld [vmem:[%s1 + $0xc8] sm:$0xff]
      %v269 = vld [vmem:[%s1 + $0xd0] sm:$0xff]
      %v270 = vld [vmem:[%s1 + $0xd8] sm:$0xff]
      %v271 = vld [vmem:[%s1 + $0xe0] sm:$0xff]
      %v272 = vld [vmem:[%s1 + $0xe8] sm:$0xff]
      %v273 = vld [vmem:[%s1 + $0xf0] sm:$0xff]
      %v274 = vld [vmem:[%s1 + $0xf8] sm:$0xff]
      %v275 = vld [vmem:[%s1 + $0x100] sm:$0xff]
      %v276 = vld [vmem:[%s1 + $0x108] sm:$0xff]
      %v277 = vld [vmem:[%s1 + $0x110] sm:$0xff]
      %v278 = vld [vmem:[%s1 + $0x118] sm:$0xff]
      %v279 = vld [vmem:[%s1 + $0x120] sm:$0xff]
      %v280 = vld [vmem:[%s1 + $0x128] sm:$0xff]
      %v281 = vld [vmem:[%s1 + $0x130] sm:$0xff]
      %v282 = vld [vmem:[%s1 + $0x138] sm:$0xff]
      %v283 = vld [vmem:[%s1 + $0x140] sm:$0xff]
      %v284 = vld [vmem:[%s1 + $0x148] sm:$0xff]
      %v285 = vld [vmem:[%s1 + $0x150] sm:$0xff]
      %v286 = vld [vmem:[%s1 + $0x158] sm:$0xff]
      %v287 = vld [vmem:[%s1 + $0x160] sm:$0xff]
      %v288 = vld [vmem:[%s1 + $0x168] sm:$0xff]
      %v289 = vld [vmem:[%s1 + $0x170] sm:$0xff]
      %v290 = vld [vmem:[%s1 + $0x178] sm:$0xff]
      %v291 = vld [vmem:[%s1 + $0x180] sm:$0xff]
      %v292 = vld [vmem:[%s1 + $0x188] sm:$0xff]
      %v293 = vld [vmem:[%s1 + $0x190] sm:$0xff]
      %v294 = vld [vmem:[%s1 + $0x198] sm:$0xff]
      %v295 = vld [vmem:[%s1 + $0x1a0] sm:$0xff]
      %v296 = vld [vmem:[%s1 + $0x1a8] sm:$0xff]
      %v297 = vld [vmem:[%s1 + $0x1b0] sm:$0xff]
      %v298 = vld [vmem:[%s1 + $0x1b8] sm:$0xff]
      %v299 = vld [vmem:[%s1 + $0x1c0] sm:$0xff]
      %v300 = vld [vmem:[%s1 + $0x1c8] sm:$0xff]
      %v301 = vld [vmem:[%s1 + $0x1d0] sm:$0xff]
      %v302 = vld [vmem:[%s1 + $0x1d8] sm:$0xff]
      %v303 = vld [vmem:[%s1 + $0x1e0] sm:$0xff]
      %v304 = vld [vmem:[%s1 + $0x1e8] sm:$0xff]
      %v305 = vld [vmem:[%s1 + $0x1f0] sm:$0xff]
      %v306 = vld [vmem:[%s1 + $0x1f8] sm:$0xff]
      %v307 = vld [vmem:[%s1 + $0x200] sm:$0xff]
      %v308 = vld [vmem:[%s1 + $0x208] sm:$0xff]
      %v309 = vld [vmem:[%s1 + $0x210] sm:$0xff]
      %v310 = vld [vmem:[%s1 + $0x218] sm:$0xff]
      %v311 = vld [vmem:[%s1 + $0x220] sm:$0xff]
      %v312 = vld [vmem:[%s1 + $0x228] sm:$0xff]
      %v313 = vld [vmem:[%s1 + $0x230] sm:$0xff]
      %v314 = vld [vmem:[%s1 + $0x238] sm:$0xff]
      %v315 = vld [vmem:[%s1 + $0x240] sm:$0xff]
      %v316 = vld [vmem:[%s1 + $0x248] sm:$0xff]
      %v317 = vld [vmem:[%s1 + $0x250] sm:$0xff]
      %v318 = vld [vmem:[%s1 + $0x258] sm:$0xff]
      %v319 = vld [vmem:[%s1 + $0x260] sm:$0xff]
      %v320 = vld [vmem:[%s1 + $0x268] sm:$0xff]
      %v321 = vld [vmem:[%s1 + $0x270] sm:$0xff]
      %v322 = vld [vmem:[%s1 + $0x278] sm:$0xff]
      %v323 = vld [vmem:[%s1 + $0x280] sm:$0xff]
      %v324 = vld [vmem:[%s1 + $0x288] sm:$0xff]
      %v325 = vld [vmem:[%s1 + $0x290] sm:$0xff]
      %v326 = vld [vmem:[%s1 + $0x298] sm:$0xff]
      %v327 = vld [vmem:[%s1 + $0x2a0] sm:$0xff]
      %v328 = vld [vmem:[%s1 + $0x2a8] sm:$0xff]
      %v329 = vld [vmem:[%s1 + $0x2b0] sm:$0xff]
      %v330 = vld [vmem:[%s1 + $0x2b8] sm:$0xff]
      %v331 = vld [vmem:[%s1 + $0x2c0] sm:$0xff]
      %v332 = vld [vmem:[%s1 + $0x2c8] sm:$0xff]
      %v333 = vld [vmem:[%s1 + $0x2d0] sm:$0xff]
      %v334 = vld [vmem:[%s1 + $0x2d8] sm:$0xff]
      %v335 = vld [vmem:[%s1 + $0x2e0] sm:$0xff]
      %v336 = vld [vmem:[%s1 + $0x2e8] sm:$0xff]
      %v337 = vld [vmem:[%s1 + $0x2f0] sm:$0xff]
      %v338 = vld [vmem:[%s1 + $0x2f8] sm:$0xff]
      %v339 = vld [vmem:[%s1 + $0x300] sm:$0xff]
      %v340 = vld [vmem:[%s1 + $0x308] sm:$0xff]
      %v341 = vld [vmem:[%s1 + $0x310] sm:$0xff]
      %v342 = vld [vmem:[%s1 + $0x318] sm:$0xff]
      %v343 = vld [vmem:[%s1 + $0x320] sm:$0xff]
      %v344 = vld [vmem:[%s1 + $0x328] sm:$0xff]
      %v345 = vld [vmem:[%s1 + $0x330] sm:$0xff]
      %v346 = vld [vmem:[%s1 + $0x338] sm:$0xff]
      %v347 = vld [vmem:[%s1 + $0x340] sm:$0xff]
      %v348 = vld [vmem:[%s1 + $0x348] sm:$0xff]
      %v349 = vld [vmem:[%s1 + $0x350] sm:$0xff]
      %v350 = vld [vmem:[%s1 + $0x358] sm:$0xff]
      %v351 = vld [vmem:[%s1 + $0x360] sm:$0xff]
      %v352 = vld [vmem:[%s1 + $0x368] sm:$0xff]
      %v353 = vld [vmem:[%s1 + $0x370] sm:$0xff]
      %v354 = vld [vmem:[%s1 + $0x378] sm:$0xff]
      %v355 = vld [vmem:[%s1 + $0x380] sm:$0xff]
      %v356 = vld [vmem:[%s1 + $0x388] sm:$0xff]
      %v357 = vld [vmem:[%s1 + $0x390] sm:$0xff]
      %v358 = vld [vmem:[%s1 + $0x398] sm:$0xff]
      %v359 = vld [vmem:[%s1 + $0x3a0] sm:$0xff]
      %v360 = vld [vmem:[%s1 + $0x3a8] sm:$0xff]
      %v361 = vld [vmem:[%s1 + $0x3b0] sm:$0xff]
      %v362 = vld [vmem:[%s1 + $0x3b8] sm:$0xff]
      %v363 = vld [vmem:[%s1 + $0x3c0] sm:$0xff]
      %v364 = vld [vmem:[%s1 + $0x3c8] sm:$0xff]
      %v365 = vld [vmem:[%s1 + $0x3d0] sm:$0xff]
      %v366 = vld [vmem:[%s1 + $0x3d8] sm:$0xff]
      %v367 = vld [vmem:[%s1 + $0x3e0] sm:$0xff]
      %v368 = vld [vmem:[%s1 + $0x3e8] sm:$0xff]
      %v369 = vld [vmem:[%s1 + $0x3f0] sm:$0xff]
      %v370 = vld [vmem:[%s1 + $0x3f8] sm:$0xff]
      %v371 = vld [vmem:[%s1 + $0x400] sm:$0xff]
      %v372 = vld [vmem:[%s1 + $0x408] sm:$0xff]
      %v373 = vld [vmem:[%s1 + $0x410] sm:$0xff]
      %v374 = vld [vmem:[%s1 + $0x418] sm:$0xff]
      %v375 = vld [vmem:[%s1 + $0x420] sm:$0xff]
      %v376 = vld [vmem:[%s1 + $0x428] sm:$0xff]
      %v377 = vld [vmem:[%s1 + $0x430] sm:$0xff]
      %v378 = vld [vmem:[%s1 + $0x438] sm:$0xff]
      %v379 = vld [vmem:[%s1 + $0x440] sm:$0xff]
      %v380 = vld [vmem:[%s1 + $0x448] sm:$0xff]
      %v381 = vld [vmem:[%s1 + $0x450] sm:$0xff]
      %v382 = vld [vmem:[%s1 + $0x458] sm:$0xff]
      %v383 = vld [vmem:[%s1 + $0x460] sm:$0xff]
      %v384 = vld [vmem:[%s1 + $0x468] sm:$0xff]
      %v385 = vld [vmem:[%s1 + $0x470] sm:$0xff]
      %v386 = vld [vmem:[%s1 + $0x478] sm:$0xff]
      %v387 = vld [vmem:[%s2] sm:$0x1]
      %v389 = vlaneseq
      %v390 = vshrl.u32 %v389, 7
      %v391 = vsub.s32 0, %v390
      %v392 = vrot.slane %v387, %v391
      %394 = vmatprep.subr.mxu0 0.0
      %395 = vmatpush1.msra.mxu0 %v243
      %396 = vmatprep.subr.mxu0 0.0
      %397 = vmatpush1.msra.mxu0 %v244
      %398 = vmatprep.subr.mxu0 0.0
      %399 = vmatpush1.msra.mxu0 %v245
      %400 = vmatprep.subr.mxu0 0.0
      %401 = vmatpush1.msra.mxu0 %v246
      %402 = vmatprep.subr.mxu0 0.0
      %403 = vmatpush1.msra.mxu0 %v247
      %404 = vmatprep.subr.mxu0 0.0
      %405 = vmatpush1.msra.mxu0 %v248
      %406 = vmatprep.subr.mxu0 0.0
      %407 = vmatpush1.msra.mxu0 %v249
      %408 = vmatprep.subr.mxu0 0.0
      %409 = vmatpush1.msra.mxu0 %v250
      %410 = vmatprep.subr.mxu0 0.0
      %411 = vmatpush1.msra.mxu0 %v251
      %412 = vmatprep.subr.mxu0 0.0
      %413 = vmatpush1.msra.mxu0 %v252
      %414 = vmatprep.subr.mxu0 0.0
      %415 = vmatpush1.msra.mxu0 %v253
      %416 = vmatprep.subr.mxu0 0.0
      %417 = vmatpush1.msra.mxu0 %v254
      %418 = vmatprep.subr.mxu0 0.0
      %419 = vmatpush1.msra.mxu0 %v255
      %420 = vmatprep.subr.mxu0 0.0
      %421 = vmatpush1.msra.mxu0 %v256
      %422 = vmatprep.subr.mxu0 0.0
      %423 = vmatpush1.msra.mxu0 %v257
      %424 = vmatprep.subr.mxu0 0.0
      %425 = vmatpush1.msra.mxu0 %v258
      %426 = vmatprep.subr.mxu0 0.0
      %427 = vmatpush1.msra.mxu0 %v259
      %428 = vmatprep.subr.mxu0 0.0
      %429 = vmatpush1.msra.mxu0 %v260
      %430 = vmatprep.subr.mxu0 0.0
      %431 = vmatpush1.msra.mxu0 %v261
      %432 = vmatprep.subr.mxu0 0.0
      %433 = vmatpush1.msra.mxu0 %v262
      %434 = vmatprep.subr.mxu0 0.0
      %435 = vmatpush1.msra.mxu0 %v263
      %436 = vmatprep.subr.mxu0 0.0
      %437 = vmatpush1.msra.mxu0 %v264
      %438 = vmatprep.subr.mxu0 0.0
      %439 = vmatpush1.msra.mxu0 %v265
      %440 = vmatprep.subr.mxu0 0.0
      %441 = vmatpush1.msra.mxu0 %v266
      %442 = vmatprep.subr.mxu0 0.0
      %443 = vmatpush1.msra.mxu0 %v267
      %444 = vmatprep.subr.mxu0 0.0
      %445 = vmatpush1.msra.mxu0 %v268
      %446 = vmatprep.subr.mxu0 0.0
      %447 = vmatpush1.msra.mxu0 %v269
      %448 = vmatprep.subr.mxu0 0.0
      %449 = vmatpush1.msra.mxu0 %v270
      %450 = vmatprep.subr.mxu0 0.0
      %451 = vmatpush1.msra.mxu0 %v271
      %452 = vmatprep.subr.mxu0 0.0
      %453 = vmatpush1.msra.mxu0 %v272
      %454 = vmatprep.subr.mxu0 0.0
      %455 = vmatpush1.msra.mxu0 %v273
      %456 = vmatprep.subr.mxu0 0.0
      %457 = vmatpush1.msra.mxu0 %v274
      %458 = vmatprep.mubr.f32.mxu0 %v172
      %459 = vmatmul.mubr.f32.gmra.mrb[0].mxu0 %v171
      %v460 = vpop.f32.mrb[0].mxu0
      %v461 = vadd.f32 %v392, %v460
      %v462 = vpop.f32.mrb[0].mxu0
      %463 = vmatprep.mubr.f32.mxu0 %v181
      %464 = vmatmul.mubr.f32.gmra.mrb[0].mxu0 %v180
      %v465 = vpop.f32.mrb[0].mxu0
      %v466 = vadd.f32 %v392, %v465
      %v467 = vpop.f32.mrb[0].mxu0
      %468 = vmatprep.mubr.f32.mxu0 %v190
      %469 = vmatmul.mubr.f32.gmra.mrb[0].mxu0 %v189
      %v470 = vpop.f32.mrb[0].mxu0
      %v471 = vadd.f32 %v392, %v470
      %v472 = vpop.f32.mrb[0].mxu0
      %473 = vmatprep.mubr.f32.mxu0 %v199
      %474 = vmatmul.mubr.f32.gmra.mrb[0].mxu0 %v198
      %v475 = vpop.f32.mrb[0].mxu0
      %v476 = vadd.f32 %v392, %v475
      %v477 = vpop.f32.mrb[0].mxu0
      %478 = vmatprep.mubr.f32.mxu0 %v208
      %479 = vmatmul.mubr.f32.gmra.mrb[0].mxu0 %v207
      %v480 = vpop.f32.mrb[0].mxu0
      %v481 = vadd.f32 %v392, %v480
      %v482 = vpop.f32.mrb[0].mxu0
      %483 = vmatprep.mubr.f32.mxu0 %v217
      %484 = vmatmul.mubr.f32.gmra.mrb[0].mxu0 %v216
      %v485 = vpop.f32.mrb[0].mxu0
      %v486 = vadd.f32 %v392, %v485
      %v487 = vpop.f32.mrb[0].mxu0
      %488 = vmatprep.mubr.f32.mxu0 %v226
      %489 = vmatmul.mubr.f32.gmra.mrb[0].mxu0 %v225
      %v490 = vpop.f32.mrb[0].mxu0
      %v491 = vadd.f32 %v392, %v490
      %v492 = vpop.f32.mrb[0].mxu0
      %493 = vmatprep.mubr.f32.mxu0 %v235
      %494 = vmatmul.mubr.f32.gmra.mrb[0].mxu0 %v234
      %v495 = vpop.f32.mrb[0].mxu0
      %v496 = vadd.f32 %v392, %v495
      %v497 = vpop.f32.mrb[0].mxu0
      %498 = vdwg.mxu0
      %499 = vmatprep.subr.mxu0 0.0
      %500 = vmatpush1.msra.mxu0 %v275
      %501 = vmatprep.subr.mxu0 0.0
      %502 = vmatpush1.msra.mxu0 %v276
      %503 = vmatprep.subr.mxu0 0.0
      %504 = vmatpush1.msra.mxu0 %v277
      %505 = vmatprep.subr.mxu0 0.0
      %506 = vmatpush1.msra.mxu0 %v278
      %507 = vmatprep.subr.mxu0 0.0
      %508 = vmatpush1.msra.mxu0 %v279
      %509 = vmatprep.subr.mxu0 0.0
      %510 = vmatpush1.msra.mxu0 %v280
      %511 = vmatprep.subr.mxu0 0.0
      %512 = vmatpush1.msra.mxu0 %v281
      %513 = vmatprep.subr.mxu0 0.0
      %514 = vmatpush1.msra.mxu0 %v282
      %515 = vmatprep.subr.mxu0 0.0
      %516 = vmatpush1.msra.mxu0 %v283
      %517 = vmatprep.subr.mxu0 0.0
      %518 = vmatpush1.msra.mxu0 %v284
      %519 = vmatprep.subr.mxu0 0.0
      %520 = vmatpush1.msra.mxu0 %v285
      %521 = vmatprep.subr.mxu0 0.0
      %522 = vmatpush1.msra.mxu0 %v286
      %523 = vmatprep.subr.mxu0 0.0
      %524 = vmatpush1.msra.mxu0 %v287
      %525 = vmatprep.subr.mxu0 0.0
      %526 = vmatpush1.msra.mxu0 %v288
      %527 = vmatprep.subr.mxu0 0.0
      %528 = vmatpush1.msra.mxu0 %v289
      %529 = vmatprep.subr.mxu0 0.0
      %530 = vmatpush1.msra.mxu0 %v290
      %531 = vmatprep.subr.mxu0 0.0
      %532 = vmatpush1.msra.mxu0 %v291
      %533 = vmatprep.subr.mxu0 0.0
      %534 = vmatpush1.msra.mxu0 %v292
      %535 = vmatprep.subr.mxu0 0.0
      %536 = vmatpush1.msra.mxu0 %v293
      %537 = vmatprep.subr.mxu0 0.0
      %538 = vmatpush1.msra.mxu0 %v294
      %539 = vmatprep.subr.mxu0 0.0
      %540 = vmatpush1.msra.mxu0 %v295
      %541 = vmatprep.subr.mxu0 0.0
      %542 = vmatpush1.msra.mxu0 %v296
      %543 = vmatprep.subr.mxu0 0.0
      %544 = vmatpush1.msra.mxu0 %v297
      %545 = vmatprep.subr.mxu0 0.0
      %546 = vmatpush1.msra.mxu0 %v298
      %547 = vmatprep.subr.mxu0 0.0
      %548 = vmatpush1.msra.mxu0 %v299
      %549 = vmatprep.subr.mxu0 0.0
      %550 = vmatpush1.msra.mxu0 %v300
      %551 = vmatprep.subr.mxu0 0.0
      %552 = vmatpush1.msra.mxu0 %v301
      %553 = vmatprep.subr.mxu0 0.0
      %554 = vmatpush1.msra.mxu0 %v302
      %555 = vmatprep.subr.mxu0 0.0
      %556 = vmatpush1.msra.mxu0 %v303
      %557 = vmatprep.subr.mxu0 0.0
      %558 = vmatpush1.msra.mxu0 %v304
      %559 = vmatprep.subr.mxu0 0.0
      %560 = vmatpush1.msra.mxu0 %v305
      %561 = vmatprep.subr.mxu0 0.0
      %562 = vmatpush1.msra.mxu0 %v306
      %563 = vmatprep.mubr.f32.mxu0 %v174
      %564 = vmatmul.mubr.f32.gmra.mrb[0].mxu0 %v173
      %v565 = vpop.f32.mrb[0].mxu0
      %v566 = vadd.f32 %v461, %v565
      %v567 = vpop.f32.mrb[0].mxu0
      %568 = vmatprep.mubr.f32.mxu0 %v183
      %569 = vmatmul.mubr.f32.gmra.mrb[0].mxu0 %v182
      %v570 = vpop.f32.mrb[0].mxu0
      %v571 = vadd.f32 %v466, %v570
      %v572 = vpop.f32.mrb[0].mxu0
      %573 = vmatprep.mubr.f32.mxu0 %v192
      %574 = vmatmul.mubr.f32.gmra.mrb[0].mxu0 %v191
      %v575 = vpop.f32.mrb[0].mxu0
      %v576 = vadd.f32 %v471, %v575
      %v577 = vpop.f32.mrb[0].mxu0
      %578 = vmatprep.mubr.f32.mxu0 %v201
      %579 = vmatmul.mubr.f32.gmra.mrb[0].mxu0 %v200
      %v580 = vpop.f32.mrb[0].mxu0
      %v581 = vadd.f32 %v476, %v580
      %v582 = vpop.f32.mrb[0].mxu0
      %583 = vmatprep.mubr.f32.mxu0 %v210
      %584 = vmatmul.mubr.f32.gmra.mrb[0].mxu0 %v209
      %v585 = vpop.f32.mrb[0].mxu0
      %v586 = vadd.f32 %v481, %v585
      %v587 = vpop.f32.mrb[0].mxu0
      %588 = vmatprep.mubr.f32.mxu0 %v219
      %589 = vmatmul.mubr.f32.gmra.mrb[0].mxu0 %v218
      %v590 = vpop.f32.mrb[0].mxu0
      %v591 = vadd.f32 %v486, %v590
      %v592 = vpop.f32.mrb[0].mxu0
      %593 = vmatprep.mubr.f32.mxu0 %v228
      %594 = vmatmul.mubr.f32.gmra.mrb[0].mxu0 %v227
      %v595 = vpop.f32.mrb[0].mxu0
      %v596 = vadd.f32 %v491, %v595
      %v597 = vpop.f32.mrb[0].mxu0
      %598 = vmatprep.mubr.f32.mxu0 %v237
      %599 = vmatmul.mubr.f32.gmra.mrb[0].mxu0 %v236
      %v600 = vpop.f32.mrb[0].mxu0
      %v601 = vadd.f32 %v496, %v600
      %v602 = vpop.f32.mrb[0].mxu0
      %603 = vdwg.mxu0
      %604 = vmatprep.subr.mxu0 0.0
      %605 = vmatpush1.msra.mxu0 %v307
      %606 = vmatprep.subr.mxu0 0.0
      %607 = vmatpush1.msra.mxu0 %v308
      %608 = vmatprep.subr.mxu0 0.0
      %609 = vmatpush1.msra.mxu0 %v309
      %610 = vmatprep.subr.mxu0 0.0
      %611 = vmatpush1.msra.mxu0 %v310
      %612 = vmatprep.subr.mxu0 0.0
      %613 = vmatpush1.msra.mxu0 %v311
      %614 = vmatprep.subr.mxu0 0.0
      %615 = vmatpush1.msra.mxu0 %v312
      %616 = vmatprep.subr.mxu0 0.0
      %617 = vmatpush1.msra.mxu0 %v313
      %618 = vmatprep.subr.mxu0 0.0
      %619 = vmatpush1.msra.mxu0 %v314
      %620 = vmatprep.subr.mxu0 0.0
      %621 = vmatpush1.msra.mxu0 %v315
      %622 = vmatprep.subr.mxu0 0.0
      %623 = vmatpush1.msra.mxu0 %v316
      %624 = vmatprep.subr.mxu0 0.0
      %625 = vmatpush1.msra.mxu0 %v317
      %626 = vmatprep.subr.mxu0 0.0
      %627 = vmatpush1.msra.mxu0 %v318
      %628 = vmatprep.subr.mxu0 0.0
      %629 = vmatpush1.msra.mxu0 %v319
      %630 = vmatprep.subr.mxu0 0.0
      %631 = vmatpush1.msra.mxu0 %v320
      %632 = vmatprep.subr.mxu0 0.0
      %633 = vmatpush1.msra.mxu0 %v321
      %634 = vmatprep.subr.mxu0 0.0
      %635 = vmatpush1.msra.mxu0 %v322
      %636 = vmatprep.subr.mxu0 0.0
      %637 = vmatpush1.msra.mxu0 %v323
      %638 = vmatprep.subr.mxu0 0.0
      %639 = vmatpush1.msra.mxu0 %v324
      %640 = vmatprep.subr.mxu0 0.0
      %641 = vmatpush1.msra.mxu0 %v325
      %642 = vmatprep.subr.mxu0 0.0
      %643 = vmatpush1.msra.mxu0 %v326
      %644 = vmatprep.subr.mxu0 0.0
      %645 = vmatpush1.msra.mxu0 %v327
      %646 = vmatprep.subr.mxu0 0.0
      %647 = vmatpush1.msra.mxu0 %v328
      %648 = vmatprep.subr.mxu0 0.0
      %649 = vmatpush1.msra.mxu0 %v329
      %650 = vmatprep.subr.mxu0 0.0
      %651 = vmatpush1.msra.mxu0 %v330
      %652 = vmatprep.subr.mxu0 0.0
      %653 = vmatpush1.msra.mxu0 %v331
      %654 = vmatprep.subr.mxu0 0.0
      %655 = vmatpush1.msra.mxu0 %v332
      %656 = vmatprep.subr.mxu0 0.0
      %657 = vmatpush1.msra.mxu0 %v333
      %658 = vmatprep.subr.mxu0 0.0
      %659 = vmatpush1.msra.mxu0 %v334
      %660 = vmatprep.subr.mxu0 0.0
      %661 = vmatpush1.msra.mxu0 %v335
      %662 = vmatprep.subr.mxu0 0.0
      %663 = vmatpush1.msra.mxu0 %v336
      %664 = vmatprep.subr.mxu0 0.0
      %665 = vmatpush1.msra.mxu0 %v337
      %666 = vmatprep.subr.mxu0 0.0
      %667 = vmatpush1.msra.mxu0 %v338
      %668 = vmatprep.mubr.f32.mxu0 %v176
      %669 = vmatmul.mubr.f32.gmra.mrb[0].mxu0 %v175
      %v670 = vpop.f32.mrb[0].mxu0
      %v671 = vadd.f32 %v566, %v670
      %v672 = vpop.f32.mrb[0].mxu0
      %673 = vmatprep.mubr.f32.mxu0 %v185
      %674 = vmatmul.mubr.f32.gmra.mrb[0].mxu0 %v184
      %v675 = vpop.f32.mrb[0].mxu0
      %v676 = vadd.f32 %v571, %v675
      %v677 = vpop.f32.mrb[0].mxu0
      %678 = vmatprep.mubr.f32.mxu0 %v194
      %679 = vmatmul.mubr.f32.gmra.mrb[0].mxu0 %v193
      %v680 = vpop.f32.mrb[0].mxu0
      %v681 = vadd.f32 %v576, %v680
      %v682 = vpop.f32.mrb[0].mxu0
      %683 = vmatprep.mubr.f32.mxu0 %v203
      %684 = vmatmul.mubr.f32.gmra.mrb[0].mxu0 %v202
      %v685 = vpop.f32.mrb[0].mxu0
      %v686 = vadd.f32 %v581, %v685
      %v687 = vpop.f32.mrb[0].mxu0
      %688 = vmatprep.mubr.f32.mxu0 %v212
      %689 = vmatmul.mubr.f32.gmra.mrb[0].mxu0 %v211
      %v690 = vpop.f32.mrb[0].mxu0
      %v691 = vadd.f32 %v586, %v690
      %v692 = vpop.f32.mrb[0].mxu0
      %693 = vmatprep.mubr.f32.mxu0 %v221
      %694 = vmatmul.mubr.f32.gmra.mrb[0].mxu0 %v220
      %v695 = vpop.f32.mrb[0].mxu0
      %v696 = vadd.f32 %v591, %v695
      %v697 = vpop.f32.mrb[0].mxu0
      %698 = vmatprep.mubr.f32.mxu0 %v230
      %699 = vmatmul.mubr.f32.gmra.mrb[0].mxu0 %v229
      %v700 = vpop.f32.mrb[0].mxu0
      %v701 = vadd.f32 %v596, %v700
      %v702 = vpop.f32.mrb[0].mxu0
      %703 = vmatprep.mubr.f32.mxu0 %v239
      %704 = vmatmul.mubr.f32.gmra.mrb[0].mxu0 %v238
      %v705 = vpop.f32.mrb[0].mxu0
      %v706 = vadd.f32 %v601, %v705
      %v707 = vpop.f32.mrb[0].mxu0
      %708 = vdwg.mxu0
      %709 = vmatprep.subr.mxu0 0.0
      %710 = vmatpush1.msra.mxu0 %v339
      %711 = vmatprep.subr.mxu0 0.0
      %712 = vmatpush1.msra.mxu0 %v340
      %713 = vmatprep.subr.mxu0 0.0
      %714 = vmatpush1.msra.mxu0 %v341
      %715 = vmatprep.subr.mxu0 0.0
      %716 = vmatpush1.msra.mxu0 %v342
      %717 = vmatprep.subr.mxu0 0.0
      %718 = vmatpush1.msra.mxu0 %v343
      %719 = vmatprep.subr.mxu0 0.0
      %720 = vmatpush1.msra.mxu0 %v344
      %721 = vmatprep.subr.mxu0 0.0
      %722 = vmatpush1.msra.mxu0 %v345
      %723 = vmatprep.subr.mxu0 0.0
      %724 = vmatpush1.msra.mxu0 %v346
      %725 = vmatprep.subr.mxu0 0.0
      %726 = vmatpush1.msra.mxu0 %v347
      %727 = vmatprep.subr.mxu0 0.0
      %728 = vmatpush1.msra.mxu0 %v348
      %729 = vmatprep.subr.mxu0 0.0
      %730 = vmatpush1.msra.mxu0 %v349
      %731 = vmatprep.subr.mxu0 0.0
      %732 = vmatpush1.msra.mxu0 %v350
      %733 = vmatprep.subr.mxu0 0.0
      %734 = vmatpush1.msra.mxu0 %v351
      %735 = vmatprep.subr.mxu0 0.0
      %736 = vmatpush1.msra.mxu0 %v352
      %737 = vmatprep.subr.mxu0 0.0
      %738 = vmatpush1.msra.mxu0 %v353
      %739 = vmatprep.subr.mxu0 0.0
      %740 = vmatpush1.msra.mxu0 %v354
      %741 = vmatprep.subr.mxu0 0.0
      %742 = vmatpush1.msra.mxu0 %v355
      %743 = vmatprep.subr.mxu0 0.0
      %744 = vmatpush1.msra.mxu0 %v356
      %745 = vmatprep.subr.mxu0 0.0
      %746 = vmatpush1.msra.mxu0 %v357
      %747 = vmatprep.subr.mxu0 0.0
      %748 = vmatpush1.msra.mxu0 %v358
      %749 = vmatprep.subr.mxu0 0.0
      %750 = vmatpush1.msra.mxu0 %v359
      %751 = vmatprep.subr.mxu0 0.0
      %752 = vmatpush1.msra.mxu0 %v360
      %753 = vmatprep.subr.mxu0 0.0
      %754 = vmatpush1.msra.mxu0 %v361
      %755 = vmatprep.subr.mxu0 0.0
      %756 = vmatpush1.msra.mxu0 %v362
      %757 = vmatprep.subr.mxu0 0.0
      %758 = vmatpush1.msra.mxu0 %v363
      %759 = vmatprep.subr.mxu0 0.0
      %760 = vmatpush1.msra.mxu0 %v364
      %761 = vmatprep.subr.mxu0 0.0
      %762 = vmatpush1.msra.mxu0 %v365
      %763 = vmatprep.subr.mxu0 0.0
      %764 = vmatpush1.msra.mxu0 %v366
      %765 = vmatprep.subr.mxu0 0.0
      %766 = vmatpush1.msra.mxu0 %v367
      %767 = vmatprep.subr.mxu0 0.0
      %768 = vmatpush1.msra.mxu0 %v368
      %769 = vmatprep.subr.mxu0 0.0
      %770 = vmatpush1.msra.mxu0 %v369
      %771 = vmatprep.subr.mxu0 0.0
      %772 = vmatpush1.msra.mxu0 %v370
      %773 = vmatprep.mubr.f32.mxu0 %v178
      %774 = vmatmul.mubr.f32.gmra.mrb[0].mxu0 %v177
      %v775 = vpop.f32.mrb[0].mxu0
      %v776 = vadd.f32 %v671, %v775
      %v777 = vpop.f32.mrb[0].mxu0
      %778 = vmatprep.mubr.f32.mxu0 %v187
      %779 = vmatmul.mubr.f32.gmra.mrb[0].mxu0 %v186
      %v780 = vpop.f32.mrb[0].mxu0
      %v781 = vadd.f32 %v676, %v780
      %v782 = vpop.f32.mrb[0].mxu0
      %783 = vmatprep.mubr.f32.mxu0 %v196
      %784 = vmatmul.mubr.f32.gmra.mrb[0].mxu0 %v195
      %v785 = vpop.f32.mrb[0].mxu0
      %v786 = vadd.f32 %v681, %v785
      %v787 = vpop.f32.mrb[0].mxu0
      %788 = vmatprep.mubr.f32.mxu0 %v205
      %789 = vmatmul.mubr.f32.gmra.mrb[0].mxu0 %v204
      %v790 = vpop.f32.mrb[0].mxu0
      %v791 = vadd.f32 %v686, %v790
      %v792 = vpop.f32.mrb[0].mxu0
      %793 = vmatprep.mubr.f32.mxu0 %v214
      %794 = vmatmul.mubr.f32.gmra.mrb[0].mxu0 %v213
      %v795 = vpop.f32.mrb[0].mxu0
      %v796 = vadd.f32 %v691, %v795
      %v797 = vpop.f32.mrb[0].mxu0
      %798 = vmatprep.mubr.f32.mxu0 %v223
      %799 = vmatmul.mubr.f32.gmra.mrb[0].mxu0 %v222
      %v800 = vpop.f32.mrb[0].mxu0
      %v801 = vadd.f32 %v696, %v800
      %v802 = vpop.f32.mrb[0].mxu0
      %803 = vmatprep.mubr.f32.mxu0 %v232
      %804 = vmatmul.mubr.f32.gmra.mrb[0].mxu0 %v231
      %v805 = vpop.f32.mrb[0].mxu0
      %v806 = vadd.f32 %v701, %v805
      %v807 = vpop.f32.mrb[0].mxu0
      %808 = vmatprep.mubr.f32.mxu0 %v241
      %809 = vmatmul.mubr.f32.gmra.mrb[0].mxu0 %v240
      %v810 = vpop.f32.mrb[0].mxu0
      %v811 = vadd.f32 %v706, %v810
      %v812 = vpop.f32.mrb[0].mxu0
      %813 = vdwg.mxu0
      %814 = vmatprep.subr.mxu0 0.0
      %815 = vmatpush1.msra.mxu0 %v371
      %816 = vmatprep.subr.mxu0 0.0
      %817 = vmatpush1.msra.mxu0 %v372
      %818 = vmatprep.subr.mxu0 0.0
      %819 = vmatpush1.msra.mxu0 %v373
      %820 = vmatprep.subr.mxu0 0.0
      %821 = vmatpush1.msra.mxu0 %v374
      %822 = vmatprep.subr.mxu0 0.0
      %823 = vmatpush1.msra.mxu0 %v375
      %824 = vmatprep.subr.mxu0 0.0
      %825 = vmatpush1.msra.mxu0 %v376
      %826 = vmatprep.subr.mxu0 0.0
      %827 = vmatpush1.msra.mxu0 %v377
      %828 = vmatprep.subr.mxu0 0.0
      %829 = vmatpush1.msra.mxu0 %v378
      %830 = vmatprep.subr.mxu0 0.0
      %831 = vmatpush1.msra.mxu0 %v379
      %832 = vmatprep.subr.mxu0 0.0
      %833 = vmatpush1.msra.mxu0 %v380
      %834 = vmatprep.subr.mxu0 0.0
      %835 = vmatpush1.msra.mxu0 %v381
      %836 = vmatprep.subr.mxu0 0.0
      %837 = vmatpush1.msra.mxu0 %v382
      %838 = vmatprep.subr.mxu0 0.0
      %839 = vmatpush1.msra.mxu0 %v383
      %840 = vmatprep.subr.mxu0 0.0
      %841 = vmatpush1.msra.mxu0 %v384
      %842 = vmatprep.subr.mxu0 0.0
      %843 = vmatpush1.msra.mxu0 %v385
      %844 = vmatprep.subr.mxu0 0.0
      %845 = vmatpush1.msra.mxu0 %v386
      %846 = vmatprep.subr.mxu0 0.0
      %847 = vmatpush1.msra.mxu0 0.0
      %848 = vmatprep.subr.mxu0 0.0
      %849 = vmatpush1.msra.mxu0 0.0
      %850 = vmatprep.subr.mxu0 0.0
      %851 = vmatpush1.msra.mxu0 0.0
      %852 = vmatprep.subr.mxu0 0.0
      %853 = vmatpush1.msra.mxu0 0.0
      %854 = vmatprep.subr.mxu0 0.0
      %855 = vmatpush1.msra.mxu0 0.0
      %856 = vmatprep.subr.mxu0 0.0
      %857 = vmatpush1.msra.mxu0 0.0
      %858 = vmatprep.subr.mxu0 0.0
      %859 = vmatpush1.msra.mxu0 0.0
      %860 = vmatprep.subr.mxu0 0.0
      %861 = vmatpush1.msra.mxu0 0.0
      %862 = vmatprep.subr.mxu0 0.0
      %863 = vmatpush1.msra.mxu0 0.0
      %864 = vmatprep.subr.mxu0 0.0
      %865 = vmatpush1.msra.mxu0 0.0
      %866 = vmatprep.subr.mxu0 0.0
      %867 = vmatpush1.msra.mxu0 0.0
      %868 = vmatprep.subr.mxu0 0.0
      %869 = vmatpush1.msra.mxu0 0.0
      %870 = vmatprep.subr.mxu0 0.0
      %871 = vmatpush1.msra.mxu0 0.0
      %872 = vmatprep.subr.mxu0 0.0
      %873 = vmatpush1.msra.mxu0 0.0
      %874 = vmatprep.subr.mxu0 0.0
      %875 = vmatpush1.msra.mxu0 0.0
      %876 = vmatprep.subr.mxu0 0.0
      %877 = vmatpush1.msra.mxu0 0.0
      %878 = vmatprep.mubr.f32.mxu0 0.0
      %879 = vmatmul.mubr.f32.gmra.mrb[0].mxu0 %v179
      %v880 = vpop.f32.mrb[0].mxu0
      %v881 = vadd.f32 %v776, %v880
      %v882 = vpop.f32.mrb[0].mxu0
      %883 = vmatprep.mubr.f32.mxu0 0.0
      %884 = vmatmul.mubr.f32.gmra.mrb[0].mxu0 %v188
      %v885 = vpop.f32.mrb[0].mxu0
      %v886 = vadd.f32 %v781, %v885
      %v887 = vpop.f32.mrb[0].mxu0
      %888 = vmatprep.mubr.f32.mxu0 0.0
      %889 = vmatmul.mubr.f32.gmra.mrb[0].mxu0 %v197
      %v890 = vpop.f32.mrb[0].mxu0
      %v891 = vadd.f32 %v786, %v890
      %v892 = vpop.f32.mrb[0].mxu0
      %893 = vmatprep.mubr.f32.mxu0 0.0
      %894 = vmatmul.mubr.f32.gmra.mrb[0].mxu0 %v206
      %v895 = vpop.f32.mrb[0].mxu0
      %v896 = vadd.f32 %v791, %v895
      %v897 = vpop.f32.mrb[0].mxu0
      %898 = vmatprep.mubr.f32.mxu0 0.0
      %899 = vmatmul.mubr.f32.gmra.mrb[0].mxu0 %v215
      %v900 = vpop.f32.mrb[0].mxu0
      %v901 = vadd.f32 %v796, %v900
      %v902 = vpop.f32.mrb[0].mxu0
      %903 = vmatprep.mubr.f32.mxu0 0.0
      %904 = vmatmul.mubr.f32.gmra.mrb[0].mxu0 %v224
      %v905 = vpop.f32.mrb[0].mxu0
      %v906 = vadd.f32 %v801, %v905
      %v907 = vpop.f32.mrb[0].mxu0
      %908 = vmatprep.mubr.f32.mxu0 0.0
      %909 = vmatmul.mubr.f32.gmra.mrb[0].mxu0 %v233
      %v910 = vpop.f32.mrb[0].mxu0
      %v911 = vadd.f32 %v806, %v910
      %v912 = vpop.f32.mrb[0].mxu0
      %913 = vmatprep.mubr.f32.mxu0 0.0
      %914 = vmatmul.mubr.f32.gmra.mrb[0].mxu0 %v242
      %v915 = vpop.f32.mrb[0].mxu0
      %v916 = vadd.f32 %v811, %v915
      %v917 = vpop.f32.mrb[0].mxu0
      %918 = vdwg.mxu0
      %vm919 = vcmask 523264
      %v920 = vsel %vm919, %v881, 0.0
      %v921 = vsel %vm919, %v886, 0.0
      %v922 = vadd.f32 %v920, %v921
      %v923 = vsel %vm919, %v891, 0.0
      %v924 = vadd.f32 %v922, %v923
      %v925 = vsel %vm919, %v896, 0.0
      %v926 = vadd.f32 %v924, %v925
      %v927 = vsel %vm919, %v901, 0.0
      %v928 = vadd.f32 %v926, %v927
      %v929 = vsel %vm919, %v906, 0.0
      %v930 = vadd.f32 %v928, %v929
      %v931 = vsel %vm919, %v911, 0.0
      %v932 = vadd.f32 %v930, %v931
      %v933 = vsel %vm919, %v916, 0.0
      %v934 = vadd.f32 %v932, %v933
      %v935 = vrot.slane %v934, 4
      %v936 = vadd.f32 %v934, %v935
      %v937 = vrot.slane %v936, 2
      %v938 = vadd.f32 %v936, %v937
      %v939 = vrot.slane %v938, 1
      %v940 = vadd.f32 %v938, %v939
      %v941 = vrcp.pop 64.0
      %v942 = vmul.f32 %v940, %v941
      %v943 = vsub.f32 %v881, %v942
      %v944 = vsub.f32 %v886, %v942
      %v945 = vsub.f32 %v891, %v942
      %v946 = vsub.f32 %v896, %v942
      %v947 = vsub.f32 %v901, %v942
      %v948 = vsub.f32 %v906, %v942
      %v949 = vsub.f32 %v911, %v942
      %v950 = vsub.f32 %v916, %v942
      %v951 = vmul.f32 %v943, %v943
      %v952 = vmul.f32 %v944, %v944
      %v953 = vmul.f32 %v945, %v945
      %v954 = vmul.f32 %v946, %v946
      %v955 = vmul.f32 %v947, %v947
      %v956 = vmul.f32 %v948, %v948
      %v957 = vmul.f32 %v949, %v949
      %v958 = vmul.f32 %v950, %v950
      %v959 = vsel %vm919, %v951, 0.0
      %v960 = vsel %vm919, %v952, 0.0
      %v961 = vadd.f32 %v959, %v960
      %v962 = vsel %vm919, %v953, 0.0
      %v963 = vadd.f32 %v961, %v962
      %v964 = vsel %vm919, %v954, 0.0
      %v965 = vadd.f32 %v963, %v964
      %v966 = vsel %vm919, %v955, 0.0
      %v967 = vadd.f32 %v965, %v966
      %v968 = vsel %vm919, %v956, 0.0
      %v969 = vadd.f32 %v967, %v968
      %v970 = vsel %vm919, %v957, 0.0
      %v971 = vadd.f32 %v969, %v970
      %v972 = vsel %vm919, %v958, 0.0
      %v973 = vadd.f32 %v971, %v972
      %v974 = vrot.slane %v973, 4
      %v975 = vadd.f32 %v973, %v974
      %v976 = vrot.slane %v975, 2
      %v977 = vadd.f32 %v975, %v976
      %v978 = vrot.slane %v977, 1
      %v979 = vadd.f32 %v977, %v978
      %v980 = vmul.f32 %v979, %v941
      %v981 = vadd.f32 %v980, 1e-05
      %v982 = vrsqrt.pop %v981
      %v983 = vmul.f32 %v943, %v982
      %v984 = vmul.f32 %v944, %v982
      %v985 = vmul.f32 %v945, %v982
      %v986 = vmul.f32 %v946, %v982
      %v987 = vmul.f32 %v947, %v982
      %v988 = vmul.f32 %v948, %v982
      %v989 = vmul.f32 %v949, %v982
      %v990 = vmul.f32 %v950, %v982
      %vm991 = vcmp.ge.f32.partialorder %v983, 0.0
      %vm992 = vcmp.ge.f32.partialorder %v984, 0.0
      %vm993 = vcmp.ge.f32.partialorder %v985, 0.0
      %vm994 = vcmp.ge.f32.partialorder %v986, 0.0
      %vm995 = vcmp.ge.f32.partialorder %v987, 0.0
      %vm996 = vcmp.ge.f32.partialorder %v988, 0.0
      %vm997 = vcmp.ge.f32.partialorder %v989, 0.0
      %vm998 = vcmp.ge.f32.partialorder %v990, 0.0
      %v999 = vmul.f32 %v983, 0.1
      %v1000 = vmul.f32 %v984, 0.1
      %v1001 = vmul.f32 %v985, 0.1
      %v1002 = vmul.f32 %v986, 0.1
      %v1003 = vmul.f32 %v987, 0.1
      %v1004 = vmul.f32 %v988, 0.1
      %v1005 = vmul.f32 %v989, 0.1
      %v1006 = vmul.f32 %v990, 0.1
      %v1007 = vsel %vm991, %v983, %v999
      %v1008 = vsel %vm992, %v984, %v1000
      %v1009 = vsel %vm993, %v985, %v1001
      %v1010 = vsel %vm994, %v986, %v1002
      %v1011 = vsel %vm995, %v987, %v1003
      %v1012 = vsel %vm996, %v988, %v1004
      %v1013 = vsel %vm997, %v989, %v1005
      %v1014 = vsel %vm998, %v990, %v1006
      %1015 = vst.msk [vmem:[%s170] sm:$0xff] %vm919, %v1007
      %1016 = vst.msk [vmem:[%s170 + $0x8] sm:$0xff] %vm919, %v1008
      %1017 = vst.msk [vmem:[%s170 + $0x10] sm:$0xff] %vm919, %v1009
      %1018 = vst.msk [vmem:[%s170 + $0x18] sm:$0xff] %vm919, %v1010
      %1019 = vst.msk [vmem:[%s170 + $0x20] sm:$0xff] %vm919, %v1011
      %1020 = vst.msk [vmem:[%s170 + $0x28] sm:$0xff] %vm919, %v1012
      %1021 = vst.msk [vmem:[%s170 + $0x30] sm:$0xff] %vm919, %v1013
      %1022 = vst.msk [vmem:[%s170 + $0x38] sm:$0xff] %vm919, %v1014
      %p1023 = scmp.lt.s32.totalorder %s14, 1
      %s1024 = scalar_select %p1023, %s14, 1
      %s1025 = smul.addr %s1024, 8
      %s1026 = smul.addr %s1025, 8
      %s1027 = scalar_lea.vmem %s3, %s1026
      // Predicated region
      $region33: #{unet_forward.22} parent=31 // pred_check
        %p1028 = pneg %p100
      $region34: #{unet_forward.22} parent=31 // pred_check_branch
        %1030 = sbr.rel (%p1028) target = $region36
      $region35: #{unet_forward.22} parent=31 // pred_region
        _
      $region36: #{unet_forward.22} parent=31 // pred_fallthru
        _
    $region32: #{unet_forward.22} parent=5 // pred_fallthru
      _
    %p1031 = scmp.le.s32.totalorder 2, %s9
    // Predicated region
    $region37: #{unet_forward.22} parent=5 // pred_check
      %p1032 = pneg %p1031
    $region38: #{unet_forward.22} parent=5 // pred_check_branch
      %1034 = sbr.rel (%p1032) target = $region40
    $region39: #{unet_forward.22} parent=5 // pred_region
      %s1035 = ssub.s32 %s9, 2
      // Predicated region
      $region41: #{unet_forward.22} parent=39 // pred_check
        %p1036 = pneg %p106
      $region42: #{unet_forward.22} parent=39 // pred_check_branch
        %1038 = sbr.rel (%p1036) target = $region44
      $region43: #{unet_forward.22} parent=39 // pred_region
        %p1039 = scmp.lt.s32.totalorder %s15, 1
        %s1040 = scalar_select %p1039, %s15, 1
        %s1041 = smul.addr %s1040, 8
        %s1042 = smul.addr %s1041, 8
        %s1043 = scalar_lea.vmem %s3, %s1042
      $region44: #{unet_forward.22} parent=39 // pred_fallthru
        _
    $region40: #{unet_forward.22} parent=5 // pred_fallthru
      _
  $region6: #{unet_forward.22} parent=0 // loop_footer
    %s13 = sadd.s32 1, %s9
  $region7: #{unet_forward.22} parent=0 // loop_footer_branch
    %8 = sbr.rel target = $region3
  $region8: #{unet_forward.22} parent=0 // loop_exit
    _

// kernel: unet_forward.25
$region0: #{unet_forward.25}
  #allocation0 [shape = 'u32[]', space=smem, size = 0x4, offset = 0x4, fixed_abs, tag = 'smem constant byte address 0x4 - core index']
  #allocation1 [shape = 'u32[144,128]{1,0:T(1,128)}', space=vmem, size = 0x12000, scoped, tag = 'internal scratch']
  %s0 = inlined_call_operand.vmem [shape: f32[2,256,576], index: 0, kind: input, shape index: {}]
  %s1 = inlined_call_operand.vmem [shape: f32[576,32], index: 1, kind: input, shape index: {}]
  %s2 = inlined_call_operand.vmem [shape: f32[1,32], index: 2, kind: input, shape index: {}]
  %s3 = inlined_call_operand.vmem [shape: f32[2,256,32], index: 3, kind: output, shape index: {}]
  %s4 = sld [smem:[#allocation0]]
  $region45: #{unet_forward.25} parent=0
    _
  %s6 = ssub.s32 1, %s4
  %s7 = scalar_select 0, %s6, %s4
  loop: start=0, step=1, limit=4
  $region2: #{unet_forward.25} parent=0 // loop_pre_header
    _
  $region3: #{unet_forward.25} parent=0 // loop_header
    %s9 = sphi 0, %s13
    %p10 = scmp.ge.s32.totalorder %s9, 4
    %s19 = sphi 0, %s21
    %s22 = sphi 0, %s19
    %s23 = sphi 0, %s22
    %s39 = sphi 0, %s23
    %s43 = sphi 0, %s43
    %s45 = sphi 0, %s43
    %s46 = sphi 0, %s45
    %s60 = sphi 0, %s46
    %s64 = sphi 0, %s64
    %s66 = sphi 0, %s64
    %s67 = sphi 0, %s66
    %s81 = sphi 0, %s67
    %s87 = sphi 0, %s89
    %s90 = sphi 0, %s87
    %s91 = sphi 0, %s90
    %s107 = sphi 0, %s91
  $region4: #{unet_forward.25} parent=0 // loop_header_branch
    %12 = sbr.rel (%p10) target = $region8
  $region5: #{unet_forward.25} parent=0 // loop_body
    %s14 = ssub.s32 %s9, 1
    %s15 = ssub.s32 %s9, 2
    %s16 = sadd.s32 %s9, 1
    %s17 = ssub.s32 %s9, %s16
    %p18 = scmp.eq.s32.totalorder %s17, 0
    %s20 = sadd.s32 %s19, 1
    %s21 = scalar_select %p18, %s19, %s20
    %p24 = pneg %p18
    %p25 = scmp.eq.s32.totalorder %s9, 1
    %p26 = por %p24, %p25
    %p27 = scmp.ne.s32.totalorder %s19, %s22
    %p28 = scmp.eq.s32.totalorder %s9, 0
    %p29 = por %p27, %p28
    %p30 = scmp.ne.s32.totalorder %s19, %s22
    %p31 = scmp.eq.s32.totalorder %s14, 1
    %p32 = por %p30, %p31
    %p33 = scmp.ne.s32.totalorder %s22, %s23
    %p34 = scmp.eq.s32.totalorder %s14, 0
    %p35 = por %p33, %p34
    %p36 = scmp.ne.s32.totalorder %s22, %s23
    %p37 = scmp.eq.s32.totalorder %s15, 1
    %p38 = por %p36, %p37
    %p40 = scmp.ne.s32.totalorder %s23, %s39
    %p41 = scmp.eq.s32.totalorder %s15, 0
    %p42 = por %p40, %p41
    %s44 = sadd.s32 %s43, 1
    %p47 = scmp.eq.s32.totalorder %s9, 1
    %p48 = scmp.ne.s32.totalorder %s43, %s45
    %p49 = scmp.eq.s32.totalorder %s9, 0
    %p50 = por %p48, %p49
    %p51 = scmp.ne.s32.totalorder %s43, %s45
    %p52 = scmp.eq.s32.totalorder %s14, 1
    %p53 = por %p51, %p52
    %p54 = scmp.ne.s32.totalorder %s45, %s46
    %p55 = scmp.eq.s32.totalorder %s14, 0
    %p56 = por %p54, %p55
    %p57 = scmp.ne.s32.totalorder %s45, %s46
    %p58 = scmp.eq.s32.totalorder %s15, 1
    %p59 = por %p57, %p58
    %p61 = scmp.ne.s32.totalorder %s46, %s60
    %p62 = scmp.eq.s32.totalorder %s15, 0
    %p63 = por %p61, %p62
    %s65 = sadd.s32 %s64, 1
    %p68 = scmp.eq.s32.totalorder %s9, 1
    %p69 = scmp.ne.s32.totalorder %s64, %s66
    %p70 = scmp.eq.s32.totalorder %s9, 0
    %p71 = por %p69, %p70
    %p72 = scmp.ne.s32.totalorder %s64, %s66
    %p73 = scmp.eq.s32.totalorder %s14, 1
    %p74 = por %p72, %p73
    %p75 = scmp.ne.s32.totalorder %s66, %s67
    %p76 = scmp.eq.s32.totalorder %s14, 0
    %p77 = por %p75, %p76
    %p78 = scmp.ne.s32.totalorder %s66, %s67
    %p79 = scmp.eq.s32.totalorder %s15, 1
    %p80 = por %p78, %p79
    %p82 = scmp.ne.s32.totalorder %s67, %s81
    %p83 = scmp.eq.s32.totalorder %s15, 0
    %p84 = por %p82, %p83
    %s85 = ssub.s32 %s9, %s16
    %p86 = scmp.eq.s32.totalorder %s85, 0
    %s88 = sadd.s32 %s87, 1
    %s89 = scalar_select %p86, %s87, %s88
    %p92 = pneg %p86
    %p93 = scmp.eq.s32.totalorder %s9, 1
    %p94 = por %p92, %p93
    %p95 = scmp.ne.s32.totalorder %s87, %s90
    %p96 = scmp.eq.s32.totalorder %s9, 0
    %p97 = por %p95, %p96
    %p98 = scmp.ne.s32.totalorder %s87, %s90
    %p99 = scmp.eq.s32.totalorder %s14, 1
    %p100 = por %p98, %p99
    %p101 = scmp.ne.s32.totalorder %s90, %s91
    %p102 = scmp.eq.s32.totalorder %s14, 0
    %p103 = por %p101, %p102
    %p104 = scmp.ne.s32.totalorder %s90, %s91
    %p105 = scmp.eq.s32.totalorder %s15, 1
    %p106 = por %p104, %p105
    %p108 = scmp.ne.s32.totalorder %s91, %s107
    %p109 = scmp.eq.s32.totalorder %s15, 0
    %p110 = por %p108, %p109
    %p111 = scmp.le.s32.totalorder 1, %s9
    %p112 = scmp.lt.s32.totalorder %s9, 3
    %p113 = pnand %p111, %p112
    %p114 = pneg %p113
    // Predicated region
    $region9: #{unet_forward.25} parent=5 // pred_check
      _
    $region10: #{unet_forward.25} parent=5 // pred_check_branch
      %116 = sbr.rel (%p113) target = $region12
    $region11: #{unet_forward.25} parent=5 // pred_region
      %s117 = ssub.s32 %s9, 1
      // Predicated region
      $region13: #{unet_forward.25} parent=11 // pred_check
        %p118 = pneg %p56
      $region14: #{unet_forward.25} parent=11 // pred_check_branch
        %120 = sbr.rel (%p118) target = $region16
      $region15: #{unet_forward.25} parent=11 // pred_region
        _
      $region16: #{unet_forward.25} parent=11 // pred_fallthru
        _
      // Predicated region
      $region17: #{unet_forward.25} parent=11 // pred_check
        %p121 = pneg %p77
      $region18: #{unet_forward.25} parent=11 // pred_check_branch
        %123 = sbr.rel (%p121) target = $region20
      $region19: #{unet_forward.25} parent=11 // pred_region
        _
      $region20: #{unet_forward.25} parent=11 // pred_fallthru
        _
    $region12: #{unet_forward.25} parent=5 // pred_fallthru
      _
    %p124 = scmp.lt.s32.totalorder %s9, 2
    // Predicated region
    $region21: #{unet_forward.25} parent=5 // pred_check
      %p125 = pneg %p124
    $region22: #{unet_forward.25} parent=5 // pred_check_branch
      %127 = sbr.rel (%p125) target = $region24
    $region23: #{unet_forward.25} parent=5 // pred_region
      // Predicated region
      $region25: #{unet_forward.25} parent=23 // pred_check
        %p128 = pneg %p29
      $region26: #{unet_forward.25} parent=23 // pred_check_branch
        %130 = sbr.rel (%p128) target = $region28
      $region27: #{unet_forward.25} parent=23 // pred_region
        %p131 = scmp.lt.s32.totalorder %s9, 1
        %s132 = scalar_select %p131, %s9, 1
        %s133 = smul.addr %s132, 160
        %s134 = smul.addr %s133, 8
        %s135 = scalar_lea.vmem %s0, %s134
      $region28: #{unet_forward.25} parent=23 // pred_fallthru
        _
    $region24: #{unet_forward.25} parent=5 // pred_fallthru
      _
    %p136 = scmp.le.s32.totalorder 1, %s9
    %p137 = scmp.lt.s32.totalorder %s9, 3
    %p138 = pnand %p136, %p137
    %p139 = pneg %p138
    // Predicated region
    $region29: #{unet_forward.25} parent=5 // pred_check
      _
    $region30: #{unet_forward.25} parent=5 // pred_check_branch
      %141 = sbr.rel (%p138) target = $region32
    $region31: #{unet_forward.25} parent=5 // pred_region
      %s142 = ssub.s32 %s9, 1
      %p143 = scmp.lt.s32.totalorder %s14, 1
      %s144 = scalar_select %p143, %s14, 1
      %s145 = smul.addr %s144, 160
      %s146 = smul.addr %s145, 8
      %s147 = scalar_lea.vmem %s0, %s146
      %p148 = pneg %p35
      %p149 = pneg %p32
      %p150 = pneg %p56
      %p151 = pneg %p53
      %p152 = pneg %p77
      %p153 = pneg %p74
      %p154 = pneg %p103
      %p155 = pneg %p100
      %p156 = scmp.lt.s32.totalorder %s14, 1
      %s157 = scalar_select %p156, %s14, 1
      %s158 = smul.addr %s157, 32
      %s159 = smul.addr %s158, 8
      %s160 = scalar_lea.vmem %s3, %s159
      %p161 = scmp.lt.s32.totalorder %s14, 1
      %s162 = scalar_select %p161, %s14, 1
      %s163 = smul.addr %s162, 160
      %s164 = smul.addr %s163, 8
      %s165 = scalar_lea.vmem %s0, %s164
      %p166 = scmp.lt.s32.totalorder %s14, 1
      %s167 = scalar_select %p166, %s14, 1
      %s168 = smul.addr %s167, 32
      %s169 = smul.addr %s168, 8
      %s170 = scalar_lea.vmem %s3, %s169
      %v171 = vld [vmem:[%s165] sm:$0xff]
      %v172 = vld [vmem:[%s165 + $0x8] sm:$0xff]
      %v173 = vld [vmem:[%s165 + $0x10] sm:$0xff]
      %v174 = vld [vmem:[%s165 + $0x18] sm:$0xff]
      %v175 = vld [vmem:[%s165 + $0x20] sm:$0xff]
      %v176 = vld [vmem:[%s165 + $0x28] sm:$0xff]
      %v177 = vld [vmem:[%s165 + $0x30] sm:$0xff]
      %v178 = vld [vmem:[%s165 + $0x38] sm:$0xff]
      %v179 = vld [vmem:[%s165 + $0x40] sm:$0xff]
      %v180 = vld [vmem:[%s165 + $0x48] sm:$0xff]
      %v181 = vld [vmem:[%s165 + $0x50] sm:$0xff]
      %v182 = vld [vmem:[%s165 + $0x58] sm:$0xff]
      %v183 = vld [vmem:[%s165 + $0x60] sm:$0xff]
      %v184 = vld [vmem:[%s165 + $0x68] sm:$0xff]
      %v185 = vld [vmem:[%s165 + $0x70] sm:$0xff]
      %v186 = vld [vmem:[%s165 + $0x78] sm:$0xff]
      %v187 = vld [vmem:[%s165 + $0x80] sm:$0xff]
      %v188 = vld [vmem:[%s165 + $0x88] sm:$0xff]
      %v189 = vld [vmem:[%s165 + $0x90] sm:$0xff]
      %v190 = vld [vmem:[%s165 + $0x98] sm:$0xff]
      %v191 = vld [vmem:[%s165 + $0xa0] sm:$0xff]
      %v192 = vld [vmem:[%s165 + $0xa8] sm:$0xff]
      %v193 = vld [vmem:[%s165 + $0xb0] sm:$0xff]
      %v194 = vld [vmem:[%s165 + $0xb8] sm:$0xff]
      %v195 = vld [vmem:[%s165 + $0xc0] sm:$0xff]
      %v196 = vld [vmem:[%s165 + $0xc8] sm:$0xff]
      %v197 = vld [vmem:[%s165 + $0xd0] sm:$0xff]
      %v198 = vld [vmem:[%s165 + $0xd8] sm:$0xff]
      %v199 = vld [vmem:[%s165 + $0xe0] sm:$0xff]
      %v200 = vld [vmem:[%s165 + $0xe8] sm:$0xff]
      %v201 = vld [vmem:[%s165 + $0xf0] sm:$0xff]
      %v202 = vld [vmem:[%s165 + $0xf8] sm:$0xff]
      %v203 = vld [vmem:[%s165 + $0x100] sm:$0xff]
      %v204 = vld [vmem:[%s165 + $0x108] sm:$0xff]
      %v205 = vld [vmem:[%s165 + $0x110] sm:$0xff]
      %v206 = vld [vmem:[%s165 + $0x118] sm:$0xff]
      %v207 = vld [vmem:[%s165 + $0x120] sm:$0xff]
      %v208 = vld [vmem:[%s165 + $0x128] sm:$0xff]
      %v209 = vld [vmem:[%s165 + $0x130] sm:$0xff]
      %v210 = vld [vmem:[%s165 + $0x138] sm:$0xff]
      %v211 = vld [vmem:[%s165 + $0x140] sm:$0xff]
      %v212 = vld [vmem:[%s165 + $0x148] sm:$0xff]
      %v213 = vld [vmem:[%s165 + $0x150] sm:$0xff]
      %v214 = vld [vmem:[%s165 + $0x158] sm:$0xff]
      %v215 = vld [vmem:[%s165 + $0x160] sm:$0xff]
      %v216 = vld [vmem:[%s165 + $0x168] sm:$0xff]
      %v217 = vld [vmem:[%s165 + $0x170] sm:$0xff]
      %v218 = vld [vmem:[%s165 + $0x178] sm:$0xff]
      %v219 = vld [vmem:[%s165 + $0x180] sm:$0xff]
      %v220 = vld [vmem:[%s165 + $0x188] sm:$0xff]
      %v221 = vld [vmem:[%s165 + $0x190] sm:$0xff]
      %v222 = vld [vmem:[%s165 + $0x198] sm:$0xff]
      %v223 = vld [vmem:[%s165 + $0x1a0] sm:$0xff]
      %v224 = vld [vmem:[%s165 + $0x1a8] sm:$0xff]
      %v225 = vld [vmem:[%s165 + $0x1b0] sm:$0xff]
      %v226 = vld [vmem:[%s165 + $0x1b8] sm:$0xff]
      %v227 = vld [vmem:[%s165 + $0x1c0] sm:$0xff]
      %v228 = vld [vmem:[%s165 + $0x1c8] sm:$0xff]
      %v229 = vld [vmem:[%s165 + $0x1d0] sm:$0xff]
      %v230 = vld [vmem:[%s165 + $0x1d8] sm:$0xff]
      %v231 = vld [vmem:[%s165 + $0x1e0] sm:$0xff]
      %v232 = vld [vmem:[%s165 + $0x1e8] sm:$0xff]
      %v233 = vld [vmem:[%s165 + $0x1f0] sm:$0xff]
      %v234 = vld [vmem:[%s165 + $0x1f8] sm:$0xff]
      %v235 = vld [vmem:[%s165 + $0x200] sm:$0xff]
      %v236 = vld [vmem:[%s165 + $0x208] sm:$0xff]
      %v237 = vld [vmem:[%s165 + $0x210] sm:$0xff]
      %v238 = vld [vmem:[%s165 + $0x218] sm:$0xff]
      %v239 = vld [vmem:[%s165 + $0x220] sm:$0xff]
      %v240 = vld [vmem:[%s165 + $0x228] sm:$0xff]
      %v241 = vld [vmem:[%s165 + $0x230] sm:$0xff]
      %v242 = vld [vmem:[%s165 + $0x238] sm:$0xff]
      %v243 = vld [vmem:[%s165 + $0x240] sm:$0xff]
      %v244 = vld [vmem:[%s165 + $0x248] sm:$0xff]
      %v245 = vld [vmem:[%s165 + $0x250] sm:$0xff]
      %v246 = vld [vmem:[%s165 + $0x258] sm:$0xff]
      %v247 = vld [vmem:[%s165 + $0x260] sm:$0xff]
      %v248 = vld [vmem:[%s165 + $0x268] sm:$0xff]
      %v249 = vld [vmem:[%s165 + $0x270] sm:$0xff]
      %v250 = vld [vmem:[%s165 + $0x278] sm:$0xff]
      %v251 = vld [vmem:[%s165 + $0x280] sm:$0xff]
      %v252 = vld [vmem:[%s165 + $0x288] sm:$0xff]
      %v253 = vld [vmem:[%s165 + $0x290] sm:$0xff]
      %v254 = vld [vmem:[%s165 + $0x298] sm:$0xff]
      %v255 = vld [vmem:[%s165 + $0x2a0] sm:$0xff]
      %v256 = vld [vmem:[%s165 + $0x2a8] sm:$0xff]
      %v257 = vld [vmem:[%s165 + $0x2b0] sm:$0xff]
      %v258 = vld [vmem:[%s165 + $0x2b8] sm:$0xff]
      %v259 = vld [vmem:[%s165 + $0x2c0] sm:$0xff]
      %v260 = vld [vmem:[%s165 + $0x2c8] sm:$0xff]
      %v261 = vld [vmem:[%s165 + $0x2d0] sm:$0xff]
      %v262 = vld [vmem:[%s165 + $0x2d8] sm:$0xff]
      %v263 = vld [vmem:[%s165 + $0x2e0] sm:$0xff]
      %v264 = vld [vmem:[%s165 + $0x2e8] sm:$0xff]
      %v265 = vld [vmem:[%s165 + $0x2f0] sm:$0xff]
      %v266 = vld [vmem:[%s165 + $0x2f8] sm:$0xff]
      %v267 = vld [vmem:[%s165 + $0x300] sm:$0xff]
      %v268 = vld [vmem:[%s165 + $0x308] sm:$0xff]
      %v269 = vld [vmem:[%s165 + $0x310] sm:$0xff]
      %v270 = vld [vmem:[%s165 + $0x318] sm:$0xff]
      %v271 = vld [vmem:[%s165 + $0x320] sm:$0xff]
      %v272 = vld [vmem:[%s165 + $0x328] sm:$0xff]
      %v273 = vld [vmem:[%s165 + $0x330] sm:$0xff]
      %v274 = vld [vmem:[%s165 + $0x338] sm:$0xff]
      %v275 = vld [vmem:[%s165 + $0x340] sm:$0xff]
      %v276 = vld [vmem:[%s165 + $0x348] sm:$0xff]
      %v277 = vld [vmem:[%s165 + $0x350] sm:$0xff]
      %v278 = vld [vmem:[%s165 + $0x358] sm:$0xff]
      %v279 = vld [vmem:[%s165 + $0x360] sm:$0xff]
      %v280 = vld [vmem:[%s165 + $0x368] sm:$0xff]
      %v281 = vld [vmem:[%s165 + $0x370] sm:$0xff]
      %v282 = vld [vmem:[%s165 + $0x378] sm:$0xff]
      %v283 = vld [vmem:[%s165 + $0x380] sm:$0xff]
      %v284 = vld [vmem:[%s165 + $0x388] sm:$0xff]
      %v285 = vld [vmem:[%s165 + $0x390] sm:$0xff]
      %v286 = vld [vmem:[%s165 + $0x398] sm:$0xff]
      %v287 = vld [vmem:[%s165 + $0x3a0] sm:$0xff]
      %v288 = vld [vmem:[%s165 + $0x3a8] sm:$0xff]
      %v289 = vld [vmem:[%s165 + $0x3b0] sm:$0xff]
      %v290 = vld [vmem:[%s165 + $0x3b8] sm:$0xff]
      %v291 = vld [vmem:[%s165 + $0x3c0] sm:$0xff]
      %v292 = vld [vmem:[%s165 + $0x3c8] sm:$0xff]
      %v293 = vld [vmem:[%s165 + $0x3d0] sm:$0xff]
      %v294 = vld [vmem:[%s165 + $0x3d8] sm:$0xff]
      %v295 = vld [vmem:[%s165 + $0x3e0] sm:$0xff]
      %v296 = vld [vmem:[%s165 + $0x3e8] sm:$0xff]
      %v297 = vld [vmem:[%s165 + $0x3f0] sm:$0xff]
      %v298 = vld [vmem:[%s165 + $0x3f8] sm:$0xff]
      %v299 = vld [vmem:[%s165 + $0x400] sm:$0xff]
      %v300 = vld [vmem:[%s165 + $0x408] sm:$0xff]
      %v301 = vld [vmem:[%s165 + $0x410] sm:$0xff]
      %v302 = vld [vmem:[%s165 + $0x418] sm:$0xff]
      %v303 = vld [vmem:[%s165 + $0x420] sm:$0xff]
      %v304 = vld [vmem:[%s165 + $0x428] sm:$0xff]
      %v305 = vld [vmem:[%s165 + $0x430] sm:$0xff]
      %v306 = vld [vmem:[%s165 + $0x438] sm:$0xff]
      %v307 = vld [vmem:[%s165 + $0x440] sm:$0xff]
      %v308 = vld [vmem:[%s165 + $0x448] sm:$0xff]
      %v309 = vld [vmem:[%s165 + $0x450] sm:$0xff]
      %v310 = vld [vmem:[%s165 + $0x458] sm:$0xff]
      %v311 = vld [vmem:[%s165 + $0x460] sm:$0xff]
      %v312 = vld [vmem:[%s165 + $0x468] sm:$0xff]
      %v313 = vld [vmem:[%s165 + $0x470] sm:$0xff]
      %v314 = vld [vmem:[%s165 + $0x478] sm:$0xff]
      %v315 = vld [vmem:[%s165 + $0x480] sm:$0xff]
      %v316 = vld [vmem:[%s165 + $0x488] sm:$0xff]
      %v317 = vld [vmem:[%s165 + $0x490] sm:$0xff]
      %v318 = vld [vmem:[%s165 + $0x498] sm:$0xff]
      %v319 = vld [vmem:[%s165 + $0x4a0] sm:$0xff]
      %v320 = vld [vmem:[%s165 + $0x4a8] sm:$0xff]
      %v321 = vld [vmem:[%s165 + $0x4b0] sm:$0xff]
      %v322 = vld [vmem:[%s165 + $0x4b8] sm:$0xff]
      %v323 = vld [vmem:[%s165 + $0x4c0] sm:$0xff]
      %v324 = vld [vmem:[%s165 + $0x4c8] sm:$0xff]
      %v325 = vld [vmem:[%s165 + $0x4d0] sm:$0xff]
      %v326 = vld [vmem:[%s165 + $0x4d8] sm:$0xff]
      %v327 = vld [vmem:[%s165 + $0x4e0] sm:$0xff]
      %v328 = vld [vmem:[%s165 + $0x4e8] sm:$0xff]
      %v329 = vld [vmem:[%s165 + $0x4f0] sm:$0xff]
      %v330 = vld [vmem:[%s165 + $0x4f8] sm:$0xff]
      %v331 = vld [vmem:[%s1] sm:$0xff]
      %v332 = vld [vmem:[%s1 + $0x8] sm:$0xff]
      %v333 = vld [vmem:[%s1 + $0x10] sm:$0xff]
      %v334 = vld [vmem:[%s1 + $0x18] sm:$0xff]
      %v335 = vld [vmem:[%s1 + $0x20] sm:$0xff]
      %v336 = vld [vmem:[%s1 + $0x28] sm:$0xff]
      %v337 = vld [vmem:[%s1 + $0x30] sm:$0xff]
      %v338 = vld [vmem:[%s1 + $0x38] sm:$0xff]
      %v339 = vld [vmem:[%s1 + $0x40] sm:$0xff]
      %v340 = vld [vmem:[%s1 + $0x48] sm:$0xff]
      %v341 = vld [vmem:[%s1 + $0x50] sm:$0xff]
      %v342 = vld [vmem:[%s1 + $0x58] sm:$0xff]
      %v343 = vld [vmem:[%s1 + $0x60] sm:$0xff]
      %v344 = vld [vmem:[%s1 + $0x68] sm:$0xff]
      %v345 = vld [vmem:[%s1 + $0x70] sm:$0xff]
      %v346 = vld [vmem:[%s1 + $0x78] sm:$0xff]
      %v347 = vld [vmem:[%s1 + $0x80] sm:$0xff]
      %v348 = vld [vmem:[%s1 + $0x88] sm:$0xff]
      %v349 = vld [vmem:[%s1 + $0x90] sm:$0xff]
      %v350 = vld [vmem:[%s1 + $0x98] sm:$0xff]
      %v351 = vld [vmem:[%s1 + $0xa0] sm:$0xff]
      %v352 = vld [vmem:[%s1 + $0xa8] sm:$0xff]
      %v353 = vld [vmem:[%s1 + $0xb0] sm:$0xff]
      %v354 = vld [vmem:[%s1 + $0xb8] sm:$0xff]
      %v355 = vld [vmem:[%s1 + $0xc0] sm:$0xff]
      %v356 = vld [vmem:[%s1 + $0xc8] sm:$0xff]
      %v357 = vld [vmem:[%s1 + $0xd0] sm:$0xff]
      %v358 = vld [vmem:[%s1 + $0xd8] sm:$0xff]
      %v359 = vld [vmem:[%s1 + $0xe0] sm:$0xff]
      %v360 = vld [vmem:[%s1 + $0xe8] sm:$0xff]
      %v361 = vld [vmem:[%s1 + $0xf0] sm:$0xff]
      %v362 = vld [vmem:[%s1 + $0xf8] sm:$0xff]
      %v363 = vld [vmem:[%s1 + $0x100] sm:$0xff]
      %v364 = vld [vmem:[%s1 + $0x108] sm:$0xff]
      %v365 = vld [vmem:[%s1 + $0x110] sm:$0xff]
      %v366 = vld [vmem:[%s1 + $0x118] sm:$0xff]
      %v367 = vld [vmem:[%s1 + $0x120] sm:$0xff]
      %v368 = vld [vmem:[%s1 + $0x128] sm:$0xff]
      %v369 = vld [vmem:[%s1 + $0x130] sm:$0xff]
      %v370 = vld [vmem:[%s1 + $0x138] sm:$0xff]
      %v371 = vld [vmem:[%s1 + $0x140] sm:$0xff]
      %v372 = vld [vmem:[%s1 + $0x148] sm:$0xff]
      %v373 = vld [vmem:[%s1 + $0x150] sm:$0xff]
      %v374 = vld [vmem:[%s1 + $0x158] sm:$0xff]
      %v375 = vld [vmem:[%s1 + $0x160] sm:$0xff]
      %v376 = vld [vmem:[%s1 + $0x168] sm:$0xff]
      %v377 = vld [vmem:[%s1 + $0x170] sm:$0xff]
      %v378 = vld [vmem:[%s1 + $0x178] sm:$0xff]
      %v379 = vld [vmem:[%s1 + $0x180] sm:$0xff]
      %v380 = vld [vmem:[%s1 + $0x188] sm:$0xff]
      %v381 = vld [vmem:[%s1 + $0x190] sm:$0xff]
      %v382 = vld [vmem:[%s1 + $0x198] sm:$0xff]
      %v383 = vld [vmem:[%s1 + $0x1a0] sm:$0xff]
      %v384 = vld [vmem:[%s1 + $0x1a8] sm:$0xff]
      %v385 = vld [vmem:[%s1 + $0x1b0] sm:$0xff]
      %v386 = vld [vmem:[%s1 + $0x1b8] sm:$0xff]
      %v387 = vld [vmem:[%s1 + $0x1c0] sm:$0xff]
      %v388 = vld [vmem:[%s1 + $0x1c8] sm:$0xff]
      %v389 = vld [vmem:[%s1 + $0x1d0] sm:$0xff]
      %v390 = vld [vmem:[%s1 + $0x1d8] sm:$0xff]
      %v391 = vld [vmem:[%s1 + $0x1e0] sm:$0xff]
      %v392 = vld [vmem:[%s1 + $0x1e8] sm:$0xff]
      %v393 = vld [vmem:[%s1 + $0x1f0] sm:$0xff]
      %v394 = vld [vmem:[%s1 + $0x1f8] sm:$0xff]
      %v395 = vld [vmem:[%s1 + $0x200] sm:$0xff]
      %v396 = vld [vmem:[%s1 + $0x208] sm:$0xff]
      %v397 = vld [vmem:[%s1 + $0x210] sm:$0xff]
      %v398 = vld [vmem:[%s1 + $0x218] sm:$0xff]
      %v399 = vld [vmem:[%s1 + $0x220] sm:$0xff]
      %v400 = vld [vmem:[%s1 + $0x228] sm:$0xff]
      %v401 = vld [vmem:[%s1 + $0x230] sm:$0xff]
      %v402 = vld [vmem:[%s1 + $0x238] sm:$0xff]
      %v403 = vld [vmem:[%s2] sm:$0x1]
      %v405 = vlaneseq
      %v406 = vshrl.u32 %v405, 7
      %v407 = vsub.s32 0, %v406
      %v408 = vrot.slane %v403, %v407
      %vm410 = vcmask 523264
      %v412 = vsel %vm410, %v175, 0
      %v415 = vsel %vm410, %v180, 0
      %v418 = vsel %vm410, %v185, 0
      %v421 = vsel %vm410, %v190, 0
      %v424 = vsel %vm410, %v195, 0
      %v427 = vsel %vm410, %v200, 0
      %v430 = vsel %vm410, %v205, 0
      %v433 = vsel %vm410, %v210, 0
      %v436 = vsel %vm410, %v215, 0
      %v439 = vsel %vm410, %v220, 0
      %v442 = vsel %vm410, %v225, 0
      %v445 = vsel %vm410, %v230, 0
      %v448 = vsel %vm410, %v235, 0
      %v451 = vsel %vm410, %v240, 0
      %v454 = vsel %vm410, %v245, 0
      %v457 = vsel %vm410, %v250, 0
      %v460 = vsel %vm410, %v255, 0
      %v463 = vsel %vm410, %v260, 0
      %v466 = vsel %vm410, %v265, 0
      %v469 = vsel %vm410, %v270, 0
      %v472 = vsel %vm410, %v275, 0
      %v475 = vsel %vm410, %v280, 0
      %v478 = vsel %vm410, %v285, 0
      %v481 = vsel %vm410, %v290, 0
      %v484 = vsel %vm410, %v295, 0
      %v487 = vsel %vm410, %v300, 0
      %v490 = vsel %vm410, %v305, 0
      %v493 = vsel %vm410, %v310, 0
      %v496 = vsel %vm410, %v315, 0
      %v499 = vsel %vm410, %v320, 0
      %v502 = vsel %vm410, %v325, 0
      %v505 = vsel %vm410, %v330, 0
      %507 = vmatprep.subr.mxu0 0.0
      %508 = vmatpush1.msra.mxu0 %v331
      %509 = vmatprep.subr.mxu0 0.0
      %510 = vmatpush1.msra.mxu0 %v332
      %511 = vmatprep.subr.mxu0 0.0
      %512 = vmatpush1.msra.mxu0 %v333
      %513 = vmatprep.subr.mxu0 0.0
      %514 = vmatpush1.msra.mxu0 %v334
      %515 = vmatprep.subr.mxu0 0.0
      %516 = vmatpush1.msra.mxu0 %v335
      %517 = vmatprep.subr.mxu0 0.0
      %518 = vmatpush1.msra.mxu0 %v336
      %519 = vmatprep.subr.mxu0 0.0
      %520 = vmatpush1.msra.mxu0 %v337
      %521 = vmatprep.subr.mxu0 0.0
      %522 = vmatpush1.msra.mxu0 %v338
      %523 = vmatprep.subr.mxu0 0.0
      %524 = vmatpush1.msra.mxu0 %v339
      %525 = vmatprep.subr.mxu0 0.0
      %526 = vmatpush1.msra.mxu0 %v340
      %527 = vmatprep.subr.mxu0 0.0
      %528 = vmatpush1.msra.mxu0 %v341
      %529 = vmatprep.subr.mxu0 0.0
      %530 = vmatpush1.msra.mxu0 %v342
      %531 = vmatprep.subr.mxu0 0.0
      %532 = vmatpush1.msra.mxu0 %v343
      %533 = vmatprep.subr.mxu0 0.0
      %534 = vmatpush1.msra.mxu0 %v344
      %535 = vmatprep.subr.mxu0 0.0
      %536 = vmatpush1.msra.mxu0 %v345
      %537 = vmatprep.subr.mxu0 0.0
      %538 = vmatpush1.msra.mxu0 %v346
      %539 = vmatprep.subr.mxu0 0.0
      %540 = vmatpush1.msra.mxu0 %v347
      %541 = vmatprep.subr.mxu0 0.0
      %542 = vmatpush1.msra.mxu0 %v348
      %543 = vmatprep.subr.mxu0 0.0
      %544 = vmatpush1.msra.mxu0 %v349
      %545 = vmatprep.subr.mxu0 0.0
      %546 = vmatpush1.msra.mxu0 %v350
      %547 = vmatprep.subr.mxu0 0.0
      %548 = vmatpush1.msra.mxu0 %v351
      %549 = vmatprep.subr.mxu0 0.0
      %550 = vmatpush1.msra.mxu0 %v352
      %551 = vmatprep.subr.mxu0 0.0
      %552 = vmatpush1.msra.mxu0 %v353
      %553 = vmatprep.subr.mxu0 0.0
      %554 = vmatpush1.msra.mxu0 %v354
      %555 = vmatprep.subr.mxu0 0.0
      %556 = vmatpush1.msra.mxu0 %v355
      %557 = vmatprep.subr.mxu0 0.0
      %558 = vmatpush1.msra.mxu0 %v356
      %559 = vmatprep.subr.mxu0 0.0
      %560 = vmatpush1.msra.mxu0 %v357
      %561 = vmatprep.subr.mxu0 0.0
      %562 = vmatpush1.msra.mxu0 %v358
      %563 = vmatprep.subr.mxu0 0.0
      %564 = vmatpush1.msra.mxu0 %v359
      %565 = vmatprep.subr.mxu0 0.0
      %566 = vmatpush1.msra.mxu0 %v360
      %567 = vmatprep.subr.mxu0 0.0
      %568 = vmatpush1.msra.mxu0 %v361
      %569 = vmatprep.subr.mxu0 0.0
      %570 = vmatpush1.msra.mxu0 %v362
      %571 = vmatprep.mubr.f32.mxu0 %v172
      %572 = vmatmul.mubr.f32.gmra.mrb[0].mxu0 %v171
      %v573 = vpop.f32.mrb[0].mxu0
      %v574 = vadd.f32 %v408, %v573
      %v575 = vpop.f32.mrb[0].mxu0
      %576 = vmatprep.mubr.f32.mxu0 %v177
      %577 = vmatmul.mubr.f32.gmra.mrb[0].mxu0 %v176
      %v578 = vpop.f32.mrb[0].mxu0
      %v579 = vadd.f32 %v408, %v578
      %v580 = vpop.f32.mrb[0].mxu0
      %581 = vmatprep.mubr.f32.mxu0 %v182
      %582 = vmatmul.mubr.f32.gmra.mrb[0].mxu0 %v181
      %v583 = vpop.f32.mrb[0].mxu0
      %v584 = vadd.f32 %v408, %v583
      %v585 = vpop.f32.mrb[0].mxu0
      %586 = vmatprep.mubr.f32.mxu0 %v187
      %587 = vmatmul.mubr.f32.gmra.mrb[0].mxu0 %v186
      %v588 = vpop.f32.mrb[0].mxu0
      %v589 = vadd.f32 %v408, %v588
      %v590 = vpop.f32.mrb[0].mxu0
      %591 = vmatprep.mubr.f32.mxu0 %v192
      %592 = vmatmul.mubr.f32.gmra.mrb[0].mxu0 %v191
      %v593 = vpop.f32.mrb[0].mxu0
      %v594 = vadd.f32 %v408, %v593
      %v595 = vpop.f32.mrb[0].mxu0
      %596 = vmatprep.mubr.f32.mxu0 %v197
      %597 = vmatmul.mubr.f32.gmra.mrb[0].mxu0 %v196
      %v598 = vpop.f32.mrb[0].mxu0
      %v599 = vadd.f32 %v408, %v598
      %v600 = vpop.f32.mrb[0].mxu0
      %601 = vmatprep.mubr.f32.mxu0 %v202
      %602 = vmatmul.mubr.f32.gmra.mrb[0].mxu0 %v201
      %v603 = vpop.f32.mrb[0].mxu0
      %v604 = vadd.f32 %v408, %v603
      %v605 = vpop.f32.mrb[0].mxu0
      %606 = vmatprep.mubr.f32.mxu0 %v207
      %607 = vmatmul.mubr.f32.gmra.mrb[0].mxu0 %v206
      %v608 = vpop.f32.mrb[0].mxu0
      %v609 = vadd.f32 %v408, %v608
      %v610 = vpop.f32.mrb[0].mxu0
      %611 = vmatprep.mubr.f32.mxu0 %v212
      %612 = vmatmul.mubr.f32.gmra.mrb[0].mxu0 %v211
      %v613 = vpop.f32.mrb[0].mxu0
      %v614 = vadd.f32 %v408, %v613
      %v615 = vpop.f32.mrb[0].mxu0
      %616 = vmatprep.mubr.f32.mxu0 %v217
      %617 = vmatmul.mubr.f32.gmra.mrb[0].mxu0 %v216
      %v618 = vpop.f32.mrb[0].mxu0
      %v619 = vadd.f32 %v408, %v618
      %v620 = vpop.f32.mrb[0].mxu0
      %621 = vmatprep.mubr.f32.mxu0 %v222
      %622 = vmatmul.mubr.f32.gmra.mrb[0].mxu0 %v221
      %v623 = vpop.f32.mrb[0].mxu0
      %v624 = vadd.f32 %v408, %v623
      %v625 = vpop.f32.mrb[0].mxu0
      %626 = vmatprep.mubr.f32.mxu0 %v227
      %627 = vmatmul.mubr.f32.gmra.mrb[0].mxu0 %v226
      %v628 = vpop.f32.mrb[0].mxu0
      %v629 = vadd.f32 %v408, %v628
      %v630 = vpop.f32.mrb[0].mxu0
      %631 = vmatprep.mubr.f32.mxu0 %v232
      %632 = vmatmul.mubr.f32.gmra.mrb[0].mxu0 %v231
      %v633 = vpop.f32.mrb[0].mxu0
      %v634 = vadd.f32 %v408, %v633
      %v635 = vpop.f32.mrb[0].mxu0
      %636 = vmatprep.mubr.f32.mxu0 %v237
      %637 = vmatmul.mubr.f32.gmra.mrb[0].mxu0 %v236
      %v638 = vpop.f32.mrb[0].mxu0
      %v639 = vadd.f32 %v408, %v638
      %v640 = vpop.f32.mrb[0].mxu0
      %641 = vmatprep.mubr.f32.mxu0 %v242
      %642 = vmatmul.mubr.f32.gmra.mrb[0].mxu0 %v241
      %v643 = vpop.f32.mrb[0].mxu0
      %v644 = vadd.f32 %v408, %v643
      %v645 = vpop.f32.mrb[0].mxu0
      %646 = vmatprep.mubr.f32.mxu0 %v247
      %647 = vmatmul.mubr.f32.gmra.mrb[0].mxu0 %v246
      %v648 = vpop.f32.mrb[0].mxu0
      %v649 = vadd.f32 %v408, %v648
      %v650 = vpop.f32.mrb[0].mxu0
      %651 = vmatprep.mubr.f32.mxu0 %v252
      %652 = vmatmul.mubr.f32.gmra.mrb[0].mxu0 %v251
      %v653 = vpop.f32.mrb[0].mxu0
      %v654 = vadd.f32 %v408, %v653
      %v655 = vpop.f32.mrb[0].mxu0
      %656 = vmatprep.mubr.f32.mxu0 %v257
      %657 = vmatmul.mubr.f32.gmra.mrb[0].mxu0 %v256
      %v658 = vpop.f32.mrb[0].mxu0
      %v659 = vadd.f32 %v408, %v658
      %v660 = vpop.f32.mrb[0].mxu0
      %661 = vmatprep.mubr.f32.mxu0 %v262
      %662 = vmatmul.mubr.f32.gmra.mrb[0].mxu0 %v261
      %v663 = vpop.f32.mrb[0].mxu0
      %v664 = vadd.f32 %v408, %v663
      %v665 = vpop.f32.mrb[0].mxu0
      %666 = vmatprep.mubr.f32.mxu0 %v267
      %667 = vmatmul.mubr.f32.gmra.mrb[0].mxu0 %v266
      %v668 = vpop.f32.mrb[0].mxu0
      %v669 = vadd.f32 %v408, %v668
      %v670 = vpop.f32.mrb[0].mxu0
      %671 = vmatprep.mubr.f32.mxu0 %v272
      %672 = vmatmul.mubr.f32.gmra.mrb[0].mxu0 %v271
      %v673 = vpop.f32.mrb[0].mxu0
      %v674 = vadd.f32 %v408, %v673
      %v675 = vpop.f32.mrb[0].mxu0
      %676 = vmatprep.mubr.f32.mxu0 %v277
      %677 = vmatmul.mubr.f32.gmra.mrb[0].mxu0 %v276
      %v678 = vpop.f32.mrb[0].mxu0
      %v679 = vadd.f32 %v408, %v678
      %v680 = vpop.f32.mrb[0].mxu0
      %681 = vmatprep.mubr.f32.mxu0 %v282
      %682 = vmatmul.mubr.f32.gmra.mrb[0].mxu0 %v281
      %v683 = vpop.f32.mrb[0].mxu0
      %v684 = vadd.f32 %v408, %v683
      %v685 = vpop.f32.mrb[0].mxu0
      %686 = vmatprep.mubr.f32.mxu0 %v287
      %687 = vmatmul.mubr.f32.gmra.mrb[0].mxu0 %v286
      %v688 = vpop.f32.mrb[0].mxu0
      %v689 = vadd.f32 %v408, %v688
      %v690 = vpop.f32.mrb[0].mxu0
      %691 = vmatprep.mubr.f32.mxu0 %v292
      %692 = vmatmul.mubr.f32.gmra.mrb[0].mxu0 %v291
      %v693 = vpop.f32.mrb[0].mxu0
      %v694 = vadd.f32 %v408, %v693
      %v695 = vpop.f32.mrb[0].mxu0
      %696 = vmatprep.mubr.f32.mxu0 %v297
      %697 = vmatmul.mubr.f32.gmra.mrb[0].mxu0 %v296
      %v698 = vpop.f32.mrb[0].mxu0
      %v699 = vadd.f32 %v408, %v698
      %v700 = vpop.f32.mrb[0].mxu0
      %701 = vmatprep.mubr.f32.mxu0 %v302
      %702 = vmatmul.mubr.f32.gmra.mrb[0].mxu0 %v301
      %v703 = vpop.f32.mrb[0].mxu0
      %v704 = vadd.f32 %v408, %v703
      %v705 = vpop.f32.mrb[0].mxu0
      %706 = vmatprep.mubr.f32.mxu0 %v307
      %707 = vmatmul.mubr.f32.gmra.mrb[0].mxu0 %v306
      %v708 = vpop.f32.mrb[0].mxu0
      %v709 = vadd.f32 %v408, %v708
      %v710 = vpop.f32.mrb[0].mxu0
      %711 = vmatprep.mubr.f32.mxu0 %v312
      %712 = vmatmul.mubr.f32.gmra.mrb[0].mxu0 %v311
      %v713 = vpop.f32.mrb[0].mxu0
      %v714 = vadd.f32 %v408, %v713
      %v715 = vpop.f32.mrb[0].mxu0
      %716 = vmatprep.mubr.f32.mxu0 %v317
      %717 = vmatmul.mubr.f32.gmra.mrb[0].mxu0 %v316
      %v718 = vpop.f32.mrb[0].mxu0
      %v719 = vadd.f32 %v408, %v718
      %v720 = vpop.f32.mrb[0].mxu0
      %721 = vmatprep.mubr.f32.mxu0 %v322
      %722 = vmatmul.mubr.f32.gmra.mrb[0].mxu0 %v321
      %v723 = vpop.f32.mrb[0].mxu0
      %v724 = vadd.f32 %v408, %v723
      %v725 = vpop.f32.mrb[0].mxu0
      %726 = vmatprep.mubr.f32.mxu0 %v327
      %727 = vmatmul.mubr.f32.gmra.mrb[0].mxu0 %v326
      %v728 = vpop.f32.mrb[0].mxu0
      %v729 = vadd.f32 %v408, %v728
      %v730 = vpop.f32.mrb[0].mxu0
      %731 = vdwg.mxu0
      %732 = vmatprep.subr.mxu0 0.0
      %733 = vmatpush1.msra.mxu0 %v363
      %734 = vmatprep.subr.mxu0 0.0
      %735 = vmatpush1.msra.mxu0 %v364
      %736 = vmatprep.subr.mxu0 0.0
      %737 = vmatpush1.msra.mxu0 %v365
      %738 = vmatprep.subr.mxu0 0.0
      %739 = vmatpush1.msra.mxu0 %v366
      %740 = vmatprep.subr.mxu0 0.0
      %741 = vmatpush1.msra.mxu0 %v367
      %742 = vmatprep.subr.mxu0 0.0
      %743 = vmatpush1.msra.mxu0 %v368
      %744 = vmatprep.subr.mxu0 0.0
      %745 = vmatpush1.msra.mxu0 %v369
      %746 = vmatprep.subr.mxu0 0.0
      %747 = vmatpush1.msra.mxu0 %v370
      %748 = vmatprep.subr.mxu0 0.0
      %749 = vmatpush1.msra.mxu0 %v371
      %750 = vmatprep.subr.mxu0 0.0
      %751 = vmatpush1.msra.mxu0 %v372
      %752 = vmatprep.subr.mxu0 0.0
      %753 = vmatpush1.msra.mxu0 %v373
      %754 = vmatprep.subr.mxu0 0.0
      %755 = vmatpush1.msra.mxu0 %v374
      %756 = vmatprep.subr.mxu0 0.0
      %757 = vmatpush1.msra.mxu0 %v375
      %758 = vmatprep.subr.mxu0 0.0
      %759 = vmatpush1.msra.mxu0 %v376
      %760 = vmatprep.subr.mxu0 0.0
      %761 = vmatpush1.msra.mxu0 %v377
      %762 = vmatprep.subr.mxu0 0.0
      %763 = vmatpush1.msra.mxu0 %v378
      %764 = vmatprep.subr.mxu0 0.0
      %765 = vmatpush1.msra.mxu0 %v379
      %766 = vmatprep.subr.mxu0 0.0
      %767 = vmatpush1.msra.mxu0 %v380
      %768 = vmatprep.subr.mxu0 0.0
      %769 = vmatpush1.msra.mxu0 %v381
      %770 = vmatprep.subr.mxu0 0.0
      %771 = vmatpush1.msra.mxu0 %v382
      %772 = vmatprep.subr.mxu0 0.0
      %773 = vmatpush1.msra.mxu0 %v383
      %774 = vmatprep.subr.mxu0 0.0
      %775 = vmatpush1.msra.mxu0 %v384
      %776 = vmatprep.subr.mxu0 0.0
      %777 = vmatpush1.msra.mxu0 %v385
      %778 = vmatprep.subr.mxu0 0.0
      %779 = vmatpush1.msra.mxu0 %v386
      %780 = vmatprep.subr.mxu0 0.0
      %781 = vmatpush1.msra.mxu0 %v387
      %782 = vmatprep.subr.mxu0 0.0
      %783 = vmatpush1.msra.mxu0 %v388
      %784 = vmatprep.subr.mxu0 0.0
      %785 = vmatpush1.msra.mxu0 %v389
      %786 = vmatprep.subr.mxu0 0.0
      %787 = vmatpush1.msra.mxu0 %v390
      %788 = vmatprep.subr.mxu0 0.0
      %789 = vmatpush1.msra.mxu0 %v391
      %790 = vmatprep.subr.mxu0 0.0
      %791 = vmatpush1.msra.mxu0 %v392
      %792 = vmatprep.subr.mxu0 0.0
      %793 = vmatpush1.msra.mxu0 %v393
      %794 = vmatprep.subr.mxu0 0.0
      %795 = vmatpush1.msra.mxu0 %v394
      %796 = vmatprep.mubr.f32.mxu0 %v174
      %797 = vmatmul.mubr.f32.gmra.mrb[0].mxu0 %v173
      %v798 = vpop.f32.mrb[0].mxu0
      %v799 = vadd.f32 %v574, %v798
      %v800 = vpop.f32.mrb[0].mxu0
      %801 = vmatprep.mubr.f32.mxu0 %v179
      %802 = vmatmul.mubr.f32.gmra.mrb[0].mxu0 %v178
      %v803 = vpop.f32.mrb[0].mxu0
      %v804 = vadd.f32 %v579, %v803
      %v805 = vpop.f32.mrb[0].mxu0
      %806 = vmatprep.mubr.f32.mxu0 %v184
      %807 = vmatmul.mubr.f32.gmra.mrb[0].mxu0 %v183
      %v808 = vpop.f32.mrb[0].mxu0
      %v809 = vadd.f32 %v584, %v808
      %v810 = vpop.f32.mrb[0].mxu0
      %811 = vmatprep.mubr.f32.mxu0 %v189
      %812 = vmatmul.mubr.f32.gmra.mrb[0].mxu0 %v188
      %v813 = vpop.f32.mrb[0].mxu0
      %v814 = vadd.f32 %v589, %v813
      %v815 = vpop.f32.mrb[0].mxu0
      %816 = vmatprep.mubr.f32.mxu0 %v194
      %817 = vmatmul.mubr.f32.gmra.mrb[0].mxu0 %v193
      %v818 = vpop.f32.mrb[0].mxu0
      %v819 = vadd.f32 %v594, %v818
      %v820 = vpop.f32.mrb[0].mxu0
      %821 = vmatprep.mubr.f32.mxu0 %v199
      %822 = vmatmul.mubr.f32.gmra.mrb[0].mxu0 %v198
      %v823 = vpop.f32.mrb[0].mxu0
      %v824 = vadd.f32 %v599, %v823
      %v825 = vpop.f32.mrb[0].mxu0
      %826 = vmatprep.mubr.f32.mxu0 %v204
      %827 = vmatmul.mubr.f32.gmra.mrb[0].mxu0 %v203
      %v828 = vpop.f32.mrb[0].mxu0
      %v829 = vadd.f32 %v604, %v828
      %v830 = vpop.f32.mrb[0].mxu0
      %831 = vmatprep.mubr.f32.mxu0 %v209
      %832 = vmatmul.mubr.f32.gmra.mrb[0].mxu0 %v208
      %v833 = vpop.f32.mrb[0].mxu0
      %v834 = vadd.f32 %v609, %v833
      %v835 = vpop.f32.mrb[0].mxu0
      %836 = vmatprep.mubr.f32.mxu0 %v214
      %837 = vmatmul.mubr.f32.gmra.mrb[0].mxu0 %v213
      %v838 = vpop.f32.mrb[0].mxu0
      %v839 = vadd.f32 %v614, %v838
      %v840 = vpop.f32.mrb[0].mxu0
      %841 = vmatprep.mubr.f32.mxu0 %v219
      %842 = vmatmul.mubr.f32.gmra.mrb[0].mxu0 %v218
      %v843 = vpop.f32.mrb[0].mxu0
      %v844 = vadd.f32 %v619, %v843
      %v845 = vpop.f32.mrb[0].mxu0
      %846 = vmatprep.mubr.f32.mxu0 %v224
      %847 = vmatmul.mubr.f32.gmra.mrb[0].mxu0 %v223
      %v848 = vpop.f32.mrb[0].mxu0
      %v849 = vadd.f32 %v624, %v848
      %v850 = vpop.f32.mrb[0].mxu0
      %851 = vmatprep.mubr.f32.mxu0 %v229
      %852 = vmatmul.mubr.f32.gmra.mrb[0].mxu0 %v228
      %v853 = vpop.f32.mrb[0].mxu0
      %v854 = vadd.f32 %v629, %v853
      %v855 = vpop.f32.mrb[0].mxu0
      %856 = vmatprep.mubr.f32.mxu0 %v234
      %857 = vmatmul.mubr.f32.gmra.mrb[0].mxu0 %v233
      %v858 = vpop.f32.mrb[0].mxu0
      %v859 = vadd.f32 %v634, %v858
      %v860 = vpop.f32.mrb[0].mxu0
      %861 = vmatprep.mubr.f32.mxu0 %v239
      %862 = vmatmul.mubr.f32.gmra.mrb[0].mxu0 %v238
      %v863 = vpop.f32.mrb[0].mxu0
      %v864 = vadd.f32 %v639, %v863
      %v865 = vpop.f32.mrb[0].mxu0
      %866 = vmatprep.mubr.f32.mxu0 %v244
      %867 = vmatmul.mubr.f32.gmra.mrb[0].mxu0 %v243
      %v868 = vpop.f32.mrb[0].mxu0
      %v869 = vadd.f32 %v644, %v868
      %v870 = vpop.f32.mrb[0].mxu0
      %871 = vmatprep.mubr.f32.mxu0 %v249
      %872 = vmatmul.mubr.f32.gmra.mrb[0].mxu0 %v248
      %v873 = vpop.f32.mrb[0].mxu0
      %v874 = vadd.f32 %v649, %v873
      %v875 = vpop.f32.mrb[0].mxu0
      %876 = vmatprep.mubr.f32.mxu0 %v254
      %877 = vmatmul.mubr.f32.gmra.mrb[0].mxu0 %v253
      %v878 = vpop.f32.mrb[0].mxu0
      %v879 = vadd.f32 %v654, %v878
      %v880 = vpop.f32.mrb[0].mxu0
      %881 = vmatprep.mubr.f32.mxu0 %v259
      %882 = vmatmul.mubr.f32.gmra.mrb[0].mxu0 %v258
      %v883 = vpop.f32.mrb[0].mxu0
      %v884 = vadd.f32 %v659, %v883
      %v885 = vpop.f32.mrb[0].mxu0
      %886 = vmatprep.mubr.f32.mxu0 %v264
      %887 = vmatmul.mubr.f32.gmra.mrb[0].mxu0 %v263
      %v888 = vpop.f32.mrb[0].mxu0
      %v889 = vadd.f32 %v664, %v888
      %v890 = vpop.f32.mrb[0].mxu0
      %891 = vmatprep.mubr.f32.mxu0 %v269
      %892 = vmatmul.mubr.f32.gmra.mrb[0].mxu0 %v268
      %v893 = vpop.f32.mrb[0].mxu0
      %v894 = vadd.f32 %v669, %v893
      %v895 = vpop.f32.mrb[0].mxu0
      %896 = vmatprep.mubr.f32.mxu0 %v274
      %897 = vmatmul.mubr.f32.gmra.mrb[0].mxu0 %v273
      %v898 = vpop.f32.mrb[0].mxu0
      %v899 = vadd.f32 %v674, %v898
      %v900 = vpop.f32.mrb[0].mxu0
      %901 = vmatprep.mubr.f32.mxu0 %v279
      %902 = vmatmul.mubr.f32.gmra.mrb[0].mxu0 %v278
      %v903 = vpop.f32.mrb[0].mxu0
      %v904 = vadd.f32 %v679, %v903
      %v905 = vpop.f32.mrb[0].mxu0
      %906 = vmatprep.mubr.f32.mxu0 %v284
      %907 = vmatmul.mubr.f32.gmra.mrb[0].mxu0 %v283
      %v908 = vpop.f32.mrb[0].mxu0
      %v909 = vadd.f32 %v684, %v908
      %v910 = vpop.f32.mrb[0].mxu0
      %911 = vmatprep.mubr.f32.mxu0 %v289
      %912 = vmatmul.mubr.f32.gmra.mrb[0].mxu0 %v288
      %v913 = vpop.f32.mrb[0].mxu0
      %v914 = vadd.f32 %v689, %v913
      %v915 = vpop.f32.mrb[0].mxu0
      %916 = vmatprep.mubr.f32.mxu0 %v294
      %917 = vmatmul.mubr.f32.gmra.mrb[0].mxu0 %v293
      %v918 = vpop.f32.mrb[0].mxu0
      %v919 = vadd.f32 %v694, %v918
      %v920 = vpop.f32.mrb[0].mxu0
      %921 = vmatprep.mubr.f32.mxu0 %v299
      %922 = vmatmul.mubr.f32.gmra.mrb[0].mxu0 %v298
      %v923 = vpop.f32.mrb[0].mxu0
      %v924 = vadd.f32 %v699, %v923
      %v925 = vpop.f32.mrb[0].mxu0
      %926 = vmatprep.mubr.f32.mxu0 %v304
      %927 = vmatmul.mubr.f32.gmra.mrb[0].mxu0 %v303
      %v928 = vpop.f32.mrb[0].mxu0
      %v929 = vadd.f32 %v704, %v928
      %v930 = vpop.f32.mrb[0].mxu0
      %931 = vmatprep.mubr.f32.mxu0 %v309
      %932 = vmatmul.mubr.f32.gmra.mrb[0].mxu0 %v308
      %v933 = vpop.f32.mrb[0].mxu0
      %v934 = vadd.f32 %v709, %v933
      %v935 = vpop.f32.mrb[0].mxu0
      %936 = vmatprep.mubr.f32.mxu0 %v314
      %937 = vmatmul.mubr.f32.gmra.mrb[0].mxu0 %v313
      %v938 = vpop.f32.mrb[0].mxu0
      %v939 = vadd.f32 %v714, %v938
      %v940 = vpop.f32.mrb[0].mxu0
      %941 = vmatprep.mubr.f32.mxu0 %v319
      %942 = vmatmul.mubr.f32.gmra.mrb[0].mxu0 %v318
      %v943 = vpop.f32.mrb[0].mxu0
      %v944 = vadd.f32 %v719, %v943
      %v945 = vpop.f32.mrb[0].mxu0
      %946 = vmatprep.mubr.f32.mxu0 %v324
      %947 = vmatmul.mubr.f32.gmra.mrb[0].mxu0 %v323
      %v948 = vpop.f32.mrb[0].mxu0
      %v949 = vadd.f32 %v724, %v948
      %v950 = vpop.f32.mrb[0].mxu0
      %951 = vmatprep.mubr.f32.mxu0 %v329
      %952 = vmatmul.mubr.f32.gmra.mrb[0].mxu0 %v328
      %v953 = vpop.f32.mrb[0].mxu0
      %v954 = vadd.f32 %v729, %v953
      %v955 = vpop.f32.mrb[0].mxu0
      %956 = vdwg.mxu0
      %957 = vmatprep.subr.mxu0 0.0
      %958 = vmatpush1.msra.mxu0 %v395
      %959 = vmatprep.subr.mxu0 0.0
      %960 = vmatpush1.msra.mxu0 %v396
      %961 = vmatprep.subr.mxu0 0.0
      %962 = vmatpush1.msra.mxu0 %v397
      %963 = vmatprep.subr.mxu0 0.0
      %964 = vmatpush1.msra.mxu0 %v398
      %965 = vmatprep.subr.mxu0 0.0
      %966 = vmatpush1.msra.mxu0 %v399
      %967 = vmatprep.subr.mxu0 0.0
      %968 = vmatpush1.msra.mxu0 %v400
      %969 = vmatprep.subr.mxu0 0.0
      %970 = vmatpush1.msra.mxu0 %v401
      %971 = vmatprep.subr.mxu0 0.0
      %972 = vmatpush1.msra.mxu0 %v402
      %973 = vmatprep.subr.mxu0 0.0
      %974 = vmatpush1.msra.mxu0 0.0
      %975 = vmatprep.subr.mxu0 0.0
      %976 = vmatpush1.msra.mxu0 0.0
      %977 = vmatprep.subr.mxu0 0.0
      %978 = vmatpush1.msra.mxu0 0.0
      %979 = vmatprep.subr.mxu0 0.0
      %980 = vmatpush1.msra.mxu0 0.0
      %981 = vmatprep.subr.mxu0 0.0
      %982 = vmatpush1.msra.mxu0 0.0
      %983 = vmatprep.subr.mxu0 0.0
      %984 = vmatpush1.msra.mxu0 0.0
      %985 = vmatprep.subr.mxu0 0.0
      %986 = vmatpush1.msra.mxu0 0.0
      %987 = vmatprep.subr.mxu0 0.0
      %988 = vmatpush1.msra.mxu0 0.0
      %989 = vmatprep.subr.mxu0 0.0
      %990 = vmatpush1.msra.mxu0 0.0
      %991 = vmatprep.subr.mxu0 0.0
      %992 = vmatpush1.msra.mxu0 0.0
      %993 = vmatprep.subr.mxu0 0.0
      %994 = vmatpush1.msra.mxu0 0.0
      %995 = vmatprep.subr.mxu0 0.0
      %996 = vmatpush1.msra.mxu0 0.0
      %997 = vmatprep.subr.mxu0 0.0
      %998 = vmatpush1.msra.mxu0 0.0
      %999 = vmatprep.subr.mxu0 0.0
      %1000 = vmatpush1.msra.mxu0 0.0
      %1001 = vmatprep.subr.mxu0 0.0
      %1002 = vmatpush1.msra.mxu0 0.0
      %1003 = vmatprep.subr.mxu0 0.0
      %1004 = vmatpush1.msra.mxu0 0.0
      %1005 = vmatprep.subr.mxu0 0.0
      %1006 = vmatpush1.msra.mxu0 0.0
      %1007 = vmatprep.subr.mxu0 0.0
      %1008 = vmatpush1.msra.mxu0 0.0
      %1009 = vmatprep.subr.mxu0 0.0
      %1010 = vmatpush1.msra.mxu0 0.0
      %1011 = vmatprep.subr.mxu0 0.0
      %1012 = vmatpush1.msra.mxu0 0.0
      %1013 = vmatprep.subr.mxu0 0.0
      %1014 = vmatpush1.msra.mxu0 0.0
      %1015 = vmatprep.subr.mxu0 0.0
      %1016 = vmatpush1.msra.mxu0 0.0
      %1017 = vmatprep.subr.mxu0 0.0
      %1018 = vmatpush1.msra.mxu0 0.0
      %1019 = vmatprep.subr.mxu0 0.0
      %1020 = vmatpush1.msra.mxu0 0.0
      %1021 = vmatprep.mubr.f32.mxu0 0.0
      %1022 = vmatmul.mubr.f32.gmra.mrb[0].mxu0 %v412
      %v1023 = vpop.f32.mrb[0].mxu0
      %v1024 = vadd.f32 %v799, %v1023
      %v1025 = vpop.f32.mrb[0].mxu0
      %1026 = vmatprep.mubr.f32.mxu0 0.0
      %1027 = vmatmul.mubr.f32.gmra.mrb[0].mxu0 %v415
      %v1028 = vpop.f32.mrb[0].mxu0
      %v1029 = vadd.f32 %v804, %v1028
      %v1030 = vpop.f32.mrb[0].mxu0
      %1031 = vmatprep.mubr.f32.mxu0 0.0
      %1032 = vmatmul.mubr.f32.gmra.mrb[0].mxu0 %v418
      %v1033 = vpop.f32.mrb[0].mxu0
      %v1034 = vadd.f32 %v809, %v1033
      %v1035 = vpop.f32.mrb[0].mxu0
      %1036 = vmatprep.mubr.f32.mxu0 0.0
      %1037 = vmatmul.mubr.f32.gmra.mrb[0].mxu0 %v421
      %v1038 = vpop.f32.mrb[0].mxu0
      %v1039 = vadd.f32 %v814, %v1038
      %v1040 = vpop.f32.mrb[0].mxu0
      %1041 = vmatprep.mubr.f32.mxu0 0.0
      %1042 = vmatmul.mubr.f32.gmra.mrb[0].mxu0 %v424
      %v1043 = vpop.f32.mrb[0].mxu0
      %v1044 = vadd.f32 %v819, %v1043
      %v1045 = vpop.f32.mrb[0].mxu0
      %1046 = vmatprep.mubr.f32.mxu0 0.0
      %1047 = vmatmul.mubr.f32.gmra.mrb[0].mxu0 %v427
      %v1048 = vpop.f32.mrb[0].mxu0
      %v1049 = vadd.f32 %v824, %v1048
      %v1050 = vpop.f32.mrb[0].mxu0
      %1051 = vmatprep.mubr.f32.mxu0 0.0
      %1052 = vmatmul.mubr.f32.gmra.mrb[0].mxu0 %v430
      %v1053 = vpop.f32.mrb[0].mxu0
      %v1054 = vadd.f32 %v829, %v1053
      %v1055 = vpop.f32.mrb[0].mxu0
      %1056 = vmatprep.mubr.f32.mxu0 0.0
      %1057 = vmatmul.mubr.f32.gmra.mrb[0].mxu0 %v433
      %v1058 = vpop.f32.mrb[0].mxu0
      %v1059 = vadd.f32 %v834, %v1058
      %v1060 = vpop.f32.mrb[0].mxu0
      %1061 = vmatprep.mubr.f32.mxu0 0.0
      %1062 = vmatmul.mubr.f32.gmra.mrb[0].mxu0 %v436
      %v1063 = vpop.f32.mrb[0].mxu0
      %v1064 = vadd.f32 %v839, %v1063
      %v1065 = vpop.f32.mrb[0].mxu0
      %1066 = vmatprep.mubr.f32.mxu0 0.0
      %1067 = vmatmul.mubr.f32.gmra.mrb[0].mxu0 %v439
      %v1068 = vpop.f32.mrb[0].mxu0
      %v1069 = vadd.f32 %v844, %v1068
      %v1070 = vpop.f32.mrb[0].mxu0
      %1071 = vmatprep.mubr.f32.mxu0 0.0
      %1072 = vmatmul.mubr.f32.gmra.mrb[0].mxu0 %v442
      %v1073 = vpop.f32.mrb[0].mxu0
      %v1074 = vadd.f32 %v849, %v1073
      %v1075 = vpop.f32.mrb[0].mxu0
      %1076 = vmatprep.mubr.f32.mxu0 0.0
      %1077 = vmatmul.mubr.f32.gmra.mrb[0].mxu0 %v445
      %v1078 = vpop.f32.mrb[0].mxu0
      %v1079 = vadd.f32 %v854, %v1078
      %v1080 = vpop.f32.mrb[0].mxu0
      %1081 = vmatprep.mubr.f32.mxu0 0.0
      %1082 = vmatmul.mubr.f32.gmra.mrb[0].mxu0 %v448
      %v1083 = vpop.f32.mrb[0].mxu0
      %v1084 = vadd.f32 %v859, %v1083
      %v1085 = vpop.f32.mrb[0].mxu0
      %1086 = vmatprep.mubr.f32.mxu0 0.0
      %1087 = vmatmul.mubr.f32.gmra.mrb[0].mxu0 %v451
      %v1088 = vpop.f32.mrb[0].mxu0
      %v1089 = vadd.f32 %v864, %v1088
      %v1090 = vpop.f32.mrb[0].mxu0
      %1091 = vmatprep.mubr.f32.mxu0 0.0
      %1092 = vmatmul.mubr.f32.gmra.mrb[0].mxu0 %v454
      %v1093 = vpop.f32.mrb[0].mxu0
      %v1094 = vadd.f32 %v869, %v1093
      %v1095 = vpop.f32.mrb[0].mxu0
      %1096 = vmatprep.mubr.f32.mxu0 0.0
      %1097 = vmatmul.mubr.f32.gmra.mrb[0].mxu0 %v457
      %v1098 = vpop.f32.mrb[0].mxu0
      %v1099 = vadd.f32 %v874, %v1098
      %v1100 = vpop.f32.mrb[0].mxu0
      %1101 = vmatprep.mubr.f32.mxu0 0.0
      %1102 = vmatmul.mubr.f32.gmra.mrb[0].mxu0 %v460
      %v1103 = vpop.f32.mrb[0].mxu0
      %v1104 = vadd.f32 %v879, %v1103
      %v1105 = vpop.f32.mrb[0].mxu0
      %1106 = vmatprep.mubr.f32.mxu0 0.0
      %1107 = vmatmul.mubr.f32.gmra.mrb[0].mxu0 %v463
      %v1108 = vpop.f32.mrb[0].mxu0
      %v1109 = vadd.f32 %v884, %v1108
      %v1110 = vpop.f32.mrb[0].mxu0
      %1111 = vmatprep.mubr.f32.mxu0 0.0
      %1112 = vmatmul.mubr.f32.gmra.mrb[0].mxu0 %v466
      %v1113 = vpop.f32.mrb[0].mxu0
      %v1114 = vadd.f32 %v889, %v1113
      %v1115 = vpop.f32.mrb[0].mxu0
      %1116 = vmatprep.mubr.f32.mxu0 0.0
      %1117 = vmatmul.mubr.f32.gmra.mrb[0].mxu0 %v469
      %v1118 = vpop.f32.mrb[0].mxu0
      %v1119 = vadd.f32 %v894, %v1118
      %v1120 = vpop.f32.mrb[0].mxu0
      %1121 = vmatprep.mubr.f32.mxu0 0.0
      %1122 = vmatmul.mubr.f32.gmra.mrb[0].mxu0 %v472
      %v1123 = vpop.f32.mrb[0].mxu0
      %v1124 = vadd.f32 %v899, %v1123
      %v1125 = vpop.f32.mrb[0].mxu0
      %1126 = vmatprep.mubr.f32.mxu0 0.0
      %1127 = vmatmul.mubr.f32.gmra.mrb[0].mxu0 %v475
      %v1128 = vpop.f32.mrb[0].mxu0
      %v1129 = vadd.f32 %v904, %v1128
      %v1130 = vpop.f32.mrb[0].mxu0
      %1131 = vmatprep.mubr.f32.mxu0 0.0
      %1132 = vmatmul.mubr.f32.gmra.mrb[0].mxu0 %v478
      %v1133 = vpop.f32.mrb[0].mxu0
      %v1134 = vadd.f32 %v909, %v1133
      %v1135 = vpop.f32.mrb[0].mxu0
      %1136 = vmatprep.mubr.f32.mxu0 0.0
      %1137 = vmatmul.mubr.f32.gmra.mrb[0].mxu0 %v481
      %v1138 = vpop.f32.mrb[0].mxu0
      %v1139 = vadd.f32 %v914, %v1138
      %v1140 = vpop.f32.mrb[0].mxu0
      %1141 = vmatprep.mubr.f32.mxu0 0.0
      %1142 = vmatmul.mubr.f32.gmra.mrb[0].mxu0 %v484
      %v1143 = vpop.f32.mrb[0].mxu0
      %v1144 = vadd.f32 %v919, %v1143
      %v1145 = vpop.f32.mrb[0].mxu0
      %1146 = vmatprep.mubr.f32.mxu0 0.0
      %1147 = vmatmul.mubr.f32.gmra.mrb[0].mxu0 %v487
      %v1148 = vpop.f32.mrb[0].mxu0
      %v1149 = vadd.f32 %v924, %v1148
      %v1150 = vpop.f32.mrb[0].mxu0
      %1151 = vmatprep.mubr.f32.mxu0 0.0
      %1152 = vmatmul.mubr.f32.gmra.mrb[0].mxu0 %v490
      %v1153 = vpop.f32.mrb[0].mxu0
      %v1154 = vadd.f32 %v929, %v1153
      %v1155 = vpop.f32.mrb[0].mxu0
      %1156 = vmatprep.mubr.f32.mxu0 0.0
      %1157 = vmatmul.mubr.f32.gmra.mrb[0].mxu0 %v493
      %v1158 = vpop.f32.mrb[0].mxu0
      %v1159 = vadd.f32 %v934, %v1158
      %v1160 = vpop.f32.mrb[0].mxu0
      %1161 = vmatprep.mubr.f32.mxu0 0.0
      %1162 = vmatmul.mubr.f32.gmra.mrb[0].mxu0 %v496
      %v1163 = vpop.f32.mrb[0].mxu0
      %v1164 = vadd.f32 %v939, %v1163
      %v1165 = vpop.f32.mrb[0].mxu0
      %1166 = vmatprep.mubr.f32.mxu0 0.0
      %1167 = vmatmul.mubr.f32.gmra.mrb[0].mxu0 %v499
      %v1168 = vpop.f32.mrb[0].mxu0
      %v1169 = vadd.f32 %v944, %v1168
      %v1170 = vpop.f32.mrb[0].mxu0
      %1171 = vmatprep.mubr.f32.mxu0 0.0
      %1172 = vmatmul.mubr.f32.gmra.mrb[0].mxu0 %v502
      %v1173 = vpop.f32.mrb[0].mxu0
      %v1174 = vadd.f32 %v949, %v1173
      %v1175 = vpop.f32.mrb[0].mxu0
      %1176 = vmatprep.mubr.f32.mxu0 0.0
      %1177 = vmatmul.mubr.f32.gmra.mrb[0].mxu0 %v505
      %v1178 = vpop.f32.mrb[0].mxu0
      %v1179 = vadd.f32 %v954, %v1178
      %v1180 = vpop.f32.mrb[0].mxu0
      %1181 = vdwg.mxu0
      %vm1182 = vcmask 261120
      %v1183 = vsel %vm1182, %v1024, 0.0
      %v1184 = vsel %vm1182, %v1029, 0.0
      %v1185 = vadd.f32 %v1183, %v1184
      %v1186 = vsel %vm1182, %v1034, 0.0
      %v1187 = vadd.f32 %v1185, %v1186
      %v1188 = vsel %vm1182, %v1039, 0.0
      %v1189 = vadd.f32 %v1187, %v1188
      %v1190 = vsel %vm1182, %v1044, 0.0
      %v1191 = vadd.f32 %v1189, %v1190
      %v1192 = vsel %vm1182, %v1049, 0.0
      %v1193 = vadd.f32 %v1191, %v1192
      %v1194 = vsel %vm1182, %v1054, 0.0
      %v1195 = vadd.f32 %v1193, %v1194
      %v1196 = vsel %vm1182, %v1059, 0.0
      %v1197 = vadd.f32 %v1195, %v1196
      %v1198 = vsel %vm1182, %v1064, 0.0
      %v1199 = vadd.f32 %v1197, %v1198
      %v1200 = vsel %vm1182, %v1069, 0.0
      %v1201 = vadd.f32 %v1199, %v1200
      %v1202 = vsel %vm1182, %v1074, 0.0
      %v1203 = vadd.f32 %v1201, %v1202
      %v1204 = vsel %vm1182, %v1079, 0.0
      %v1205 = vadd.f32 %v1203, %v1204
      %v1206 = vsel %vm1182, %v1084, 0.0
      %v1207 = vadd.f32 %v1205, %v1206
      %v1208 = vsel %vm1182, %v1089, 0.0
      %v1209 = vadd.f32 %v1207, %v1208
      %v1210 = vsel %vm1182, %v1094, 0.0
      %v1211 = vadd.f32 %v1209, %v1210
      %v1212 = vsel %vm1182, %v1099, 0.0
      %v1213 = vadd.f32 %v1211, %v1212
      %v1214 = vsel %vm1182, %v1104, 0.0
      %v1215 = vadd.f32 %v1213, %v1214
      %v1216 = vsel %vm1182, %v1109, 0.0
      %v1217 = vadd.f32 %v1215, %v1216
      %v1218 = vsel %vm1182, %v1114, 0.0
      %v1219 = vadd.f32 %v1217, %v1218
      %v1220 = vsel %vm1182, %v1119, 0.0
      %v1221 = vadd.f32 %v1219, %v1220
      %v1222 = vsel %vm1182, %v1124, 0.0
      %v1223 = vadd.f32 %v1221, %v1222
      %v1224 = vsel %vm1182, %v1129, 0.0
      %v1225 = vadd.f32 %v1223, %v1224
      %v1226 = vsel %vm1182, %v1134, 0.0
      %v1227 = vadd.f32 %v1225, %v1226
      %v1228 = vsel %vm1182, %v1139, 0.0
      %v1229 = vadd.f32 %v1227, %v1228
      %v1230 = vsel %vm1182, %v1144, 0.0
      %v1231 = vadd.f32 %v1229, %v1230
      %v1232 = vsel %vm1182, %v1149, 0.0
      %v1233 = vadd.f32 %v1231, %v1232
      %v1234 = vsel %vm1182, %v1154, 0.0
      %v1235 = vadd.f32 %v1233, %v1234
      %v1236 = vsel %vm1182, %v1159, 0.0
      %v1237 = vadd.f32 %v1235, %v1236
      %v1238 = vsel %vm1182, %v1164, 0.0
      %v1239 = vadd.f32 %v1237, %v1238
      %v1240 = vsel %vm1182, %v1169, 0.0
      %v1241 = vadd.f32 %v1239, %v1240
      %v1242 = vsel %vm1182, %v1174, 0.0
      %v1243 = vadd.f32 %v1241, %v1242
      %v1244 = vsel %vm1182, %v1179, 0.0
      %v1245 = vadd.f32 %v1243, %v1244
      %v1246 = vrot.slane %v1245, 4
      %v1247 = vadd.f32 %v1245, %v1246
      %v1248 = vrot.slane %v1247, 2
      %v1249 = vadd.f32 %v1247, %v1248
      %v1250 = vrot.slane %v1249, 1
      %v1251 = vadd.f32 %v1249, %v1250
      %v1252 = vrcp.pop 256.0
      %v1253 = vmul.f32 %v1251, %v1252
      %v1254 = vsub.f32 %v1024, %v1253
      %v1255 = vsub.f32 %v1029, %v1253
      %v1256 = vsub.f32 %v1034, %v1253
      %v1257 = vsub.f32 %v1039, %v1253
      %v1258 = vsub.f32 %v1044, %v1253
      %v1259 = vsub.f32 %v1049, %v1253
      %v1260 = vsub.f32 %v1054, %v1253
      %v1261 = vsub.f32 %v1059, %v1253
      %v1262 = vsub.f32 %v1064, %v1253
      %v1263 = vsub.f32 %v1069, %v1253
      %v1264 = vsub.f32 %v1074, %v1253
      %v1265 = vsub.f32 %v1079, %v1253
      %v1266 = vsub.f32 %v1084, %v1253
      %v1267 = vsub.f32 %v1089, %v1253
      %v1268 = vsub.f32 %v1094, %v1253
      %v1269 = vsub.f32 %v1099, %v1253
      %v1270 = vsub.f32 %v1104, %v1253
      %v1271 = vsub.f32 %v1109, %v1253
      %v1272 = vsub.f32 %v1114, %v1253
      %v1273 = vsub.f32 %v1119, %v1253
      %v1274 = vsub.f32 %v1124, %v1253
      %v1275 = vsub.f32 %v1129, %v1253
      %v1276 = vsub.f32 %v1134, %v1253
      %v1277 = vsub.f32 %v1139, %v1253
      %v1278 = vsub.f32 %v1144, %v1253
      %v1279 = vsub.f32 %v1149, %v1253
      %v1280 = vsub.f32 %v1154, %v1253
      %v1281 = vsub.f32 %v1159, %v1253
      %v1282 = vsub.f32 %v1164, %v1253
      %v1283 = vsub.f32 %v1169, %v1253
      %v1284 = vsub.f32 %v1174, %v1253
      %v1285 = vsub.f32 %v1179, %v1253
      %v1286 = vmul.f32 %v1254, %v1254
      %v1287 = vmul.f32 %v1255, %v1255
      %v1288 = vmul.f32 %v1256, %v1256
      %v1289 = vmul.f32 %v1257, %v1257
      %v1290 = vmul.f32 %v1258, %v1258
      %v1291 = vmul.f32 %v1259, %v1259
      %v1292 = vmul.f32 %v1260, %v1260
      %v1293 = vmul.f32 %v1261, %v1261
      %v1294 = vmul.f32 %v1262, %v1262
      %v1295 = vmul.f32 %v1263, %v1263
      %v1296 = vmul.f32 %v1264, %v1264
      %v1297 = vmul.f32 %v1265, %v1265
      %v1298 = vmul.f32 %v1266, %v1266
      %v1299 = vmul.f32 %v1267, %v1267
      %v1300 = vmul.f32 %v1268, %v1268
      %v1301 = vmul.f32 %v1269, %v1269
      %v1302 = vmul.f32 %v1270, %v1270
      %v1303 = vmul.f32 %v1271, %v1271
      %v1304 = vmul.f32 %v1272, %v1272
      %v1305 = vmul.f32 %v1273, %v1273
      %v1306 = vmul.f32 %v1274, %v1274
      %v1307 = vmul.f32 %v1275, %v1275
      %v1308 = vmul.f32 %v1276, %v1276
      %v1309 = vmul.f32 %v1277, %v1277
      %v1310 = vmul.f32 %v1278, %v1278
      %v1311 = vmul.f32 %v1279, %v1279
      %v1312 = vmul.f32 %v1280, %v1280
      %v1313 = vmul.f32 %v1281, %v1281
      %v1314 = vmul.f32 %v1282, %v1282
      %v1315 = vmul.f32 %v1283, %v1283
      %v1316 = vmul.f32 %v1284, %v1284
      %v1317 = vmul.f32 %v1285, %v1285
      %v1318 = vsel %vm1182, %v1286, 0.0
      %v1319 = vsel %vm1182, %v1287, 0.0
      %v1320 = vadd.f32 %v1318, %v1319
      %v1321 = vsel %vm1182, %v1288, 0.0
      %v1322 = vadd.f32 %v1320, %v1321
      %v1323 = vsel %vm1182, %v1289, 0.0
      %v1324 = vadd.f32 %v1322, %v1323
      %v1325 = vsel %vm1182, %v1290, 0.0
      %v1326 = vadd.f32 %v1324, %v1325
      %v1327 = vsel %vm1182, %v1291, 0.0
      %v1328 = vadd.f32 %v1326, %v1327
      %v1329 = vsel %vm1182, %v1292, 0.0
      %v1330 = vadd.f32 %v1328, %v1329
      %v1331 = vsel %vm1182, %v1293, 0.0
      %v1332 = vadd.f32 %v1330, %v1331
      %v1333 = vsel %vm1182, %v1294, 0.0
      %v1334 = vadd.f32 %v1332, %v1333
      %v1335 = vsel %vm1182, %v1295, 0.0
      %v1336 = vadd.f32 %v1334, %v1335
      %v1337 = vsel %vm1182, %v1296, 0.0
      %v1338 = vadd.f32 %v1336, %v1337
      %v1339 = vsel %vm1182, %v1297, 0.0
      %v1340 = vadd.f32 %v1338, %v1339
      %v1341 = vsel %vm1182, %v1298, 0.0
      %v1342 = vadd.f32 %v1340, %v1341
      %v1343 = vsel %vm1182, %v1299, 0.0
      %v1344 = vadd.f32 %v1342, %v1343
      %v1345 = vsel %vm1182, %v1300, 0.0
      %v1346 = vadd.f32 %v1344, %v1345
      %v1347 = vsel %vm1182, %v1301, 0.0
      %v1348 = vadd.f32 %v1346, %v1347
      %v1349 = vsel %vm1182, %v1302, 0.0
      %v1350 = vadd.f32 %v1348, %v1349
      %v1351 = vsel %vm1182, %v1303, 0.0
      %v1352 = vadd.f32 %v1350, %v1351
      %v1353 = vsel %vm1182, %v1304, 0.0
      %v1354 = vadd.f32 %v1352, %v1353
      %v1355 = vsel %vm1182, %v1305, 0.0
      %v1356 = vadd.f32 %v1354, %v1355
      %v1357 = vsel %vm1182, %v1306, 0.0
      %v1358 = vadd.f32 %v1356, %v1357
      %v1359 = vsel %vm1182, %v1307, 0.0
      %v1360 = vadd.f32 %v1358, %v1359
      %v1361 = vsel %vm1182, %v1308, 0.0
      %v1362 = vadd.f32 %v1360, %v1361
      %v1363 = vsel %vm1182, %v1309, 0.0
      %v1364 = vadd.f32 %v1362, %v1363
      %v1365 = vsel %vm1182, %v1310, 0.0
      %v1366 = vadd.f32 %v1364, %v1365
      %v1367 = vsel %vm1182, %v1311, 0.0
      %v1368 = vadd.f32 %v1366, %v1367
      %v1369 = vsel %vm1182, %v1312, 0.0
      %v1370 = vadd.f32 %v1368, %v1369
      %v1371 = vsel %vm1182, %v1313, 0.0
      %v1372 = vadd.f32 %v1370, %v1371
      %v1373 = vsel %vm1182, %v1314, 0.0
      %v1374 = vadd.f32 %v1372, %v1373
      %v1375 = vsel %vm1182, %v1315, 0.0
      %v1376 = vadd.f32 %v1374, %v1375
      %v1377 = vsel %vm1182, %v1316, 0.0
      %v1378 = vadd.f32 %v1376, %v1377
      %v1379 = vsel %vm1182, %v1317, 0.0
      %v1380 = vadd.f32 %v1378, %v1379
      %v1381 = vrot.slane %v1380, 4
      %v1382 = vadd.f32 %v1380, %v1381
      %v1383 = vrot.slane %v1382, 2
      %v1384 = vadd.f32 %v1382, %v1383
      %v1385 = vrot.slane %v1384, 1
      %v1386 = vadd.f32 %v1384, %v1385
      %v1387 = vmul.f32 %v1386, %v1252
      %v1388 = vadd.f32 %v1387, 1e-05
      %v1389 = vrsqrt.pop %v1388
      %v1390 = vmul.f32 %v1254, %v1389
      %v1391 = vmul.f32 %v1255, %v1389
      %v1392 = vmul.f32 %v1256, %v1389
      %v1393 = vmul.f32 %v1257, %v1389
      %v1394 = vmul.f32 %v1258, %v1389
      %v1395 = vmul.f32 %v1259, %v1389
      %v1396 = vmul.f32 %v1260, %v1389
      %v1397 = vmul.f32 %v1261, %v1389
      %v1398 = vmul.f32 %v1262, %v1389
      %v1399 = vmul.f32 %v1263, %v1389
      %v1400 = vmul.f32 %v1264, %v1389
      %v1401 = vmul.f32 %v1265, %v1389
      %v1402 = vmul.f32 %v1266, %v1389
      %v1403 = vmul.f32 %v1267, %v1389
      %v1404 = vmul.f32 %v1268, %v1389
      %v1405 = vmul.f32 %v1269, %v1389
      %v1406 = vmul.f32 %v1270, %v1389
      %v1407 = vmul.f32 %v1271, %v1389
      %v1408 = vmul.f32 %v1272, %v1389
      %v1409 = vmul.f32 %v1273, %v1389
      %v1410 = vmul.f32 %v1274, %v1389
      %v1411 = vmul.f32 %v1275, %v1389
      %v1412 = vmul.f32 %v1276, %v1389
      %v1413 = vmul.f32 %v1277, %v1389
      %v1414 = vmul.f32 %v1278, %v1389
      %v1415 = vmul.f32 %v1279, %v1389
      %v1416 = vmul.f32 %v1280, %v1389
      %v1417 = vmul.f32 %v1281, %v1389
      %v1418 = vmul.f32 %v1282, %v1389
      %v1419 = vmul.f32 %v1283, %v1389
      %v1420 = vmul.f32 %v1284, %v1389
      %v1421 = vmul.f32 %v1285, %v1389
      %vm1422 = vcmp.ge.f32.partialorder %v1390, 0.0
      %vm1423 = vcmp.ge.f32.partialorder %v1391, 0.0
      %vm1424 = vcmp.ge.f32.partialorder %v1392, 0.0
      %vm1425 = vcmp.ge.f32.partialorder %v1393, 0.0
      %vm1426 = vcmp.ge.f32.partialorder %v1394, 0.0
      %vm1427 = vcmp.ge.f32.partialorder %v1395, 0.0
      %vm1428 = vcmp.ge.f32.partialorder %v1396, 0.0
      %vm1429 = vcmp.ge.f32.partialorder %v1397, 0.0
      %vm1430 = vcmp.ge.f32.partialorder %v1398, 0.0
      %vm1431 = vcmp.ge.f32.partialorder %v1399, 0.0
      %vm1432 = vcmp.ge.f32.partialorder %v1400, 0.0
      %vm1433 = vcmp.ge.f32.partialorder %v1401, 0.0
      %vm1434 = vcmp.ge.f32.partialorder %v1402, 0.0
      %vm1435 = vcmp.ge.f32.partialorder %v1403, 0.0
      %vm1436 = vcmp.ge.f32.partialorder %v1404, 0.0
      %vm1437 = vcmp.ge.f32.partialorder %v1405, 0.0
      %vm1438 = vcmp.ge.f32.partialorder %v1406, 0.0
      %vm1439 = vcmp.ge.f32.partialorder %v1407, 0.0
      %vm1440 = vcmp.ge.f32.partialorder %v1408, 0.0
      %vm1441 = vcmp.ge.f32.partialorder %v1409, 0.0
      %vm1442 = vcmp.ge.f32.partialorder %v1410, 0.0
      %vm1443 = vcmp.ge.f32.partialorder %v1411, 0.0
      %vm1444 = vcmp.ge.f32.partialorder %v1412, 0.0
      %vm1445 = vcmp.ge.f32.partialorder %v1413, 0.0
      %vm1446 = vcmp.ge.f32.partialorder %v1414, 0.0
      %vm1447 = vcmp.ge.f32.partialorder %v1415, 0.0
      %vm1448 = vcmp.ge.f32.partialorder %v1416, 0.0
      %vm1449 = vcmp.ge.f32.partialorder %v1417, 0.0
      %vm1450 = vcmp.ge.f32.partialorder %v1418, 0.0
      %vm1451 = vcmp.ge.f32.partialorder %v1419, 0.0
      %vm1452 = vcmp.ge.f32.partialorder %v1420, 0.0
      %vm1453 = vcmp.ge.f32.partialorder %v1421, 0.0
      %v1454 = vmul.f32 %v1390, 0.1
      %v1455 = vmul.f32 %v1391, 0.1
      %v1456 = vmul.f32 %v1392, 0.1
      %v1457 = vmul.f32 %v1393, 0.1
      %v1458 = vmul.f32 %v1394, 0.1
      %v1459 = vmul.f32 %v1395, 0.1
      %v1460 = vmul.f32 %v1396, 0.1
      %v1461 = vmul.f32 %v1397, 0.1
      %v1462 = vmul.f32 %v1398, 0.1
      %v1463 = vmul.f32 %v1399, 0.1
      %v1464 = vmul.f32 %v1400, 0.1
      %v1465 = vmul.f32 %v1401, 0.1
      %v1466 = vmul.f32 %v1402, 0.1
      %v1467 = vmul.f32 %v1403, 0.1
      %v1468 = vmul.f32 %v1404, 0.1
      %v1469 = vmul.f32 %v1405, 0.1
      %v1470 = vmul.f32 %v1406, 0.1
      %v1471 = vmul.f32 %v1407, 0.1
      %v1472 = vmul.f32 %v1408, 0.1
      %v1473 = vmul.f32 %v1409, 0.1
      %v1474 = vmul.f32 %v1410, 0.1
      %v1475 = vmul.f32 %v1411, 0.1
      %v1476 = vmul.f32 %v1412, 0.1
      %v1477 = vmul.f32 %v1413, 0.1
      %v1478 = vmul.f32 %v1414, 0.1
      %v1479 = vmul.f32 %v1415, 0.1
      %v1480 = vmul.f32 %v1416, 0.1
      %v1481 = vmul.f32 %v1417, 0.1
      %v1482 = vmul.f32 %v1418, 0.1
      %v1483 = vmul.f32 %v1419, 0.1
      %v1484 = vmul.f32 %v1420, 0.1
      %v1485 = vmul.f32 %v1421, 0.1
      %v1486 = vsel %vm1422, %v1390, %v1454
      %v1487 = vsel %vm1423, %v1391, %v1455
      %v1488 = vsel %vm1424, %v1392, %v1456
      %v1489 = vsel %vm1425, %v1393, %v1457
      %v1490 = vsel %vm1426, %v1394, %v1458
      %v1491 = vsel %vm1427, %v1395, %v1459
      %v1492 = vsel %vm1428, %v1396, %v1460
      %v1493 = vsel %vm1429, %v1397, %v1461
      %v1494 = vsel %vm1430, %v1398, %v1462
      %v1495 = vsel %vm1431, %v1399, %v1463
      %v1496 = vsel %vm1432, %v1400, %v1464
      %v1497 = vsel %vm1433, %v1401, %v1465
      %v1498 = vsel %vm1434, %v1402, %v1466
      %v1499 = vsel %vm1435, %v1403, %v1467
      %v1500 = vsel %vm1436, %v1404, %v1468
      %v1501 = vsel %vm1437, %v1405, %v1469
      %v1502 = vsel %vm1438, %v1406, %v1470
      %v1503 = vsel %vm1439, %v1407, %v1471
      %v1504 = vsel %vm1440, %v1408, %v1472
      %v1505 = vsel %vm1441, %v1409, %v1473
      %v1506 = vsel %vm1442, %v1410, %v1474
      %v1507 = vsel %vm1443, %v1411, %v1475
      %v1508 = vsel %vm1444, %v1412, %v1476
      %v1509 = vsel %vm1445, %v1413, %v1477
      %v1510 = vsel %vm1446, %v1414, %v1478
      %v1511 = vsel %vm1447, %v1415, %v1479
      %v1512 = vsel %vm1448, %v1416, %v1480
      %v1513 = vsel %vm1449, %v1417, %v1481
      %v1514 = vsel %vm1450, %v1418, %v1482
      %v1515 = vsel %vm1451, %v1419, %v1483
      %v1516 = vsel %vm1452, %v1420, %v1484
      %v1517 = vsel %vm1453, %v1421, %v1485
      %1518 = vst.msk [vmem:[%s170] sm:$0xff] %vm1182, %v1486
      %1519 = vst.msk [vmem:[%s170 + $0x8] sm:$0xff] %vm1182, %v1487
      %1520 = vst.msk [vmem:[%s170 + $0x10] sm:$0xff] %vm1182, %v1488
      %1521 = vst.msk [vmem:[%s170 + $0x18] sm:$0xff] %vm1182, %v1489
      %1522 = vst.msk [vmem:[%s170 + $0x20] sm:$0xff] %vm1182, %v1490
      %1523 = vst.msk [vmem:[%s170 + $0x28] sm:$0xff] %vm1182, %v1491
      %1524 = vst.msk [vmem:[%s170 + $0x30] sm:$0xff] %vm1182, %v1492
      %1525 = vst.msk [vmem:[%s170 + $0x38] sm:$0xff] %vm1182, %v1493
      %1526 = vst.msk [vmem:[%s170 + $0x40] sm:$0xff] %vm1182, %v1494
      %1527 = vst.msk [vmem:[%s170 + $0x48] sm:$0xff] %vm1182, %v1495
      %1528 = vst.msk [vmem:[%s170 + $0x50] sm:$0xff] %vm1182, %v1496
      %1529 = vst.msk [vmem:[%s170 + $0x58] sm:$0xff] %vm1182, %v1497
      %1530 = vst.msk [vmem:[%s170 + $0x60] sm:$0xff] %vm1182, %v1498
      %1531 = vst.msk [vmem:[%s170 + $0x68] sm:$0xff] %vm1182, %v1499
      %1532 = vst.msk [vmem:[%s170 + $0x70] sm:$0xff] %vm1182, %v1500
      %1533 = vst.msk [vmem:[%s170 + $0x78] sm:$0xff] %vm1182, %v1501
      %1534 = vst.msk [vmem:[%s170 + $0x80] sm:$0xff] %vm1182, %v1502
      %1535 = vst.msk [vmem:[%s170 + $0x88] sm:$0xff] %vm1182, %v1503
      %1536 = vst.msk [vmem:[%s170 + $0x90] sm:$0xff] %vm1182, %v1504
      %1537 = vst.msk [vmem:[%s170 + $0x98] sm:$0xff] %vm1182, %v1505
      %1538 = vst.msk [vmem:[%s170 + $0xa0] sm:$0xff] %vm1182, %v1506
      %1539 = vst.msk [vmem:[%s170 + $0xa8] sm:$0xff] %vm1182, %v1507
      %1540 = vst.msk [vmem:[%s170 + $0xb0] sm:$0xff] %vm1182, %v1508
      %1541 = vst.msk [vmem:[%s170 + $0xb8] sm:$0xff] %vm1182, %v1509
      %1542 = vst.msk [vmem:[%s170 + $0xc0] sm:$0xff] %vm1182, %v1510
      %1543 = vst.msk [vmem:[%s170 + $0xc8] sm:$0xff] %vm1182, %v1511
      %1544 = vst.msk [vmem:[%s170 + $0xd0] sm:$0xff] %vm1182, %v1512
      %1545 = vst.msk [vmem:[%s170 + $0xd8] sm:$0xff] %vm1182, %v1513
      %1546 = vst.msk [vmem:[%s170 + $0xe0] sm:$0xff] %vm1182, %v1514
      %1547 = vst.msk [vmem:[%s170 + $0xe8] sm:$0xff] %vm1182, %v1515
      %1548 = vst.msk [vmem:[%s170 + $0xf0] sm:$0xff] %vm1182, %v1516
      %1549 = vst.msk [vmem:[%s170 + $0xf8] sm:$0xff] %vm1182, %v1517
      %p1550 = scmp.lt.s32.totalorder %s14, 1
      %s1551 = scalar_select %p1550, %s14, 1
      %s1552 = smul.addr %s1551, 32
      %s1553 = smul.addr %s1552, 8
      %s1554 = scalar_lea.vmem %s3, %s1553
      // Predicated region
      $region33: #{unet_forward.25} parent=31 // pred_check
        %p1555 = pneg %p100
      $region34: #{unet_forward.25} parent=31 // pred_check_branch
        %1557 = sbr.rel (%p1555) target = $region36
      $region35: #{unet_forward.25} parent=31 // pred_region
        _
      $region36: #{unet_forward.25} parent=31 // pred_fallthru
        _
    $region32: #{unet_forward.25} parent=5 // pred_fallthru
      _
    %p1558 = scmp.le.s32.totalorder 2, %s9
    // Predicated region
    $region37: #{unet_forward.25} parent=5 // pred_check
      %p1559 = pneg %p1558
    $region38: #{unet_forward.25} parent=5 // pred_check_branch
      %1561 = sbr.rel (%p1559) target = $region40
    $region39: #{unet_forward.25} parent=5 // pred_region
      %s1562 = ssub.s32 %s9, 2
      // Predicated region
      $region41: #{unet_forward.25} parent=39 // pred_check
        %p1563 = pneg %p106
      $region42: #{unet_forward.25} parent=39 // pred_check_branch
        %1565 = sbr.rel (%p1563) target = $region44
      $region43: #{unet_forward.25} parent=39 // pred_region
        %p1566 = scmp.lt.s32.totalorder %s15, 1
        %s1567 = scalar_select %p1566, %s15, 1
        %s1568 = smul.addr %s1567, 32
        %s1569 = smul.addr %s1568, 8
        %s1570 = scalar_lea.vmem %s3, %s1569
      $region44: #{unet_forward.25} parent=39 // pred_fallthru
        _
    $region40: #{unet_forward.25} parent=5 // pred_fallthru
      _
  $region6: #{unet_forward.25} parent=0 // loop_footer
    %s13 = sadd.s32 1, %s9
  $region7: #{unet_forward.25} parent=0 // loop_footer_branch
    %8 = sbr.rel target = $region3
  $region8: #{unet_forward.25} parent=0 // loop_exit
    _

// kernel: unet_forward.28
$region0: #{unet_forward.28}
  #allocation0 [shape = 'u32[]', space=smem, size = 0x4, offset = 0x4, fixed_abs, tag = 'smem constant byte address 0x4 - core index']
  #allocation1 [shape = 'u32[144,128]{1,0:T(1,128)}', space=vmem, size = 0x12000, scoped, tag = 'internal scratch']
  %s0 = inlined_call_operand.vmem [shape: f32[2,256,288], index: 0, kind: input, shape index: {}]
  %s1 = inlined_call_operand.vmem [shape: f32[288,16], index: 1, kind: input, shape index: {}]
  %s2 = inlined_call_operand.vmem [shape: f32[1,16], index: 2, kind: input, shape index: {}]
  %s3 = inlined_call_operand.vmem [shape: f32[2,256,16], index: 3, kind: output, shape index: {}]
  %s4 = sld [smem:[#allocation0]]
  $region45: #{unet_forward.28} parent=0
    _
  %s6 = ssub.s32 1, %s4
  %s7 = scalar_select 0, %s6, %s4
  loop: start=0, step=1, limit=4
  $region2: #{unet_forward.28} parent=0 // loop_pre_header
    _
  $region3: #{unet_forward.28} parent=0 // loop_header
    %s9 = sphi 0, %s13
    %p10 = scmp.ge.s32.totalorder %s9, 4
    %s19 = sphi 0, %s21
    %s22 = sphi 0, %s19
    %s23 = sphi 0, %s22
    %s39 = sphi 0, %s23
    %s43 = sphi 0, %s43
    %s45 = sphi 0, %s43
    %s46 = sphi 0, %s45
    %s60 = sphi 0, %s46
    %s64 = sphi 0, %s64
    %s66 = sphi 0, %s64
    %s67 = sphi 0, %s66
    %s81 = sphi 0, %s67
    %s87 = sphi 0, %s89
    %s90 = sphi 0, %s87
    %s91 = sphi 0, %s90
    %s107 = sphi 0, %s91
  $region4: #{unet_forward.28} parent=0 // loop_header_branch
    %12 = sbr.rel (%p10) target = $region8
  $region5: #{unet_forward.28} parent=0 // loop_body
    %s14 = ssub.s32 %s9, 1
    %s15 = ssub.s32 %s9, 2
    %s16 = sadd.s32 %s9, 1
    %s17 = ssub.s32 %s9, %s16
    %p18 = scmp.eq.s32.totalorder %s17, 0
    %s20 = sadd.s32 %s19, 1
    %s21 = scalar_select %p18, %s19, %s20
    %p24 = pneg %p18
    %p25 = scmp.eq.s32.totalorder %s9, 1
    %p26 = por %p24, %p25
    %p27 = scmp.ne.s32.totalorder %s19, %s22
    %p28 = scmp.eq.s32.totalorder %s9, 0
    %p29 = por %p27, %p28
    %p30 = scmp.ne.s32.totalorder %s19, %s22
    %p31 = scmp.eq.s32.totalorder %s14, 1
    %p32 = por %p30, %p31
    %p33 = scmp.ne.s32.totalorder %s22, %s23
    %p34 = scmp.eq.s32.totalorder %s14, 0
    %p35 = por %p33, %p34
    %p36 = scmp.ne.s32.totalorder %s22, %s23
    %p37 = scmp.eq.s32.totalorder %s15, 1
    %p38 = por %p36, %p37
    %p40 = scmp.ne.s32.totalorder %s23, %s39
    %p41 = scmp.eq.s32.totalorder %s15, 0
    %p42 = por %p40, %p41
    %s44 = sadd.s32 %s43, 1
    %p47 = scmp.eq.s32.totalorder %s9, 1
    %p48 = scmp.ne.s32.totalorder %s43, %s45
    %p49 = scmp.eq.s32.totalorder %s9, 0
    %p50 = por %p48, %p49
    %p51 = scmp.ne.s32.totalorder %s43, %s45
    %p52 = scmp.eq.s32.totalorder %s14, 1
    %p53 = por %p51, %p52
    %p54 = scmp.ne.s32.totalorder %s45, %s46
    %p55 = scmp.eq.s32.totalorder %s14, 0
    %p56 = por %p54, %p55
    %p57 = scmp.ne.s32.totalorder %s45, %s46
    %p58 = scmp.eq.s32.totalorder %s15, 1
    %p59 = por %p57, %p58
    %p61 = scmp.ne.s32.totalorder %s46, %s60
    %p62 = scmp.eq.s32.totalorder %s15, 0
    %p63 = por %p61, %p62
    %s65 = sadd.s32 %s64, 1
    %p68 = scmp.eq.s32.totalorder %s9, 1
    %p69 = scmp.ne.s32.totalorder %s64, %s66
    %p70 = scmp.eq.s32.totalorder %s9, 0
    %p71 = por %p69, %p70
    %p72 = scmp.ne.s32.totalorder %s64, %s66
    %p73 = scmp.eq.s32.totalorder %s14, 1
    %p74 = por %p72, %p73
    %p75 = scmp.ne.s32.totalorder %s66, %s67
    %p76 = scmp.eq.s32.totalorder %s14, 0
    %p77 = por %p75, %p76
    %p78 = scmp.ne.s32.totalorder %s66, %s67
    %p79 = scmp.eq.s32.totalorder %s15, 1
    %p80 = por %p78, %p79
    %p82 = scmp.ne.s32.totalorder %s67, %s81
    %p83 = scmp.eq.s32.totalorder %s15, 0
    %p84 = por %p82, %p83
    %s85 = ssub.s32 %s9, %s16
    %p86 = scmp.eq.s32.totalorder %s85, 0
    %s88 = sadd.s32 %s87, 1
    %s89 = scalar_select %p86, %s87, %s88
    %p92 = pneg %p86
    %p93 = scmp.eq.s32.totalorder %s9, 1
    %p94 = por %p92, %p93
    %p95 = scmp.ne.s32.totalorder %s87, %s90
    %p96 = scmp.eq.s32.totalorder %s9, 0
    %p97 = por %p95, %p96
    %p98 = scmp.ne.s32.totalorder %s87, %s90
    %p99 = scmp.eq.s32.totalorder %s14, 1
    %p100 = por %p98, %p99
    %p101 = scmp.ne.s32.totalorder %s90, %s91
    %p102 = scmp.eq.s32.totalorder %s14, 0
    %p103 = por %p101, %p102
    %p104 = scmp.ne.s32.totalorder %s90, %s91
    %p105 = scmp.eq.s32.totalorder %s15, 1
    %p106 = por %p104, %p105
    %p108 = scmp.ne.s32.totalorder %s91, %s107
    %p109 = scmp.eq.s32.totalorder %s15, 0
    %p110 = por %p108, %p109
    %p111 = scmp.le.s32.totalorder 1, %s9
    %p112 = scmp.lt.s32.totalorder %s9, 3
    %p113 = pnand %p111, %p112
    %p114 = pneg %p113
    // Predicated region
    $region9: #{unet_forward.28} parent=5 // pred_check
      _
    $region10: #{unet_forward.28} parent=5 // pred_check_branch
      %116 = sbr.rel (%p113) target = $region12
    $region11: #{unet_forward.28} parent=5 // pred_region
      %s117 = ssub.s32 %s9, 1
      // Predicated region
      $region13: #{unet_forward.28} parent=11 // pred_check
        %p118 = pneg %p56
      $region14: #{unet_forward.28} parent=11 // pred_check_branch
        %120 = sbr.rel (%p118) target = $region16
      $region15: #{unet_forward.28} parent=11 // pred_region
        _
      $region16: #{unet_forward.28} parent=11 // pred_fallthru
        _
      // Predicated region
      $region17: #{unet_forward.28} parent=11 // pred_check
        %p121 = pneg %p77
      $region18: #{unet_forward.28} parent=11 // pred_check_branch
        %123 = sbr.rel (%p121) target = $region20
      $region19: #{unet_forward.28} parent=11 // pred_region
        _
      $region20: #{unet_forward.28} parent=11 // pred_fallthru
        _
    $region12: #{unet_forward.28} parent=5 // pred_fallthru
      _
    %p124 = scmp.lt.s32.totalorder %s9, 2
    // Predicated region
    $region21: #{unet_forward.28} parent=5 // pred_check
      %p125 = pneg %p124
    $region22: #{unet_forward.28} parent=5 // pred_check_branch
      %127 = sbr.rel (%p125) target = $region24
    $region23: #{unet_forward.28} parent=5 // pred_region
      // Predicated region
      $region25: #{unet_forward.28} parent=23 // pred_check
        %p128 = pneg %p29
      $region26: #{unet_forward.28} parent=23 // pred_check_branch
        %130 = sbr.rel (%p128) target = $region28
      $region27: #{unet_forward.28} parent=23 // pred_region
        %p131 = scmp.lt.s32.totalorder %s9, 1
        %s132 = scalar_select %p131, %s9, 1
        %s133 = smul.addr %s132, 96
        %s134 = smul.addr %s133, 8
        %s135 = scalar_lea.vmem %s0, %s134
      $region28: #{unet_forward.28} parent=23 // pred_fallthru
        _
    $region24: #{unet_forward.28} parent=5 // pred_fallthru
      _
    %p136 = scmp.le.s32.totalorder 1, %s9
    %p137 = scmp.lt.s32.totalorder %s9, 3
    %p138 = pnand %p136, %p137
    %p139 = pneg %p138
    // Predicated region
    $region29: #{unet_forward.28} parent=5 // pred_check
      _
    $region30: #{unet_forward.28} parent=5 // pred_check_branch
      %141 = sbr.rel (%p138) target = $region32
    $region31: #{unet_forward.28} parent=5 // pred_region
      %s142 = ssub.s32 %s9, 1
      %p143 = scmp.lt.s32.totalorder %s14, 1
      %s144 = scalar_select %p143, %s14, 1
      %s145 = smul.addr %s144, 96
      %s146 = smul.addr %s145, 8
      %s147 = scalar_lea.vmem %s0, %s146
      %p148 = pneg %p35
      %p149 = pneg %p32
      %p150 = pneg %p56
      %p151 = pneg %p53
      %p152 = pneg %p77
      %p153 = pneg %p74
      %p154 = pneg %p103
      %p155 = pneg %p100
      %p156 = scmp.lt.s32.totalorder %s14, 1
      %s157 = scalar_select %p156, %s14, 1
      %s158 = smul.addr %s157, 32
      %s159 = smul.addr %s158, 8
      %s160 = scalar_lea.vmem %s3, %s159
      %p161 = scmp.lt.s32.totalorder %s14, 1
      %s162 = scalar_select %p161, %s14, 1
      %s163 = smul.addr %s162, 96
      %s164 = smul.addr %s163, 8
      %s165 = scalar_lea.vmem %s0, %s164
      %p166 = scmp.lt.s32.totalorder %s14, 1
      %s167 = scalar_select %p166, %s14, 1
      %s168 = smul.addr %s167, 32
      %s169 = smul.addr %s168, 8
      %s170 = scalar_lea.vmem %s3, %s169
      %v171 = vld [vmem:[%s165] sm:$0xff]
      %v172 = vld [vmem:[%s165 + $0x8] sm:$0xff]
      %v173 = vld [vmem:[%s165 + $0x10] sm:$0xff]
      %v174 = vld [vmem:[%s165 + $0x18] sm:$0xff]
      %v175 = vld [vmem:[%s165 + $0x20] sm:$0xff]
      %v176 = vld [vmem:[%s165 + $0x28] sm:$0xff]
      %v177 = vld [vmem:[%s165 + $0x30] sm:$0xff]
      %v178 = vld [vmem:[%s165 + $0x38] sm:$0xff]
      %v179 = vld [vmem:[%s165 + $0x40] sm:$0xff]
      %v180 = vld [vmem:[%s165 + $0x48] sm:$0xff]
      %v181 = vld [vmem:[%s165 + $0x50] sm:$0xff]
      %v182 = vld [vmem:[%s165 + $0x58] sm:$0xff]
      %v183 = vld [vmem:[%s165 + $0x60] sm:$0xff]
      %v184 = vld [vmem:[%s165 + $0x68] sm:$0xff]
      %v185 = vld [vmem:[%s165 + $0x70] sm:$0xff]
      %v186 = vld [vmem:[%s165 + $0x78] sm:$0xff]
      %v187 = vld [vmem:[%s165 + $0x80] sm:$0xff]
      %v188 = vld [vmem:[%s165 + $0x88] sm:$0xff]
      %v189 = vld [vmem:[%s165 + $0x90] sm:$0xff]
      %v190 = vld [vmem:[%s165 + $0x98] sm:$0xff]
      %v191 = vld [vmem:[%s165 + $0xa0] sm:$0xff]
      %v192 = vld [vmem:[%s165 + $0xa8] sm:$0xff]
      %v193 = vld [vmem:[%s165 + $0xb0] sm:$0xff]
      %v194 = vld [vmem:[%s165 + $0xb8] sm:$0xff]
      %v195 = vld [vmem:[%s165 + $0xc0] sm:$0xff]
      %v196 = vld [vmem:[%s165 + $0xc8] sm:$0xff]
      %v197 = vld [vmem:[%s165 + $0xd0] sm:$0xff]
      %v198 = vld [vmem:[%s165 + $0xd8] sm:$0xff]
      %v199 = vld [vmem:[%s165 + $0xe0] sm:$0xff]
      %v200 = vld [vmem:[%s165 + $0xe8] sm:$0xff]
      %v201 = vld [vmem:[%s165 + $0xf0] sm:$0xff]
      %v202 = vld [vmem:[%s165 + $0xf8] sm:$0xff]
      %v203 = vld [vmem:[%s165 + $0x100] sm:$0xff]
      %v204 = vld [vmem:[%s165 + $0x108] sm:$0xff]
      %v205 = vld [vmem:[%s165 + $0x110] sm:$0xff]
      %v206 = vld [vmem:[%s165 + $0x118] sm:$0xff]
      %v207 = vld [vmem:[%s165 + $0x120] sm:$0xff]
      %v208 = vld [vmem:[%s165 + $0x128] sm:$0xff]
      %v209 = vld [vmem:[%s165 + $0x130] sm:$0xff]
      %v210 = vld [vmem:[%s165 + $0x138] sm:$0xff]
      %v211 = vld [vmem:[%s165 + $0x140] sm:$0xff]
      %v212 = vld [vmem:[%s165 + $0x148] sm:$0xff]
      %v213 = vld [vmem:[%s165 + $0x150] sm:$0xff]
      %v214 = vld [vmem:[%s165 + $0x158] sm:$0xff]
      %v215 = vld [vmem:[%s165 + $0x160] sm:$0xff]
      %v216 = vld [vmem:[%s165 + $0x168] sm:$0xff]
      %v217 = vld [vmem:[%s165 + $0x170] sm:$0xff]
      %v218 = vld [vmem:[%s165 + $0x178] sm:$0xff]
      %v219 = vld [vmem:[%s165 + $0x180] sm:$0xff]
      %v220 = vld [vmem:[%s165 + $0x188] sm:$0xff]
      %v221 = vld [vmem:[%s165 + $0x190] sm:$0xff]
      %v222 = vld [vmem:[%s165 + $0x198] sm:$0xff]
      %v223 = vld [vmem:[%s165 + $0x1a0] sm:$0xff]
      %v224 = vld [vmem:[%s165 + $0x1a8] sm:$0xff]
      %v225 = vld [vmem:[%s165 + $0x1b0] sm:$0xff]
      %v226 = vld [vmem:[%s165 + $0x1b8] sm:$0xff]
      %v227 = vld [vmem:[%s165 + $0x1c0] sm:$0xff]
      %v228 = vld [vmem:[%s165 + $0x1c8] sm:$0xff]
      %v229 = vld [vmem:[%s165 + $0x1d0] sm:$0xff]
      %v230 = vld [vmem:[%s165 + $0x1d8] sm:$0xff]
      %v231 = vld [vmem:[%s165 + $0x1e0] sm:$0xff]
      %v232 = vld [vmem:[%s165 + $0x1e8] sm:$0xff]
      %v233 = vld [vmem:[%s165 + $0x1f0] sm:$0xff]
      %v234 = vld [vmem:[%s165 + $0x1f8] sm:$0xff]
      %v235 = vld [vmem:[%s165 + $0x200] sm:$0xff]
      %v236 = vld [vmem:[%s165 + $0x208] sm:$0xff]
      %v237 = vld [vmem:[%s165 + $0x210] sm:$0xff]
      %v238 = vld [vmem:[%s165 + $0x218] sm:$0xff]
      %v239 = vld [vmem:[%s165 + $0x220] sm:$0xff]
      %v240 = vld [vmem:[%s165 + $0x228] sm:$0xff]
      %v241 = vld [vmem:[%s165 + $0x230] sm:$0xff]
      %v242 = vld [vmem:[%s165 + $0x238] sm:$0xff]
      %v243 = vld [vmem:[%s165 + $0x240] sm:$0xff]
      %v244 = vld [vmem:[%s165 + $0x248] sm:$0xff]
      %v245 = vld [vmem:[%s165 + $0x250] sm:$0xff]
      %v246 = vld [vmem:[%s165 + $0x258] sm:$0xff]
      %v247 = vld [vmem:[%s165 + $0x260] sm:$0xff]
      %v248 = vld [vmem:[%s165 + $0x268] sm:$0xff]
      %v249 = vld [vmem:[%s165 + $0x270] sm:$0xff]
      %v250 = vld [vmem:[%s165 + $0x278] sm:$0xff]
      %v251 = vld [vmem:[%s165 + $0x280] sm:$0xff]
      %v252 = vld [vmem:[%s165 + $0x288] sm:$0xff]
      %v253 = vld [vmem:[%s165 + $0x290] sm:$0xff]
      %v254 = vld [vmem:[%s165 + $0x298] sm:$0xff]
      %v255 = vld [vmem:[%s165 + $0x2a0] sm:$0xff]
      %v256 = vld [vmem:[%s165 + $0x2a8] sm:$0xff]
      %v257 = vld [vmem:[%s165 + $0x2b0] sm:$0xff]
      %v258 = vld [vmem:[%s165 + $0x2b8] sm:$0xff]
      %v259 = vld [vmem:[%s165 + $0x2c0] sm:$0xff]
      %v260 = vld [vmem:[%s165 + $0x2c8] sm:$0xff]
      %v261 = vld [vmem:[%s165 + $0x2d0] sm:$0xff]
      %v262 = vld [vmem:[%s165 + $0x2d8] sm:$0xff]
      %v263 = vld [vmem:[%s165 + $0x2e0] sm:$0xff]
      %v264 = vld [vmem:[%s165 + $0x2e8] sm:$0xff]
      %v265 = vld [vmem:[%s165 + $0x2f0] sm:$0xff]
      %v266 = vld [vmem:[%s165 + $0x2f8] sm:$0xff]
      %v267 = vld [vmem:[%s1] sm:$0xff]
      %v268 = vld [vmem:[%s1 + $0x8] sm:$0xff]
      %v269 = vld [vmem:[%s1 + $0x10] sm:$0xff]
      %v270 = vld [vmem:[%s1 + $0x18] sm:$0xff]
      %v271 = vld [vmem:[%s1 + $0x20] sm:$0xff]
      %v272 = vld [vmem:[%s1 + $0x28] sm:$0xff]
      %v273 = vld [vmem:[%s1 + $0x30] sm:$0xff]
      %v274 = vld [vmem:[%s1 + $0x38] sm:$0xff]
      %v275 = vld [vmem:[%s1 + $0x40] sm:$0xff]
      %v276 = vld [vmem:[%s1 + $0x48] sm:$0xff]
      %v277 = vld [vmem:[%s1 + $0x50] sm:$0xff]
      %v278 = vld [vmem:[%s1 + $0x58] sm:$0xff]
      %v279 = vld [vmem:[%s1 + $0x60] sm:$0xff]
      %v280 = vld [vmem:[%s1 + $0x68] sm:$0xff]
      %v281 = vld [vmem:[%s1 + $0x70] sm:$0xff]
      %v282 = vld [vmem:[%s1 + $0x78] sm:$0xff]
      %v283 = vld [vmem:[%s1 + $0x80] sm:$0xff]
      %v284 = vld [vmem:[%s1 + $0x88] sm:$0xff]
      %v285 = vld [vmem:[%s1 + $0x90] sm:$0xff]
      %v286 = vld [vmem:[%s1 + $0x98] sm:$0xff]
      %v287 = vld [vmem:[%s1 + $0xa0] sm:$0xff]
      %v288 = vld [vmem:[%s1 + $0xa8] sm:$0xff]
      %v289 = vld [vmem:[%s1 + $0xb0] sm:$0xff]
      %v290 = vld [vmem:[%s1 + $0xb8] sm:$0xff]
      %v291 = vld [vmem:[%s1 + $0xc0] sm:$0xff]
      %v292 = vld [vmem:[%s1 + $0xc8] sm:$0xff]
      %v293 = vld [vmem:[%s1 + $0xd0] sm:$0xff]
      %v294 = vld [vmem:[%s1 + $0xd8] sm:$0xff]
      %v295 = vld [vmem:[%s1 + $0xe0] sm:$0xff]
      %v296 = vld [vmem:[%s1 + $0xe8] sm:$0xff]
      %v297 = vld [vmem:[%s1 + $0xf0] sm:$0xff]
      %v298 = vld [vmem:[%s1 + $0xf8] sm:$0xff]
      %v299 = vld [vmem:[%s1 + $0x100] sm:$0xff]
      %v300 = vld [vmem:[%s1 + $0x108] sm:$0xff]
      %v301 = vld [vmem:[%s1 + $0x110] sm:$0xff]
      %v302 = vld [vmem:[%s1 + $0x118] sm:$0xff]
      %v303 = vld [vmem:[%s2] sm:$0x1]
      %v305 = vlaneseq
      %v306 = vshrl.u32 %v305, 7
      %v307 = vsub.s32 0, %v306
      %v308 = vrot.slane %v303, %v307
      %vm310 = vcmask 261120
      %v312 = vsel %vm310, %v173, 0
      %v315 = vsel %vm310, %v176, 0
      %v318 = vsel %vm310, %v179, 0
      %v321 = vsel %vm310, %v182, 0
      %v324 = vsel %vm310, %v185, 0
      %v327 = vsel %vm310, %v188, 0
      %v330 = vsel %vm310, %v191, 0
      %v333 = vsel %vm310, %v194, 0
      %v336 = vsel %vm310, %v197, 0
      %v339 = vsel %vm310, %v200, 0
      %v342 = vsel %vm310, %v203, 0
      %v345 = vsel %vm310, %v206, 0
      %v348 = vsel %vm310, %v209, 0
      %v351 = vsel %vm310, %v212, 0
      %v354 = vsel %vm310, %v215, 0
      %v357 = vsel %vm310, %v218, 0
      %v360 = vsel %vm310, %v221, 0
      %v363 = vsel %vm310, %v224, 0
      %v366 = vsel %vm310, %v227, 0
      %v369 = vsel %vm310, %v230, 0
      %v372 = vsel %vm310, %v233, 0
      %v375 = vsel %vm310, %v236, 0
      %v378 = vsel %vm310, %v239, 0
      %v381 = vsel %vm310, %v242, 0
      %v384 = vsel %vm310, %v245, 0
      %v387 = vsel %vm310, %v248, 0
      %v390 = vsel %vm310, %v251, 0
      %v393 = vsel %vm310, %v254, 0
      %v396 = vsel %vm310, %v257, 0
      %v399 = vsel %vm310, %v260, 0
      %v402 = vsel %vm310, %v263, 0
      %v405 = vsel %vm310, %v266, 0
      %407 = vmatprep.subr.mxu0 0.0
      %408 = vmatpush1.msra.mxu0 %v267
      %409 = vmatprep.subr.mxu0 0.0
      %410 = vmatpush1.msra.mxu0 %v268
      %411 = vmatprep.subr.mxu0 0.0
      %412 = vmatpush1.msra.mxu0 %v269
      %413 = vmatprep.subr.mxu0 0.0
      %414 = vmatpush1.msra.mxu0 %v270
      %415 = vmatprep.subr.mxu0 0.0
      %416 = vmatpush1.msra.mxu0 %v271
      %417 = vmatprep.subr.mxu0 0.0
      %418 = vmatpush1.msra.mxu0 %v272
      %419 = vmatprep.subr.mxu0 0.0
      %420 = vmatpush1.msra.mxu0 %v273
      %421 = vmatprep.subr.mxu0 0.0
      %422 = vmatpush1.msra.mxu0 %v274
      %423 = vmatprep.subr.mxu0 0.0
      %424 = vmatpush1.msra.mxu0 %v275
      %425 = vmatprep.subr.mxu0 0.0
      %426 = vmatpush1.msra.mxu0 %v276
      %427 = vmatprep.subr.mxu0 0.0
      %428 = vmatpush1.msra.mxu0 %v277
      %429 = vmatprep.subr.mxu0 0.0
      %430 = vmatpush1.msra.mxu0 %v278
      %431 = vmatprep.subr.mxu0 0.0
      %432 = vmatpush1.msra.mxu0 %v279
      %433 = vmatprep.subr.mxu0 0.0
      %434 = vmatpush1.msra.mxu0 %v280
      %435 = vmatprep.subr.mxu0 0.0
      %436 = vmatpush1.msra.mxu0 %v281
      %437 = vmatprep.subr.mxu0 0.0
      %438 = vmatpush1.msra.mxu0 %v282
      %439 = vmatprep.subr.mxu0 0.0
      %440 = vmatpush1.msra.mxu0 %v283
      %441 = vmatprep.subr.mxu0 0.0
      %442 = vmatpush1.msra.mxu0 %v284
      %443 = vmatprep.subr.mxu0 0.0
      %444 = vmatpush1.msra.mxu0 %v285
      %445 = vmatprep.subr.mxu0 0.0
      %446 = vmatpush1.msra.mxu0 %v286
      %447 = vmatprep.subr.mxu0 0.0
      %448 = vmatpush1.msra.mxu0 %v287
      %449 = vmatprep.subr.mxu0 0.0
      %450 = vmatpush1.msra.mxu0 %v288
      %451 = vmatprep.subr.mxu0 0.0
      %452 = vmatpush1.msra.mxu0 %v289
      %453 = vmatprep.subr.mxu0 0.0
      %454 = vmatpush1.msra.mxu0 %v290
      %455 = vmatprep.subr.mxu0 0.0
      %456 = vmatpush1.msra.mxu0 %v291
      %457 = vmatprep.subr.mxu0 0.0
      %458 = vmatpush1.msra.mxu0 %v292
      %459 = vmatprep.subr.mxu0 0.0
      %460 = vmatpush1.msra.mxu0 %v293
      %461 = vmatprep.subr.mxu0 0.0
      %462 = vmatpush1.msra.mxu0 %v294
      %463 = vmatprep.subr.mxu0 0.0
      %464 = vmatpush1.msra.mxu0 %v295
      %465 = vmatprep.subr.mxu0 0.0
      %466 = vmatpush1.msra.mxu0 %v296
      %467 = vmatprep.subr.mxu0 0.0
      %468 = vmatpush1.msra.mxu0 %v297
      %469 = vmatprep.subr.mxu0 0.0
      %470 = vmatpush1.msra.mxu0 %v298
      %471 = vmatprep.mubr.f32.mxu0 %v172
      %472 = vmatmul.mubr.f32.gmra.mrb[0].mxu0 %v171
      %v473 = vpop.f32.mrb[0].mxu0
      %v474 = vadd.f32 %v308, %v473
      %v475 = vpop.f32.mrb[0].mxu0
      %476 = vmatprep.mubr.f32.mxu0 %v175
      %477 = vmatmul.mubr.f32.gmra.mrb[0].mxu0 %v174
      %v478 = vpop.f32.mrb[0].mxu0
      %v479 = vadd.f32 %v308, %v478
      %v480 = vpop.f32.mrb[0].mxu0
      %481 = vmatprep.mubr.f32.mxu0 %v178
      %482 = vmatmul.mubr.f32.gmra.mrb[0].mxu0 %v177
      %v483 = vpop.f32.mrb[0].mxu0
      %v484 = vadd.f32 %v308, %v483
      %v485 = vpop.f32.mrb[0].mxu0
      %486 = vmatprep.mubr.f32.mxu0 %v181
      %487 = vmatmul.mubr.f32.gmra.mrb[0].mxu0 %v180
      %v488 = vpop.f32.mrb[0].mxu0
      %v489 = vadd.f32 %v308, %v488
      %v490 = vpop.f32.mrb[0].mxu0
      %491 = vmatprep.mubr.f32.mxu0 %v184
      %492 = vmatmul.mubr.f32.gmra.mrb[0].mxu0 %v183
      %v493 = vpop.f32.mrb[0].mxu0
      %v494 = vadd.f32 %v308, %v493
      %v495 = vpop.f32.mrb[0].mxu0
      %496 = vmatprep.mubr.f32.mxu0 %v187
      %497 = vmatmul.mubr.f32.gmra.mrb[0].mxu0 %v186
      %v498 = vpop.f32.mrb[0].mxu0
      %v499 = vadd.f32 %v308, %v498
      %v500 = vpop.f32.mrb[0].mxu0
      %501 = vmatprep.mubr.f32.mxu0 %v190
      %502 = vmatmul.mubr.f32.gmra.mrb[0].mxu0 %v189
      %v503 = vpop.f32.mrb[0].mxu0
      %v504 = vadd.f32 %v308, %v503
      %v505 = vpop.f32.mrb[0].mxu0
      %506 = vmatprep.mubr.f32.mxu0 %v193
      %507 = vmatmul.mubr.f32.gmra.mrb[0].mxu0 %v192
      %v508 = vpop.f32.mrb[0].mxu0
      %v509 = vadd.f32 %v308, %v508
      %v510 = vpop.f32.mrb[0].mxu0
      %511 = vmatprep.mubr.f32.mxu0 %v196
      %512 = vmatmul.mubr.f32.gmra.mrb[0].mxu0 %v195
      %v513 = vpop.f32.mrb[0].mxu0
      %v514 = vadd.f32 %v308, %v513
      %v515 = vpop.f32.mrb[0].mxu0
      %516 = vmatprep.mubr.f32.mxu0 %v199
      %517 = vmatmul.mubr.f32.gmra.mrb[0].mxu0 %v198
      %v518 = vpop.f32.mrb[0].mxu0
      %v519 = vadd.f32 %v308, %v518
      %v520 = vpop.f32.mrb[0].mxu0
      %521 = vmatprep.mubr.f32.mxu0 %v202
      %522 = vmatmul.mubr.f32.gmra.mrb[0].mxu0 %v201
      %v523 = vpop.f32.mrb[0].mxu0
      %v524 = vadd.f32 %v308, %v523
      %v525 = vpop.f32.mrb[0].mxu0
      %526 = vmatprep.mubr.f32.mxu0 %v205
      %527 = vmatmul.mubr.f32.gmra.mrb[0].mxu0 %v204
      %v528 = vpop.f32.mrb[0].mxu0
      %v529 = vadd.f32 %v308, %v528
      %v530 = vpop.f32.mrb[0].mxu0
      %531 = vmatprep.mubr.f32.mxu0 %v208
      %532 = vmatmul.mubr.f32.gmra.mrb[0].mxu0 %v207
      %v533 = vpop.f32.mrb[0].mxu0
      %v534 = vadd.f32 %v308, %v533
      %v535 = vpop.f32.mrb[0].mxu0
      %536 = vmatprep.mubr.f32.mxu0 %v211
      %537 = vmatmul.mubr.f32.gmra.mrb[0].mxu0 %v210
      %v538 = vpop.f32.mrb[0].mxu0
      %v539 = vadd.f32 %v308, %v538
      %v540 = vpop.f32.mrb[0].mxu0
      %541 = vmatprep.mubr.f32.mxu0 %v214
      %542 = vmatmul.mubr.f32.gmra.mrb[0].mxu0 %v213
      %v543 = vpop.f32.mrb[0].mxu0
      %v544 = vadd.f32 %v308, %v543
      %v545 = vpop.f32.mrb[0].mxu0
      %546 = vmatprep.mubr.f32.mxu0 %v217
      %547 = vmatmul.mubr.f32.gmra.mrb[0].mxu0 %v216
      %v548 = vpop.f32.mrb[0].mxu0
      %v549 = vadd.f32 %v308, %v548
      %v550 = vpop.f32.mrb[0].mxu0
      %551 = vmatprep.mubr.f32.mxu0 %v220
      %552 = vmatmul.mubr.f32.gmra.mrb[0].mxu0 %v219
      %v553 = vpop.f32.mrb[0].mxu0
      %v554 = vadd.f32 %v308, %v553
      %v555 = vpop.f32.mrb[0].mxu0
      %556 = vmatprep.mubr.f32.mxu0 %v223
      %557 = vmatmul.mubr.f32.gmra.mrb[0].mxu0 %v222
      %v558 = vpop.f32.mrb[0].mxu0
      %v559 = vadd.f32 %v308, %v558
      %v560 = vpop.f32.mrb[0].mxu0
      %561 = vmatprep.mubr.f32.mxu0 %v226
      %562 = vmatmul.mubr.f32.gmra.mrb[0].mxu0 %v225
      %v563 = vpop.f32.mrb[0].mxu0
      %v564 = vadd.f32 %v308, %v563
      %v565 = vpop.f32.mrb[0].mxu0
      %566 = vmatprep.mubr.f32.mxu0 %v229
      %567 = vmatmul.mubr.f32.gmra.mrb[0].mxu0 %v228
      %v568 = vpop.f32.mrb[0].mxu0
      %v569 = vadd.f32 %v308, %v568
      %v570 = vpop.f32.mrb[0].mxu0
      %571 = vmatprep.mubr.f32.mxu0 %v232
      %572 = vmatmul.mubr.f32.gmra.mrb[0].mxu0 %v231
      %v573 = vpop.f32.mrb[0].mxu0
      %v574 = vadd.f32 %v308, %v573
      %v575 = vpop.f32.mrb[0].mxu0
      %576 = vmatprep.mubr.f32.mxu0 %v235
      %577 = vmatmul.mubr.f32.gmra.mrb[0].mxu0 %v234
      %v578 = vpop.f32.mrb[0].mxu0
      %v579 = vadd.f32 %v308, %v578
      %v580 = vpop.f32.mrb[0].mxu0
      %581 = vmatprep.mubr.f32.mxu0 %v238
      %582 = vmatmul.mubr.f32.gmra.mrb[0].mxu0 %v237
      %v583 = vpop.f32.mrb[0].mxu0
      %v584 = vadd.f32 %v308, %v583
      %v585 = vpop.f32.mrb[0].mxu0
      %586 = vmatprep.mubr.f32.mxu0 %v241
      %587 = vmatmul.mubr.f32.gmra.mrb[0].mxu0 %v240
      %v588 = vpop.f32.mrb[0].mxu0
      %v589 = vadd.f32 %v308, %v588
      %v590 = vpop.f32.mrb[0].mxu0
      %591 = vmatprep.mubr.f32.mxu0 %v244
      %592 = vmatmul.mubr.f32.gmra.mrb[0].mxu0 %v243
      %v593 = vpop.f32.mrb[0].mxu0
      %v594 = vadd.f32 %v308, %v593
      %v595 = vpop.f32.mrb[0].mxu0
      %596 = vmatprep.mubr.f32.mxu0 %v247
      %597 = vmatmul.mubr.f32.gmra.mrb[0].mxu0 %v246
      %v598 = vpop.f32.mrb[0].mxu0
      %v599 = vadd.f32 %v308, %v598
      %v600 = vpop.f32.mrb[0].mxu0
      %601 = vmatprep.mubr.f32.mxu0 %v250
      %602 = vmatmul.mubr.f32.gmra.mrb[0].mxu0 %v249
      %v603 = vpop.f32.mrb[0].mxu0
      %v604 = vadd.f32 %v308, %v603
      %v605 = vpop.f32.mrb[0].mxu0
      %606 = vmatprep.mubr.f32.mxu0 %v253
      %607 = vmatmul.mubr.f32.gmra.mrb[0].mxu0 %v252
      %v608 = vpop.f32.mrb[0].mxu0
      %v609 = vadd.f32 %v308, %v608
      %v610 = vpop.f32.mrb[0].mxu0
      %611 = vmatprep.mubr.f32.mxu0 %v256
      %612 = vmatmul.mubr.f32.gmra.mrb[0].mxu0 %v255
      %v613 = vpop.f32.mrb[0].mxu0
      %v614 = vadd.f32 %v308, %v613
      %v615 = vpop.f32.mrb[0].mxu0
      %616 = vmatprep.mubr.f32.mxu0 %v259
      %617 = vmatmul.mubr.f32.gmra.mrb[0].mxu0 %v258
      %v618 = vpop.f32.mrb[0].mxu0
      %v619 = vadd.f32 %v308, %v618
      %v620 = vpop.f32.mrb[0].mxu0
      %621 = vmatprep.mubr.f32.mxu0 %v262
      %622 = vmatmul.mubr.f32.gmra.mrb[0].mxu0 %v261
      %v623 = vpop.f32.mrb[0].mxu0
      %v624 = vadd.f32 %v308, %v623
      %v625 = vpop.f32.mrb[0].mxu0
      %626 = vmatprep.mubr.f32.mxu0 %v265
      %627 = vmatmul.mubr.f32.gmra.mrb[0].mxu0 %v264
      %v628 = vpop.f32.mrb[0].mxu0
      %v629 = vadd.f32 %v308, %v628
      %v630 = vpop.f32.mrb[0].mxu0
      %631 = vdwg.mxu0
      %632 = vmatprep.subr.mxu0 0.0
      %633 = vmatpush1.msra.mxu0 %v299
      %634 = vmatprep.subr.mxu0 0.0
      %635 = vmatpush1.msra.mxu0 %v300
      %636 = vmatprep.subr.mxu0 0.0
      %637 = vmatpush1.msra.mxu0 %v301
      %638 = vmatprep.subr.mxu0 0.0
      %639 = vmatpush1.msra.mxu0 %v302
      %640 = vmatprep.subr.mxu0 0.0
      %641 = vmatpush1.msra.mxu0 0.0
      %642 = vmatprep.subr.mxu0 0.0
      %643 = vmatpush1.msra.mxu0 0.0
      %644 = vmatprep.subr.mxu0 0.0
      %645 = vmatpush1.msra.mxu0 0.0
      %646 = vmatprep.subr.mxu0 0.0
      %647 = vmatpush1.msra.mxu0 0.0
      %648 = vmatprep.subr.mxu0 0.0
      %649 = vmatpush1.msra.mxu0 0.0
      %650 = vmatprep.subr.mxu0 0.0
      %651 = vmatpush1.msra.mxu0 0.0
      %652 = vmatprep.subr.mxu0 0.0
      %653 = vmatpush1.msra.mxu0 0.0
      %654 = vmatprep.subr.mxu0 0.0
      %655 = vmatpush1.msra.mxu0 0.0
      %656 = vmatprep.subr.mxu0 0.0
      %657 = vmatpush1.msra.mxu0 0.0
      %658 = vmatprep.subr.mxu0 0.0
      %659 = vmatpush1.msra.mxu0 0.0
      %660 = vmatprep.subr.mxu0 0.0
      %661 = vmatpush1.msra.mxu0 0.0
      %662 = vmatprep.subr.mxu0 0.0
      %663 = vmatpush1.msra.mxu0 0.0
      %664 = vmatprep.subr.mxu0 0.0
      %665 = vmatpush1.msra.mxu0 0.0
      %666 = vmatprep.subr.mxu0 0.0
      %667 = vmatpush1.msra.mxu0 0.0
      %668 = vmatprep.subr.mxu0 0.0
      %669 = vmatpush1.msra.mxu0 0.0
      %670 = vmatprep.subr.mxu0 0.0
      %671 = vmatpush1.msra.mxu0 0.0
      %672 = vmatprep.subr.mxu0 0.0
      %673 = vmatpush1.msra.mxu0 0.0
      %674 = vmatprep.subr.mxu0 0.0
      %675 = vmatpush1.msra.mxu0 0.0
      %676 = vmatprep.subr.mxu0 0.0
      %677 = vmatpush1.msra.mxu0 0.0
      %678 = vmatprep.subr.mxu0 0.0
      %679 = vmatpush1.msra.mxu0 0.0
      %680 = vmatprep.subr.mxu0 0.0
      %681 = vmatpush1.msra.mxu0 0.0
      %682 = vmatprep.subr.mxu0 0.0
      %683 = vmatpush1.msra.mxu0 0.0
      %684 = vmatprep.subr.mxu0 0.0
      %685 = vmatpush1.msra.mxu0 0.0
      %686 = vmatprep.subr.mxu0 0.0
      %687 = vmatpush1.msra.mxu0 0.0
      %688 = vmatprep.subr.mxu0 0.0
      %689 = vmatpush1.msra.mxu0 0.0
      %690 = vmatprep.subr.mxu0 0.0
      %691 = vmatpush1.msra.mxu0 0.0
      %692 = vmatprep.subr.mxu0 0.0
      %693 = vmatpush1.msra.mxu0 0.0
      %694 = vmatprep.subr.mxu0 0.0
      %695 = vmatpush1.msra.mxu0 0.0
      %696 = vmatprep.mubr.f32.mxu0 0.0
      %697 = vmatmul.mubr.f32.gmra.mrb[0].mxu0 %v312
      %v698 = vpop.f32.mrb[0].mxu0
      %v699 = vadd.f32 %v474, %v698
      %v700 = vpop.f32.mrb[0].mxu0
      %701 = vmatprep.mubr.f32.mxu0 0.0
      %702 = vmatmul.mubr.f32.gmra.mrb[0].mxu0 %v315
      %v703 = vpop.f32.mrb[0].mxu0
      %v704 = vadd.f32 %v479, %v703
      %v705 = vpop.f32.mrb[0].mxu0
      %706 = vmatprep.mubr.f32.mxu0 0.0
      %707 = vmatmul.mubr.f32.gmra.mrb[0].mxu0 %v318
      %v708 = vpop.f32.mrb[0].mxu0
      %v709 = vadd.f32 %v484, %v708
      %v710 = vpop.f32.mrb[0].mxu0
      %711 = vmatprep.mubr.f32.mxu0 0.0
      %712 = vmatmul.mubr.f32.gmra.mrb[0].mxu0 %v321
      %v713 = vpop.f32.mrb[0].mxu0
      %v714 = vadd.f32 %v489, %v713
      %v715 = vpop.f32.mrb[0].mxu0
      %716 = vmatprep.mubr.f32.mxu0 0.0
      %717 = vmatmul.mubr.f32.gmra.mrb[0].mxu0 %v324
      %v718 = vpop.f32.mrb[0].mxu0
      %v719 = vadd.f32 %v494, %v718
      %v720 = vpop.f32.mrb[0].mxu0
      %721 = vmatprep.mubr.f32.mxu0 0.0
      %722 = vmatmul.mubr.f32.gmra.mrb[0].mxu0 %v327
      %v723 = vpop.f32.mrb[0].mxu0
      %v724 = vadd.f32 %v499, %v723
      %v725 = vpop.f32.mrb[0].mxu0
      %726 = vmatprep.mubr.f32.mxu0 0.0
      %727 = vmatmul.mubr.f32.gmra.mrb[0].mxu0 %v330
      %v728 = vpop.f32.mrb[0].mxu0
      %v729 = vadd.f32 %v504, %v728
      %v730 = vpop.f32.mrb[0].mxu0
      %731 = vmatprep.mubr.f32.mxu0 0.0
      %732 = vmatmul.mubr.f32.gmra.mrb[0].mxu0 %v333
      %v733 = vpop.f32.mrb[0].mxu0
      %v734 = vadd.f32 %v509, %v733
      %v735 = vpop.f32.mrb[0].mxu0
      %736 = vmatprep.mubr.f32.mxu0 0.0
      %737 = vmatmul.mubr.f32.gmra.mrb[0].mxu0 %v336
      %v738 = vpop.f32.mrb[0].mxu0
      %v739 = vadd.f32 %v514, %v738
      %v740 = vpop.f32.mrb[0].mxu0
      %741 = vmatprep.mubr.f32.mxu0 0.0
      %742 = vmatmul.mubr.f32.gmra.mrb[0].mxu0 %v339
      %v743 = vpop.f32.mrb[0].mxu0
      %v744 = vadd.f32 %v519, %v743
      %v745 = vpop.f32.mrb[0].mxu0
      %746 = vmatprep.mubr.f32.mxu0 0.0
      %747 = vmatmul.mubr.f32.gmra.mrb[0].mxu0 %v342
      %v748 = vpop.f32.mrb[0].mxu0
      %v749 = vadd.f32 %v524, %v748
      %v750 = vpop.f32.mrb[0].mxu0
      %751 = vmatprep.mubr.f32.mxu0 0.0
      %752 = vmatmul.mubr.f32.gmra.mrb[0].mxu0 %v345
      %v753 = vpop.f32.mrb[0].mxu0
      %v754 = vadd.f32 %v529, %v753
      %v755 = vpop.f32.mrb[0].mxu0
      %756 = vmatprep.mubr.f32.mxu0 0.0
      %757 = vmatmul.mubr.f32.gmra.mrb[0].mxu0 %v348
      %v758 = vpop.f32.mrb[0].mxu0
      %v759 = vadd.f32 %v534, %v758
      %v760 = vpop.f32.mrb[0].mxu0
      %761 = vmatprep.mubr.f32.mxu0 0.0
      %762 = vmatmul.mubr.f32.gmra.mrb[0].mxu0 %v351
      %v763 = vpop.f32.mrb[0].mxu0
      %v764 = vadd.f32 %v539, %v763
      %v765 = vpop.f32.mrb[0].mxu0
      %766 = vmatprep.mubr.f32.mxu0 0.0
      %767 = vmatmul.mubr.f32.gmra.mrb[0].mxu0 %v354
      %v768 = vpop.f32.mrb[0].mxu0
      %v769 = vadd.f32 %v544, %v768
      %v770 = vpop.f32.mrb[0].mxu0
      %771 = vmatprep.mubr.f32.mxu0 0.0
      %772 = vmatmul.mubr.f32.gmra.mrb[0].mxu0 %v357
      %v773 = vpop.f32.mrb[0].mxu0
      %v774 = vadd.f32 %v549, %v773
      %v775 = vpop.f32.mrb[0].mxu0
      %776 = vmatprep.mubr.f32.mxu0 0.0
      %777 = vmatmul.mubr.f32.gmra.mrb[0].mxu0 %v360
      %v778 = vpop.f32.mrb[0].mxu0
      %v779 = vadd.f32 %v554, %v778
      %v780 = vpop.f32.mrb[0].mxu0
      %781 = vmatprep.mubr.f32.mxu0 0.0
      %782 = vmatmul.mubr.f32.gmra.mrb[0].mxu0 %v363
      %v783 = vpop.f32.mrb[0].mxu0
      %v784 = vadd.f32 %v559, %v783
      %v785 = vpop.f32.mrb[0].mxu0
      %786 = vmatprep.mubr.f32.mxu0 0.0
      %787 = vmatmul.mubr.f32.gmra.mrb[0].mxu0 %v366
      %v788 = vpop.f32.mrb[0].mxu0
      %v789 = vadd.f32 %v564, %v788
      %v790 = vpop.f32.mrb[0].mxu0
      %791 = vmatprep.mubr.f32.mxu0 0.0
      %792 = vmatmul.mubr.f32.gmra.mrb[0].mxu0 %v369
      %v793 = vpop.f32.mrb[0].mxu0
      %v794 = vadd.f32 %v569, %v793
      %v795 = vpop.f32.mrb[0].mxu0
      %796 = vmatprep.mubr.f32.mxu0 0.0
      %797 = vmatmul.mubr.f32.gmra.mrb[0].mxu0 %v372
      %v798 = vpop.f32.mrb[0].mxu0
      %v799 = vadd.f32 %v574, %v798
      %v800 = vpop.f32.mrb[0].mxu0
      %801 = vmatprep.mubr.f32.mxu0 0.0
      %802 = vmatmul.mubr.f32.gmra.mrb[0].mxu0 %v375
      %v803 = vpop.f32.mrb[0].mxu0
      %v804 = vadd.f32 %v579, %v803
      %v805 = vpop.f32.mrb[0].mxu0
      %806 = vmatprep.mubr.f32.mxu0 0.0
      %807 = vmatmul.mubr.f32.gmra.mrb[0].mxu0 %v378
      %v808 = vpop.f32.mrb[0].mxu0
      %v809 = vadd.f32 %v584, %v808
      %v810 = vpop.f32.mrb[0].mxu0
      %811 = vmatprep.mubr.f32.mxu0 0.0
      %812 = vmatmul.mubr.f32.gmra.mrb[0].mxu0 %v381
      %v813 = vpop.f32.mrb[0].mxu0
      %v814 = vadd.f32 %v589, %v813
      %v815 = vpop.f32.mrb[0].mxu0
      %816 = vmatprep.mubr.f32.mxu0 0.0
      %817 = vmatmul.mubr.f32.gmra.mrb[0].mxu0 %v384
      %v818 = vpop.f32.mrb[0].mxu0
      %v819 = vadd.f32 %v594, %v818
      %v820 = vpop.f32.mrb[0].mxu0
      %821 = vmatprep.mubr.f32.mxu0 0.0
      %822 = vmatmul.mubr.f32.gmra.mrb[0].mxu0 %v387
      %v823 = vpop.f32.mrb[0].mxu0
      %v824 = vadd.f32 %v599, %v823
      %v825 = vpop.f32.mrb[0].mxu0
      %826 = vmatprep.mubr.f32.mxu0 0.0
      %827 = vmatmul.mubr.f32.gmra.mrb[0].mxu0 %v390
      %v828 = vpop.f32.mrb[0].mxu0
      %v829 = vadd.f32 %v604, %v828
      %v830 = vpop.f32.mrb[0].mxu0
      %831 = vmatprep.mubr.f32.mxu0 0.0
      %832 = vmatmul.mubr.f32.gmra.mrb[0].mxu0 %v393
      %v833 = vpop.f32.mrb[0].mxu0
      %v834 = vadd.f32 %v609, %v833
      %v835 = vpop.f32.mrb[0].mxu0
      %836 = vmatprep.mubr.f32.mxu0 0.0
      %837 = vmatmul.mubr.f32.gmra.mrb[0].mxu0 %v396
      %v838 = vpop.f32.mrb[0].mxu0
      %v839 = vadd.f32 %v614, %v838
      %v840 = vpop.f32.mrb[0].mxu0
      %841 = vmatprep.mubr.f32.mxu0 0.0
      %842 = vmatmul.mubr.f32.gmra.mrb[0].mxu0 %v399
      %v843 = vpop.f32.mrb[0].mxu0
      %v844 = vadd.f32 %v619, %v843
      %v845 = vpop.f32.mrb[0].mxu0
      %846 = vmatprep.mubr.f32.mxu0 0.0
      %847 = vmatmul.mubr.f32.gmra.mrb[0].mxu0 %v402
      %v848 = vpop.f32.mrb[0].mxu0
      %v849 = vadd.f32 %v624, %v848
      %v850 = vpop.f32.mrb[0].mxu0
      %851 = vmatprep.mubr.f32.mxu0 0.0
      %852 = vmatmul.mubr.f32.gmra.mrb[0].mxu0 %v405
      %v853 = vpop.f32.mrb[0].mxu0
      %v854 = vadd.f32 %v629, %v853
      %v855 = vpop.f32.mrb[0].mxu0
      %856 = vdwg.mxu0
      %vm857 = vcmp.ge.f32.partialorder %v699, 0.0
      %vm858 = vcmp.ge.f32.partialorder %v704, 0.0
      %vm859 = vcmp.ge.f32.partialorder %v709, 0.0
      %vm860 = vcmp.ge.f32.partialorder %v714, 0.0
      %vm861 = vcmp.ge.f32.partialorder %v719, 0.0
      %vm862 = vcmp.ge.f32.partialorder %v724, 0.0
      %vm863 = vcmp.ge.f32.partialorder %v729, 0.0
      %vm864 = vcmp.ge.f32.partialorder %v734, 0.0
      %vm865 = vcmp.ge.f32.partialorder %v739, 0.0
      %vm866 = vcmp.ge.f32.partialorder %v744, 0.0
      %vm867 = vcmp.ge.f32.partialorder %v749, 0.0
      %vm868 = vcmp.ge.f32.partialorder %v754, 0.0
      %vm869 = vcmp.ge.f32.partialorder %v759, 0.0
      %vm870 = vcmp.ge.f32.partialorder %v764, 0.0
      %vm871 = vcmp.ge.f32.partialorder %v769, 0.0
      %vm872 = vcmp.ge.f32.partialorder %v774, 0.0
      %vm873 = vcmp.ge.f32.partialorder %v779, 0.0
      %vm874 = vcmp.ge.f32.partialorder %v784, 0.0
      %vm875 = vcmp.ge.f32.partialorder %v789, 0.0
      %vm876 = vcmp.ge.f32.partialorder %v794, 0.0
      %vm877 = vcmp.ge.f32.partialorder %v799, 0.0
      %vm878 = vcmp.ge.f32.partialorder %v804, 0.0
      %vm879 = vcmp.ge.f32.partialorder %v809, 0.0
      %vm880 = vcmp.ge.f32.partialorder %v814, 0.0
      %vm881 = vcmp.ge.f32.partialorder %v819, 0.0
      %vm882 = vcmp.ge.f32.partialorder %v824, 0.0
      %vm883 = vcmp.ge.f32.partialorder %v829, 0.0
      %vm884 = vcmp.ge.f32.partialorder %v834, 0.0
      %vm885 = vcmp.ge.f32.partialorder %v839, 0.0
      %vm886 = vcmp.ge.f32.partialorder %v844, 0.0
      %vm887 = vcmp.ge.f32.partialorder %v849, 0.0
      %vm888 = vcmp.ge.f32.partialorder %v854, 0.0
      %v889 = vmul.f32 %v699, 0.1
      %v890 = vmul.f32 %v704, 0.1
      %v891 = vmul.f32 %v709, 0.1
      %v892 = vmul.f32 %v714, 0.1
      %v893 = vmul.f32 %v719, 0.1
      %v894 = vmul.f32 %v724, 0.1
      %v895 = vmul.f32 %v729, 0.1
      %v896 = vmul.f32 %v734, 0.1
      %v897 = vmul.f32 %v739, 0.1
      %v898 = vmul.f32 %v744, 0.1
      %v899 = vmul.f32 %v749, 0.1
      %v900 = vmul.f32 %v754, 0.1
      %v901 = vmul.f32 %v759, 0.1
      %v902 = vmul.f32 %v764, 0.1
      %v903 = vmul.f32 %v769, 0.1
      %v904 = vmul.f32 %v774, 0.1
      %v905 = vmul.f32 %v779, 0.1
      %v906 = vmul.f32 %v784, 0.1
      %v907 = vmul.f32 %v789, 0.1
      %v908 = vmul.f32 %v794, 0.1
      %v909 = vmul.f32 %v799, 0.1
      %v910 = vmul.f32 %v804, 0.1
      %v911 = vmul.f32 %v809, 0.1
      %v912 = vmul.f32 %v814, 0.1
      %v913 = vmul.f32 %v819, 0.1
      %v914 = vmul.f32 %v824, 0.1
      %v915 = vmul.f32 %v829, 0.1
      %v916 = vmul.f32 %v834, 0.1
      %v917 = vmul.f32 %v839, 0.1
      %v918 = vmul.f32 %v844, 0.1
      %v919 = vmul.f32 %v849, 0.1
      %v920 = vmul.f32 %v854, 0.1
      %v921 = vsel %vm857, %v699, %v889
      %v922 = vsel %vm858, %v704, %v890
      %v923 = vsel %vm859, %v709, %v891
      %v924 = vsel %vm860, %v714, %v892
      %v925 = vsel %vm861, %v719, %v893
      %v926 = vsel %vm862, %v724, %v894
      %v927 = vsel %vm863, %v729, %v895
      %v928 = vsel %vm864, %v734, %v896
      %v929 = vsel %vm865, %v739, %v897
      %v930 = vsel %vm866, %v744, %v898
      %v931 = vsel %vm867, %v749, %v899
      %v932 = vsel %vm868, %v754, %v900
      %v933 = vsel %vm869, %v759, %v901
      %v934 = vsel %vm870, %v764, %v902
      %v935 = vsel %vm871, %v769, %v903
      %v936 = vsel %vm872, %v774, %v904
      %v937 = vsel %vm873, %v779, %v905
      %v938 = vsel %vm874, %v784, %v906
      %v939 = vsel %vm875, %v789, %v907
      %v940 = vsel %vm876, %v794, %v908
      %v941 = vsel %vm877, %v799, %v909
      %v942 = vsel %vm878, %v804, %v910
      %v943 = vsel %vm879, %v809, %v911
      %v944 = vsel %vm880, %v814, %v912
      %v945 = vsel %vm881, %v819, %v913
      %v946 = vsel %vm882, %v824, %v914
      %v947 = vsel %vm883, %v829, %v915
      %v948 = vsel %vm884, %v834, %v916
      %v949 = vsel %vm885, %v839, %v917
      %v950 = vsel %vm886, %v844, %v918
      %v951 = vsel %vm887, %v849, %v919
      %v952 = vsel %vm888, %v854, %v920
      %vm953 = vcmask 130048
      %954 = vst.msk [vmem:[%s170] sm:$0xff] %vm953, %v921
      %955 = vst.msk [vmem:[%s170 + $0x8] sm:$0xff] %vm953, %v922
      %956 = vst.msk [vmem:[%s170 + $0x10] sm:$0xff] %vm953, %v923
      %957 = vst.msk [vmem:[%s170 + $0x18] sm:$0xff] %vm953, %v924
      %958 = vst.msk [vmem:[%s170 + $0x20] sm:$0xff] %vm953, %v925
      %959 = vst.msk [vmem:[%s170 + $0x28] sm:$0xff] %vm953, %v926
      %960 = vst.msk [vmem:[%s170 + $0x30] sm:$0xff] %vm953, %v927
      %961 = vst.msk [vmem:[%s170 + $0x38] sm:$0xff] %vm953, %v928
      %962 = vst.msk [vmem:[%s170 + $0x40] sm:$0xff] %vm953, %v929
      %963 = vst.msk [vmem:[%s170 + $0x48] sm:$0xff] %vm953, %v930
      %964 = vst.msk [vmem:[%s170 + $0x50] sm:$0xff] %vm953, %v931
      %965 = vst.msk [vmem:[%s170 + $0x58] sm:$0xff] %vm953, %v932
      %966 = vst.msk [vmem:[%s170 + $0x60] sm:$0xff] %vm953, %v933
      %967 = vst.msk [vmem:[%s170 + $0x68] sm:$0xff] %vm953, %v934
      %968 = vst.msk [vmem:[%s170 + $0x70] sm:$0xff] %vm953, %v935
      %969 = vst.msk [vmem:[%s170 + $0x78] sm:$0xff] %vm953, %v936
      %970 = vst.msk [vmem:[%s170 + $0x80] sm:$0xff] %vm953, %v937
      %971 = vst.msk [vmem:[%s170 + $0x88] sm:$0xff] %vm953, %v938
      %972 = vst.msk [vmem:[%s170 + $0x90] sm:$0xff] %vm953, %v939
      %973 = vst.msk [vmem:[%s170 + $0x98] sm:$0xff] %vm953, %v940
      %974 = vst.msk [vmem:[%s170 + $0xa0] sm:$0xff] %vm953, %v941
      %975 = vst.msk [vmem:[%s170 + $0xa8] sm:$0xff] %vm953, %v942
      %976 = vst.msk [vmem:[%s170 + $0xb0] sm:$0xff] %vm953, %v943
      %977 = vst.msk [vmem:[%s170 + $0xb8] sm:$0xff] %vm953, %v944
      %978 = vst.msk [vmem:[%s170 + $0xc0] sm:$0xff] %vm953, %v945
      %979 = vst.msk [vmem:[%s170 + $0xc8] sm:$0xff] %vm953, %v946
      %980 = vst.msk [vmem:[%s170 + $0xd0] sm:$0xff] %vm953, %v947
      %981 = vst.msk [vmem:[%s170 + $0xd8] sm:$0xff] %vm953, %v948
      %982 = vst.msk [vmem:[%s170 + $0xe0] sm:$0xff] %vm953, %v949
      %983 = vst.msk [vmem:[%s170 + $0xe8] sm:$0xff] %vm953, %v950
      %984 = vst.msk [vmem:[%s170 + $0xf0] sm:$0xff] %vm953, %v951
      %985 = vst.msk [vmem:[%s170 + $0xf8] sm:$0xff] %vm953, %v952
      %p986 = scmp.lt.s32.totalorder %s14, 1
      %s987 = scalar_select %p986, %s14, 1
      %s988 = smul.addr %s987, 32
      %s989 = smul.addr %s988, 8
      %s990 = scalar_lea.vmem %s3, %s989
      // Predicated region
      $region33: #{unet_forward.28} parent=31 // pred_check
        %p991 = pneg %p100
      $region34: #{unet_forward.28} parent=31 // pred_check_branch
        %993 = sbr.rel (%p991) target = $region36
      $region35: #{unet_forward.28} parent=31 // pred_region
        _
      $region36: #{unet_forward.28} parent=31 // pred_fallthru
        _
    $region32: #{unet_forward.28} parent=5 // pred_fallthru
      _
    %p994 = scmp.le.s32.totalorder 2, %s9
    // Predicated region
    $region37: #{unet_forward.28} parent=5 // pred_check
      %p995 = pneg %p994
    $region38: #{unet_forward.28} parent=5 // pred_check_branch
      %997 = sbr.rel (%p995) target = $region40
    $region39: #{unet_forward.28} parent=5 // pred_region
      %s998 = ssub.s32 %s9, 2
      // Predicated region
      $region41: #{unet_forward.28} parent=39 // pred_check
        %p999 = pneg %p106
      $region42: #{unet_forward.28} parent=39 // pred_check_branch
        %1001 = sbr.rel (%p999) target = $region44
      $region43: #{unet_forward.28} parent=39 // pred_region
        %p1002 = scmp.lt.s32.totalorder %s15, 1
        %s1003 = scalar_select %p1002, %s15, 1
        %s1004 = smul.addr %s1003, 32
        %s1005 = smul.addr %s1004, 8
        %s1006 = scalar_lea.vmem %s3, %s1005
      $region44: #{unet_forward.28} parent=39 // pred_fallthru
        _
    $region40: #{unet_forward.28} parent=5 // pred_fallthru
      _
  $region6: #{unet_forward.28} parent=0 // loop_footer
    %s13 = sadd.s32 1, %s9
  $region7: #{unet_forward.28} parent=0 // loop_footer_branch
    %8 = sbr.rel target = $region3
  $region8: #{unet_forward.28} parent=0 // loop_exit
    _

// kernel: unet_forward.29
$region0: #{unet_forward.29}
  #allocation0 [shape = 'u32[]', space=smem, size = 0x4, offset = 0x4, fixed_abs, tag = 'smem constant byte address 0x4 - core index']
  #allocation1 [shape = 'u32[144,128]{1,0:T(1,128)}', space=vmem, size = 0x12000, scoped, tag = 'internal scratch']
  %s0 = inlined_call_operand.vmem [shape: f32[2,256,144], index: 0, kind: input, shape index: {}]
  %s1 = inlined_call_operand.vmem [shape: f32[144,3], index: 1, kind: input, shape index: {}]
  %s2 = inlined_call_operand.vmem [shape: f32[1,3], index: 2, kind: input, shape index: {}]
  %s3 = inlined_call_operand.vmem [shape: f32[2,256,3], index: 3, kind: output, shape index: {}]
  %s4 = sld [smem:[#allocation0]]
  $region45: #{unet_forward.29} parent=0
    _
  %s6 = ssub.s32 1, %s4
  %s7 = scalar_select 0, %s6, %s4
  loop: start=0, step=1, limit=4
  $region2: #{unet_forward.29} parent=0 // loop_pre_header
    _
  $region3: #{unet_forward.29} parent=0 // loop_header
    %s9 = sphi 0, %s13
    %p10 = scmp.ge.s32.totalorder %s9, 4
    %s19 = sphi 0, %s21
    %s22 = sphi 0, %s19
    %s23 = sphi 0, %s22
    %s39 = sphi 0, %s23
    %s43 = sphi 0, %s43
    %s45 = sphi 0, %s43
    %s46 = sphi 0, %s45
    %s60 = sphi 0, %s46
    %s64 = sphi 0, %s64
    %s66 = sphi 0, %s64
    %s67 = sphi 0, %s66
    %s81 = sphi 0, %s67
    %s87 = sphi 0, %s89
    %s90 = sphi 0, %s87
    %s91 = sphi 0, %s90
    %s107 = sphi 0, %s91
  $region4: #{unet_forward.29} parent=0 // loop_header_branch
    %12 = sbr.rel (%p10) target = $region8
  $region5: #{unet_forward.29} parent=0 // loop_body
    %s14 = ssub.s32 %s9, 1
    %s15 = ssub.s32 %s9, 2
    %s16 = sadd.s32 %s9, 1
    %s17 = ssub.s32 %s9, %s16
    %p18 = scmp.eq.s32.totalorder %s17, 0
    %s20 = sadd.s32 %s19, 1
    %s21 = scalar_select %p18, %s19, %s20
    %p24 = pneg %p18
    %p25 = scmp.eq.s32.totalorder %s9, 1
    %p26 = por %p24, %p25
    %p27 = scmp.ne.s32.totalorder %s19, %s22
    %p28 = scmp.eq.s32.totalorder %s9, 0
    %p29 = por %p27, %p28
    %p30 = scmp.ne.s32.totalorder %s19, %s22
    %p31 = scmp.eq.s32.totalorder %s14, 1
    %p32 = por %p30, %p31
    %p33 = scmp.ne.s32.totalorder %s22, %s23
    %p34 = scmp.eq.s32.totalorder %s14, 0
    %p35 = por %p33, %p34
    %p36 = scmp.ne.s32.totalorder %s22, %s23
    %p37 = scmp.eq.s32.totalorder %s15, 1
    %p38 = por %p36, %p37
    %p40 = scmp.ne.s32.totalorder %s23, %s39
    %p41 = scmp.eq.s32.totalorder %s15, 0
    %p42 = por %p40, %p41
    %s44 = sadd.s32 %s43, 1
    %p47 = scmp.eq.s32.totalorder %s9, 1
    %p48 = scmp.ne.s32.totalorder %s43, %s45
    %p49 = scmp.eq.s32.totalorder %s9, 0
    %p50 = por %p48, %p49
    %p51 = scmp.ne.s32.totalorder %s43, %s45
    %p52 = scmp.eq.s32.totalorder %s14, 1
    %p53 = por %p51, %p52
    %p54 = scmp.ne.s32.totalorder %s45, %s46
    %p55 = scmp.eq.s32.totalorder %s14, 0
    %p56 = por %p54, %p55
    %p57 = scmp.ne.s32.totalorder %s45, %s46
    %p58 = scmp.eq.s32.totalorder %s15, 1
    %p59 = por %p57, %p58
    %p61 = scmp.ne.s32.totalorder %s46, %s60
    %p62 = scmp.eq.s32.totalorder %s15, 0
    %p63 = por %p61, %p62
    %s65 = sadd.s32 %s64, 1
    %p68 = scmp.eq.s32.totalorder %s9, 1
    %p69 = scmp.ne.s32.totalorder %s64, %s66
    %p70 = scmp.eq.s32.totalorder %s9, 0
    %p71 = por %p69, %p70
    %p72 = scmp.ne.s32.totalorder %s64, %s66
    %p73 = scmp.eq.s32.totalorder %s14, 1
    %p74 = por %p72, %p73
    %p75 = scmp.ne.s32.totalorder %s66, %s67
    %p76 = scmp.eq.s32.totalorder %s14, 0
    %p77 = por %p75, %p76
    %p78 = scmp.ne.s32.totalorder %s66, %s67
    %p79 = scmp.eq.s32.totalorder %s15, 1
    %p80 = por %p78, %p79
    %p82 = scmp.ne.s32.totalorder %s67, %s81
    %p83 = scmp.eq.s32.totalorder %s15, 0
    %p84 = por %p82, %p83
    %s85 = ssub.s32 %s9, %s16
    %p86 = scmp.eq.s32.totalorder %s85, 0
    %s88 = sadd.s32 %s87, 1
    %s89 = scalar_select %p86, %s87, %s88
    %p92 = pneg %p86
    %p93 = scmp.eq.s32.totalorder %s9, 1
    %p94 = por %p92, %p93
    %p95 = scmp.ne.s32.totalorder %s87, %s90
    %p96 = scmp.eq.s32.totalorder %s9, 0
    %p97 = por %p95, %p96
    %p98 = scmp.ne.s32.totalorder %s87, %s90
    %p99 = scmp.eq.s32.totalorder %s14, 1
    %p100 = por %p98, %p99
    %p101 = scmp.ne.s32.totalorder %s90, %s91
    %p102 = scmp.eq.s32.totalorder %s14, 0
    %p103 = por %p101, %p102
    %p104 = scmp.ne.s32.totalorder %s90, %s91
    %p105 = scmp.eq.s32.totalorder %s15, 1
    %p106 = por %p104, %p105
    %p108 = scmp.ne.s32.totalorder %s91, %s107
    %p109 = scmp.eq.s32.totalorder %s15, 0
    %p110 = por %p108, %p109
    %p111 = scmp.le.s32.totalorder 1, %s9
    %p112 = scmp.lt.s32.totalorder %s9, 3
    %p113 = pnand %p111, %p112
    %p114 = pneg %p113
    // Predicated region
    $region9: #{unet_forward.29} parent=5 // pred_check
      _
    $region10: #{unet_forward.29} parent=5 // pred_check_branch
      %116 = sbr.rel (%p113) target = $region12
    $region11: #{unet_forward.29} parent=5 // pred_region
      %s117 = ssub.s32 %s9, 1
      // Predicated region
      $region13: #{unet_forward.29} parent=11 // pred_check
        %p118 = pneg %p56
      $region14: #{unet_forward.29} parent=11 // pred_check_branch
        %120 = sbr.rel (%p118) target = $region16
      $region15: #{unet_forward.29} parent=11 // pred_region
        _
      $region16: #{unet_forward.29} parent=11 // pred_fallthru
        _
      // Predicated region
      $region17: #{unet_forward.29} parent=11 // pred_check
        %p121 = pneg %p77
      $region18: #{unet_forward.29} parent=11 // pred_check_branch
        %123 = sbr.rel (%p121) target = $region20
      $region19: #{unet_forward.29} parent=11 // pred_region
        _
      $region20: #{unet_forward.29} parent=11 // pred_fallthru
        _
    $region12: #{unet_forward.29} parent=5 // pred_fallthru
      _
    %p124 = scmp.lt.s32.totalorder %s9, 2
    // Predicated region
    $region21: #{unet_forward.29} parent=5 // pred_check
      %p125 = pneg %p124
    $region22: #{unet_forward.29} parent=5 // pred_check_branch
      %127 = sbr.rel (%p125) target = $region24
    $region23: #{unet_forward.29} parent=5 // pred_region
      // Predicated region
      $region25: #{unet_forward.29} parent=23 // pred_check
        %p128 = pneg %p29
      $region26: #{unet_forward.29} parent=23 // pred_check_branch
        %130 = sbr.rel (%p128) target = $region28
      $region27: #{unet_forward.29} parent=23 // pred_region
        %p131 = scmp.lt.s32.totalorder %s9, 1
        %s132 = scalar_select %p131, %s9, 1
        %s133 = smul.addr %s132, 64
        %s134 = smul.addr %s133, 8
        %s135 = scalar_lea.vmem %s0, %s134
      $region28: #{unet_forward.29} parent=23 // pred_fallthru
        _
    $region24: #{unet_forward.29} parent=5 // pred_fallthru
      _
    %p136 = scmp.le.s32.totalorder 1, %s9
    %p137 = scmp.lt.s32.totalorder %s9, 3
    %p138 = pnand %p136, %p137
    %p139 = pneg %p138
    // Predicated region
    $region29: #{unet_forward.29} parent=5 // pred_check
      _
    $region30: #{unet_forward.29} parent=5 // pred_check_branch
      %141 = sbr.rel (%p138) target = $region32
    $region31: #{unet_forward.29} parent=5 // pred_region
      %s142 = ssub.s32 %s9, 1
      %p143 = scmp.lt.s32.totalorder %s14, 1
      %s144 = scalar_select %p143, %s14, 1
      %s145 = smul.addr %s144, 64
      %s146 = smul.addr %s145, 8
      %s147 = scalar_lea.vmem %s0, %s146
      %p148 = pneg %p35
      %p149 = pneg %p32
      %p150 = pneg %p56
      %p151 = pneg %p53
      %p152 = pneg %p77
      %p153 = pneg %p74
      %p154 = pneg %p103
      %p155 = pneg %p100
      %p156 = scmp.lt.s32.totalorder %s14, 1
      %s157 = scalar_select %p156, %s14, 1
      %s158 = smul.addr %s157, 32
      %s159 = smul.addr %s158, 8
      %s160 = scalar_lea.vmem %s3, %s159
      %p161 = scmp.lt.s32.totalorder %s14, 1
      %s162 = scalar_select %p161, %s14, 1
      %s163 = smul.addr %s162, 64
      %s164 = smul.addr %s163, 8
      %s165 = scalar_lea.vmem %s0, %s164
      %p166 = scmp.lt.s32.totalorder %s14, 1
      %s167 = scalar_select %p166, %s14, 1
      %s168 = smul.addr %s167, 32
      %s169 = smul.addr %s168, 8
      %s170 = scalar_lea.vmem %s3, %s169
      %v171 = vld [vmem:[%s165] sm:$0xff]
      %v172 = vld [vmem:[%s165 + $0x8] sm:$0xff]
      %v173 = vld [vmem:[%s165 + $0x10] sm:$0xff]
      %v174 = vld [vmem:[%s165 + $0x18] sm:$0xff]
      %v175 = vld [vmem:[%s165 + $0x20] sm:$0xff]
      %v176 = vld [vmem:[%s165 + $0x28] sm:$0xff]
      %v177 = vld [vmem:[%s165 + $0x30] sm:$0xff]
      %v178 = vld [vmem:[%s165 + $0x38] sm:$0xff]
      %v179 = vld [vmem:[%s165 + $0x40] sm:$0xff]
      %v180 = vld [vmem:[%s165 + $0x48] sm:$0xff]
      %v181 = vld [vmem:[%s165 + $0x50] sm:$0xff]
      %v182 = vld [vmem:[%s165 + $0x58] sm:$0xff]
      %v183 = vld [vmem:[%s165 + $0x60] sm:$0xff]
      %v184 = vld [vmem:[%s165 + $0x68] sm:$0xff]
      %v185 = vld [vmem:[%s165 + $0x70] sm:$0xff]
      %v186 = vld [vmem:[%s165 + $0x78] sm:$0xff]
      %v187 = vld [vmem:[%s165 + $0x80] sm:$0xff]
      %v188 = vld [vmem:[%s165 + $0x88] sm:$0xff]
      %v189 = vld [vmem:[%s165 + $0x90] sm:$0xff]
      %v190 = vld [vmem:[%s165 + $0x98] sm:$0xff]
      %v191 = vld [vmem:[%s165 + $0xa0] sm:$0xff]
      %v192 = vld [vmem:[%s165 + $0xa8] sm:$0xff]
      %v193 = vld [vmem:[%s165 + $0xb0] sm:$0xff]
      %v194 = vld [vmem:[%s165 + $0xb8] sm:$0xff]
      %v195 = vld [vmem:[%s165 + $0xc0] sm:$0xff]
      %v196 = vld [vmem:[%s165 + $0xc8] sm:$0xff]
      %v197 = vld [vmem:[%s165 + $0xd0] sm:$0xff]
      %v198 = vld [vmem:[%s165 + $0xd8] sm:$0xff]
      %v199 = vld [vmem:[%s165 + $0xe0] sm:$0xff]
      %v200 = vld [vmem:[%s165 + $0xe8] sm:$0xff]
      %v201 = vld [vmem:[%s165 + $0xf0] sm:$0xff]
      %v202 = vld [vmem:[%s165 + $0xf8] sm:$0xff]
      %v203 = vld [vmem:[%s165 + $0x100] sm:$0xff]
      %v204 = vld [vmem:[%s165 + $0x108] sm:$0xff]
      %v205 = vld [vmem:[%s165 + $0x110] sm:$0xff]
      %v206 = vld [vmem:[%s165 + $0x118] sm:$0xff]
      %v207 = vld [vmem:[%s165 + $0x120] sm:$0xff]
      %v208 = vld [vmem:[%s165 + $0x128] sm:$0xff]
      %v209 = vld [vmem:[%s165 + $0x130] sm:$0xff]
      %v210 = vld [vmem:[%s165 + $0x138] sm:$0xff]
      %v211 = vld [vmem:[%s165 + $0x140] sm:$0xff]
      %v212 = vld [vmem:[%s165 + $0x148] sm:$0xff]
      %v213 = vld [vmem:[%s165 + $0x150] sm:$0xff]
      %v214 = vld [vmem:[%s165 + $0x158] sm:$0xff]
      %v215 = vld [vmem:[%s165 + $0x160] sm:$0xff]
      %v216 = vld [vmem:[%s165 + $0x168] sm:$0xff]
      %v217 = vld [vmem:[%s165 + $0x170] sm:$0xff]
      %v218 = vld [vmem:[%s165 + $0x178] sm:$0xff]
      %v219 = vld [vmem:[%s165 + $0x180] sm:$0xff]
      %v220 = vld [vmem:[%s165 + $0x188] sm:$0xff]
      %v221 = vld [vmem:[%s165 + $0x190] sm:$0xff]
      %v222 = vld [vmem:[%s165 + $0x198] sm:$0xff]
      %v223 = vld [vmem:[%s165 + $0x1a0] sm:$0xff]
      %v224 = vld [vmem:[%s165 + $0x1a8] sm:$0xff]
      %v225 = vld [vmem:[%s165 + $0x1b0] sm:$0xff]
      %v226 = vld [vmem:[%s165 + $0x1b8] sm:$0xff]
      %v227 = vld [vmem:[%s165 + $0x1c0] sm:$0xff]
      %v228 = vld [vmem:[%s165 + $0x1c8] sm:$0xff]
      %v229 = vld [vmem:[%s165 + $0x1d0] sm:$0xff]
      %v230 = vld [vmem:[%s165 + $0x1d8] sm:$0xff]
      %v231 = vld [vmem:[%s165 + $0x1e0] sm:$0xff]
      %v232 = vld [vmem:[%s165 + $0x1e8] sm:$0xff]
      %v233 = vld [vmem:[%s165 + $0x1f0] sm:$0xff]
      %v234 = vld [vmem:[%s165 + $0x1f8] sm:$0xff]
      %v235 = vld [vmem:[%s1] sm:$0xff]
      %v236 = vld [vmem:[%s1 + $0x8] sm:$0xff]
      %v237 = vld [vmem:[%s1 + $0x10] sm:$0xff]
      %v238 = vld [vmem:[%s1 + $0x18] sm:$0xff]
      %v239 = vld [vmem:[%s1 + $0x20] sm:$0xff]
      %v240 = vld [vmem:[%s1 + $0x28] sm:$0xff]
      %v241 = vld [vmem:[%s1 + $0x30] sm:$0xff]
      %v242 = vld [vmem:[%s1 + $0x38] sm:$0xff]
      %v243 = vld [vmem:[%s1 + $0x40] sm:$0xff]
      %v244 = vld [vmem:[%s1 + $0x48] sm:$0xff]
      %v245 = vld [vmem:[%s1 + $0x50] sm:$0xff]
      %v246 = vld [vmem:[%s1 + $0x58] sm:$0xff]
      %v247 = vld [vmem:[%s1 + $0x60] sm:$0xff]
      %v248 = vld [vmem:[%s1 + $0x68] sm:$0xff]
      %v249 = vld [vmem:[%s1 + $0x70] sm:$0xff]
      %v250 = vld [vmem:[%s1 + $0x78] sm:$0xff]
      %v251 = vld [vmem:[%s1 + $0x80] sm:$0xff]
      %v252 = vld [vmem:[%s1 + $0x88] sm:$0xff]
      %v253 = vld [vmem:[%s2] sm:$0x1]
      %v255 = vlaneseq
      %v256 = vshrl.u32 %v255, 7
      %v257 = vsub.s32 0, %v256
      %v258 = vrot.slane %v253, %v257
      %vm260 = vcmask 130048
      %v262 = vsel %vm260, %v172, 0
      %v265 = vsel %vm260, %v174, 0
      %v268 = vsel %vm260, %v176, 0
      %v271 = vsel %vm260, %v178, 0
      %v274 = vsel %vm260, %v180, 0
      %v277 = vsel %vm260, %v182, 0
      %v280 = vsel %vm260, %v184, 0
      %v283 = vsel %vm260, %v186, 0
      %v286 = vsel %vm260, %v188, 0
      %v289 = vsel %vm260, %v190, 0
      %v292 = vsel %vm260, %v192, 0
      %v295 = vsel %vm260, %v194, 0
      %v298 = vsel %vm260, %v196, 0
      %v301 = vsel %vm260, %v198, 0
      %v304 = vsel %vm260, %v200, 0
      %v307 = vsel %vm260, %v202, 0
      %v310 = vsel %vm260, %v204, 0
      %v313 = vsel %vm260, %v206, 0
      %v316 = vsel %vm260, %v208, 0
      %v319 = vsel %vm260, %v210, 0
      %v322 = vsel %vm260, %v212, 0
      %v325 = vsel %vm260, %v214, 0
      %v328 = vsel %vm260, %v216, 0
      %v331 = vsel %vm260, %v218, 0
      %v334 = vsel %vm260, %v220, 0
      %v337 = vsel %vm260, %v222, 0
      %v340 = vsel %vm260, %v224, 0
      %v343 = vsel %vm260, %v226, 0
      %v346 = vsel %vm260, %v228, 0
      %v349 = vsel %vm260, %v230, 0
      %v352 = vsel %vm260, %v232, 0
      %v355 = vsel %vm260, %v234, 0
      %357 = vmatprep.subr.mxu0 0.0
      %358 = vmatpush1.msra.mxu0 %v235
      %359 = vmatprep.subr.mxu0 0.0
      %360 = vmatpush1.msra.mxu0 %v236
      %361 = vmatprep.subr.mxu0 0.0
      %362 = vmatpush1.msra.mxu0 %v237
      %363 = vmatprep.subr.mxu0 0.0
      %364 = vmatpush1.msra.mxu0 %v238
      %365 = vmatprep.subr.mxu0 0.0
      %366 = vmatpush1.msra.mxu0 %v239
      %367 = vmatprep.subr.mxu0 0.0
      %368 = vmatpush1.msra.mxu0 %v240
      %369 = vmatprep.subr.mxu0 0.0
      %370 = vmatpush1.msra.mxu0 %v241
      %371 = vmatprep.subr.mxu0 0.0
      %372 = vmatpush1.msra.mxu0 %v242
      %373 = vmatprep.subr.mxu0 0.0
      %374 = vmatpush1.msra.mxu0 %v243
      %375 = vmatprep.subr.mxu0 0.0
      %376 = vmatpush1.msra.mxu0 %v244
      %377 = vmatprep.subr.mxu0 0.0
      %378 = vmatpush1.msra.mxu0 %v245
      %379 = vmatprep.subr.mxu0 0.0
      %380 = vmatpush1.msra.mxu0 %v246
      %381 = vmatprep.subr.mxu0 0.0
      %382 = vmatpush1.msra.mxu0 %v247
      %383 = vmatprep.subr.mxu0 0.0
      %384 = vmatpush1.msra.mxu0 %v248
      %385 = vmatprep.subr.mxu0 0.0
      %386 = vmatpush1.msra.mxu0 %v249
      %387 = vmatprep.subr.mxu0 0.0
      %388 = vmatpush1.msra.mxu0 %v250
      %389 = vmatprep.subr.mxu0 0.0
      %390 = vmatpush1.msra.mxu0 %v251
      %391 = vmatprep.subr.mxu0 0.0
      %392 = vmatpush1.msra.mxu0 %v252
      %393 = vmatprep.subr.mxu0 0.0
      %394 = vmatpush1.msra.mxu0 0.0
      %395 = vmatprep.subr.mxu0 0.0
      %396 = vmatpush1.msra.mxu0 0.0
      %397 = vmatprep.subr.mxu0 0.0
      %398 = vmatpush1.msra.mxu0 0.0
      %399 = vmatprep.subr.mxu0 0.0
      %400 = vmatpush1.msra.mxu0 0.0
      %401 = vmatprep.subr.mxu0 0.0
      %402 = vmatpush1.msra.mxu0 0.0
      %403 = vmatprep.subr.mxu0 0.0
      %404 = vmatpush1.msra.mxu0 0.0
      %405 = vmatprep.subr.mxu0 0.0
      %406 = vmatpush1.msra.mxu0 0.0
      %407 = vmatprep.subr.mxu0 0.0
      %408 = vmatpush1.msra.mxu0 0.0
      %409 = vmatprep.subr.mxu0 0.0
      %410 = vmatpush1.msra.mxu0 0.0
      %411 = vmatprep.subr.mxu0 0.0
      %412 = vmatpush1.msra.mxu0 0.0
      %413 = vmatprep.subr.mxu0 0.0
      %414 = vmatpush1.msra.mxu0 0.0
      %415 = vmatprep.subr.mxu0 0.0
      %416 = vmatpush1.msra.mxu0 0.0
      %417 = vmatprep.subr.mxu0 0.0
      %418 = vmatpush1.msra.mxu0 0.0
      %419 = vmatprep.subr.mxu0 0.0
      %420 = vmatpush1.msra.mxu0 0.0
      %421 = vmatprep.mubr.f32.mxu0 %v262
      %422 = vmatmul.mubr.f32.gmra.mrb[0].mxu0 %v171
      %v423 = vpop.f32.mrb[0].mxu0
      %v424 = vadd.f32 %v258, %v423
      %v425 = vpop.f32.mrb[0].mxu0
      %426 = vmatprep.mubr.f32.mxu0 %v265
      %427 = vmatmul.mubr.f32.gmra.mrb[0].mxu0 %v173
      %v428 = vpop.f32.mrb[0].mxu0
      %v429 = vadd.f32 %v258, %v428
      %v430 = vpop.f32.mrb[0].mxu0
      %431 = vmatprep.mubr.f32.mxu0 %v268
      %432 = vmatmul.mubr.f32.gmra.mrb[0].mxu0 %v175
      %v433 = vpop.f32.mrb[0].mxu0
      %v434 = vadd.f32 %v258, %v433
      %v435 = vpop.f32.mrb[0].mxu0
      %436 = vmatprep.mubr.f32.mxu0 %v271
      %437 = vmatmul.mubr.f32.gmra.mrb[0].mxu0 %v177
      %v438 = vpop.f32.mrb[0].mxu0
      %v439 = vadd.f32 %v258, %v438
      %v440 = vpop.f32.mrb[0].mxu0
      %441 = vmatprep.mubr.f32.mxu0 %v274
      %442 = vmatmul.mubr.f32.gmra.mrb[0].mxu0 %v179
      %v443 = vpop.f32.mrb[0].mxu0
      %v444 = vadd.f32 %v258, %v443
      %v445 = vpop.f32.mrb[0].mxu0
      %446 = vmatprep.mubr.f32.mxu0 %v277
      %447 = vmatmul.mubr.f32.gmra.mrb[0].mxu0 %v181
      %v448 = vpop.f32.mrb[0].mxu0
      %v449 = vadd.f32 %v258, %v448
      %v450 = vpop.f32.mrb[0].mxu0
      %451 = vmatprep.mubr.f32.mxu0 %v280
      %452 = vmatmul.mubr.f32.gmra.mrb[0].mxu0 %v183
      %v453 = vpop.f32.mrb[0].mxu0
      %v454 = vadd.f32 %v258, %v453
      %v455 = vpop.f32.mrb[0].mxu0
      %456 = vmatprep.mubr.f32.mxu0 %v283
      %457 = vmatmul.mubr.f32.gmra.mrb[0].mxu0 %v185
      %v458 = vpop.f32.mrb[0].mxu0
      %v459 = vadd.f32 %v258, %v458
      %v460 = vpop.f32.mrb[0].mxu0
      %461 = vmatprep.mubr.f32.mxu0 %v286
      %462 = vmatmul.mubr.f32.gmra.mrb[0].mxu0 %v187
      %v463 = vpop.f32.mrb[0].mxu0
      %v464 = vadd.f32 %v258, %v463
      %v465 = vpop.f32.mrb[0].mxu0
      %466 = vmatprep.mubr.f32.mxu0 %v289
      %467 = vmatmul.mubr.f32.gmra.mrb[0].mxu0 %v189
      %v468 = vpop.f32.mrb[0].mxu0
      %v469 = vadd.f32 %v258, %v468
      %v470 = vpop.f32.mrb[0].mxu0
      %471 = vmatprep.mubr.f32.mxu0 %v292
      %472 = vmatmul.mubr.f32.gmra.mrb[0].mxu0 %v191
      %v473 = vpop.f32.mrb[0].mxu0
      %v474 = vadd.f32 %v258, %v473
      %v475 = vpop.f32.mrb[0].mxu0
      %476 = vmatprep.mubr.f32.mxu0 %v295
      %477 = vmatmul.mubr.f32.gmra.mrb[0].mxu0 %v193
      %v478 = vpop.f32.mrb[0].mxu0
      %v479 = vadd.f32 %v258, %v478
      %v480 = vpop.f32.mrb[0].mxu0
      %481 = vmatprep.mubr.f32.mxu0 %v298
      %482 = vmatmul.mubr.f32.gmra.mrb[0].mxu0 %v195
      %v483 = vpop.f32.mrb[0].mxu0
      %v484 = vadd.f32 %v258, %v483
      %v485 = vpop.f32.mrb[0].mxu0
      %486 = vmatprep.mubr.f32.mxu0 %v301
      %487 = vmatmul.mubr.f32.gmra.mrb[0].mxu0 %v197
      %v488 = vpop.f32.mrb[0].mxu0
      %v489 = vadd.f32 %v258, %v488
      %v490 = vpop.f32.mrb[0].mxu0
      %491 = vmatprep.mubr.f32.mxu0 %v304
      %492 = vmatmul.mubr.f32.gmra.mrb[0].mxu0 %v199
      %v493 = vpop.f32.mrb[0].mxu0
      %v494 = vadd.f32 %v258, %v493
      %v495 = vpop.f32.mrb[0].mxu0
      %496 = vmatprep.mubr.f32.mxu0 %v307
      %497 = vmatmul.mubr.f32.gmra.mrb[0].mxu0 %v201
      %v498 = vpop.f32.mrb[0].mxu0
      %v499 = vadd.f32 %v258, %v498
      %v500 = vpop.f32.mrb[0].mxu0
      %501 = vmatprep.mubr.f32.mxu0 %v310
      %502 = vmatmul.mubr.f32.gmra.mrb[0].mxu0 %v203
      %v503 = vpop.f32.mrb[0].mxu0
      %v504 = vadd.f32 %v258, %v503
      %v505 = vpop.f32.mrb[0].mxu0
      %506 = vmatprep.mubr.f32.mxu0 %v313
      %507 = vmatmul.mubr.f32.gmra.mrb[0].mxu0 %v205
      %v508 = vpop.f32.mrb[0].mxu0
      %v509 = vadd.f32 %v258, %v508
      %v510 = vpop.f32.mrb[0].mxu0
      %511 = vmatprep.mubr.f32.mxu0 %v316
      %512 = vmatmul.mubr.f32.gmra.mrb[0].mxu0 %v207
      %v513 = vpop.f32.mrb[0].mxu0
      %v514 = vadd.f32 %v258, %v513
      %v515 = vpop.f32.mrb[0].mxu0
      %516 = vmatprep.mubr.f32.mxu0 %v319
      %517 = vmatmul.mubr.f32.gmra.mrb[0].mxu0 %v209
      %v518 = vpop.f32.mrb[0].mxu0
      %v519 = vadd.f32 %v258, %v518
      %v520 = vpop.f32.mrb[0].mxu0
      %521 = vmatprep.mubr.f32.mxu0 %v322
      %522 = vmatmul.mubr.f32.gmra.mrb[0].mxu0 %v211
      %v523 = vpop.f32.mrb[0].mxu0
      %v524 = vadd.f32 %v258, %v523
      %v525 = vpop.f32.mrb[0].mxu0
      %526 = vmatprep.mubr.f32.mxu0 %v325
      %527 = vmatmul.mubr.f32.gmra.mrb[0].mxu0 %v213
      %v528 = vpop.f32.mrb[0].mxu0
      %v529 = vadd.f32 %v258, %v528
      %v530 = vpop.f32.mrb[0].mxu0
      %531 = vmatprep.mubr.f32.mxu0 %v328
      %532 = vmatmul.mubr.f32.gmra.mrb[0].mxu0 %v215
      %v533 = vpop.f32.mrb[0].mxu0
      %v534 = vadd.f32 %v258, %v533
      %v535 = vpop.f32.mrb[0].mxu0
      %536 = vmatprep.mubr.f32.mxu0 %v331
      %537 = vmatmul.mubr.f32.gmra.mrb[0].mxu0 %v217
      %v538 = vpop.f32.mrb[0].mxu0
      %v539 = vadd.f32 %v258, %v538
      %v540 = vpop.f32.mrb[0].mxu0
      %541 = vmatprep.mubr.f32.mxu0 %v334
      %542 = vmatmul.mubr.f32.gmra.mrb[0].mxu0 %v219
      %v543 = vpop.f32.mrb[0].mxu0
      %v544 = vadd.f32 %v258, %v543
      %v545 = vpop.f32.mrb[0].mxu0
      %546 = vmatprep.mubr.f32.mxu0 %v337
      %547 = vmatmul.mubr.f32.gmra.mrb[0].mxu0 %v221
      %v548 = vpop.f32.mrb[0].mxu0
      %v549 = vadd.f32 %v258, %v548
      %v550 = vpop.f32.mrb[0].mxu0
      %551 = vmatprep.mubr.f32.mxu0 %v340
      %552 = vmatmul.mubr.f32.gmra.mrb[0].mxu0 %v223
      %v553 = vpop.f32.mrb[0].mxu0
      %v554 = vadd.f32 %v258, %v553
      %v555 = vpop.f32.mrb[0].mxu0
      %556 = vmatprep.mubr.f32.mxu0 %v343
      %557 = vmatmul.mubr.f32.gmra.mrb[0].mxu0 %v225
      %v558 = vpop.f32.mrb[0].mxu0
      %v559 = vadd.f32 %v258, %v558
      %v560 = vpop.f32.mrb[0].mxu0
      %561 = vmatprep.mubr.f32.mxu0 %v346
      %562 = vmatmul.mubr.f32.gmra.mrb[0].mxu0 %v227
      %v563 = vpop.f32.mrb[0].mxu0
      %v564 = vadd.f32 %v258, %v563
      %v565 = vpop.f32.mrb[0].mxu0
      %566 = vmatprep.mubr.f32.mxu0 %v349
      %567 = vmatmul.mubr.f32.gmra.mrb[0].mxu0 %v229
      %v568 = vpop.f32.mrb[0].mxu0
      %v569 = vadd.f32 %v258, %v568
      %v570 = vpop.f32.mrb[0].mxu0
      %571 = vmatprep.mubr.f32.mxu0 %v352
      %572 = vmatmul.mubr.f32.gmra.mrb[0].mxu0 %v231
      %v573 = vpop.f32.mrb[0].mxu0
      %v574 = vadd.f32 %v258, %v573
      %v575 = vpop.f32.mrb[0].mxu0
      %576 = vmatprep.mubr.f32.mxu0 %v355
      %577 = vmatmul.mubr.f32.gmra.mrb[0].mxu0 %v233
      %v578 = vpop.f32.mrb[0].mxu0
      %v579 = vadd.f32 %v258, %v578
      %v580 = vpop.f32.mrb[0].mxu0
      %581 = vdwg.mxu0
      %vm582 = vcmask 23552
      %583 = vst.msk [vmem:[%s170] sm:$0xff] %vm582, %v424
      %584 = vst.msk [vmem:[%s170 + $0x8] sm:$0xff] %vm582, %v429
      %585 = vst.msk [vmem:[%s170 + $0x10] sm:$0xff] %vm582, %v434
      %586 = vst.msk [vmem:[%s170 + $0x18] sm:$0xff] %vm582, %v439
      %587 = vst.msk [vmem:[%s170 + $0x20] sm:$0xff] %vm582, %v444
      %588 = vst.msk [vmem:[%s170 + $0x28] sm:$0xff] %vm582, %v449
      %589 = vst.msk [vmem:[%s170 + $0x30] sm:$0xff] %vm582, %v454
      %590 = vst.msk [vmem:[%s170 + $0x38] sm:$0xff] %vm582, %v459
      %591 = vst.msk [vmem:[%s170 + $0x40] sm:$0xff] %vm582, %v464
      %592 = vst.msk [vmem:[%s170 + $0x48] sm:$0xff] %vm582, %v469
      %593 = vst.msk [vmem:[%s170 + $0x50] sm:$0xff] %vm582, %v474
      %594 = vst.msk [vmem:[%s170 + $0x58] sm:$0xff] %vm582, %v479
      %595 = vst.msk [vmem:[%s170 + $0x60] sm:$0xff] %vm582, %v484
      %596 = vst.msk [vmem:[%s170 + $0x68] sm:$0xff] %vm582, %v489
      %597 = vst.msk [vmem:[%s170 + $0x70] sm:$0xff] %vm582, %v494
      %598 = vst.msk [vmem:[%s170 + $0x78] sm:$0xff] %vm582, %v499
      %599 = vst.msk [vmem:[%s170 + $0x80] sm:$0xff] %vm582, %v504
      %600 = vst.msk [vmem:[%s170 + $0x88] sm:$0xff] %vm582, %v509
      %601 = vst.msk [vmem:[%s170 + $0x90] sm:$0xff] %vm582, %v514
      %602 = vst.msk [vmem:[%s170 + $0x98] sm:$0xff] %vm582, %v519
      %603 = vst.msk [vmem:[%s170 + $0xa0] sm:$0xff] %vm582, %v524
      %604 = vst.msk [vmem:[%s170 + $0xa8] sm:$0xff] %vm582, %v529
      %605 = vst.msk [vmem:[%s170 + $0xb0] sm:$0xff] %vm582, %v534
      %606 = vst.msk [vmem:[%s170 + $0xb8] sm:$0xff] %vm582, %v539
      %607 = vst.msk [vmem:[%s170 + $0xc0] sm:$0xff] %vm582, %v544
      %608 = vst.msk [vmem:[%s170 + $0xc8] sm:$0xff] %vm582, %v549
      %609 = vst.msk [vmem:[%s170 + $0xd0] sm:$0xff] %vm582, %v554
      %610 = vst.msk [vmem:[%s170 + $0xd8] sm:$0xff] %vm582, %v559
      %611 = vst.msk [vmem:[%s170 + $0xe0] sm:$0xff] %vm582, %v564
      %612 = vst.msk [vmem:[%s170 + $0xe8] sm:$0xff] %vm582, %v569
      %613 = vst.msk [vmem:[%s170 + $0xf0] sm:$0xff] %vm582, %v574
      %614 = vst.msk [vmem:[%s170 + $0xf8] sm:$0xff] %vm582, %v579
      %p615 = scmp.lt.s32.totalorder %s14, 1
      %s616 = scalar_select %p615, %s14, 1
      %s617 = smul.addr %s616, 32
      %s618 = smul.addr %s617, 8
      %s619 = scalar_lea.vmem %s3, %s618
      // Predicated region
      $region33: #{unet_forward.29} parent=31 // pred_check
        %p620 = pneg %p100
      $region34: #{unet_forward.29} parent=31 // pred_check_branch
        %622 = sbr.rel (%p620) target = $region36
      $region35: #{unet_forward.29} parent=31 // pred_region
        _
      $region36: #{unet_forward.29} parent=31 // pred_fallthru
        _
    $region32: #{unet_forward.29} parent=5 // pred_fallthru
      _
    %p623 = scmp.le.s32.totalorder 2, %s9
    // Predicated region
    $region37: #{unet_forward.29} parent=5 // pred_check
      %p624 = pneg %p623
    $region38: #{unet_forward.29} parent=5 // pred_check_branch
      %626 = sbr.rel (%p624) target = $region40
    $region39: #{unet_forward.29} parent=5 // pred_region
      %s627 = ssub.s32 %s9, 2
      // Predicated region
      $region41: #{unet_forward.29} parent=39 // pred_check
        %p628 = pneg %p106
      $region42: #{unet_forward.29} parent=39 // pred_check_branch
        %630 = sbr.rel (%p628) target = $region44
      $region43: #{unet_forward.29} parent=39 // pred_region
        %p631 = scmp.lt.s32.totalorder %s15, 1
        %s632 = scalar_select %p631, %s15, 1
        %s633 = smul.addr %s632, 32
        %s634 = smul.addr %s633, 8
        %s635 = scalar_lea.vmem %s3, %s634
      $region44: #{unet_forward.29} parent=39 // pred_fallthru
        _
    $region40: #{unet_forward.29} parent=5 // pred_fallthru
      _
  $region6: #{unet_forward.29} parent=0 // loop_footer
    %s13 = sadd.s32 1, %s9
  $region7: #{unet_forward.29} parent=0 // loop_footer_branch
    %8 = sbr.rel target = $region3
  $region8: #{unet_forward.29} parent=0 // loop_exit
    _

</llo_original>
